<compile_context>
chip_gen: v7x
topology: tpu7x:2x2x1
jax: 0.10.0
libtpu: 0.0.40
codegen_flags: <defaults>
</compile_context>

<pallas_src>
import functools

import numpy as np
import jax
import jax.numpy as jnp
from jax.experimental import pallas as pl
from jax.experimental.pallas import tpu as pltpu  # noqa: F401  (defaults suffice at these sizes)

CNN_SIZE = 16            # stand-in for the 240x240 resizeCNN target of the original module
FEAT_C = 16              # feature-extraction output channels (stand-in for ResNet-101)
GRID = CNN_SIZE // 2     # 8x8 feature grid (3x3 stride-2 conv)
FEAT_HW = GRID * GRID    # 64 = correlation channels
FE_K = 32                # 3*3*3 = 27 im2col columns padded to 32
REG1_C = 32
REG2_C = 16
REG_HW = 4 * 4           # 8 -> 6 -> 4 spatial after two valid 3x3 convs
THETA_PAD = 32           # theta (6 / 18) padded to one 32-lane row
PAD_ROWS = 24            # row padding so every 3x3 tap is a contiguous row-shifted slice

_MEAN = jnp.array([0.485, 0.456, 0.406], jnp.float32).reshape(1, 3, 1, 1)
_STD = jnp.array([0.229, 0.224, 0.225], jnp.float32).reshape(1, 3, 1, 1)


# ----------------------------------------------------------------------------
# In-kernel helpers (traced inside the fused Pallas kernels, operate on values)
# ----------------------------------------------------------------------------
def _extract_features(patches_b16, fe_w, fe_b):
    """Fused conv(im2col matmul) + bias + ReLU + featureL2Norm.  -> (64, 16) f32."""
    f = jnp.dot(patches_b16, fe_w, preferred_element_type=jnp.float32)
    f = jnp.maximum(f + fe_b, 0.0)
    return f * jax.lax.rsqrt(jnp.sum(f * f, axis=-1, keepdims=True) + 1e-6)


def _conv3x3_full(x_full, w, b):
    """Valid 3x3 conv over the flat 8x8 grid as ONE concatenated-K MXU dot.

    x_full: (64, Cin) f32 rows ordered y*8+x.  Output (64, Cout) f32; only rows
    with x,y inside the valid (8-2)x(8-2) window are meaningful (extra rows are
    finite garbage that later stages never read).
    """
    cin = x_full.shape[1]
    xp = jnp.concatenate(
        [x_full, jnp.zeros((PAD_ROWS, cin), jnp.float32)], axis=0)      # (88, Cin)
    taps = [xp[i * GRID + j:i * GRID + j + FEAT_HW, :]
            for i in range(3) for j in range(3)]                        # 9 x (64, Cin)
    xc = jnp.concatenate(taps, axis=1).astype(jnp.bfloat16)             # (64, 9*Cin)
    y = jnp.dot(xc, w, preferred_element_type=jnp.float32) + b
    return jnp.maximum(y, 0.0)


def _regression_head(f_src, f_tgt, r1_w, r1_b, r2_w, r2_b, fc_w, fc_b):
    """FeatureCorrelation (+ReLU+L2norm) -> two reg convs -> FC, all in VMEM."""
    # corr[b_pos, a_pos] = <f_tgt[b_pos], f_src[a_pos]>  (rows = spatial, lanes = channels)
    corr = jax.lax.dot_general(
        f_tgt.astype(jnp.bfloat16), f_src.astype(jnp.bfloat16),
        dimension_numbers=(((1,), (1,)), ((), ())),
        preferred_element_type=jnp.float32)                             # (64, 64)
    corr = jnp.maximum(corr, 0.0)
    corr = corr * jax.lax.rsqrt(jnp.sum(corr * corr, axis=-1, keepdims=True) + 1e-6)

    y1 = _conv3x3_full(corr, r1_w, r1_b)                                # (64, 32) valid 6x6
    y2 = _conv3x3_full(y1, r2_w, r2_b)                                  # (64, 16) valid 4x4

    # FC: gather the 4x4 valid rows into one lane-dense (1, 256) row.  FC weights
    # were host-permuted to this (pos-major, channel-minor) order.
    rows = [y2[oy * GRID + ox:oy * GRID + ox + 1, :]
            for oy in range(4) for ox in range(4)]                      # 16 x (1, 16)
    xrow = jnp.concatenate(rows, axis=1).astype(jnp.bfloat16)           # (1, 256)
    return jnp.dot(xrow, fc_w, preferred_element_type=jnp.float32) + fc_b  # (1, 32)


# ----------------------------------------------------------------------------
# Fused CNNGeometric kernels
# ----------------------------------------------------------------------------
def _geo_pass2_kernel(patches_ref, few_ref, feb_ref, r1w_ref, r1b_ref,
                      r2w_ref, r2b_ref, fcw_ref, fcb_ref,
                      theta_ref, ftgt_ref):
    """Both CNNGeometric heads (aff + tps) on the (src, tgt) pair in ONE launch.

    patches_ref : (2, 64, 32) f32  im2col of src / tgt images
    *w/*b refs  : per-head stacked weights (leading dim 2), weights in bf16
    theta_ref   : (2, 32) f32  row 0 = theta_aff (6 valid), row 1 = theta_tps (18 valid)
    ftgt_ref    : (64, 16) f32 tps-head target features (reused by the aff->tps pass)
    """
    src_b16 = patches_ref[0].astype(jnp.bfloat16)
    tgt_b16 = patches_ref[1].astype(jnp.bfloat16)
    for h in range(2):                          # static 2-head unroll, no grid
        f_src = _extract_features(src_b16, few_ref[h], feb_ref[h])
        f_tgt = _extract_features(tgt_b16, few_ref[h], feb_ref[h])
        theta = _regression_head(f_src, f_tgt, r1w_ref[h], r1b_ref[h],
                                 r2w_ref[h], r2b_ref[h], fcw_ref[h], fcb_ref[h])
        theta_ref[h:h + 1, :] = theta
        if h == 1:
            ftgt_ref[...] = f_tgt


def _geo_pass1_kernel(patches_ref, ftgt_ref, few_ref, feb_ref, r1w_ref, r1b_ref,
                      r2w_ref, r2b_ref, fcw_ref, fcb_ref, theta_ref):
    """Single-head (tps) pass for (warped_aff, tgt); tgt features are reused."""
    f_src = _extract_features(patches_ref[...].astype(jnp.bfloat16),
                              few_ref[...], feb_ref[...])
    theta = _regression_head(f_src, ftgt_ref[...], r1w_ref[...], r1b_ref[...],
                             r2w_ref[...], r2b_ref[...], fcw_ref[...], fcb_ref[...])
    theta_ref[...] = theta


# ----------------------------------------------------------------------------
# Matmul-form bilinear warp kernel (replaces the gather-based grid_sample)
# ----------------------------------------------------------------------------
def _warp_kernel(coords_ref, img_ref, o_ref, *, h_in, w_in):
    """out[c, p] = sum_q tri(y_p - iy) * tri(x_p - ix) * img[c, iy*w+ix].

    coords_ref: (2, P) f32 pixel-space sample coords (row 0 = x, row 1 = y)
    img_ref   : (C, h_in*w_in) f32
    o_ref     : (C, P) f32   (zeros padding, align_corners=True semantics)
    """
    x = coords_ref[0:1, :]                                          # (1, P)
    y = coords_ref[1:2, :]
    p = x.shape[1]
    ix = jax.lax.broadcasted_iota(jnp.int32, (w_in, p), 0).astype(jnp.float32)
    iy = jax.lax.broadcasted_iota(jnp.int32, (h_in, p), 0).astype(jnp.float32)
    wx = jnp.maximum(1.0 - jnp.abs(ix - x), 0.0)                    # (w_in, P)
    wy = jnp.maximum(1.0 - jnp.abs(iy - y), 0.0)                    # (h_in, P)
    wt = (wy[:, None, :] * wx[None, :, :]).reshape(h_in * w_in, p)  # (HW_in, P)
    o_ref[...] = jnp.dot(img_ref[...], wt, preferred_element_type=jnp.float32)


def warp_bilinear(coords, img_flat):
    c, _ = img_flat.shape
    p = coords.shape[1]
    kern = functools.partial(_warp_kernel, h_in=CNN_SIZE, w_in=CNN_SIZE)
    return pl.pallas_call(
        kern, out_shape=jax.ShapeDtypeStruct((c, p), jnp.float32),
    )(coords.astype(jnp.float32), img_flat.astype(jnp.float32))


# ----------------------------------------------------------------------------
# Host-side glue (plain JAX): im2col, grid generation, separable resize
# ----------------------------------------------------------------------------
def fe_patches(img_nchw):
    """im2col for the 3x3 / stride-2 / pad-1 feature conv: (N,3,16,16) -> (N,64,32)."""
    n = img_nchw.shape[0]
    x = jnp.transpose(img_nchw, (0, 2, 3, 1))                        # (N,16,16,3)
    x = jnp.pad(x, ((0, 0), (1, 1), (1, 1), (0, 0)))                 # (N,18,18,3)
    taps = [x[:, i:i + CNN_SIZE:2, j:j + CNN_SIZE:2, :]
            for i in range(3) for j in range(3)]                     # 9 x (N,8,8,3)
    p = jnp.stack(taps, axis=3).reshape(n, FEAT_HW, 27)
    return jnp.pad(p, ((0, 0), (0, 0), (0, FE_K - 27)))


@functools.lru_cache(maxsize=None)
def _affine_pts(out_h, out_w):
    ys = np.linspace(-1.0, 1.0, out_h)
    xs = np.linspace(-1.0, 1.0, out_w)
    X, Y = np.meshgrid(xs, ys)
    return np.stack([X, Y, np.ones_like(X)], axis=-1).astype(np.float32)


def tps_control_points():
    ax = np.linspace(-1.0, 1.0, 3)
    PX, PY = np.meshgrid(ax, ax)
    return PX.reshape(-1), PY.reshape(-1)


@functools.lru_cache(maxsize=None)
def _tps_constants(out_h, out_w):
    PX, PY = tps_control_points()
    N = 9
    d2 = (PX[:, None] - PX[None, :]) ** 2 + (PY[:, None] - PY[None, :]) ** 2
    K = d2 * np.log(np.where(d2 == 0, 1.0, d2))
    P = np.stack([np.ones(N), PX, PY], axis=1)
    L = np.block([[K, P], [P.T, np.zeros((3, 3))]])
    Li9 = np.linalg.inv(L)[:, :N]
    ys = np.linspace(-1.0, 1.0, out_h)
    xs = np.linspace(-1.0, 1.0, out_w)
    GX, GY = np.meshgrid(xs, ys)
    g2 = (GX[..., None] - PX) ** 2 + (GY[..., None] - PY) ** 2
    U = g2 * np.log(np.where(g2 == 0, 1.0, g2))
    return (Li9.astype(np.float32), GX.astype(np.float32),
            GY.astype(np.float32), U.astype(np.float32))


def affine_grid(theta23, out_h, out_w):
    pts = jnp.asarray(_affine_pts(out_h, out_w))
    return jnp.einsum("hwk,bjk->bhwj", pts, theta23)                 # (B, H, W, 2)


def tps_grid(theta18, out_h, out_w):
    Li9, GX, GY, U = (jnp.asarray(a) for a in _tps_constants(out_h, out_w))
    QX, QY = theta18[:, :9], theta18[:, 9:]
    WAX = QX @ Li9.T
    WAY = QY @ Li9.T
    fx = (WAX[:, 9][:, None, None] + WAX[:, 10][:, None, None] * GX
          + WAX[:, 11][:, None, None] * GY + jnp.einsum("hwn,bn->bhw", U, WAX[:, :9]))
    fy = (WAY[:, 9][:, None, None] + WAY[:, 10][:, None, None] * GX
          + WAY[:, 11][:, None, None] * GY + jnp.einsum("hwn,bn->bhw", U, WAY[:, :9]))
    return jnp.stack([fx, fy], axis=-1)                              # (B, H, W, 2)


def grids_to_coords(grids):
    """Normalized [-1,1] grids -> pixel-space (2, P) coords, batched along P."""
    xs = jnp.concatenate([((g[..., 0] + 1.0) * (CNN_SIZE - 1) * 0.5).reshape(-1)
                          for g in grids])
    ys = jnp.concatenate([((g[..., 1] + 1.0) * (CNN_SIZE - 1) * 0.5).reshape(-1)
                          for g in grids])
    return jnp.stack([xs, ys], axis=0).astype(jnp.float32)


@functools.lru_cache(maxsize=None)
def _interp_matrix(n_out, n_in):
    if n_out == 1:
        coords = np.zeros((1,))
    else:
        coords = np.arange(n_out) * (n_in - 1) / (n_out - 1)
    i = np.arange(n_in)
    return np.maximum(0.0, 1.0 - np.abs(coords[:, None] - i[None, :])).astype(np.float32)


def resize_bilinear(img_nchw, out_h, out_w):
    """Separable matmul-form bilinear resize (align_corners): no gathers."""
    in_h, in_w = img_nchw.shape[2], img_nchw.shape[3]
    Rh = jnp.asarray(_interp_matrix(out_h, in_h))
    Rw = jnp.asarray(_interp_matrix(out_w, in_w))
    return jnp.einsum("oi,ncij,pj->ncop", Rh, img_nchw, Rw)


def preprocess_image(image_hwc):
    img = jnp.transpose(image_hwc, (2, 0, 1))[None].astype(jnp.float32) / 255.0
    img = resize_bilinear(img, CNN_SIZE, CNN_SIZE)
    return (img - _MEAN) / _STD


# ----------------------------------------------------------------------------
# GeoAPI forward
# ----------------------------------------------------------------------------
def geo_api_forward(source_image, target_image, a_image, kp):
    tgt_h, tgt_w = target_image.shape[0], target_image.shape[1]
    src = preprocess_image(source_image)                              # (1, 3, 16, 16)
    tgt = preprocess_image(target_image)
    aim = preprocess_image(a_image)

    # --- aff + tps CNNGeometric passes: ONE fused pallas_call ----------------
    patches = jnp.concatenate([fe_patches(src), fe_patches(tgt)], axis=0)   # (2, 64, 32)
    theta2, f_tgt_tps = pl.pallas_call(
        _geo_pass2_kernel,
        out_shape=(jax.ShapeDtypeStruct((2, THETA_PAD), jnp.float32),
                   jax.ShapeDtypeStruct((FEAT_HW, FEAT_C), jnp.float32)),
    )(patches, kp["fe_w"], kp["fe_b"], kp["r1_w"], kp["r1_b"],
      kp["r2_w"], kp["r2_b"], kp["fc_w"], kp["fc_b"])
    theta_aff = theta2[0:1, :6]
    theta_tps = theta2[1:2, :18]

    # --- warp a_image with the aff and tps grids in ONE matmul-form launch ---
    aim_flat = aim.reshape(3, CNN_SIZE * CNN_SIZE)
    grid_aff = affine_grid(theta_aff.reshape(1, 2, 3), CNN_SIZE, CNN_SIZE)
    grid_tps = tps_grid(theta_tps, CNN_SIZE, CNN_SIZE)
    warped2 = warp_bilinear(grids_to_coords([grid_aff, grid_tps]), aim_flat)  # (3, 512)
    wa_flat = warped2[:, :CNN_SIZE * CNN_SIZE]                        # warped_aff
    wt_flat = warped2[:, CNN_SIZE * CNN_SIZE:]                        # warped_tps

    # --- aff -> tps pass: reuse tps target features, one fused launch --------
    wa_img = wa_flat.reshape(1, 3, CNN_SIZE, CNN_SIZE)
    kpt = {k: v[1] for k, v in kp.items()}                            # tps head slices
    theta_at = pl.pallas_call(
        _geo_pass1_kernel,
        out_shape=jax.ShapeDtypeStruct((1, THETA_PAD), jnp.float32),
    )(fe_patches(wa_img)[0], f_tgt_tps, kpt["fe_w"], kpt["fe_b"], kpt["r1_w"],
      kpt["r1_b"], kpt["r2_w"], kpt["r2_b"], kpt["fc_w"], kpt["fc_b"])[:, :18]

    grid_at = tps_grid(theta_at, CNN_SIZE, CNN_SIZE)
    wat_flat = warp_bilinear(grids_to_coords([grid_at]), wa_flat)     # (3, 256)

    def to_out(flat):
        img = flat.reshape(1, 3, CNN_SIZE, CNN_SIZE)
        img = resize_bilinear(img, tgt_h, tgt_w)
        img = img * _STD + _MEAN
        return jnp.transpose(img[0], (1, 2, 0))                       # CHW -> HWC

    return to_out(wa_flat), to_out(wt_flat), to_out(wat_flat)


# ----------------------------------------------------------------------------
# Parameters: deterministic synthetic stand-in + one-time kernel-layout prep
# ----------------------------------------------------------------------------
def init_cnngeo_params(key, out_dim, feat_c=FEAT_C, corr_c=FEAT_HW):
    ks = jax.random.split(key, 4)
    p = {
        "fe_conv1_w": 0.3 * jax.random.normal(ks[0], (3, 3, 3, feat_c), jnp.float32),
        "fe_conv1_b": jnp.zeros((feat_c,), jnp.float32),
        "reg_conv1_w": 0.1 * jax.random.normal(ks[1], (3, 3, corr_c, REG1_C), jnp.float32),
        "reg_conv1_b": jnp.zeros((REG1_C,), jnp.float32),
        "reg_conv2_w": 0.1 * jax.random.normal(ks[2], (3, 3, REG1_C, REG2_C), jnp.float32),
        "reg_conv2_b": jnp.zeros((REG2_C,), jnp.float32),
        "fc_w": 0.01 * jax.random.normal(ks[3], (REG2_C * REG_HW, out_dim), jnp.float32),
    }
    if out_dim == 6:   # affine: bias = identity transform
        p["fc_b"] = jnp.array([1.0, 0.0, 0.0, 0.0, 1.0, 0.0], jnp.float32)
    else:              # tps: bias = base 3x3 control-point grid (identity TPS)
        PX, PY = tps_control_points()
        p["fc_b"] = jnp.asarray(np.concatenate([PX, PY]), jnp.float32)
    return p


def _prep_head(p):
    """Reshape / permute / pad / bf16-cast one head's weights into kernel layout."""
    out_dim = p["fc_w"].shape[1]
    fe_w = jnp.pad(p["fe_conv1_w"].reshape(27, FEAT_C), ((0, FE_K - 27), (0, 0)))
    # FC: permute PyTorch NCHW flatten (c*HW + q) -> kernel order (q*C + c), pad out_dim.
    # TODO(synk): real CNNGeometric checkpoints also need FeatureCorrelation's
    # transpose(2,3) channel ordering folded into reg_conv1_w; irrelevant here.
    fc_w = (p["fc_w"].reshape(REG2_C, REG_HW, out_dim).transpose(1, 0, 2)
            .reshape(REG_HW * REG2_C, out_dim))
    fc_w = jnp.pad(fc_w, ((0, 0), (0, THETA_PAD - out_dim)))
    fc_b = jnp.pad(p["fc_b"], (0, THETA_PAD - out_dim))
    return dict(
        fe_w=fe_w.astype(jnp.bfloat16),
        fe_b=p["fe_conv1_b"].reshape(1, FEAT_C).astype(jnp.float32),
        r1_w=p["reg_conv1_w"].reshape(9 * FEAT_HW, REG1_C).astype(jnp.bfloat16),
        r1_b=p["reg_conv1_b"].reshape(1, REG1_C).astype(jnp.float32),
        r2_w=p["reg_conv2_w"].reshape(9 * REG1_C, REG2_C).astype(jnp.bfloat16),
        r2_b=p["reg_conv2_b"].reshape(1, REG2_C).astype(jnp.float32),
        fc_w=fc_w.astype(jnp.bfloat16),
        fc_b=fc_b.reshape(1, THETA_PAD).astype(jnp.float32),
    )


def prepare_kernel_params(p_aff, p_tps):
    ha, ht = _prep_head(p_aff), _prep_head(p_tps)
    return {k: jnp.stack([ha[k], ht[k]], axis=0) for k in ha}


if __name__ == "__main__":
    key = jax.random.PRNGKey(0)
    k_src, k_tgt, k_a, k_aff, k_tps = jax.random.split(key, 5)
    H_IMG = W_IMG = 16
    source_image = jax.random.uniform(k_src, (H_IMG, W_IMG, 3), jnp.float32, 0.0, 255.0)
    target_image = jax.random.uniform(k_tgt, (H_IMG, W_IMG, 3), jnp.float32, 0.0, 255.0)
    a_image = jax.random.uniform(k_a, (H_IMG, W_IMG, 3), jnp.float32, 0.0, 255.0)

    p_aff = init_cnngeo_params(k_aff, out_dim=6)
    p_tps = init_cnngeo_params(k_tps, out_dim=18)
    kernel_params = prepare_kernel_params(p_aff, p_tps)   # one-time layout / bf16 prep

    fwd = jax.jit(geo_api_forward)
    aff_np, tps_np, aff_tps_np = fwd(source_image, target_image, a_image, kernel_params)
    jax.block_until_ready((aff_np, tps_np, aff_tps_np))

    assert aff_np.shape == (H_IMG, W_IMG, 3)
    assert tps_np.shape == (H_IMG, W_IMG, 3)
    assert aff_tps_np.shape == (H_IMG, W_IMG, 3)
    assert bool(jnp.all(jnp.isfinite(aff_np)))
    assert bool(jnp.all(jnp.isfinite(tps_np)))
    assert bool(jnp.all(jnp.isfinite(aff_tps_np)))
    print("KERNEL_OK")
</pallas_src>

<mosaic_0001>
module attributes {stable_mosaic.version = 11 : i64} {
  func.func @_geo_pass2_kernel(%arg0: memref<2x64x32xf32, #tpu.memory_space<vmem>>, %arg1: memref<2x32x16xbf16, #tpu.memory_space<vmem>>, %arg2: memref<2x1x16xf32, #tpu.memory_space<vmem>>, %arg3: memref<2x576x32xbf16, #tpu.memory_space<vmem>>, %arg4: memref<2x1x32xf32, #tpu.memory_space<vmem>>, %arg5: memref<2x288x16xbf16, #tpu.memory_space<vmem>>, %arg6: memref<2x1x16xf32, #tpu.memory_space<vmem>>, %arg7: memref<2x256x32xbf16, #tpu.memory_space<vmem>>, %arg8: memref<2x1x32xf32, #tpu.memory_space<vmem>>, %arg9: memref<2x32xf32, #tpu.memory_space<vmem>>, %arg10: memref<64x16xf32, #tpu.memory_space<vmem>>) attributes {dimension_semantics = [], scalar_prefetch = 0 : i64, scratch_operands = 0 : i64, tpu.core_type = #tpu.core_type<tc>} {
    %c0 = arith.constant 0 : index
    %c0_0 = arith.constant 0 : index
    %c0_1 = arith.constant 0 : index
    %0 = vector.load %arg0[%c0, %c0_0, %c0_1] : memref<2x64x32xf32, #tpu.memory_space<vmem>>, vector<1x64x32xf32>
    %1 = vector.shape_cast %0 : vector<1x64x32xf32> to vector<64x32xf32>
    %2 = arith.truncf %1 : vector<64x32xf32> to vector<64x32xbf16>
    %c1 = arith.constant 1 : index
    %c0_2 = arith.constant 0 : index
    %c0_3 = arith.constant 0 : index
    %3 = vector.load %arg0[%c1, %c0_2, %c0_3] : memref<2x64x32xf32, #tpu.memory_space<vmem>>, vector<1x64x32xf32>
    %4 = vector.shape_cast %3 : vector<1x64x32xf32> to vector<64x32xf32>
    %5 = arith.truncf %4 : vector<64x32xf32> to vector<64x32xbf16>
    %c0_4 = arith.constant 0 : index
    %c0_5 = arith.constant 0 : index
    %c0_6 = arith.constant 0 : index
    %6 = vector.load %arg1[%c0_4, %c0_5, %c0_6] : memref<2x32x16xbf16, #tpu.memory_space<vmem>>, vector<1x32x16xbf16>
    %7 = vector.shape_cast %6 : vector<1x32x16xbf16> to vector<32x16xbf16>
    %c0_7 = arith.constant 0 : index
    %c0_8 = arith.constant 0 : index
    %c0_9 = arith.constant 0 : index
    %8 = vector.load %arg2[%c0_7, %c0_8, %c0_9] : memref<2x1x16xf32, #tpu.memory_space<vmem>>, vector<1x1x16xf32>
    %9 = vector.shape_cast %8 : vector<1x1x16xf32> to vector<1x16xf32>
    %cst = arith.constant dense<0.000000e+00> : vector<64x16xf32>
    %10 = tpu.matmul %2, %7, %cst {dimension_numbers = #tpu.dot_dimension_numbers<[1], [0], [0], [1], [0, 0, 1, 1], [], []>} : vector<64x32xbf16>, vector<32x16xbf16>, vector<64x16xf32> -> vector<64x16xf32>
    %11 = vector.broadcast %9 : vector<1x16xf32> to vector<64x16xf32>
    %12 = arith.addf %10, %11 : vector<64x16xf32>
    %cst_10 = arith.constant 0.000000e+00 : f32
    %13 = vector.broadcast %cst_10 : f32 to vector<64x16xf32>
    %14 = arith.maximumf %12, %13 : vector<64x16xf32>
    %15 = arith.mulf %14, %14 : vector<64x16xf32>
    %cst_11 = arith.constant dense<0.000000e+00> : vector<64xf32>
    %16 = vector.multi_reduction <add>, %15, %cst_11 [1] : vector<64x16xf32> to vector<64xf32>
    %17 = vector.shape_cast %16 : vector<64xf32> to vector<64x1xf32>
    %cst_12 = arith.constant 9.99999997E-7 : f32
    %18 = vector.broadcast %cst_12 : f32 to vector<64x1xf32>
    %19 = arith.addf %17, %18 : vector<64x1xf32>
    %20 = math.rsqrt %19 : vector<64x1xf32>
    %21 = vector.broadcast %20 : vector<64x1xf32> to vector<64x16xf32>
    %22 = arith.mulf %14, %21 : vector<64x16xf32>
    %c0_13 = arith.constant 0 : index
    %c0_14 = arith.constant 0 : index
    %c0_15 = arith.constant 0 : index
    %23 = vector.load %arg1[%c0_13, %c0_14, %c0_15] : memref<2x32x16xbf16, #tpu.memory_space<vmem>>, vector<1x32x16xbf16>
    %24 = vector.shape_cast %23 : vector<1x32x16xbf16> to vector<32x16xbf16>
    %c0_16 = arith.constant 0 : index
    %c0_17 = arith.constant 0 : index
    %c0_18 = arith.constant 0 : index
    %25 = vector.load %arg2[%c0_16, %c0_17, %c0_18] : memref<2x1x16xf32, #tpu.memory_space<vmem>>, vector<1x1x16xf32>
    %26 = vector.shape_cast %25 : vector<1x1x16xf32> to vector<1x16xf32>
    %cst_19 = arith.constant dense<0.000000e+00> : vector<64x16xf32>
    %27 = tpu.matmul %5, %24, %cst_19 {dimension_numbers = #tpu.dot_dimension_numbers<[1], [0], [0], [1], [0, 0, 1, 1], [], []>} : vector<64x32xbf16>, vector<32x16xbf16>, vector<64x16xf32> -> vector<64x16xf32>
    %28 = vector.broadcast %26 : vector<1x16xf32> to vector<64x16xf32>
    %29 = arith.addf %27, %28 : vector<64x16xf32>
    %cst_20 = arith.constant 0.000000e+00 : f32
    %30 = vector.broadcast %cst_20 : f32 to vector<64x16xf32>
    %31 = arith.maximumf %29, %30 : vector<64x16xf32>
    %32 = arith.mulf %31, %31 : vector<64x16xf32>
    %cst_21 = arith.constant dense<0.000000e+00> : vector<64xf32>
    %33 = vector.multi_reduction <add>, %32, %cst_21 [1] : vector<64x16xf32> to vector<64xf32>
    %34 = vector.shape_cast %33 : vector<64xf32> to vector<64x1xf32>
    %cst_22 = arith.constant 9.99999997E-7 : f32
    %35 = vector.broadcast %cst_22 : f32 to vector<64x1xf32>
    %36 = arith.addf %34, %35 : vector<64x1xf32>
    %37 = math.rsqrt %36 : vector<64x1xf32>
    %38 = vector.broadcast %37 : vector<64x1xf32> to vector<64x16xf32>
    %39 = arith.mulf %31, %38 : vector<64x16xf32>
    %c0_23 = arith.constant 0 : index
    %c0_24 = arith.constant 0 : index
    %c0_25 = arith.constant 0 : index
    %40 = vector.load %arg3[%c0_23, %c0_24, %c0_25] : memref<2x576x32xbf16, #tpu.memory_space<vmem>>, vector<1x576x32xbf16>
    %41 = vector.shape_cast %40 : vector<1x576x32xbf16> to vector<576x32xbf16>
    %c0_26 = arith.constant 0 : index
    %c0_27 = arith.constant 0 : index
    %c0_28 = arith.constant 0 : index
    %42 = vector.load %arg4[%c0_26, %c0_27, %c0_28] : memref<2x1x32xf32, #tpu.memory_space<vmem>>, vector<1x1x32xf32>
    %43 = vector.shape_cast %42 : vector<1x1x32xf32> to vector<1x32xf32>
    %c0_29 = arith.constant 0 : index
    %c0_30 = arith.constant 0 : index
    %c0_31 = arith.constant 0 : index
    %44 = vector.load %arg5[%c0_29, %c0_30, %c0_31] : memref<2x288x16xbf16, #tpu.memory_space<vmem>>, vector<1x288x16xbf16>
    %45 = vector.shape_cast %44 : vector<1x288x16xbf16> to vector<288x16xbf16>
    %c0_32 = arith.constant 0 : index
    %c0_33 = arith.constant 0 : index
    %c0_34 = arith.constant 0 : index
    %46 = vector.load %arg6[%c0_32, %c0_33, %c0_34] : memref<2x1x16xf32, #tpu.memory_space<vmem>>, vector<1x1x16xf32>
    %47 = vector.shape_cast %46 : vector<1x1x16xf32> to vector<1x16xf32>
    %c0_35 = arith.constant 0 : index
    %c0_36 = arith.constant 0 : index
    %c0_37 = arith.constant 0 : index
    %48 = vector.load %arg7[%c0_35, %c0_36, %c0_37] : memref<2x256x32xbf16, #tpu.memory_space<vmem>>, vector<1x256x32xbf16>
    %49 = vector.shape_cast %48 : vector<1x256x32xbf16> to vector<256x32xbf16>
    %c0_38 = arith.constant 0 : index
    %c0_39 = arith.constant 0 : index
    %c0_40 = arith.constant 0 : index
    %50 = vector.load %arg8[%c0_38, %c0_39, %c0_40] : memref<2x1x32xf32, #tpu.memory_space<vmem>>, vector<1x1x32xf32>
    %51 = vector.shape_cast %50 : vector<1x1x32xf32> to vector<1x32xf32>
    %52 = arith.truncf %39 : vector<64x16xf32> to vector<64x16xbf16>
    %53 = arith.truncf %22 : vector<64x16xf32> to vector<64x16xbf16>
    %cst_41 = arith.constant dense<0.000000e+00> : vector<64x64xf32>
    %54 = tpu.matmul %52, %53, %cst_41 {dimension_numbers = #tpu.dot_dimension_numbers<[1], [1], [0], [0], [0, 0, 1, 0], [], []>} : vector<64x16xbf16>, vector<64x16xbf16>, vector<64x64xf32> -> vector<64x64xf32>
    %cst_42 = arith.constant 0.000000e+00 : f32
    %55 = vector.broadcast %cst_42 : f32 to vector<64x64xf32>
    %56 = arith.maximumf %54, %55 : vector<64x64xf32>
    %57 = arith.mulf %56, %56 : vector<64x64xf32>
    %cst_43 = arith.constant dense<0.000000e+00> : vector<64xf32>
    %58 = vector.multi_reduction <add>, %57, %cst_43 [1] : vector<64x64xf32> to vector<64xf32>
    %59 = vector.shape_cast %58 : vector<64xf32> to vector<64x1xf32>
    %cst_44 = arith.constant 9.99999997E-7 : f32
    %60 = vector.broadcast %cst_44 : f32 to vector<64x1xf32>
    %61 = arith.addf %59, %60 : vector<64x1xf32>
    %62 = math.rsqrt %61 : vector<64x1xf32>
    %63 = vector.broadcast %62 : vector<64x1xf32> to vector<64x64xf32>
    %64 = arith.mulf %56, %63 : vector<64x64xf32>
    %cst_45 = arith.constant 0.000000e+00 : f32
    %65 = vector.broadcast %cst_45 : f32 to vector<24x64xf32>
    %66 = tpu.concatenate %64, %65 in 0 : vector<64x64xf32>, vector<24x64xf32> -> vector<88x64xf32>
    %67 = vector.extract_strided_slice %66 {offsets = [0, 0], sizes = [64, 64], strides = [1, 1]} : vector<88x64xf32> to vector<64x64xf32>
    %68 = vector.extract_strided_slice %66 {offsets = [1, 0], sizes = [64, 64], strides = [1, 1]} : vector<88x64xf32> to vector<64x64xf32>
    %69 = vector.extract_strided_slice %66 {offsets = [2, 0], sizes = [64, 64], strides = [1, 1]} : vector<88x64xf32> to vector<64x64xf32>
    %70 = vector.extract_strided_slice %66 {offsets = [8, 0], sizes = [64, 64], strides = [1, 1]} : vector<88x64xf32> to vector<64x64xf32>
    %71 = vector.extract_strided_slice %66 {offsets = [9, 0], sizes = [64, 64], strides = [1, 1]} : vector<88x64xf32> to vector<64x64xf32>
    %72 = vector.extract_strided_slice %66 {offsets = [10, 0], sizes = [64, 64], strides = [1, 1]} : vector<88x64xf32> to vector<64x64xf32>
    %73 = vector.extract_strided_slice %66 {offsets = [16, 0], sizes = [64, 64], strides = [1, 1]} : vector<88x64xf32> to vector<64x64xf32>
    %74 = vector.extract_strided_slice %66 {offsets = [17, 0], sizes = [64, 64], strides = [1, 1]} : vector<88x64xf32> to vector<64x64xf32>
    %75 = vector.extract_strided_slice %66 {offsets = [18, 0], sizes = [64, 64], strides = [1, 1]} : vector<88x64xf32> to vector<64x64xf32>
    %76 = tpu.concatenate %67, %68, %69, %70, %71, %72, %73, %74, %75 in 1 : vector<64x64xf32>, vector<64x64xf32>, vector<64x64xf32>, vector<64x64xf32>, vector<64x64xf32>, vector<64x64xf32>, vector<64x64xf32>, vector<64x64xf32>, vector<64x64xf32> -> vector<64x576xf32>
    %77 = arith.truncf %76 : vector<64x576xf32> to vector<64x576xbf16>
    %cst_46 = arith.constant dense<0.000000e+00> : vector<64x32xf32>
    %78 = tpu.matmul %77, %41, %cst_46 {dimension_numbers = #tpu.dot_dimension_numbers<[1], [0], [0], [1], [0, 0, 1, 1], [], []>} : vector<64x576xbf16>, vector<576x32xbf16>, vector<64x32xf32> -> vector<64x32xf32>
    %79 = vector.broadcast %43 : vector<1x32xf32> to vector<64x32xf32>
    %80 = arith.addf %78, %79 : vector<64x32xf32>
    %cst_47 = arith.constant 0.000000e+00 : f32
    %81 = vector.broadcast %cst_47 : f32 to vector<64x32xf32>
    %82 = arith.maximumf %80, %81 : vector<64x32xf32>
    %cst_48 = arith.constant 0.000000e+00 : f32
    %83 = vector.broadcast %cst_48 : f32 to vector<24x32xf32>
    %84 = tpu.concatenate %82, %83 in 0 : vector<64x32xf32>, vector<24x32xf32> -> vector<88x32xf32>
    %85 = vector.extract_strided_slice %84 {offsets = [0, 0], sizes = [64, 32], strides = [1, 1]} : vector<88x32xf32> to vector<64x32xf32>
    %86 = vector.extract_strided_slice %84 {offsets = [1, 0], sizes = [64, 32], strides = [1, 1]} : vector<88x32xf32> to vector<64x32xf32>
    %87 = vector.extract_strided_slice %84 {offsets = [2, 0], sizes = [64, 32], strides = [1, 1]} : vector<88x32xf32> to vector<64x32xf32>
    %88 = vector.extract_strided_slice %84 {offsets = [8, 0], sizes = [64, 32], strides = [1, 1]} : vector<88x32xf32> to vector<64x32xf32>
    %89 = vector.extract_strided_slice %84 {offsets = [9, 0], sizes = [64, 32], strides = [1, 1]} : vector<88x32xf32> to vector<64x32xf32>
    %90 = vector.extract_strided_slice %84 {offsets = [10, 0], sizes = [64, 32], strides = [1, 1]} : vector<88x32xf32> to vector<64x32xf32>
    %91 = vector.extract_strided_slice %84 {offsets = [16, 0], sizes = [64, 32], strides = [1, 1]} : vector<88x32xf32> to vector<64x32xf32>
    %92 = vector.extract_strided_slice %84 {offsets = [17, 0], sizes = [64, 32], strides = [1, 1]} : vector<88x32xf32> to vector<64x32xf32>
    %93 = vector.extract_strided_slice %84 {offsets = [18, 0], sizes = [64, 32], strides = [1, 1]} : vector<88x32xf32> to vector<64x32xf32>
    %94 = tpu.concatenate %85, %86, %87, %88, %89, %90, %91, %92, %93 in 1 : vector<64x32xf32>, vector<64x32xf32>, vector<64x32xf32>, vector<64x32xf32>, vector<64x32xf32>, vector<64x32xf32>, vector<64x32xf32>, vector<64x32xf32>, vector<64x32xf32> -> vector<64x288xf32>
    %95 = arith.truncf %94 : vector<64x288xf32> to vector<64x288xbf16>
    %cst_49 = arith.constant dense<0.000000e+00> : vector<64x16xf32>
    %96 = tpu.matmul %95, %45, %cst_49 {dimension_numbers = #tpu.dot_dimension_numbers<[1], [0], [0], [1], [0, 0, 1, 1], [], []>} : vector<64x288xbf16>, vector<288x16xbf16>, vector<64x16xf32> -> vector<64x16xf32>
    %97 = vector.broadcast %47 : vector<1x16xf32> to vector<64x16xf32>
    %98 = arith.addf %96, %97 : vector<64x16xf32>
    %cst_50 = arith.constant 0.000000e+00 : f32
    %99 = vector.broadcast %cst_50 : f32 to vector<64x16xf32>
    %100 = arith.maximumf %98, %99 : vector<64x16xf32>
    %101 = vector.extract_strided_slice %100 {offsets = [0, 0], sizes = [1, 16], strides = [1, 1]} : vector<64x16xf32> to vector<1x16xf32>
    %102 = vector.extract_strided_slice %100 {offsets = [1, 0], sizes = [1, 16], strides = [1, 1]} : vector<64x16xf32> to vector<1x16xf32>
    %103 = vector.extract_strided_slice %100 {offsets = [2, 0], sizes = [1, 16], strides = [1, 1]} : vector<64x16xf32> to vector<1x16xf32>
    %104 = vector.extract_strided_slice %100 {offsets = [3, 0], sizes = [1, 16], strides = [1, 1]} : vector<64x16xf32> to vector<1x16xf32>
    %105 = vector.extract_strided_slice %100 {offsets = [8, 0], sizes = [1, 16], strides = [1, 1]} : vector<64x16xf32> to vector<1x16xf32>
    %106 = vector.extract_strided_slice %100 {offsets = [9, 0], sizes = [1, 16], strides = [1, 1]} : vector<64x16xf32> to vector<1x16xf32>
    %107 = vector.extract_strided_slice %100 {offsets = [10, 0], sizes = [1, 16], strides = [1, 1]} : vector<64x16xf32> to vector<1x16xf32>
    %108 = vector.extract_strided_slice %100 {offsets = [11, 0], sizes = [1, 16], strides = [1, 1]} : vector<64x16xf32> to vector<1x16xf32>
    %109 = vector.extract_strided_slice %100 {offsets = [16, 0], sizes = [1, 16], strides = [1, 1]} : vector<64x16xf32> to vector<1x16xf32>
    %110 = vector.extract_strided_slice %100 {offsets = [17, 0], sizes = [1, 16], strides = [1, 1]} : vector<64x16xf32> to vector<1x16xf32>
    %111 = vector.extract_strided_slice %100 {offsets = [18, 0], sizes = [1, 16], strides = [1, 1]} : vector<64x16xf32> to vector<1x16xf32>
    %112 = vector.extract_strided_slice %100 {offsets = [19, 0], sizes = [1, 16], strides = [1, 1]} : vector<64x16xf32> to vector<1x16xf32>
    %113 = vector.extract_strided_slice %100 {offsets = [24, 0], sizes = [1, 16], strides = [1, 1]} : vector<64x16xf32> to vector<1x16xf32>
    %114 = vector.extract_strided_slice %100 {offsets = [25, 0], sizes = [1, 16], strides = [1, 1]} : vector<64x16xf32> to vector<1x16xf32>
    %115 = vector.extract_strided_slice %100 {offsets = [26, 0], sizes = [1, 16], strides = [1, 1]} : vector<64x16xf32> to vector<1x16xf32>
    %116 = vector.extract_strided_slice %100 {offsets = [27, 0], sizes = [1, 16], strides = [1, 1]} : vector<64x16xf32> to vector<1x16xf32>
    %117 = tpu.concatenate %101, %102, %103, %104, %105, %106, %107, %108, %109, %110, %111, %112, %113, %114, %115, %116 in 1 : vector<1x16xf32>, vector<1x16xf32>, vector<1x16xf32>, vector<1x16xf32>, vector<1x16xf32>, vector<1x16xf32>, vector<1x16xf32>, vector<1x16xf32>, vector<1x16xf32>, vector<1x16xf32>, vector<1x16xf32>, vector<1x16xf32>, vector<1x16xf32>, vector<1x16xf32>, vector<1x16xf32>, vector<1x16xf32> -> vector<1x256xf32>
    %118 = arith.truncf %117 : vector<1x256xf32> to vector<1x256xbf16>
    %cst_51 = arith.constant dense<0.000000e+00> : vector<1x32xf32>
    %119 = tpu.matmul %118, %49, %cst_51 {dimension_numbers = #tpu.dot_dimension_numbers<[1], [0], [0], [1], [0, 0, 1, 1], [], []>} : vector<1x256xbf16>, vector<256x32xbf16>, vector<1x32xf32> -> vector<1x32xf32>
    %120 = arith.addf %119, %51 : vector<1x32xf32>
    %c0_52 = arith.constant 0 : index
    %c0_53 = arith.constant 0 : index
    %121 = vector.load %arg9[%c0_52, %c0_53] : memref<2x32xf32, #tpu.memory_space<vmem>>, vector<1x32xf32>
    tpu.vector_store %arg9[%c0_52, %c0_53], %120 {strides = array<i32>} : memref<2x32xf32, #tpu.memory_space<vmem>>, vector<1x32xf32>,
    %c1_54 = arith.constant 1 : index
    %c0_55 = arith.constant 0 : index
    %c0_56 = arith.constant 0 : index
    %122 = vector.load %arg1[%c1_54, %c0_55, %c0_56] : memref<2x32x16xbf16, #tpu.memory_space<vmem>>, vector<1x32x16xbf16>
    %123 = vector.shape_cast %122 : vector<1x32x16xbf16> to vector<32x16xbf16>
    %c1_57 = arith.constant 1 : index
    %c0_58 = arith.constant 0 : index
    %c0_59 = arith.constant 0 : index
    %124 = vector.load %arg2[%c1_57, %c0_58, %c0_59] : memref<2x1x16xf32, #tpu.memory_space<vmem>>, vector<1x1x16xf32>
    %125 = vector.shape_cast %124 : vector<1x1x16xf32> to vector<1x16xf32>
    %cst_60 = arith.constant dense<0.000000e+00> : vector<64x16xf32>
    %126 = tpu.matmul %2, %123, %cst_60 {dimension_numbers = #tpu.dot_dimension_numbers<[1], [0], [0], [1], [0, 0, 1, 1], [], []>} : vector<64x32xbf16>, vector<32x16xbf16>, vector<64x16xf32> -> vector<64x16xf32>
    %127 = vector.broadcast %125 : vector<1x16xf32> to vector<64x16xf32>
    %128 = arith.addf %126, %127 : vector<64x16xf32>
    %cst_61 = arith.constant 0.000000e+00 : f32
    %129 = vector.broadcast %cst_61 : f32 to vector<64x16xf32>
    %130 = arith.maximumf %128, %129 : vector<64x16xf32>
    %131 = arith.mulf %130, %130 : vector<64x16xf32>
    %cst_62 = arith.constant dense<0.000000e+00> : vector<64xf32>
    %132 = vector.multi_reduction <add>, %131, %cst_62 [1] : vector<64x16xf32> to vector<64xf32>
    %133 = vector.shape_cast %132 : vector<64xf32> to vector<64x1xf32>
    %cst_63 = arith.constant 9.99999997E-7 : f32
    %134 = vector.broadcast %cst_63 : f32 to vector<64x1xf32>
    %135 = arith.addf %133, %134 : vector<64x1xf32>
    %136 = math.rsqrt %135 : vector<64x1xf32>
    %137 = vector.broadcast %136 : vector<64x1xf32> to vector<64x16xf32>
    %138 = arith.mulf %130, %137 : vector<64x16xf32>
    %c1_64 = arith.constant 1 : index
    %c0_65 = arith.constant 0 : index
    %c0_66 = arith.constant 0 : index
    %139 = vector.load %arg1[%c1_64, %c0_65, %c0_66] : memref<2x32x16xbf16, #tpu.memory_space<vmem>>, vector<1x32x16xbf16>
    %140 = vector.shape_cast %139 : vector<1x32x16xbf16> to vector<32x16xbf16>
    %c1_67 = arith.constant 1 : index
    %c0_68 = arith.constant 0 : index
    %c0_69 = arith.constant 0 : index
    %141 = vector.load %arg2[%c1_67, %c0_68, %c0_69] : memref<2x1x16xf32, #tpu.memory_space<vmem>>, vector<1x1x16xf32>
    %142 = vector.shape_cast %141 : vector<1x1x16xf32> to vector<1x16xf32>
    %cst_70 = arith.constant dense<0.000000e+00> : vector<64x16xf32>
    %143 = tpu.matmul %5, %140, %cst_70 {dimension_numbers = #tpu.dot_dimension_numbers<[1], [0], [0], [1], [0, 0, 1, 1], [], []>} : vector<64x32xbf16>, vector<32x16xbf16>, vector<64x16xf32> -> vector<64x16xf32>
    %144 = vector.broadcast %142 : vector<1x16xf32> to vector<64x16xf32>
    %145 = arith.addf %143, %144 : vector<64x16xf32>
    %cst_71 = arith.constant 0.000000e+00 : f32
    %146 = vector.broadcast %cst_71 : f32 to vector<64x16xf32>
    %147 = arith.maximumf %145, %146 : vector<64x16xf32>
    %148 = arith.mulf %147, %147 : vector<64x16xf32>
    %cst_72 = arith.constant dense<0.000000e+00> : vector<64xf32>
    %149 = vector.multi_reduction <add>, %148, %cst_72 [1] : vector<64x16xf32> to vector<64xf32>
    %150 = vector.shape_cast %149 : vector<64xf32> to vector<64x1xf32>
    %cst_73 = arith.constant 9.99999997E-7 : f32
    %151 = vector.broadcast %cst_73 : f32 to vector<64x1xf32>
    %152 = arith.addf %150, %151 : vector<64x1xf32>
    %153 = math.rsqrt %152 : vector<64x1xf32>
    %154 = vector.broadcast %153 : vector<64x1xf32> to vector<64x16xf32>
    %155 = arith.mulf %147, %154 : vector<64x16xf32>
    %c1_74 = arith.constant 1 : index
    %c0_75 = arith.constant 0 : index
    %c0_76 = arith.constant 0 : index
    %156 = vector.load %arg3[%c1_74, %c0_75, %c0_76] : memref<2x576x32xbf16, #tpu.memory_space<vmem>>, vector<1x576x32xbf16>
    %157 = vector.shape_cast %156 : vector<1x576x32xbf16> to vector<576x32xbf16>
    %c1_77 = arith.constant 1 : index
    %c0_78 = arith.constant 0 : index
    %c0_79 = arith.constant 0 : index
    %158 = vector.load %arg4[%c1_77, %c0_78, %c0_79] : memref<2x1x32xf32, #tpu.memory_space<vmem>>, vector<1x1x32xf32>
    %159 = vector.shape_cast %158 : vector<1x1x32xf32> to vector<1x32xf32>
    %c1_80 = arith.constant 1 : index
    %c0_81 = arith.constant 0 : index
    %c0_82 = arith.constant 0 : index
    %160 = vector.load %arg5[%c1_80, %c0_81, %c0_82] : memref<2x288x16xbf16, #tpu.memory_space<vmem>>, vector<1x288x16xbf16>
    %161 = vector.shape_cast %160 : vector<1x288x16xbf16> to vector<288x16xbf16>
    %c1_83 = arith.constant 1 : index
    %c0_84 = arith.constant 0 : index
    %c0_85 = arith.constant 0 : index
    %162 = vector.load %arg6[%c1_83, %c0_84, %c0_85] : memref<2x1x16xf32, #tpu.memory_space<vmem>>, vector<1x1x16xf32>
    %163 = vector.shape_cast %162 : vector<1x1x16xf32> to vector<1x16xf32>
    %c1_86 = arith.constant 1 : index
    %c0_87 = arith.constant 0 : index
    %c0_88 = arith.constant 0 : index
    %164 = vector.load %arg7[%c1_86, %c0_87, %c0_88] : memref<2x256x32xbf16, #tpu.memory_space<vmem>>, vector<1x256x32xbf16>
    %165 = vector.shape_cast %164 : vector<1x256x32xbf16> to vector<256x32xbf16>
    %c1_89 = arith.constant 1 : index
    %c0_90 = arith.constant 0 : index
    %c0_91 = arith.constant 0 : index
    %166 = vector.load %arg8[%c1_89, %c0_90, %c0_91] : memref<2x1x32xf32, #tpu.memory_space<vmem>>, vector<1x1x32xf32>
    %167 = vector.shape_cast %166 : vector<1x1x32xf32> to vector<1x32xf32>
    %168 = arith.truncf %155 : vector<64x16xf32> to vector<64x16xbf16>
    %169 = arith.truncf %138 : vector<64x16xf32> to vector<64x16xbf16>
    %cst_92 = arith.constant dense<0.000000e+00> : vector<64x64xf32>
    %170 = tpu.matmul %168, %169, %cst_92 {dimension_numbers = #tpu.dot_dimension_numbers<[1], [1], [0], [0], [0, 0, 1, 0], [], []>} : vector<64x16xbf16>, vector<64x16xbf16>, vector<64x64xf32> -> vector<64x64xf32>
    %cst_93 = arith.constant 0.000000e+00 : f32
    %171 = vector.broadcast %cst_93 : f32 to vector<64x64xf32>
    %172 = arith.maximumf %170, %171 : vector<64x64xf32>
    %173 = arith.mulf %172, %172 : vector<64x64xf32>
    %cst_94 = arith.constant dense<0.000000e+00> : vector<64xf32>
    %174 = vector.multi_reduction <add>, %173, %cst_94 [1] : vector<64x64xf32> to vector<64xf32>
    %175 = vector.shape_cast %174 : vector<64xf32> to vector<64x1xf32>
    %cst_95 = arith.constant 9.99999997E-7 : f32
    %176 = vector.broadcast %cst_95 : f32 to vector<64x1xf32>
    %177 = arith.addf %175, %176 : vector<64x1xf32>
    %178 = math.rsqrt %177 : vector<64x1xf32>
    %179 = vector.broadcast %178 : vector<64x1xf32> to vector<64x64xf32>
    %180 = arith.mulf %172, %179 : vector<64x64xf32>
    %cst_96 = arith.constant 0.000000e+00 : f32
    %181 = vector.broadcast %cst_96 : f32 to vector<24x64xf32>
    %182 = tpu.concatenate %180, %181 in 0 : vector<64x64xf32>, vector<24x64xf32> -> vector<88x64xf32>
    %183 = vector.extract_strided_slice %182 {offsets = [0, 0], sizes = [64, 64], strides = [1, 1]} : vector<88x64xf32> to vector<64x64xf32>
    %184 = vector.extract_strided_slice %182 {offsets = [1, 0], sizes = [64, 64], strides = [1, 1]} : vector<88x64xf32> to vector<64x64xf32>
    %185 = vector.extract_strided_slice %182 {offsets = [2, 0], sizes = [64, 64], strides = [1, 1]} : vector<88x64xf32> to vector<64x64xf32>
    %186 = vector.extract_strided_slice %182 {offsets = [8, 0], sizes = [64, 64], strides = [1, 1]} : vector<88x64xf32> to vector<64x64xf32>
    %187 = vector.extract_strided_slice %182 {offsets = [9, 0], sizes = [64, 64], strides = [1, 1]} : vector<88x64xf32> to vector<64x64xf32>
    %188 = vector.extract_strided_slice %182 {offsets = [10, 0], sizes = [64, 64], strides = [1, 1]} : vector<88x64xf32> to vector<64x64xf32>
    %189 = vector.extract_strided_slice %182 {offsets = [16, 0], sizes = [64, 64], strides = [1, 1]} : vector<88x64xf32> to vector<64x64xf32>
    %190 = vector.extract_strided_slice %182 {offsets = [17, 0], sizes = [64, 64], strides = [1, 1]} : vector<88x64xf32> to vector<64x64xf32>
    %191 = vector.extract_strided_slice %182 {offsets = [18, 0], sizes = [64, 64], strides = [1, 1]} : vector<88x64xf32> to vector<64x64xf32>
    %192 = tpu.concatenate %183, %184, %185, %186, %187, %188, %189, %190, %191 in 1 : vector<64x64xf32>, vector<64x64xf32>, vector<64x64xf32>, vector<64x64xf32>, vector<64x64xf32>, vector<64x64xf32>, vector<64x64xf32>, vector<64x64xf32>, vector<64x64xf32> -> vector<64x576xf32>
    %193 = arith.truncf %192 : vector<64x576xf32> to vector<64x576xbf16>
    %cst_97 = arith.constant dense<0.000000e+00> : vector<64x32xf32>
    %194 = tpu.matmul %193, %157, %cst_97 {dimension_numbers = #tpu.dot_dimension_numbers<[1], [0], [0], [1], [0, 0, 1, 1], [], []>} : vector<64x576xbf16>, vector<576x32xbf16>, vector<64x32xf32> -> vector<64x32xf32>
    %195 = vector.broadcast %159 : vector<1x32xf32> to vector<64x32xf32>
    %196 = arith.addf %194, %195 : vector<64x32xf32>
    %cst_98 = arith.constant 0.000000e+00 : f32
    %197 = vector.broadcast %cst_98 : f32 to vector<64x32xf32>
    %198 = arith.maximumf %196, %197 : vector<64x32xf32>
    %cst_99 = arith.constant 0.000000e+00 : f32
    %199 = vector.broadcast %cst_99 : f32 to vector<24x32xf32>
    %200 = tpu.concatenate %198, %199 in 0 : vector<64x32xf32>, vector<24x32xf32> -> vector<88x32xf32>
    %201 = vector.extract_strided_slice %200 {offsets = [0, 0], sizes = [64, 32], strides = [1, 1]} : vector<88x32xf32> to vector<64x32xf32>
    %202 = vector.extract_strided_slice %200 {offsets = [1, 0], sizes = [64, 32], strides = [1, 1]} : vector<88x32xf32> to vector<64x32xf32>
    %203 = vector.extract_strided_slice %200 {offsets = [2, 0], sizes = [64, 32], strides = [1, 1]} : vector<88x32xf32> to vector<64x32xf32>
    %204 = vector.extract_strided_slice %200 {offsets = [8, 0], sizes = [64, 32], strides = [1, 1]} : vector<88x32xf32> to vector<64x32xf32>
    %205 = vector.extract_strided_slice %200 {offsets = [9, 0], sizes = [64, 32], strides = [1, 1]} : vector<88x32xf32> to vector<64x32xf32>
    %206 = vector.extract_strided_slice %200 {offsets = [10, 0], sizes = [64, 32], strides = [1, 1]} : vector<88x32xf32> to vector<64x32xf32>
    %207 = vector.extract_strided_slice %200 {offsets = [16, 0], sizes = [64, 32], strides = [1, 1]} : vector<88x32xf32> to vector<64x32xf32>
    %208 = vector.extract_strided_slice %200 {offsets = [17, 0], sizes = [64, 32], strides = [1, 1]} : vector<88x32xf32> to vector<64x32xf32>
    %209 = vector.extract_strided_slice %200 {offsets = [18, 0], sizes = [64, 32], strides = [1, 1]} : vector<88x32xf32> to vector<64x32xf32>
    %210 = tpu.concatenate %201, %202, %203, %204, %205, %206, %207, %208, %209 in 1 : vector<64x32xf32>, vector<64x32xf32>, vector<64x32xf32>, vector<64x32xf32>, vector<64x32xf32>, vector<64x32xf32>, vector<64x32xf32>, vector<64x32xf32>, vector<64x32xf32> -> vector<64x288xf32>
    %211 = arith.truncf %210 : vector<64x288xf32> to vector<64x288xbf16>
    %cst_100 = arith.constant dense<0.000000e+00> : vector<64x16xf32>
    %212 = tpu.matmul %211, %161, %cst_100 {dimension_numbers = #tpu.dot_dimension_numbers<[1], [0], [0], [1], [0, 0, 1, 1], [], []>} : vector<64x288xbf16>, vector<288x16xbf16>, vector<64x16xf32> -> vector<64x16xf32>
    %213 = vector.broadcast %163 : vector<1x16xf32> to vector<64x16xf32>
    %214 = arith.addf %212, %213 : vector<64x16xf32>
    %cst_101 = arith.constant 0.000000e+00 : f32
    %215 = vector.broadcast %cst_101 : f32 to vector<64x16xf32>
    %216 = arith.maximumf %214, %215 : vector<64x16xf32>
    %217 = vector.extract_strided_slice %216 {offsets = [0, 0], sizes = [1, 16], strides = [1, 1]} : vector<64x16xf32> to vector<1x16xf32>
    %218 = vector.extract_strided_slice %216 {offsets = [1, 0], sizes = [1, 16], strides = [1, 1]} : vector<64x16xf32> to vector<1x16xf32>
    %219 = vector.extract_strided_slice %216 {offsets = [2, 0], sizes = [1, 16], strides = [1, 1]} : vector<64x16xf32> to vector<1x16xf32>
    %220 = vector.extract_strided_slice %216 {offsets = [3, 0], sizes = [1, 16], strides = [1, 1]} : vector<64x16xf32> to vector<1x16xf32>
    %221 = vector.extract_strided_slice %216 {offsets = [8, 0], sizes = [1, 16], strides = [1, 1]} : vector<64x16xf32> to vector<1x16xf32>
    %222 = vector.extract_strided_slice %216 {offsets = [9, 0], sizes = [1, 16], strides = [1, 1]} : vector<64x16xf32> to vector<1x16xf32>
    %223 = vector.extract_strided_slice %216 {offsets = [10, 0], sizes = [1, 16], strides = [1, 1]} : vector<64x16xf32> to vector<1x16xf32>
    %224 = vector.extract_strided_slice %216 {offsets = [11, 0], sizes = [1, 16], strides = [1, 1]} : vector<64x16xf32> to vector<1x16xf32>
    %225 = vector.extract_strided_slice %216 {offsets = [16, 0], sizes = [1, 16], strides = [1, 1]} : vector<64x16xf32> to vector<1x16xf32>
    %226 = vector.extract_strided_slice %216 {offsets = [17, 0], sizes = [1, 16], strides = [1, 1]} : vector<64x16xf32> to vector<1x16xf32>
    %227 = vector.extract_strided_slice %216 {offsets = [18, 0], sizes = [1, 16], strides = [1, 1]} : vector<64x16xf32> to vector<1x16xf32>
    %228 = vector.extract_strided_slice %216 {offsets = [19, 0], sizes = [1, 16], strides = [1, 1]} : vector<64x16xf32> to vector<1x16xf32>
    %229 = vector.extract_strided_slice %216 {offsets = [24, 0], sizes = [1, 16], strides = [1, 1]} : vector<64x16xf32> to vector<1x16xf32>
    %230 = vector.extract_strided_slice %216 {offsets = [25, 0], sizes = [1, 16], strides = [1, 1]} : vector<64x16xf32> to vector<1x16xf32>
    %231 = vector.extract_strided_slice %216 {offsets = [26, 0], sizes = [1, 16], strides = [1, 1]} : vector<64x16xf32> to vector<1x16xf32>
    %232 = vector.extract_strided_slice %216 {offsets = [27, 0], sizes = [1, 16], strides = [1, 1]} : vector<64x16xf32> to vector<1x16xf32>
    %233 = tpu.concatenate %217, %218, %219, %220, %221, %222, %223, %224, %225, %226, %227, %228, %229, %230, %231, %232 in 1 : vector<1x16xf32>, vector<1x16xf32>, vector<1x16xf32>, vector<1x16xf32>, vector<1x16xf32>, vector<1x16xf32>, vector<1x16xf32>, vector<1x16xf32>, vector<1x16xf32>, vector<1x16xf32>, vector<1x16xf32>, vector<1x16xf32>, vector<1x16xf32>, vector<1x16xf32>, vector<1x16xf32>, vector<1x16xf32> -> vector<1x256xf32>
    %234 = arith.truncf %233 : vector<1x256xf32> to vector<1x256xbf16>
    %cst_102 = arith.constant dense<0.000000e+00> : vector<1x32xf32>
    %235 = tpu.matmul %234, %165, %cst_102 {dimension_numbers = #tpu.dot_dimension_numbers<[1], [0], [0], [1], [0, 0, 1, 1], [], []>} : vector<1x256xbf16>, vector<256x32xbf16>, vector<1x32xf32> -> vector<1x32xf32>
    %236 = arith.addf %235, %167 : vector<1x32xf32>
    %c1_103 = arith.constant 1 : index
    %c0_104 = arith.constant 0 : index
    %237 = vector.load %arg9[%c1_103, %c0_104] : memref<2x32xf32, #tpu.memory_space<vmem>>, vector<1x32xf32>
    tpu.vector_store %arg9[%c1_103, %c0_104], %236 {strides = array<i32>} : memref<2x32xf32, #tpu.memory_space<vmem>>, vector<1x32xf32>,
    %c0_105 = arith.constant 0 : index
    %c0_106 = arith.constant 0 : index
    %238 = vector.load %arg10[%c0_105, %c0_106] : memref<64x16xf32, #tpu.memory_space<vmem>>, vector<64x16xf32>
    tpu.vector_store %arg10[%c0_105, %c0_106], %155 {strides = array<i32>} : memref<64x16xf32, #tpu.memory_space<vmem>>, vector<64x16xf32>,
    return
  }
}

module attributes {stable_mosaic.version = 11 : i64} {
  func.func @_warp_kernel(%arg0: memref<2x512xf32, #tpu.memory_space<vmem>>, %arg1: memref<3x256xf32, #tpu.memory_space<vmem>>, %arg2: memref<3x512xf32, #tpu.memory_space<vmem>>) attributes {dimension_semantics = [], scalar_prefetch = 0 : i64, scratch_operands = 0 : i64, tpu.core_type = #tpu.core_type<tc>} {
    %c0 = arith.constant 0 : index
    %c0_0 = arith.constant 0 : index
    %0 = vector.load %arg0[%c0, %c0_0] : memref<2x512xf32, #tpu.memory_space<vmem>>, vector<1x512xf32>
    %c1 = arith.constant 1 : index
    %c0_1 = arith.constant 0 : index
    %1 = vector.load %arg0[%c1, %c0_1] : memref<2x512xf32, #tpu.memory_space<vmem>>, vector<1x512xf32>
    %2 = tpu.iota {dimensions = array<i32: 0>} : vector<16x512xi32>
    %3 = arith.sitofp %2 : vector<16x512xi32> to vector<16x512xf32>
    %4 = tpu.iota {dimensions = array<i32: 0>} : vector<16x512xi32>
    %5 = arith.sitofp %4 : vector<16x512xi32> to vector<16x512xf32>
    %6 = vector.broadcast %0 : vector<1x512xf32> to vector<16x512xf32>
    %7 = arith.subf %3, %6 : vector<16x512xf32>
    %8 = math.absf %7 : vector<16x512xf32>
    %cst = arith.constant 1.000000e+00 : f32
    %9 = vector.broadcast %cst : f32 to vector<16x512xf32>
    %10 = arith.subf %9, %8 : vector<16x512xf32>
    %cst_2 = arith.constant 0.000000e+00 : f32
    %11 = vector.broadcast %cst_2 : f32 to vector<16x512xf32>
    %12 = arith.maximumf %10, %11 : vector<16x512xf32>
    %13 = vector.broadcast %1 : vector<1x512xf32> to vector<16x512xf32>
    %14 = arith.subf %5, %13 : vector<16x512xf32>
    %15 = math.absf %14 : vector<16x512xf32>
    %cst_3 = arith.constant 1.000000e+00 : f32
    %16 = vector.broadcast %cst_3 : f32 to vector<16x512xf32>
    %17 = arith.subf %16, %15 : vector<16x512xf32>
    %cst_4 = arith.constant 0.000000e+00 : f32
    %18 = vector.broadcast %cst_4 : f32 to vector<16x512xf32>
    %19 = arith.maximumf %17, %18 : vector<16x512xf32>
    %20 = vector.shape_cast %19 : vector<16x512xf32> to vector<16x1x512xf32>
    %21 = vector.shape_cast %12 : vector<16x512xf32> to vector<1x16x512xf32>
    %22 = vector.broadcast %20 : vector<16x1x512xf32> to vector<16x16x512xf32>
    %23 = vector.broadcast %21 : vector<1x16x512xf32> to vector<16x16x512xf32>
    %24 = arith.mulf %22, %23 : vector<16x16x512xf32>
    %25 = vector.shape_cast %24 : vector<16x16x512xf32> to vector<256x512xf32>
    %c0_5 = arith.constant 0 : index
    %c0_6 = arith.constant 0 : index
    %26 = vector.load %arg1[%c0_5, %c0_6] : memref<3x256xf32, #tpu.memory_space<vmem>>, vector<3x256xf32>
    %cst_7 = arith.constant dense<0.000000e+00> : vector<3x512xf32>
    %27 = tpu.matmul %26, %25, %cst_7 {dimension_numbers = #tpu.dot_dimension_numbers<[1], [0], [0], [1], [0, 0, 1, 1], [], []>} : vector<3x256xf32>, vector<256x512xf32>, vector<3x512xf32> -> vector<3x512xf32>
    %c0_8 = arith.constant 0 : index
    %c0_9 = arith.constant 0 : index
    %28 = vector.load %arg2[%c0_8, %c0_9] : memref<3x512xf32, #tpu.memory_space<vmem>>, vector<3x512xf32>
    tpu.vector_store %arg2[%c0_8, %c0_9], %27 {strides = array<i32>} : memref<3x512xf32, #tpu.memory_space<vmem>>, vector<3x512xf32>,
    return
  }
}

module attributes {stable_mosaic.version = 11 : i64} {
  func.func @_geo_pass1_kernel(%arg0: memref<64x32xf32, #tpu.memory_space<vmem>>, %arg1: memref<64x16xf32, #tpu.memory_space<vmem>>, %arg2: memref<32x16xbf16, #tpu.memory_space<vmem>>, %arg3: memref<1x16xf32, #tpu.memory_space<vmem>>, %arg4: memref<576x32xbf16, #tpu.memory_space<vmem>>, %arg5: memref<1x32xf32, #tpu.memory_space<vmem>>, %arg6: memref<288x16xbf16, #tpu.memory_space<vmem>>, %arg7: memref<1x16xf32, #tpu.memory_space<vmem>>, %arg8: memref<256x32xbf16, #tpu.memory_space<vmem>>, %arg9: memref<1x32xf32, #tpu.memory_space<vmem>>, %arg10: memref<1x32xf32, #tpu.memory_space<vmem>>) attributes {dimension_semantics = [], scalar_prefetch = 0 : i64, scratch_operands = 0 : i64, tpu.core_type = #tpu.core_type<tc>} {
    %c0 = arith.constant 0 : index
    %c0_0 = arith.constant 0 : index
    %0 = vector.load %arg0[%c0, %c0_0] : memref<64x32xf32, #tpu.memory_space<vmem>>, vector<64x32xf32>
    %1 = arith.truncf %0 : vector<64x32xf32> to vector<64x32xbf16>
    %c0_1 = arith.constant 0 : index
    %c0_2 = arith.constant 0 : index
    %2 = vector.load %arg2[%c0_1, %c0_2] : memref<32x16xbf16, #tpu.memory_space<vmem>>, vector<32x16xbf16>
    %c0_3 = arith.constant 0 : index
    %c0_4 = arith.constant 0 : index
    %3 = vector.load %arg3[%c0_3, %c0_4] : memref<1x16xf32, #tpu.memory_space<vmem>>, vector<1x16xf32>
    %cst = arith.constant dense<0.000000e+00> : vector<64x16xf32>
    %4 = tpu.matmul %1, %2, %cst {dimension_numbers = #tpu.dot_dimension_numbers<[1], [0], [0], [1], [0, 0, 1, 1], [], []>} : vector<64x32xbf16>, vector<32x16xbf16>, vector<64x16xf32> -> vector<64x16xf32>
    %5 = vector.broadcast %3 : vector<1x16xf32> to vector<64x16xf32>
    %6 = arith.addf %4, %5 : vector<64x16xf32>
    %cst_5 = arith.constant 0.000000e+00 : f32
    %7 = vector.broadcast %cst_5 : f32 to vector<64x16xf32>
    %8 = arith.maximumf %6, %7 : vector<64x16xf32>
    %9 = arith.mulf %8, %8 : vector<64x16xf32>
    %cst_6 = arith.constant dense<0.000000e+00> : vector<64xf32>
    %10 = vector.multi_reduction <add>, %9, %cst_6 [1] : vector<64x16xf32> to vector<64xf32>
    %11 = vector.shape_cast %10 : vector<64xf32> to vector<64x1xf32>
    %cst_7 = arith.constant 9.99999997E-7 : f32
    %12 = vector.broadcast %cst_7 : f32 to vector<64x1xf32>
    %13 = arith.addf %11, %12 : vector<64x1xf32>
    %14 = math.rsqrt %13 : vector<64x1xf32>
    %15 = vector.broadcast %14 : vector<64x1xf32> to vector<64x16xf32>
    %16 = arith.mulf %8, %15 : vector<64x16xf32>
    %c0_8 = arith.constant 0 : index
    %c0_9 = arith.constant 0 : index
    %17 = vector.load %arg1[%c0_8, %c0_9] : memref<64x16xf32, #tpu.memory_space<vmem>>, vector<64x16xf32>
    %c0_10 = arith.constant 0 : index
    %c0_11 = arith.constant 0 : index
    %18 = vector.load %arg4[%c0_10, %c0_11] : memref<576x32xbf16, #tpu.memory_space<vmem>>, vector<576x32xbf16>
    %c0_12 = arith.constant 0 : index
    %c0_13 = arith.constant 0 : index
    %19 = vector.load %arg5[%c0_12, %c0_13] : memref<1x32xf32, #tpu.memory_space<vmem>>, vector<1x32xf32>
    %c0_14 = arith.constant 0 : index
    %c0_15 = arith.constant 0 : index
    %20 = vector.load %arg6[%c0_14, %c0_15] : memref<288x16xbf16, #tpu.memory_space<vmem>>, vector<288x16xbf16>
    %c0_16 = arith.constant 0 : index
    %c0_17 = arith.constant 0 : index
    %21 = vector.load %arg7[%c0_16, %c0_17] : memref<1x16xf32, #tpu.memory_space<vmem>>, vector<1x16xf32>
    %c0_18 = arith.constant 0 : index
    %c0_19 = arith.constant 0 : index
    %22 = vector.load %arg8[%c0_18, %c0_19] : memref<256x32xbf16, #tpu.memory_space<vmem>>, vector<256x32xbf16>
    %c0_20 = arith.constant 0 : index
    %c0_21 = arith.constant 0 : index
    %23 = vector.load %arg9[%c0_20, %c0_21] : memref<1x32xf32, #tpu.memory_space<vmem>>, vector<1x32xf32>
    %24 = arith.truncf %17 : vector<64x16xf32> to vector<64x16xbf16>
    %25 = arith.truncf %16 : vector<64x16xf32> to vector<64x16xbf16>
    %cst_22 = arith.constant dense<0.000000e+00> : vector<64x64xf32>
    %26 = tpu.matmul %24, %25, %cst_22 {dimension_numbers = #tpu.dot_dimension_numbers<[1], [1], [0], [0], [0, 0, 1, 0], [], []>} : vector<64x16xbf16>, vector<64x16xbf16>, vector<64x64xf32> -> vector<64x64xf32>
    %cst_23 = arith.constant 0.000000e+00 : f32
    %27 = vector.broadcast %cst_23 : f32 to vector<64x64xf32>
    %28 = arith.maximumf %26, %27 : vector<64x64xf32>
    %29 = arith.mulf %28, %28 : vector<64x64xf32>
    %cst_24 = arith.constant dense<0.000000e+00> : vector<64xf32>
    %30 = vector.multi_reduction <add>, %29, %cst_24 [1] : vector<64x64xf32> to vector<64xf32>
    %31 = vector.shape_cast %30 : vector<64xf32> to vector<64x1xf32>
    %cst_25 = arith.constant 9.99999997E-7 : f32
    %32 = vector.broadcast %cst_25 : f32 to vector<64x1xf32>
    %33 = arith.addf %31, %32 : vector<64x1xf32>
    %34 = math.rsqrt %33 : vector<64x1xf32>
    %35 = vector.broadcast %34 : vector<64x1xf32> to vector<64x64xf32>
    %36 = arith.mulf %28, %35 : vector<64x64xf32>
    %cst_26 = arith.constant 0.000000e+00 : f32
    %37 = vector.broadcast %cst_26 : f32 to vector<24x64xf32>
    %38 = tpu.concatenate %36, %37 in 0 : vector<64x64xf32>, vector<24x64xf32> -> vector<88x64xf32>
    %39 = vector.extract_strided_slice %38 {offsets = [0, 0], sizes = [64, 64], strides = [1, 1]} : vector<88x64xf32> to vector<64x64xf32>
    %40 = vector.extract_strided_slice %38 {offsets = [1, 0], sizes = [64, 64], strides = [1, 1]} : vector<88x64xf32> to vector<64x64xf32>
    %41 = vector.extract_strided_slice %38 {offsets = [2, 0], sizes = [64, 64], strides = [1, 1]} : vector<88x64xf32> to vector<64x64xf32>
    %42 = vector.extract_strided_slice %38 {offsets = [8, 0], sizes = [64, 64], strides = [1, 1]} : vector<88x64xf32> to vector<64x64xf32>
    %43 = vector.extract_strided_slice %38 {offsets = [9, 0], sizes = [64, 64], strides = [1, 1]} : vector<88x64xf32> to vector<64x64xf32>
    %44 = vector.extract_strided_slice %38 {offsets = [10, 0], sizes = [64, 64], strides = [1, 1]} : vector<88x64xf32> to vector<64x64xf32>
    %45 = vector.extract_strided_slice %38 {offsets = [16, 0], sizes = [64, 64], strides = [1, 1]} : vector<88x64xf32> to vector<64x64xf32>
    %46 = vector.extract_strided_slice %38 {offsets = [17, 0], sizes = [64, 64], strides = [1, 1]} : vector<88x64xf32> to vector<64x64xf32>
    %47 = vector.extract_strided_slice %38 {offsets = [18, 0], sizes = [64, 64], strides = [1, 1]} : vector<88x64xf32> to vector<64x64xf32>
    %48 = tpu.concatenate %39, %40, %41, %42, %43, %44, %45, %46, %47 in 1 : vector<64x64xf32>, vector<64x64xf32>, vector<64x64xf32>, vector<64x64xf32>, vector<64x64xf32>, vector<64x64xf32>, vector<64x64xf32>, vector<64x64xf32>, vector<64x64xf32> -> vector<64x576xf32>
    %49 = arith.truncf %48 : vector<64x576xf32> to vector<64x576xbf16>
    %cst_27 = arith.constant dense<0.000000e+00> : vector<64x32xf32>
    %50 = tpu.matmul %49, %18, %cst_27 {dimension_numbers = #tpu.dot_dimension_numbers<[1], [0], [0], [1], [0, 0, 1, 1], [], []>} : vector<64x576xbf16>, vector<576x32xbf16>, vector<64x32xf32> -> vector<64x32xf32>
    %51 = vector.broadcast %19 : vector<1x32xf32> to vector<64x32xf32>
    %52 = arith.addf %50, %51 : vector<64x32xf32>
    %cst_28 = arith.constant 0.000000e+00 : f32
    %53 = vector.broadcast %cst_28 : f32 to vector<64x32xf32>
    %54 = arith.maximumf %52, %53 : vector<64x32xf32>
    %cst_29 = arith.constant 0.000000e+00 : f32
    %55 = vector.broadcast %cst_29 : f32 to vector<24x32xf32>
    %56 = tpu.concatenate %54, %55 in 0 : vector<64x32xf32>, vector<24x32xf32> -> vector<88x32xf32>
    %57 = vector.extract_strided_slice %56 {offsets = [0, 0], sizes = [64, 32], strides = [1, 1]} : vector<88x32xf32> to vector<64x32xf32>
    %58 = vector.extract_strided_slice %56 {offsets = [1, 0], sizes = [64, 32], strides = [1, 1]} : vector<88x32xf32> to vector<64x32xf32>
    %59 = vector.extract_strided_slice %56 {offsets = [2, 0], sizes = [64, 32], strides = [1, 1]} : vector<88x32xf32> to vector<64x32xf32>
    %60 = vector.extract_strided_slice %56 {offsets = [8, 0], sizes = [64, 32], strides = [1, 1]} : vector<88x32xf32> to vector<64x32xf32>
    %61 = vector.extract_strided_slice %56 {offsets = [9, 0], sizes = [64, 32], strides = [1, 1]} : vector<88x32xf32> to vector<64x32xf32>
    %62 = vector.extract_strided_slice %56 {offsets = [10, 0], sizes = [64, 32], strides = [1, 1]} : vector<88x32xf32> to vector<64x32xf32>
    %63 = vector.extract_strided_slice %56 {offsets = [16, 0], sizes = [64, 32], strides = [1, 1]} : vector<88x32xf32> to vector<64x32xf32>
    %64 = vector.extract_strided_slice %56 {offsets = [17, 0], sizes = [64, 32], strides = [1, 1]} : vector<88x32xf32> to vector<64x32xf32>
    %65 = vector.extract_strided_slice %56 {offsets = [18, 0], sizes = [64, 32], strides = [1, 1]} : vector<88x32xf32> to vector<64x32xf32>
    %66 = tpu.concatenate %57, %58, %59, %60, %61, %62, %63, %64, %65 in 1 : vector<64x32xf32>, vector<64x32xf32>, vector<64x32xf32>, vector<64x32xf32>, vector<64x32xf32>, vector<64x32xf32>, vector<64x32xf32>, vector<64x32xf32>, vector<64x32xf32> -> vector<64x288xf32>
    %67 = arith.truncf %66 : vector<64x288xf32> to vector<64x288xbf16>
    %cst_30 = arith.constant dense<0.000000e+00> : vector<64x16xf32>
    %68 = tpu.matmul %67, %20, %cst_30 {dimension_numbers = #tpu.dot_dimension_numbers<[1], [0], [0], [1], [0, 0, 1, 1], [], []>} : vector<64x288xbf16>, vector<288x16xbf16>, vector<64x16xf32> -> vector<64x16xf32>
    %69 = vector.broadcast %21 : vector<1x16xf32> to vector<64x16xf32>
    %70 = arith.addf %68, %69 : vector<64x16xf32>
    %cst_31 = arith.constant 0.000000e+00 : f32
    %71 = vector.broadcast %cst_31 : f32 to vector<64x16xf32>
    %72 = arith.maximumf %70, %71 : vector<64x16xf32>
    %73 = vector.extract_strided_slice %72 {offsets = [0, 0], sizes = [1, 16], strides = [1, 1]} : vector<64x16xf32> to vector<1x16xf32>
    %74 = vector.extract_strided_slice %72 {offsets = [1, 0], sizes = [1, 16], strides = [1, 1]} : vector<64x16xf32> to vector<1x16xf32>
    %75 = vector.extract_strided_slice %72 {offsets = [2, 0], sizes = [1, 16], strides = [1, 1]} : vector<64x16xf32> to vector<1x16xf32>
    %76 = vector.extract_strided_slice %72 {offsets = [3, 0], sizes = [1, 16], strides = [1, 1]} : vector<64x16xf32> to vector<1x16xf32>
    %77 = vector.extract_strided_slice %72 {offsets = [8, 0], sizes = [1, 16], strides = [1, 1]} : vector<64x16xf32> to vector<1x16xf32>
    %78 = vector.extract_strided_slice %72 {offsets = [9, 0], sizes = [1, 16], strides = [1, 1]} : vector<64x16xf32> to vector<1x16xf32>
    %79 = vector.extract_strided_slice %72 {offsets = [10, 0], sizes = [1, 16], strides = [1, 1]} : vector<64x16xf32> to vector<1x16xf32>
    %80 = vector.extract_strided_slice %72 {offsets = [11, 0], sizes = [1, 16], strides = [1, 1]} : vector<64x16xf32> to vector<1x16xf32>
    %81 = vector.extract_strided_slice %72 {offsets = [16, 0], sizes = [1, 16], strides = [1, 1]} : vector<64x16xf32> to vector<1x16xf32>
    %82 = vector.extract_strided_slice %72 {offsets = [17, 0], sizes = [1, 16], strides = [1, 1]} : vector<64x16xf32> to vector<1x16xf32>
    %83 = vector.extract_strided_slice %72 {offsets = [18, 0], sizes = [1, 16], strides = [1, 1]} : vector<64x16xf32> to vector<1x16xf32>
    %84 = vector.extract_strided_slice %72 {offsets = [19, 0], sizes = [1, 16], strides = [1, 1]} : vector<64x16xf32> to vector<1x16xf32>
    %85 = vector.extract_strided_slice %72 {offsets = [24, 0], sizes = [1, 16], strides = [1, 1]} : vector<64x16xf32> to vector<1x16xf32>
    %86 = vector.extract_strided_slice %72 {offsets = [25, 0], sizes = [1, 16], strides = [1, 1]} : vector<64x16xf32> to vector<1x16xf32>
    %87 = vector.extract_strided_slice %72 {offsets = [26, 0], sizes = [1, 16], strides = [1, 1]} : vector<64x16xf32> to vector<1x16xf32>
    %88 = vector.extract_strided_slice %72 {offsets = [27, 0], sizes = [1, 16], strides = [1, 1]} : vector<64x16xf32> to vector<1x16xf32>
    %89 = tpu.concatenate %73, %74, %75, %76, %77, %78, %79, %80, %81, %82, %83, %84, %85, %86, %87, %88 in 1 : vector<1x16xf32>, vector<1x16xf32>, vector<1x16xf32>, vector<1x16xf32>, vector<1x16xf32>, vector<1x16xf32>, vector<1x16xf32>, vector<1x16xf32>, vector<1x16xf32>, vector<1x16xf32>, vector<1x16xf32>, vector<1x16xf32>, vector<1x16xf32>, vector<1x16xf32>, vector<1x16xf32>, vector<1x16xf32> -> vector<1x256xf32>
    %90 = arith.truncf %89 : vector<1x256xf32> to vector<1x256xbf16>
    %cst_32 = arith.constant dense<0.000000e+00> : vector<1x32xf32>
    %91 = tpu.matmul %90, %22, %cst_32 {dimension_numbers = #tpu.dot_dimension_numbers<[1], [0], [0], [1], [0, 0, 1, 1], [], []>} : vector<1x256xbf16>, vector<256x32xbf16>, vector<1x32xf32> -> vector<1x32xf32>
    %92 = arith.addf %91, %23 : vector<1x32xf32>
    %c0_33 = arith.constant 0 : index
    %c0_34 = arith.constant 0 : index
    %93 = vector.load %arg10[%c0_33, %c0_34] : memref<1x32xf32, #tpu.memory_space<vmem>>, vector<1x32xf32>
    tpu.vector_store %arg10[%c0_33, %c0_34], %92 {strides = array<i32>} : memref<1x32xf32, #tpu.memory_space<vmem>>, vector<1x32xf32>,
    return
  }
}

module attributes {stable_mosaic.version = 11 : i64} {
  func.func @_warp_kernel(%arg0: memref<2x256xf32, #tpu.memory_space<vmem>>, %arg1: memref<3x256xf32, #tpu.memory_space<vmem>>, %arg2: memref<3x256xf32, #tpu.memory_space<vmem>>) attributes {dimension_semantics = [], scalar_prefetch = 0 : i64, scratch_operands = 0 : i64, tpu.core_type = #tpu.core_type<tc>} {
    %c0 = arith.constant 0 : index
    %c0_0 = arith.constant 0 : index
    %0 = vector.load %arg0[%c0, %c0_0] : memref<2x256xf32, #tpu.memory_space<vmem>>, vector<1x256xf32>
    %c1 = arith.constant 1 : index
    %c0_1 = arith.constant 0 : index
    %1 = vector.load %arg0[%c1, %c0_1] : memref<2x256xf32, #tpu.memory_space<vmem>>, vector<1x256xf32>
    %2 = tpu.iota {dimensions = array<i32: 0>} : vector<16x256xi32>
    %3 = arith.sitofp %2 : vector<16x256xi32> to vector<16x256xf32>
    %4 = tpu.iota {dimensions = array<i32: 0>} : vector<16x256xi32>
    %5 = arith.sitofp %4 : vector<16x256xi32> to vector<16x256xf32>
    %6 = vector.broadcast %0 : vector<1x256xf32> to vector<16x256xf32>
    %7 = arith.subf %3, %6 : vector<16x256xf32>
    %8 = math.absf %7 : vector<16x256xf32>
    %cst = arith.constant 1.000000e+00 : f32
    %9 = vector.broadcast %cst : f32 to vector<16x256xf32>
    %10 = arith.subf %9, %8 : vector<16x256xf32>
    %cst_2 = arith.constant 0.000000e+00 : f32
    %11 = vector.broadcast %cst_2 : f32 to vector<16x256xf32>
    %12 = arith.maximumf %10, %11 : vector<16x256xf32>
    %13 = vector.broadcast %1 : vector<1x256xf32> to vector<16x256xf32>
    %14 = arith.subf %5, %13 : vector<16x256xf32>
    %15 = math.absf %14 : vector<16x256xf32>
    %cst_3 = arith.constant 1.000000e+00 : f32
    %16 = vector.broadcast %cst_3 : f32 to vector<16x256xf32>
    %17 = arith.subf %16, %15 : vector<16x256xf32>
    %cst_4 = arith.constant 0.000000e+00 : f32
    %18 = vector.broadcast %cst_4 : f32 to vector<16x256xf32>
    %19 = arith.maximumf %17, %18 : vector<16x256xf32>
    %20 = vector.shape_cast %19 : vector<16x256xf32> to vector<16x1x256xf32>
    %21 = vector.shape_cast %12 : vector<16x256xf32> to vector<1x16x256xf32>
    %22 = vector.broadcast %20 : vector<16x1x256xf32> to vector<16x16x256xf32>
    %23 = vector.broadcast %21 : vector<1x16x256xf32> to vector<16x16x256xf32>
    %24 = arith.mulf %22, %23 : vector<16x16x256xf32>
    %25 = vector.shape_cast %24 : vector<16x16x256xf32> to vector<256x256xf32>
    %c0_5 = arith.constant 0 : index
    %c0_6 = arith.constant 0 : index
    %26 = vector.load %arg1[%c0_5, %c0_6] : memref<3x256xf32, #tpu.memory_space<vmem>>, vector<3x256xf32>
    %cst_7 = arith.constant dense<0.000000e+00> : vector<3x256xf32>
    %27 = tpu.matmul %26, %25, %cst_7 {dimension_numbers = #tpu.dot_dimension_numbers<[1], [0], [0], [1], [0, 0, 1, 1], [], []>} : vector<3x256xf32>, vector<256x256xf32>, vector<3x256xf32> -> vector<3x256xf32>
    %c0_8 = arith.constant 0 : index
    %c0_9 = arith.constant 0 : index
    %28 = vector.load %arg2[%c0_8, %c0_9] : memref<3x256xf32, #tpu.memory_space<vmem>>, vector<3x256xf32>
    tpu.vector_store %arg2[%c0_8, %c0_9], %27 {strides = array<i32>} : memref<3x256xf32, #tpu.memory_space<vmem>>, vector<3x256xf32>,
    return
  }
}

</mosaic_0001>

<llo_original>
// kernel: geo_api_forward.5
$region0: #{geo_api_forward.5}
  #allocation0 [shape = 'u32[]', space=smem, size = 0x4, offset = 0x4, fixed_abs, tag = 'smem constant byte address 0x4 - core index']
  #allocation1 [shape = 'u32[144,128]{1,0:T(1,128)}', space=vmem, size = 0x12000, scoped, tag = 'internal scratch']
  %s0 = inlined_call_operand.vmem [shape: f32[2,512], index: 0, kind: input, shape index: {}]
  %s1 = inlined_call_operand.vmem [shape: f32[3,256], index: 1, kind: input, shape index: {}]
  %s2 = inlined_call_operand.vmem [shape: f32[3,512], index: 2, kind: output, shape index: {}]
  %s3 = sld [smem:[#allocation0]]
  $region18: #{geo_api_forward.5} parent=0
    _
  %s5 = ssub.s32 1, %s3
  %s6 = scalar_select 0, %s5, %s3
  // Predicated region
  $region2: #{geo_api_forward.5} parent=0 // pred_check
    _
  $region3: #{geo_api_forward.5} parent=0 // pred_check_branch
    %8 = sbr.rel (0) target = $region5
  $region4: #{geo_api_forward.5} parent=0 // pred_region
    _
  $region5: #{geo_api_forward.5} parent=0 // pred_fallthru
    _
  // Predicated region
  $region6: #{geo_api_forward.5} parent=0 // pred_check
    _
  $region7: #{geo_api_forward.5} parent=0 // pred_check_branch
    %10 = sbr.rel (0) target = $region9
  $region8: #{geo_api_forward.5} parent=0 // pred_region
    _
  $region9: #{geo_api_forward.5} parent=0 // pred_fallthru
    _
  %v11 = vld [vmem:[%s0] ss:$2 sm:$0xf]
  %s12 = scalar_lea.vmem %s0, 1
  %v13 = vld [vmem:[%s12] ss:$2 sm:$0xf]
  %v14 = vlaneseq
  %v15 = vshrl.u32 %v14, 7
  %v16 = vadd.s32 %v15, 8
  %v17 = vcvt.s32.f32 %v15
  %v18 = vcvt.s32.f32 %v16
  %v20 = vlaneseq
  %v21 = vshrl.u32 %v20, 7
  %v22 = vsub.s32 0, %v21
  %v23 = vrot.slane %v11, %v22
  %v24 = vlaneseq
  %v25 = vshrl.u32 %v24, 7
  %v26 = vsub.s32 1, %v25
  %v27 = vrot.slane %v11, %v26
  %v28 = vlaneseq
  %v29 = vshrl.u32 %v28, 7
  %v30 = vsub.s32 2, %v29
  %v31 = vrot.slane %v11, %v30
  %v32 = vlaneseq
  %v33 = vshrl.u32 %v32, 7
  %v34 = vsub.s32 3, %v33
  %v35 = vrot.slane %v11, %v34
  %v40 = vsub.f32 %v17, %v23
  %v41 = vsub.f32 %v17, %v27
  %v42 = vsub.f32 %v17, %v31
  %v43 = vsub.f32 %v17, %v35
  %v44 = vsub.f32 %v18, %v23
  %v45 = vsub.f32 %v18, %v27
  %v46 = vsub.f32 %v18, %v31
  %v47 = vsub.f32 %v18, %v35
  %v48 = vand.u32 2147483647, %v40
  %v49 = vand.u32 2147483647, %v41
  %v50 = vand.u32 2147483647, %v42
  %v51 = vand.u32 2147483647, %v43
  %v52 = vand.u32 2147483647, %v44
  %v53 = vand.u32 2147483647, %v45
  %v54 = vand.u32 2147483647, %v46
  %v55 = vand.u32 2147483647, %v47
  %v56 = vsub.f32 1.0, %v48
  %v57 = vsub.f32 1.0, %v49
  %v58 = vsub.f32 1.0, %v50
  %v59 = vsub.f32 1.0, %v51
  %v60 = vsub.f32 1.0, %v52
  %v61 = vsub.f32 1.0, %v53
  %v62 = vsub.f32 1.0, %v54
  %v63 = vsub.f32 1.0, %v55
  %v64 = vmax.f32 %v56, 0.0
  %v65 = vmax.f32 %v57, 0.0
  %v66 = vmax.f32 %v58, 0.0
  %v67 = vmax.f32 %v59, 0.0
  %v68 = vmax.f32 %v60, 0.0
  %v69 = vmax.f32 %v61, 0.0
  %v70 = vmax.f32 %v62, 0.0
  %v71 = vmax.f32 %v63, 0.0
  %v73 = vlaneseq
  %v74 = vshrl.u32 %v73, 7
  %v75 = vsub.s32 0, %v74
  %v76 = vrot.slane %v13, %v75
  %v77 = vlaneseq
  %v78 = vshrl.u32 %v77, 7
  %v79 = vsub.s32 1, %v78
  %v80 = vrot.slane %v13, %v79
  %v81 = vlaneseq
  %v82 = vshrl.u32 %v81, 7
  %v83 = vsub.s32 2, %v82
  %v84 = vrot.slane %v13, %v83
  %v85 = vlaneseq
  %v86 = vshrl.u32 %v85, 7
  %v87 = vsub.s32 3, %v86
  %v88 = vrot.slane %v13, %v87
  %v93 = vsub.f32 %v17, %v76
  %v94 = vsub.f32 %v17, %v80
  %v95 = vsub.f32 %v17, %v84
  %v96 = vsub.f32 %v17, %v88
  %v97 = vsub.f32 %v18, %v76
  %v98 = vsub.f32 %v18, %v80
  %v99 = vsub.f32 %v18, %v84
  %v100 = vsub.f32 %v18, %v88
  %v101 = vand.u32 2147483647, %v93
  %v102 = vand.u32 2147483647, %v94
  %v103 = vand.u32 2147483647, %v95
  %v104 = vand.u32 2147483647, %v96
  %v105 = vand.u32 2147483647, %v97
  %v106 = vand.u32 2147483647, %v98
  %v107 = vand.u32 2147483647, %v99
  %v108 = vand.u32 2147483647, %v100
  %v109 = vsub.f32 1.0, %v101
  %v110 = vsub.f32 1.0, %v102
  %v111 = vsub.f32 1.0, %v103
  %v112 = vsub.f32 1.0, %v104
  %v113 = vsub.f32 1.0, %v105
  %v114 = vsub.f32 1.0, %v106
  %v115 = vsub.f32 1.0, %v107
  %v116 = vsub.f32 1.0, %v108
  %v117 = vmax.f32 %v109, 0.0
  %v118 = vmax.f32 %v110, 0.0
  %v119 = vmax.f32 %v111, 0.0
  %v120 = vmax.f32 %v112, 0.0
  %v121 = vmax.f32 %v113, 0.0
  %v122 = vmax.f32 %v114, 0.0
  %v123 = vmax.f32 %v115, 0.0
  %v124 = vmax.f32 %v116, 0.0
  %v133 = vcombine.low %v117, %v118
  %v134 = vcombine.high %v117, %v118
  %v135 = vcombine.low %v119, %v120
  %v136 = vcombine.high %v119, %v120
  %v138 = vunpack.c.l.s4 1966171168
  %v139 = vunpack.c.0.s8 %v138
  %v140 = vlaneseq
  %v141 = vshrl.u32 %v140, 7
  %v142 = vsub.s32 %v139, %v141
  %v143 = vrot.slane %v133, %v142
  %v145 = vunpack.c.l.s4 1966171168
  %v146 = vunpack.c.0.s8 %v145
  %v147 = vlaneseq
  %v148 = vshrl.u32 %v147, 7
  %v149 = vsub.s32 %v146, %v148
  %v150 = vrot.slane %v134, %v149
  %v152 = vunpack.c.l.s4 1966171168
  %v153 = vunpack.c.0.s8 %v152
  %v154 = vlaneseq
  %v155 = vshrl.u32 %v154, 7
  %v156 = vsub.s32 %v153, %v155
  %v157 = vrot.slane %v135, %v156
  %v159 = vunpack.c.l.s4 1966171168
  %v160 = vunpack.c.0.s8 %v159
  %v161 = vlaneseq
  %v162 = vshrl.u32 %v161, 7
  %v163 = vsub.s32 %v160, %v162
  %v164 = vrot.slane %v136, %v163
  %v165 = vcombine.low %v143, %v157
  %v166 = vcombine.high %v143, %v157
  %v167 = vcombine.low %v150, %v164
  %v168 = vcombine.high %v150, %v164
  %v170 = vunpack.c.l.s4 1966171168
  %v171 = vunpack.c.0.s8 %v170
  %v172 = vlaneseq
  %v173 = vshrl.u32 %v172, 7
  %v174 = vsub.s32 %v171, %v173
  %v175 = vrot.slane %v165, %v174
  %v177 = vunpack.c.l.s4 1966171168
  %v178 = vunpack.c.0.s8 %v177
  %v179 = vlaneseq
  %v180 = vshrl.u32 %v179, 7
  %v181 = vsub.s32 %v178, %v180
  %v182 = vrot.slane %v167, %v181
  %v184 = vunpack.c.l.s4 1966171168
  %v185 = vunpack.c.0.s8 %v184
  %v186 = vlaneseq
  %v187 = vshrl.u32 %v186, 7
  %v188 = vsub.s32 %v185, %v187
  %v189 = vrot.slane %v166, %v188
  %v191 = vunpack.c.l.s4 1966171168
  %v192 = vunpack.c.0.s8 %v191
  %v193 = vlaneseq
  %v194 = vshrl.u32 %v193, 7
  %v195 = vsub.s32 %v192, %v194
  %v196 = vrot.slane %v168, %v195
  %v197 = vcombine.high %v175, %v175
  %v198 = vcombine.high %v182, %v182
  %v199 = vcombine.high %v189, %v189
  %v200 = vcombine.high %v196, %v196
  %v201 = vcombine.low %v121, %v122
  %v202 = vcombine.high %v121, %v122
  %v203 = vcombine.low %v123, %v124
  %v204 = vcombine.high %v123, %v124
  %v206 = vunpack.c.l.s4 1966171168
  %v207 = vunpack.c.0.s8 %v206
  %v208 = vlaneseq
  %v209 = vshrl.u32 %v208, 7
  %v210 = vsub.s32 %v207, %v209
  %v211 = vrot.slane %v201, %v210
  %v213 = vunpack.c.l.s4 1966171168
  %v214 = vunpack.c.0.s8 %v213
  %v215 = vlaneseq
  %v216 = vshrl.u32 %v215, 7
  %v217 = vsub.s32 %v214, %v216
  %v218 = vrot.slane %v202, %v217
  %v220 = vunpack.c.l.s4 1966171168
  %v221 = vunpack.c.0.s8 %v220
  %v222 = vlaneseq
  %v223 = vshrl.u32 %v222, 7
  %v224 = vsub.s32 %v221, %v223
  %v225 = vrot.slane %v203, %v224
  %v227 = vunpack.c.l.s4 1966171168
  %v228 = vunpack.c.0.s8 %v227
  %v229 = vlaneseq
  %v230 = vshrl.u32 %v229, 7
  %v231 = vsub.s32 %v228, %v230
  %v232 = vrot.slane %v204, %v231
  %v233 = vcombine.low %v211, %v225
  %v234 = vcombine.high %v211, %v225
  %v235 = vcombine.low %v218, %v232
  %v236 = vcombine.high %v218, %v232
  %v238 = vunpack.c.l.s4 1966171168
  %v239 = vunpack.c.0.s8 %v238
  %v240 = vlaneseq
  %v241 = vshrl.u32 %v240, 7
  %v242 = vsub.s32 %v239, %v241
  %v243 = vrot.slane %v233, %v242
  %v245 = vunpack.c.l.s4 1966171168
  %v246 = vunpack.c.0.s8 %v245
  %v247 = vlaneseq
  %v248 = vshrl.u32 %v247, 7
  %v249 = vsub.s32 %v246, %v248
  %v250 = vrot.slane %v235, %v249
  %v252 = vunpack.c.l.s4 1966171168
  %v253 = vunpack.c.0.s8 %v252
  %v254 = vlaneseq
  %v255 = vshrl.u32 %v254, 7
  %v256 = vsub.s32 %v253, %v255
  %v257 = vrot.slane %v234, %v256
  %v259 = vunpack.c.l.s4 1966171168
  %v260 = vunpack.c.0.s8 %v259
  %v261 = vlaneseq
  %v262 = vshrl.u32 %v261, 7
  %v263 = vsub.s32 %v260, %v262
  %v264 = vrot.slane %v236, %v263
  %v265 = vcombine.high %v243, %v243
  %v266 = vcombine.high %v250, %v250
  %v267 = vcombine.high %v257, %v257
  %v268 = vcombine.high %v264, %v264
  %v269 = vlaneseq
  %v270 = vshrl.u32 %v269, 7
  %v271 = vsub.s32 0, %v270
  %v272 = vrot.slane %v175, %v271
  %v273 = vlaneseq
  %v274 = vshrl.u32 %v273, 7
  %v275 = vsub.s32 1, %v274
  %v276 = vrot.slane %v175, %v275
  %v277 = vlaneseq
  %v278 = vshrl.u32 %v277, 7
  %v279 = vsub.s32 2, %v278
  %v280 = vrot.slane %v175, %v279
  %v281 = vlaneseq
  %v282 = vshrl.u32 %v281, 7
  %v283 = vsub.s32 3, %v282
  %v284 = vrot.slane %v175, %v283
  %v285 = vlaneseq
  %v286 = vshrl.u32 %v285, 7
  %v287 = vsub.s32 0, %v286
  %v288 = vrot.slane %v189, %v287
  %v289 = vlaneseq
  %v290 = vshrl.u32 %v289, 7
  %v291 = vsub.s32 1, %v290
  %v292 = vrot.slane %v189, %v291
  %v293 = vlaneseq
  %v294 = vshrl.u32 %v293, 7
  %v295 = vsub.s32 2, %v294
  %v296 = vrot.slane %v189, %v295
  %v297 = vlaneseq
  %v298 = vshrl.u32 %v297, 7
  %v299 = vsub.s32 3, %v298
  %v300 = vrot.slane %v189, %v299
  %v301 = vlaneseq
  %v302 = vshrl.u32 %v301, 7
  %v303 = vsub.s32 0, %v302
  %v304 = vrot.slane %v197, %v303
  %v305 = vlaneseq
  %v306 = vshrl.u32 %v305, 7
  %v307 = vsub.s32 1, %v306
  %v308 = vrot.slane %v197, %v307
  %v309 = vlaneseq
  %v310 = vshrl.u32 %v309, 7
  %v311 = vsub.s32 2, %v310
  %v312 = vrot.slane %v197, %v311
  %v313 = vlaneseq
  %v314 = vshrl.u32 %v313, 7
  %v315 = vsub.s32 3, %v314
  %v316 = vrot.slane %v197, %v315
  %v317 = vlaneseq
  %v318 = vshrl.u32 %v317, 7
  %v319 = vsub.s32 0, %v318
  %v320 = vrot.slane %v199, %v319
  %v321 = vlaneseq
  %v322 = vshrl.u32 %v321, 7
  %v323 = vsub.s32 1, %v322
  %v324 = vrot.slane %v199, %v323
  %v325 = vlaneseq
  %v326 = vshrl.u32 %v325, 7
  %v327 = vsub.s32 2, %v326
  %v328 = vrot.slane %v199, %v327
  %v329 = vlaneseq
  %v330 = vshrl.u32 %v329, 7
  %v331 = vsub.s32 3, %v330
  %v332 = vrot.slane %v199, %v331
  %v333 = vlaneseq
  %v334 = vshrl.u32 %v333, 7
  %v335 = vsub.s32 0, %v334
  %v336 = vrot.slane %v182, %v335
  %v337 = vlaneseq
  %v338 = vshrl.u32 %v337, 7
  %v339 = vsub.s32 1, %v338
  %v340 = vrot.slane %v182, %v339
  %v341 = vlaneseq
  %v342 = vshrl.u32 %v341, 7
  %v343 = vsub.s32 2, %v342
  %v344 = vrot.slane %v182, %v343
  %v345 = vlaneseq
  %v346 = vshrl.u32 %v345, 7
  %v347 = vsub.s32 3, %v346
  %v348 = vrot.slane %v182, %v347
  %v349 = vlaneseq
  %v350 = vshrl.u32 %v349, 7
  %v351 = vsub.s32 0, %v350
  %v352 = vrot.slane %v196, %v351
  %v353 = vlaneseq
  %v354 = vshrl.u32 %v353, 7
  %v355 = vsub.s32 1, %v354
  %v356 = vrot.slane %v196, %v355
  %v357 = vlaneseq
  %v358 = vshrl.u32 %v357, 7
  %v359 = vsub.s32 2, %v358
  %v360 = vrot.slane %v196, %v359
  %v361 = vlaneseq
  %v362 = vshrl.u32 %v361, 7
  %v363 = vsub.s32 3, %v362
  %v364 = vrot.slane %v196, %v363
  %v365 = vlaneseq
  %v366 = vshrl.u32 %v365, 7
  %v367 = vsub.s32 0, %v366
  %v368 = vrot.slane %v198, %v367
  %v369 = vlaneseq
  %v370 = vshrl.u32 %v369, 7
  %v371 = vsub.s32 1, %v370
  %v372 = vrot.slane %v198, %v371
  %v373 = vlaneseq
  %v374 = vshrl.u32 %v373, 7
  %v375 = vsub.s32 2, %v374
  %v376 = vrot.slane %v198, %v375
  %v377 = vlaneseq
  %v378 = vshrl.u32 %v377, 7
  %v379 = vsub.s32 3, %v378
  %v380 = vrot.slane %v198, %v379
  %v381 = vlaneseq
  %v382 = vshrl.u32 %v381, 7
  %v383 = vsub.s32 0, %v382
  %v384 = vrot.slane %v200, %v383
  %v385 = vlaneseq
  %v386 = vshrl.u32 %v385, 7
  %v387 = vsub.s32 1, %v386
  %v388 = vrot.slane %v200, %v387
  %v389 = vlaneseq
  %v390 = vshrl.u32 %v389, 7
  %v391 = vsub.s32 2, %v390
  %v392 = vrot.slane %v200, %v391
  %v393 = vlaneseq
  %v394 = vshrl.u32 %v393, 7
  %v395 = vsub.s32 3, %v394
  %v396 = vrot.slane %v200, %v395
  %v397 = vlaneseq
  %v398 = vshrl.u32 %v397, 7
  %v399 = vsub.s32 0, %v398
  %v400 = vrot.slane %v243, %v399
  %v401 = vlaneseq
  %v402 = vshrl.u32 %v401, 7
  %v403 = vsub.s32 1, %v402
  %v404 = vrot.slane %v243, %v403
  %v405 = vlaneseq
  %v406 = vshrl.u32 %v405, 7
  %v407 = vsub.s32 2, %v406
  %v408 = vrot.slane %v243, %v407
  %v409 = vlaneseq
  %v410 = vshrl.u32 %v409, 7
  %v411 = vsub.s32 3, %v410
  %v412 = vrot.slane %v243, %v411
  %v413 = vlaneseq
  %v414 = vshrl.u32 %v413, 7
  %v415 = vsub.s32 0, %v414
  %v416 = vrot.slane %v257, %v415
  %v417 = vlaneseq
  %v418 = vshrl.u32 %v417, 7
  %v419 = vsub.s32 1, %v418
  %v420 = vrot.slane %v257, %v419
  %v421 = vlaneseq
  %v422 = vshrl.u32 %v421, 7
  %v423 = vsub.s32 2, %v422
  %v424 = vrot.slane %v257, %v423
  %v425 = vlaneseq
  %v426 = vshrl.u32 %v425, 7
  %v427 = vsub.s32 3, %v426
  %v428 = vrot.slane %v257, %v427
  %v429 = vlaneseq
  %v430 = vshrl.u32 %v429, 7
  %v431 = vsub.s32 0, %v430
  %v432 = vrot.slane %v265, %v431
  %v433 = vlaneseq
  %v434 = vshrl.u32 %v433, 7
  %v435 = vsub.s32 1, %v434
  %v436 = vrot.slane %v265, %v435
  %v437 = vlaneseq
  %v438 = vshrl.u32 %v437, 7
  %v439 = vsub.s32 2, %v438
  %v440 = vrot.slane %v265, %v439
  %v441 = vlaneseq
  %v442 = vshrl.u32 %v441, 7
  %v443 = vsub.s32 3, %v442
  %v444 = vrot.slane %v265, %v443
  %v445 = vlaneseq
  %v446 = vshrl.u32 %v445, 7
  %v447 = vsub.s32 0, %v446
  %v448 = vrot.slane %v267, %v447
  %v449 = vlaneseq
  %v450 = vshrl.u32 %v449, 7
  %v451 = vsub.s32 1, %v450
  %v452 = vrot.slane %v267, %v451
  %v453 = vlaneseq
  %v454 = vshrl.u32 %v453, 7
  %v455 = vsub.s32 2, %v454
  %v456 = vrot.slane %v267, %v455
  %v457 = vlaneseq
  %v458 = vshrl.u32 %v457, 7
  %v459 = vsub.s32 3, %v458
  %v460 = vrot.slane %v267, %v459
  %v461 = vlaneseq
  %v462 = vshrl.u32 %v461, 7
  %v463 = vsub.s32 0, %v462
  %v464 = vrot.slane %v250, %v463
  %v465 = vlaneseq
  %v466 = vshrl.u32 %v465, 7
  %v467 = vsub.s32 1, %v466
  %v468 = vrot.slane %v250, %v467
  %v469 = vlaneseq
  %v470 = vshrl.u32 %v469, 7
  %v471 = vsub.s32 2, %v470
  %v472 = vrot.slane %v250, %v471
  %v473 = vlaneseq
  %v474 = vshrl.u32 %v473, 7
  %v475 = vsub.s32 3, %v474
  %v476 = vrot.slane %v250, %v475
  %v477 = vlaneseq
  %v478 = vshrl.u32 %v477, 7
  %v479 = vsub.s32 0, %v478
  %v480 = vrot.slane %v264, %v479
  %v481 = vlaneseq
  %v482 = vshrl.u32 %v481, 7
  %v483 = vsub.s32 1, %v482
  %v484 = vrot.slane %v264, %v483
  %v485 = vlaneseq
  %v486 = vshrl.u32 %v485, 7
  %v487 = vsub.s32 2, %v486
  %v488 = vrot.slane %v264, %v487
  %v489 = vlaneseq
  %v490 = vshrl.u32 %v489, 7
  %v491 = vsub.s32 3, %v490
  %v492 = vrot.slane %v264, %v491
  %v493 = vlaneseq
  %v494 = vshrl.u32 %v493, 7
  %v495 = vsub.s32 0, %v494
  %v496 = vrot.slane %v266, %v495
  %v497 = vlaneseq
  %v498 = vshrl.u32 %v497, 7
  %v499 = vsub.s32 1, %v498
  %v500 = vrot.slane %v266, %v499
  %v501 = vlaneseq
  %v502 = vshrl.u32 %v501, 7
  %v503 = vsub.s32 2, %v502
  %v504 = vrot.slane %v266, %v503
  %v505 = vlaneseq
  %v506 = vshrl.u32 %v505, 7
  %v507 = vsub.s32 3, %v506
  %v508 = vrot.slane %v266, %v507
  %v509 = vlaneseq
  %v510 = vshrl.u32 %v509, 7
  %v511 = vsub.s32 0, %v510
  %v512 = vrot.slane %v268, %v511
  %v513 = vlaneseq
  %v514 = vshrl.u32 %v513, 7
  %v515 = vsub.s32 1, %v514
  %v516 = vrot.slane %v268, %v515
  %v517 = vlaneseq
  %v518 = vshrl.u32 %v517, 7
  %v519 = vsub.s32 2, %v518
  %v520 = vrot.slane %v268, %v519
  %v521 = vlaneseq
  %v522 = vshrl.u32 %v521, 7
  %v523 = vsub.s32 3, %v522
  %v524 = vrot.slane %v268, %v523
  %v589 = vmul.f32 %v272, %v64
  %v590 = vmul.f32 %v276, %v65
  %v591 = vmul.f32 %v280, %v66
  %v592 = vmul.f32 %v284, %v67
  %v593 = vmul.f32 %v272, %v68
  %v594 = vmul.f32 %v276, %v69
  %v595 = vmul.f32 %v280, %v70
  %v596 = vmul.f32 %v284, %v71
  %v597 = vmul.f32 %v288, %v64
  %v598 = vmul.f32 %v292, %v65
  %v599 = vmul.f32 %v296, %v66
  %v600 = vmul.f32 %v300, %v67
  %v601 = vmul.f32 %v288, %v68
  %v602 = vmul.f32 %v292, %v69
  %v603 = vmul.f32 %v296, %v70
  %v604 = vmul.f32 %v300, %v71
  %v605 = vmul.f32 %v304, %v64
  %v606 = vmul.f32 %v308, %v65
  %v607 = vmul.f32 %v312, %v66
  %v608 = vmul.f32 %v316, %v67
  %v609 = vmul.f32 %v304, %v68
  %v610 = vmul.f32 %v308, %v69
  %v611 = vmul.f32 %v312, %v70
  %v612 = vmul.f32 %v316, %v71
  %v613 = vmul.f32 %v320, %v64
  %v614 = vmul.f32 %v324, %v65
  %v615 = vmul.f32 %v328, %v66
  %v616 = vmul.f32 %v332, %v67
  %v617 = vmul.f32 %v320, %v68
  %v618 = vmul.f32 %v324, %v69
  %v619 = vmul.f32 %v328, %v70
  %v620 = vmul.f32 %v332, %v71
  %v621 = vmul.f32 %v336, %v64
  %v622 = vmul.f32 %v340, %v65
  %v623 = vmul.f32 %v344, %v66
  %v624 = vmul.f32 %v348, %v67
  %v625 = vmul.f32 %v336, %v68
  %v626 = vmul.f32 %v340, %v69
  %v627 = vmul.f32 %v344, %v70
  %v628 = vmul.f32 %v348, %v71
  %v629 = vmul.f32 %v352, %v64
  %v630 = vmul.f32 %v356, %v65
  %v631 = vmul.f32 %v360, %v66
  %v632 = vmul.f32 %v364, %v67
  %v633 = vmul.f32 %v352, %v68
  %v634 = vmul.f32 %v356, %v69
  %v635 = vmul.f32 %v360, %v70
  %v636 = vmul.f32 %v364, %v71
  %v637 = vmul.f32 %v368, %v64
  %v638 = vmul.f32 %v372, %v65
  %v639 = vmul.f32 %v376, %v66
  %v640 = vmul.f32 %v380, %v67
  %v641 = vmul.f32 %v368, %v68
  %v642 = vmul.f32 %v372, %v69
  %v643 = vmul.f32 %v376, %v70
  %v644 = vmul.f32 %v380, %v71
  %v645 = vmul.f32 %v384, %v64
  %v646 = vmul.f32 %v388, %v65
  %v647 = vmul.f32 %v392, %v66
  %v648 = vmul.f32 %v396, %v67
  %v649 = vmul.f32 %v384, %v68
  %v650 = vmul.f32 %v388, %v69
  %v651 = vmul.f32 %v392, %v70
  %v652 = vmul.f32 %v396, %v71
  %v653 = vmul.f32 %v400, %v64
  %v654 = vmul.f32 %v404, %v65
  %v655 = vmul.f32 %v408, %v66
  %v656 = vmul.f32 %v412, %v67
  %v657 = vmul.f32 %v400, %v68
  %v658 = vmul.f32 %v404, %v69
  %v659 = vmul.f32 %v408, %v70
  %v660 = vmul.f32 %v412, %v71
  %v661 = vmul.f32 %v416, %v64
  %v662 = vmul.f32 %v420, %v65
  %v663 = vmul.f32 %v424, %v66
  %v664 = vmul.f32 %v428, %v67
  %v665 = vmul.f32 %v416, %v68
  %v666 = vmul.f32 %v420, %v69
  %v667 = vmul.f32 %v424, %v70
  %v668 = vmul.f32 %v428, %v71
  %v669 = vmul.f32 %v432, %v64
  %v670 = vmul.f32 %v436, %v65
  %v671 = vmul.f32 %v440, %v66
  %v672 = vmul.f32 %v444, %v67
  %v673 = vmul.f32 %v432, %v68
  %v674 = vmul.f32 %v436, %v69
  %v675 = vmul.f32 %v440, %v70
  %v676 = vmul.f32 %v444, %v71
  %v677 = vmul.f32 %v448, %v64
  %v678 = vmul.f32 %v452, %v65
  %v679 = vmul.f32 %v456, %v66
  %v680 = vmul.f32 %v460, %v67
  %v681 = vmul.f32 %v448, %v68
  %v682 = vmul.f32 %v452, %v69
  %v683 = vmul.f32 %v456, %v70
  %v684 = vmul.f32 %v460, %v71
  %v685 = vmul.f32 %v464, %v64
  %v686 = vmul.f32 %v468, %v65
  %v687 = vmul.f32 %v472, %v66
  %v688 = vmul.f32 %v476, %v67
  %v689 = vmul.f32 %v464, %v68
  %v690 = vmul.f32 %v468, %v69
  %v691 = vmul.f32 %v472, %v70
  %v692 = vmul.f32 %v476, %v71
  %v693 = vmul.f32 %v480, %v64
  %v694 = vmul.f32 %v484, %v65
  %v695 = vmul.f32 %v488, %v66
  %v696 = vmul.f32 %v492, %v67
  %v697 = vmul.f32 %v480, %v68
  %v698 = vmul.f32 %v484, %v69
  %v699 = vmul.f32 %v488, %v70
  %v700 = vmul.f32 %v492, %v71
  %v701 = vmul.f32 %v496, %v64
  %v702 = vmul.f32 %v500, %v65
  %v703 = vmul.f32 %v504, %v66
  %v704 = vmul.f32 %v508, %v67
  %v705 = vmul.f32 %v496, %v68
  %v706 = vmul.f32 %v500, %v69
  %v707 = vmul.f32 %v504, %v70
  %v708 = vmul.f32 %v508, %v71
  %v709 = vmul.f32 %v512, %v64
  %v710 = vmul.f32 %v516, %v65
  %v711 = vmul.f32 %v520, %v66
  %v712 = vmul.f32 %v524, %v67
  %v713 = vmul.f32 %v512, %v68
  %v714 = vmul.f32 %v516, %v69
  %v715 = vmul.f32 %v520, %v70
  %v716 = vmul.f32 %v524, %v71
  %v717 = vld [vmem:[%s1] sm:$0x77]
  %v719 = vcombine.high %v717, %v717
  %721 = vmatprep.subr.mxu0 %v590
  %722 = vmatpush1.msra.mxu0 %v589
  %723 = vmatprep.subr.mxu0 %v594
  %724 = vmatpush1.msra.mxu0 %v593
  %725 = vmatprep.subr.mxu0 %v598
  %726 = vmatpush1.msra.mxu0 %v597
  %727 = vmatprep.subr.mxu0 %v602
  %728 = vmatpush1.msra.mxu0 %v601
  %729 = vmatprep.subr.mxu0 %v606
  %730 = vmatpush1.msra.mxu0 %v605
  %731 = vmatprep.subr.mxu0 %v610
  %732 = vmatpush1.msra.mxu0 %v609
  %733 = vmatprep.subr.mxu0 %v614
  %734 = vmatpush1.msra.mxu0 %v613
  %735 = vmatprep.subr.mxu0 %v618
  %736 = vmatpush1.msra.mxu0 %v617
  %737 = vmatprep.subr.mxu0 %v622
  %738 = vmatpush1.msra.mxu0 %v621
  %739 = vmatprep.subr.mxu0 %v626
  %740 = vmatpush1.msra.mxu0 %v625
  %741 = vmatprep.subr.mxu0 %v630
  %742 = vmatpush1.msra.mxu0 %v629
  %743 = vmatprep.subr.mxu0 %v634
  %744 = vmatpush1.msra.mxu0 %v633
  %745 = vmatprep.subr.mxu0 %v638
  %746 = vmatpush1.msra.mxu0 %v637
  %747 = vmatprep.subr.mxu0 %v642
  %748 = vmatpush1.msra.mxu0 %v641
  %749 = vmatprep.subr.mxu0 %v646
  %750 = vmatpush1.msra.mxu0 %v645
  %751 = vmatprep.subr.mxu0 %v650
  %752 = vmatpush1.msra.mxu0 %v649
  %753 = vmatprep.subr.mxu0 %v654
  %754 = vmatpush1.msra.mxu0 %v653
  %755 = vmatprep.subr.mxu0 %v658
  %756 = vmatpush1.msra.mxu0 %v657
  %757 = vmatprep.subr.mxu0 %v662
  %758 = vmatpush1.msra.mxu0 %v661
  %759 = vmatprep.subr.mxu0 %v666
  %760 = vmatpush1.msra.mxu0 %v665
  %761 = vmatprep.subr.mxu0 %v670
  %762 = vmatpush1.msra.mxu0 %v669
  %763 = vmatprep.subr.mxu0 %v674
  %764 = vmatpush1.msra.mxu0 %v673
  %765 = vmatprep.subr.mxu0 %v678
  %766 = vmatpush1.msra.mxu0 %v677
  %767 = vmatprep.subr.mxu0 %v682
  %768 = vmatpush1.msra.mxu0 %v681
  %769 = vmatprep.subr.mxu0 %v686
  %770 = vmatpush1.msra.mxu0 %v685
  %771 = vmatprep.subr.mxu0 %v690
  %772 = vmatpush1.msra.mxu0 %v689
  %773 = vmatprep.subr.mxu0 %v694
  %774 = vmatpush1.msra.mxu0 %v693
  %775 = vmatprep.subr.mxu0 %v698
  %776 = vmatpush1.msra.mxu0 %v697
  %777 = vmatprep.subr.mxu0 %v702
  %778 = vmatpush1.msra.mxu0 %v701
  %779 = vmatprep.subr.mxu0 %v706
  %780 = vmatpush1.msra.mxu0 %v705
  %781 = vmatprep.subr.mxu0 %v710
  %782 = vmatpush1.msra.mxu0 %v709
  %783 = vmatprep.subr.mxu0 %v714
  %784 = vmatpush1.msra.mxu0 %v713
  %785 = vmatprep.mubr.f32.mxu0 %v719
  %786 = vmatmul.mubr.f32.gmra.mrb[0].mxu0 %v717
  %v787 = vpop.f32.mrb[0].mxu0
  %v788 = vadd.f32 0.0, %v787
  %v789 = vpop.f32.mrb[0].mxu0
  %v790 = vadd.f32 0.0, %v789
  %791 = vdwg.mxu0
  %792 = vmatprep.subr.mxu0 %v592
  %793 = vmatpush1.msra.mxu0 %v591
  %794 = vmatprep.subr.mxu0 %v596
  %795 = vmatpush1.msra.mxu0 %v595
  %796 = vmatprep.subr.mxu0 %v600
  %797 = vmatpush1.msra.mxu0 %v599
  %798 = vmatprep.subr.mxu0 %v604
  %799 = vmatpush1.msra.mxu0 %v603
  %800 = vmatprep.subr.mxu0 %v608
  %801 = vmatpush1.msra.mxu0 %v607
  %802 = vmatprep.subr.mxu0 %v612
  %803 = vmatpush1.msra.mxu0 %v611
  %804 = vmatprep.subr.mxu0 %v616
  %805 = vmatpush1.msra.mxu0 %v615
  %806 = vmatprep.subr.mxu0 %v620
  %807 = vmatpush1.msra.mxu0 %v619
  %808 = vmatprep.subr.mxu0 %v624
  %809 = vmatpush1.msra.mxu0 %v623
  %810 = vmatprep.subr.mxu0 %v628
  %811 = vmatpush1.msra.mxu0 %v627
  %812 = vmatprep.subr.mxu0 %v632
  %813 = vmatpush1.msra.mxu0 %v631
  %814 = vmatprep.subr.mxu0 %v636
  %815 = vmatpush1.msra.mxu0 %v635
  %816 = vmatprep.subr.mxu0 %v640
  %817 = vmatpush1.msra.mxu0 %v639
  %818 = vmatprep.subr.mxu0 %v644
  %819 = vmatpush1.msra.mxu0 %v643
  %820 = vmatprep.subr.mxu0 %v648
  %821 = vmatpush1.msra.mxu0 %v647
  %822 = vmatprep.subr.mxu0 %v652
  %823 = vmatpush1.msra.mxu0 %v651
  %824 = vmatprep.subr.mxu0 %v656
  %825 = vmatpush1.msra.mxu0 %v655
  %826 = vmatprep.subr.mxu0 %v660
  %827 = vmatpush1.msra.mxu0 %v659
  %828 = vmatprep.subr.mxu0 %v664
  %829 = vmatpush1.msra.mxu0 %v663
  %830 = vmatprep.subr.mxu0 %v668
  %831 = vmatpush1.msra.mxu0 %v667
  %832 = vmatprep.subr.mxu0 %v672
  %833 = vmatpush1.msra.mxu0 %v671
  %834 = vmatprep.subr.mxu0 %v676
  %835 = vmatpush1.msra.mxu0 %v675
  %836 = vmatprep.subr.mxu0 %v680
  %837 = vmatpush1.msra.mxu0 %v679
  %838 = vmatprep.subr.mxu0 %v684
  %839 = vmatpush1.msra.mxu0 %v683
  %840 = vmatprep.subr.mxu0 %v688
  %841 = vmatpush1.msra.mxu0 %v687
  %842 = vmatprep.subr.mxu0 %v692
  %843 = vmatpush1.msra.mxu0 %v691
  %844 = vmatprep.subr.mxu0 %v696
  %845 = vmatpush1.msra.mxu0 %v695
  %846 = vmatprep.subr.mxu0 %v700
  %847 = vmatpush1.msra.mxu0 %v699
  %848 = vmatprep.subr.mxu0 %v704
  %849 = vmatpush1.msra.mxu0 %v703
  %850 = vmatprep.subr.mxu0 %v708
  %851 = vmatpush1.msra.mxu0 %v707
  %852 = vmatprep.subr.mxu0 %v712
  %853 = vmatpush1.msra.mxu0 %v711
  %854 = vmatprep.subr.mxu0 %v716
  %855 = vmatpush1.msra.mxu0 %v715
  %856 = vmatprep.mubr.f32.mxu0 %v719
  %857 = vmatmul.mubr.f32.gmra.mrb[0].mxu0 %v717
  %v858 = vpop.f32.mrb[0].mxu0
  %v859 = vadd.f32 0.0, %v858
  %v860 = vpop.f32.mrb[0].mxu0
  %v861 = vadd.f32 0.0, %v860
  %862 = vdwg.mxu0
  %v867 = vcombine.low %v788, %v790
  %v868 = vcombine.low %v859, %v861
  %871 = vst [vmem:[%s2] sm:$0x77] %v867
  %872 = vst [vmem:[%s2 + $0x8] sm:$0x77] %v868
  // Predicated region
  $region10: #{geo_api_forward.5} parent=0 // pred_check
    _
  $region11: #{geo_api_forward.5} parent=0 // pred_check_branch
    %874 = sbr.rel (0) target = $region13
  $region12: #{geo_api_forward.5} parent=0 // pred_region
    _
  $region13: #{geo_api_forward.5} parent=0 // pred_fallthru
    _
  // Predicated region
  $region14: #{geo_api_forward.5} parent=0 // pred_check
    _
  $region15: #{geo_api_forward.5} parent=0 // pred_check_branch
    %876 = sbr.rel (0) target = $region17
  $region16: #{geo_api_forward.5} parent=0 // pred_region
    _
  $region17: #{geo_api_forward.5} parent=0 // pred_fallthru
    _

// kernel: geo_api_forward.7
$region0: #{geo_api_forward.7}
  #allocation0 [shape = 'u32[]', space=smem, size = 0x4, offset = 0x4, fixed_abs, tag = 'smem constant byte address 0x4 - core index']
  #allocation1 [shape = 'u32[144,128]{1,0:T(1,128)}', space=vmem, size = 0x12000, scoped, tag = 'internal scratch']
  %s0 = inlined_call_operand.vmem [shape: f32[2,256], index: 0, kind: input, shape index: {}]
  %s1 = inlined_call_operand.vmem [shape: f32[3,256], index: 1, kind: input, shape index: {}]
  %s2 = inlined_call_operand.vmem [shape: f32[3,256], index: 2, kind: output, shape index: {}]
  %s3 = sld [smem:[#allocation0]]
  $region18: #{geo_api_forward.7} parent=0
    _
  %s5 = ssub.s32 1, %s3
  %s6 = scalar_select 0, %s5, %s3
  // Predicated region
  $region2: #{geo_api_forward.7} parent=0 // pred_check
    _
  $region3: #{geo_api_forward.7} parent=0 // pred_check_branch
    %8 = sbr.rel (0) target = $region5
  $region4: #{geo_api_forward.7} parent=0 // pred_region
    _
  $region5: #{geo_api_forward.7} parent=0 // pred_fallthru
    _
  // Predicated region
  $region6: #{geo_api_forward.7} parent=0 // pred_check
    _
  $region7: #{geo_api_forward.7} parent=0 // pred_check_branch
    %10 = sbr.rel (0) target = $region9
  $region8: #{geo_api_forward.7} parent=0 // pred_region
    _
  $region9: #{geo_api_forward.7} parent=0 // pred_fallthru
    _
  %v11 = vld [vmem:[%s0] ss:$2 sm:$0x3]
  %s12 = scalar_lea.vmem %s0, 1
  %v13 = vld [vmem:[%s12] ss:$2 sm:$0x3]
  %v14 = vlaneseq
  %v15 = vshrl.u32 %v14, 7
  %v16 = vadd.s32 %v15, 8
  %v17 = vcvt.s32.f32 %v15
  %v18 = vcvt.s32.f32 %v16
  %v20 = vlaneseq
  %v21 = vshrl.u32 %v20, 7
  %v22 = vsub.s32 0, %v21
  %v23 = vrot.slane %v11, %v22
  %v24 = vlaneseq
  %v25 = vshrl.u32 %v24, 7
  %v26 = vsub.s32 1, %v25
  %v27 = vrot.slane %v11, %v26
  %v30 = vsub.f32 %v17, %v23
  %v31 = vsub.f32 %v17, %v27
  %v32 = vsub.f32 %v18, %v23
  %v33 = vsub.f32 %v18, %v27
  %v34 = vand.u32 2147483647, %v30
  %v35 = vand.u32 2147483647, %v31
  %v36 = vand.u32 2147483647, %v32
  %v37 = vand.u32 2147483647, %v33
  %v38 = vsub.f32 1.0, %v34
  %v39 = vsub.f32 1.0, %v35
  %v40 = vsub.f32 1.0, %v36
  %v41 = vsub.f32 1.0, %v37
  %v42 = vmax.f32 %v38, 0.0
  %v43 = vmax.f32 %v39, 0.0
  %v44 = vmax.f32 %v40, 0.0
  %v45 = vmax.f32 %v41, 0.0
  %v47 = vlaneseq
  %v48 = vshrl.u32 %v47, 7
  %v49 = vsub.s32 0, %v48
  %v50 = vrot.slane %v13, %v49
  %v51 = vlaneseq
  %v52 = vshrl.u32 %v51, 7
  %v53 = vsub.s32 1, %v52
  %v54 = vrot.slane %v13, %v53
  %v57 = vsub.f32 %v17, %v50
  %v58 = vsub.f32 %v17, %v54
  %v59 = vsub.f32 %v18, %v50
  %v60 = vsub.f32 %v18, %v54
  %v61 = vand.u32 2147483647, %v57
  %v62 = vand.u32 2147483647, %v58
  %v63 = vand.u32 2147483647, %v59
  %v64 = vand.u32 2147483647, %v60
  %v65 = vsub.f32 1.0, %v61
  %v66 = vsub.f32 1.0, %v62
  %v67 = vsub.f32 1.0, %v63
  %v68 = vsub.f32 1.0, %v64
  %v69 = vmax.f32 %v65, 0.0
  %v70 = vmax.f32 %v66, 0.0
  %v71 = vmax.f32 %v67, 0.0
  %v72 = vmax.f32 %v68, 0.0
  %v77 = vcombine.low %v69, %v70
  %v78 = vcombine.high %v69, %v70
  %v80 = vunpack.c.l.s4 1966171168
  %v81 = vunpack.c.0.s8 %v80
  %v82 = vlaneseq
  %v83 = vshrl.u32 %v82, 7
  %v84 = vsub.s32 %v81, %v83
  %v85 = vrot.slane %v77, %v84
  %v87 = vunpack.c.l.s4 1966171168
  %v88 = vunpack.c.0.s8 %v87
  %v89 = vlaneseq
  %v90 = vshrl.u32 %v89, 7
  %v91 = vsub.s32 %v88, %v90
  %v92 = vrot.slane %v78, %v91
  %v93 = vcombine.high %v85, %v85
  %v94 = vcombine.high %v92, %v92
  %v96 = vunpack.c.l.s4 1966171168
  %v97 = vunpack.c.0.s8 %v96
  %v98 = vlaneseq
  %v99 = vshrl.u32 %v98, 7
  %v100 = vsub.s32 %v97, %v99
  %v101 = vrot.slane %v85, %v100
  %v103 = vunpack.c.l.s4 1966171168
  %v104 = vunpack.c.0.s8 %v103
  %v105 = vlaneseq
  %v106 = vshrl.u32 %v105, 7
  %v107 = vsub.s32 %v104, %v106
  %v108 = vrot.slane %v92, %v107
  %v110 = vunpack.c.l.s4 1966171168
  %v111 = vunpack.c.0.s8 %v110
  %v112 = vlaneseq
  %v113 = vshrl.u32 %v112, 7
  %v114 = vsub.s32 %v111, %v113
  %v115 = vrot.slane %v93, %v114
  %v117 = vunpack.c.l.s4 1966171168
  %v118 = vunpack.c.0.s8 %v117
  %v119 = vlaneseq
  %v120 = vshrl.u32 %v119, 7
  %v121 = vsub.s32 %v118, %v120
  %v122 = vrot.slane %v94, %v121
  %v123 = vcombine.high %v101, %v101
  %v124 = vcombine.high %v108, %v108
  %v125 = vcombine.high %v115, %v115
  %v126 = vcombine.high %v122, %v122
  %v127 = vcombine.low %v71, %v72
  %v128 = vcombine.high %v71, %v72
  %v130 = vunpack.c.l.s4 1966171168
  %v131 = vunpack.c.0.s8 %v130
  %v132 = vlaneseq
  %v133 = vshrl.u32 %v132, 7
  %v134 = vsub.s32 %v131, %v133
  %v135 = vrot.slane %v127, %v134
  %v137 = vunpack.c.l.s4 1966171168
  %v138 = vunpack.c.0.s8 %v137
  %v139 = vlaneseq
  %v140 = vshrl.u32 %v139, 7
  %v141 = vsub.s32 %v138, %v140
  %v142 = vrot.slane %v128, %v141
  %v143 = vcombine.high %v135, %v135
  %v144 = vcombine.high %v142, %v142
  %v146 = vunpack.c.l.s4 1966171168
  %v147 = vunpack.c.0.s8 %v146
  %v148 = vlaneseq
  %v149 = vshrl.u32 %v148, 7
  %v150 = vsub.s32 %v147, %v149
  %v151 = vrot.slane %v135, %v150
  %v153 = vunpack.c.l.s4 1966171168
  %v154 = vunpack.c.0.s8 %v153
  %v155 = vlaneseq
  %v156 = vshrl.u32 %v155, 7
  %v157 = vsub.s32 %v154, %v156
  %v158 = vrot.slane %v142, %v157
  %v160 = vunpack.c.l.s4 1966171168
  %v161 = vunpack.c.0.s8 %v160
  %v162 = vlaneseq
  %v163 = vshrl.u32 %v162, 7
  %v164 = vsub.s32 %v161, %v163
  %v165 = vrot.slane %v143, %v164
  %v167 = vunpack.c.l.s4 1966171168
  %v168 = vunpack.c.0.s8 %v167
  %v169 = vlaneseq
  %v170 = vshrl.u32 %v169, 7
  %v171 = vsub.s32 %v168, %v170
  %v172 = vrot.slane %v144, %v171
  %v173 = vcombine.high %v151, %v151
  %v174 = vcombine.high %v158, %v158
  %v175 = vcombine.high %v165, %v165
  %v176 = vcombine.high %v172, %v172
  %v177 = vlaneseq
  %v178 = vshrl.u32 %v177, 7
  %v179 = vsub.s32 0, %v178
  %v180 = vrot.slane %v101, %v179
  %v181 = vlaneseq
  %v182 = vshrl.u32 %v181, 7
  %v183 = vsub.s32 1, %v182
  %v184 = vrot.slane %v101, %v183
  %v185 = vlaneseq
  %v186 = vshrl.u32 %v185, 7
  %v187 = vsub.s32 0, %v186
  %v188 = vrot.slane %v115, %v187
  %v189 = vlaneseq
  %v190 = vshrl.u32 %v189, 7
  %v191 = vsub.s32 1, %v190
  %v192 = vrot.slane %v115, %v191
  %v193 = vlaneseq
  %v194 = vshrl.u32 %v193, 7
  %v195 = vsub.s32 0, %v194
  %v196 = vrot.slane %v123, %v195
  %v197 = vlaneseq
  %v198 = vshrl.u32 %v197, 7
  %v199 = vsub.s32 1, %v198
  %v200 = vrot.slane %v123, %v199
  %v201 = vlaneseq
  %v202 = vshrl.u32 %v201, 7
  %v203 = vsub.s32 0, %v202
  %v204 = vrot.slane %v125, %v203
  %v205 = vlaneseq
  %v206 = vshrl.u32 %v205, 7
  %v207 = vsub.s32 1, %v206
  %v208 = vrot.slane %v125, %v207
  %v209 = vlaneseq
  %v210 = vshrl.u32 %v209, 7
  %v211 = vsub.s32 0, %v210
  %v212 = vrot.slane %v108, %v211
  %v213 = vlaneseq
  %v214 = vshrl.u32 %v213, 7
  %v215 = vsub.s32 1, %v214
  %v216 = vrot.slane %v108, %v215
  %v217 = vlaneseq
  %v218 = vshrl.u32 %v217, 7
  %v219 = vsub.s32 0, %v218
  %v220 = vrot.slane %v122, %v219
  %v221 = vlaneseq
  %v222 = vshrl.u32 %v221, 7
  %v223 = vsub.s32 1, %v222
  %v224 = vrot.slane %v122, %v223
  %v225 = vlaneseq
  %v226 = vshrl.u32 %v225, 7
  %v227 = vsub.s32 0, %v226
  %v228 = vrot.slane %v124, %v227
  %v229 = vlaneseq
  %v230 = vshrl.u32 %v229, 7
  %v231 = vsub.s32 1, %v230
  %v232 = vrot.slane %v124, %v231
  %v233 = vlaneseq
  %v234 = vshrl.u32 %v233, 7
  %v235 = vsub.s32 0, %v234
  %v236 = vrot.slane %v126, %v235
  %v237 = vlaneseq
  %v238 = vshrl.u32 %v237, 7
  %v239 = vsub.s32 1, %v238
  %v240 = vrot.slane %v126, %v239
  %v241 = vlaneseq
  %v242 = vshrl.u32 %v241, 7
  %v243 = vsub.s32 0, %v242
  %v244 = vrot.slane %v151, %v243
  %v245 = vlaneseq
  %v246 = vshrl.u32 %v245, 7
  %v247 = vsub.s32 1, %v246
  %v248 = vrot.slane %v151, %v247
  %v249 = vlaneseq
  %v250 = vshrl.u32 %v249, 7
  %v251 = vsub.s32 0, %v250
  %v252 = vrot.slane %v165, %v251
  %v253 = vlaneseq
  %v254 = vshrl.u32 %v253, 7
  %v255 = vsub.s32 1, %v254
  %v256 = vrot.slane %v165, %v255
  %v257 = vlaneseq
  %v258 = vshrl.u32 %v257, 7
  %v259 = vsub.s32 0, %v258
  %v260 = vrot.slane %v173, %v259
  %v261 = vlaneseq
  %v262 = vshrl.u32 %v261, 7
  %v263 = vsub.s32 1, %v262
  %v264 = vrot.slane %v173, %v263
  %v265 = vlaneseq
  %v266 = vshrl.u32 %v265, 7
  %v267 = vsub.s32 0, %v266
  %v268 = vrot.slane %v175, %v267
  %v269 = vlaneseq
  %v270 = vshrl.u32 %v269, 7
  %v271 = vsub.s32 1, %v270
  %v272 = vrot.slane %v175, %v271
  %v273 = vlaneseq
  %v274 = vshrl.u32 %v273, 7
  %v275 = vsub.s32 0, %v274
  %v276 = vrot.slane %v158, %v275
  %v277 = vlaneseq
  %v278 = vshrl.u32 %v277, 7
  %v279 = vsub.s32 1, %v278
  %v280 = vrot.slane %v158, %v279
  %v281 = vlaneseq
  %v282 = vshrl.u32 %v281, 7
  %v283 = vsub.s32 0, %v282
  %v284 = vrot.slane %v172, %v283
  %v285 = vlaneseq
  %v286 = vshrl.u32 %v285, 7
  %v287 = vsub.s32 1, %v286
  %v288 = vrot.slane %v172, %v287
  %v289 = vlaneseq
  %v290 = vshrl.u32 %v289, 7
  %v291 = vsub.s32 0, %v290
  %v292 = vrot.slane %v174, %v291
  %v293 = vlaneseq
  %v294 = vshrl.u32 %v293, 7
  %v295 = vsub.s32 1, %v294
  %v296 = vrot.slane %v174, %v295
  %v297 = vlaneseq
  %v298 = vshrl.u32 %v297, 7
  %v299 = vsub.s32 0, %v298
  %v300 = vrot.slane %v176, %v299
  %v301 = vlaneseq
  %v302 = vshrl.u32 %v301, 7
  %v303 = vsub.s32 1, %v302
  %v304 = vrot.slane %v176, %v303
  %v337 = vmul.f32 %v180, %v42
  %v338 = vmul.f32 %v184, %v43
  %v339 = vmul.f32 %v180, %v44
  %v340 = vmul.f32 %v184, %v45
  %v341 = vmul.f32 %v188, %v42
  %v342 = vmul.f32 %v192, %v43
  %v343 = vmul.f32 %v188, %v44
  %v344 = vmul.f32 %v192, %v45
  %v345 = vmul.f32 %v196, %v42
  %v346 = vmul.f32 %v200, %v43
  %v347 = vmul.f32 %v196, %v44
  %v348 = vmul.f32 %v200, %v45
  %v349 = vmul.f32 %v204, %v42
  %v350 = vmul.f32 %v208, %v43
  %v351 = vmul.f32 %v204, %v44
  %v352 = vmul.f32 %v208, %v45
  %v353 = vmul.f32 %v212, %v42
  %v354 = vmul.f32 %v216, %v43
  %v355 = vmul.f32 %v212, %v44
  %v356 = vmul.f32 %v216, %v45
  %v357 = vmul.f32 %v220, %v42
  %v358 = vmul.f32 %v224, %v43
  %v359 = vmul.f32 %v220, %v44
  %v360 = vmul.f32 %v224, %v45
  %v361 = vmul.f32 %v228, %v42
  %v362 = vmul.f32 %v232, %v43
  %v363 = vmul.f32 %v228, %v44
  %v364 = vmul.f32 %v232, %v45
  %v365 = vmul.f32 %v236, %v42
  %v366 = vmul.f32 %v240, %v43
  %v367 = vmul.f32 %v236, %v44
  %v368 = vmul.f32 %v240, %v45
  %v369 = vmul.f32 %v244, %v42
  %v370 = vmul.f32 %v248, %v43
  %v371 = vmul.f32 %v244, %v44
  %v372 = vmul.f32 %v248, %v45
  %v373 = vmul.f32 %v252, %v42
  %v374 = vmul.f32 %v256, %v43
  %v375 = vmul.f32 %v252, %v44
  %v376 = vmul.f32 %v256, %v45
  %v377 = vmul.f32 %v260, %v42
  %v378 = vmul.f32 %v264, %v43
  %v379 = vmul.f32 %v260, %v44
  %v380 = vmul.f32 %v264, %v45
  %v381 = vmul.f32 %v268, %v42
  %v382 = vmul.f32 %v272, %v43
  %v383 = vmul.f32 %v268, %v44
  %v384 = vmul.f32 %v272, %v45
  %v385 = vmul.f32 %v276, %v42
  %v386 = vmul.f32 %v280, %v43
  %v387 = vmul.f32 %v276, %v44
  %v388 = vmul.f32 %v280, %v45
  %v389 = vmul.f32 %v284, %v42
  %v390 = vmul.f32 %v288, %v43
  %v391 = vmul.f32 %v284, %v44
  %v392 = vmul.f32 %v288, %v45
  %v393 = vmul.f32 %v292, %v42
  %v394 = vmul.f32 %v296, %v43
  %v395 = vmul.f32 %v292, %v44
  %v396 = vmul.f32 %v296, %v45
  %v397 = vmul.f32 %v300, %v42
  %v398 = vmul.f32 %v304, %v43
  %v399 = vmul.f32 %v300, %v44
  %v400 = vmul.f32 %v304, %v45
  %v401 = vld [vmem:[%s1] sm:$0x77]
  %v403 = vcombine.high %v401, %v401
  %405 = vmatprep.subr.mxu0 %v338
  %406 = vmatpush1.msra.mxu0 %v337
  %407 = vmatprep.subr.mxu0 %v340
  %408 = vmatpush1.msra.mxu0 %v339
  %409 = vmatprep.subr.mxu0 %v342
  %410 = vmatpush1.msra.mxu0 %v341
  %411 = vmatprep.subr.mxu0 %v344
  %412 = vmatpush1.msra.mxu0 %v343
  %413 = vmatprep.subr.mxu0 %v346
  %414 = vmatpush1.msra.mxu0 %v345
  %415 = vmatprep.subr.mxu0 %v348
  %416 = vmatpush1.msra.mxu0 %v347
  %417 = vmatprep.subr.mxu0 %v350
  %418 = vmatpush1.msra.mxu0 %v349
  %419 = vmatprep.subr.mxu0 %v352
  %420 = vmatpush1.msra.mxu0 %v351
  %421 = vmatprep.subr.mxu0 %v354
  %422 = vmatpush1.msra.mxu0 %v353
  %423 = vmatprep.subr.mxu0 %v356
  %424 = vmatpush1.msra.mxu0 %v355
  %425 = vmatprep.subr.mxu0 %v358
  %426 = vmatpush1.msra.mxu0 %v357
  %427 = vmatprep.subr.mxu0 %v360
  %428 = vmatpush1.msra.mxu0 %v359
  %429 = vmatprep.subr.mxu0 %v362
  %430 = vmatpush1.msra.mxu0 %v361
  %431 = vmatprep.subr.mxu0 %v364
  %432 = vmatpush1.msra.mxu0 %v363
  %433 = vmatprep.subr.mxu0 %v366
  %434 = vmatpush1.msra.mxu0 %v365
  %435 = vmatprep.subr.mxu0 %v368
  %436 = vmatpush1.msra.mxu0 %v367
  %437 = vmatprep.subr.mxu0 %v370
  %438 = vmatpush1.msra.mxu0 %v369
  %439 = vmatprep.subr.mxu0 %v372
  %440 = vmatpush1.msra.mxu0 %v371
  %441 = vmatprep.subr.mxu0 %v374
  %442 = vmatpush1.msra.mxu0 %v373
  %443 = vmatprep.subr.mxu0 %v376
  %444 = vmatpush1.msra.mxu0 %v375
  %445 = vmatprep.subr.mxu0 %v378
  %446 = vmatpush1.msra.mxu0 %v377
  %447 = vmatprep.subr.mxu0 %v380
  %448 = vmatpush1.msra.mxu0 %v379
  %449 = vmatprep.subr.mxu0 %v382
  %450 = vmatpush1.msra.mxu0 %v381
  %451 = vmatprep.subr.mxu0 %v384
  %452 = vmatpush1.msra.mxu0 %v383
  %453 = vmatprep.subr.mxu0 %v386
  %454 = vmatpush1.msra.mxu0 %v385
  %455 = vmatprep.subr.mxu0 %v388
  %456 = vmatpush1.msra.mxu0 %v387
  %457 = vmatprep.subr.mxu0 %v390
  %458 = vmatpush1.msra.mxu0 %v389
  %459 = vmatprep.subr.mxu0 %v392
  %460 = vmatpush1.msra.mxu0 %v391
  %461 = vmatprep.subr.mxu0 %v394
  %462 = vmatpush1.msra.mxu0 %v393
  %463 = vmatprep.subr.mxu0 %v396
  %464 = vmatpush1.msra.mxu0 %v395
  %465 = vmatprep.subr.mxu0 %v398
  %466 = vmatpush1.msra.mxu0 %v397
  %467 = vmatprep.subr.mxu0 %v400
  %468 = vmatpush1.msra.mxu0 %v399
  %469 = vmatprep.mubr.f32.mxu0 %v403
  %470 = vmatmul.mubr.f32.gmra.mrb[0].mxu0 %v401
  %v471 = vpop.f32.mrb[0].mxu0
  %v472 = vadd.f32 0.0, %v471
  %v473 = vpop.f32.mrb[0].mxu0
  %v474 = vadd.f32 0.0, %v473
  %475 = vdwg.mxu0
  %v478 = vcombine.low %v472, %v474
  %480 = vst [vmem:[%s2] sm:$0x77] %v478
  // Predicated region
  $region10: #{geo_api_forward.7} parent=0 // pred_check
    _
  $region11: #{geo_api_forward.7} parent=0 // pred_check_branch
    %482 = sbr.rel (0) target = $region13
  $region12: #{geo_api_forward.7} parent=0 // pred_region
    _
  $region13: #{geo_api_forward.7} parent=0 // pred_fallthru
    _
  // Predicated region
  $region14: #{geo_api_forward.7} parent=0 // pred_check
    _
  $region15: #{geo_api_forward.7} parent=0 // pred_check_branch
    %484 = sbr.rel (0) target = $region17
  $region16: #{geo_api_forward.7} parent=0 // pred_region
    _
  $region17: #{geo_api_forward.7} parent=0 // pred_fallthru
    _

// kernel: geo_api_forward.6
$region0: #{geo_api_forward.6}
  #allocation0 [shape = 'u32[]', space=smem, size = 0x4, offset = 0x4, fixed_abs, tag = 'smem constant byte address 0x4 - core index']
  #allocation1 [shape = 'u32[144,128]{1,0:T(1,128)}', space=vmem, size = 0x12000, scoped, tag = 'internal scratch']
  %s0 = inlined_call_operand.vmem [shape: f32[64,32], index: 0, kind: input, shape index: {}]
  %s1 = inlined_call_operand.vmem [shape: f32[64,16], index: 1, kind: input, shape index: {}]
  %s2 = inlined_call_operand.vmem [shape: bf16[32,16], index: 2, kind: input, shape index: {}]
  %s3 = inlined_call_operand.vmem [shape: f32[1,16], index: 3, kind: input, shape index: {}]
  %s4 = inlined_call_operand.vmem [shape: bf16[576,32], index: 4, kind: input, shape index: {}]
  %s5 = inlined_call_operand.vmem [shape: f32[1,32], index: 5, kind: input, shape index: {}]
  %s6 = inlined_call_operand.vmem [shape: bf16[288,16], index: 6, kind: input, shape index: {}]
  %s7 = inlined_call_operand.vmem [shape: f32[1,16], index: 7, kind: input, shape index: {}]
  %s8 = inlined_call_operand.vmem [shape: bf16[256,32], index: 8, kind: input, shape index: {}]
  %s9 = inlined_call_operand.vmem [shape: f32[1,32], index: 9, kind: input, shape index: {}]
  %s10 = inlined_call_operand.vmem [shape: f32[1,32], index: 10, kind: output, shape index: {}]
  %s11 = sld [smem:[#allocation0]]
  $region50: #{geo_api_forward.6} parent=0
    _
  %s13 = ssub.s32 1, %s11
  %s14 = scalar_select 0, %s13, %s11
  // Predicated region
  $region2: #{geo_api_forward.6} parent=0 // pred_check
    _
  $region3: #{geo_api_forward.6} parent=0 // pred_check_branch
    %16 = sbr.rel (0) target = $region5
  $region4: #{geo_api_forward.6} parent=0 // pred_region
    _
  $region5: #{geo_api_forward.6} parent=0 // pred_fallthru
    _
  // Predicated region
  $region6: #{geo_api_forward.6} parent=0 // pred_check
    _
  $region7: #{geo_api_forward.6} parent=0 // pred_check_branch
    %18 = sbr.rel (0) target = $region9
  $region8: #{geo_api_forward.6} parent=0 // pred_region
    _
  $region9: #{geo_api_forward.6} parent=0 // pred_fallthru
    _
  // Predicated region
  $region10: #{geo_api_forward.6} parent=0 // pred_check
    _
  $region11: #{geo_api_forward.6} parent=0 // pred_check_branch
    %20 = sbr.rel (0) target = $region13
  $region12: #{geo_api_forward.6} parent=0 // pred_region
    _
  $region13: #{geo_api_forward.6} parent=0 // pred_fallthru
    _
  // Predicated region
  $region14: #{geo_api_forward.6} parent=0 // pred_check
    _
  $region15: #{geo_api_forward.6} parent=0 // pred_check_branch
    %22 = sbr.rel (0) target = $region17
  $region16: #{geo_api_forward.6} parent=0 // pred_region
    _
  $region17: #{geo_api_forward.6} parent=0 // pred_fallthru
    _
  // Predicated region
  $region18: #{geo_api_forward.6} parent=0 // pred_check
    _
  $region19: #{geo_api_forward.6} parent=0 // pred_check_branch
    %24 = sbr.rel (0) target = $region21
  $region20: #{geo_api_forward.6} parent=0 // pred_region
    _
  $region21: #{geo_api_forward.6} parent=0 // pred_fallthru
    _
  // Predicated region
  $region22: #{geo_api_forward.6} parent=0 // pred_check
    _
  $region23: #{geo_api_forward.6} parent=0 // pred_check_branch
    %26 = sbr.rel (0) target = $region25
  $region24: #{geo_api_forward.6} parent=0 // pred_region
    _
  $region25: #{geo_api_forward.6} parent=0 // pred_fallthru
    _
  // Predicated region
  $region26: #{geo_api_forward.6} parent=0 // pred_check
    _
  $region27: #{geo_api_forward.6} parent=0 // pred_check_branch
    %28 = sbr.rel (0) target = $region29
  $region28: #{geo_api_forward.6} parent=0 // pred_region
    _
  $region29: #{geo_api_forward.6} parent=0 // pred_fallthru
    _
  // Predicated region
  $region30: #{geo_api_forward.6} parent=0 // pred_check
    _
  $region31: #{geo_api_forward.6} parent=0 // pred_check_branch
    %30 = sbr.rel (0) target = $region33
  $region32: #{geo_api_forward.6} parent=0 // pred_region
    _
  $region33: #{geo_api_forward.6} parent=0 // pred_fallthru
    _
  // Predicated region
  $region34: #{geo_api_forward.6} parent=0 // pred_check
    _
  $region35: #{geo_api_forward.6} parent=0 // pred_check_branch
    %32 = sbr.rel (0) target = $region37
  $region36: #{geo_api_forward.6} parent=0 // pred_region
    _
  $region37: #{geo_api_forward.6} parent=0 // pred_fallthru
    _
  // Predicated region
  $region38: #{geo_api_forward.6} parent=0 // pred_check
    _
  $region39: #{geo_api_forward.6} parent=0 // pred_check_branch
    %34 = sbr.rel (0) target = $region41
  $region40: #{geo_api_forward.6} parent=0 // pred_region
    _
  $region41: #{geo_api_forward.6} parent=0 // pred_fallthru
    _
  %v36 = vld [vmem:[%s0] sm:$0xff]
  %v37 = vld [vmem:[%s0 + $0x8] sm:$0xff]
  %v38 = vld [vmem:[%s0 + $0x10] sm:$0xff]
  %v39 = vld [vmem:[%s0 + $0x18] sm:$0xff]
  %v40 = vld [vmem:[%s0 + $0x20] sm:$0xff]
  %v41 = vld [vmem:[%s0 + $0x28] sm:$0xff]
  %v42 = vld [vmem:[%s0 + $0x30] sm:$0xff]
  %v43 = vld [vmem:[%s0 + $0x38] sm:$0xff]
  %v44 = vpack.c.bf16 %v37, %v36
  %v45 = vpack.c.bf16 %v39, %v38
  %v46 = vpack.c.bf16 %v41, %v40
  %v47 = vpack.c.bf16 %v43, %v42
  %v48 = vld [vmem:[%s2] sm:$0xf]
  %v49 = vld [vmem:[%s2 + $0x4] sm:$0xf]
  %v50 = vld [vmem:[%s2 + $0x8] sm:$0xf]
  %v51 = vld [vmem:[%s2 + $0xc] sm:$0xf]
  %v52 = vld [vmem:[%s3] sm:$0x1]
  %v54 = vlaneseq
  %v55 = vshrl.u32 %v54, 7
  %v56 = vsub.s32 0, %v55
  %v57 = vrot.slane %v52, %v56
  %v63 = vunpack.c.l.b16 %v48
  %v64 = vunpack.c.l.b16 %v49
  %v65 = vunpack.c.l.b16 %v50
  %v66 = vunpack.c.l.b16 %v51
  %v67 = vpack.c.b16 %v64, %v63
  %v68 = vpack.c.b16 %v66, %v65
  %vm71 = vcmask 261120
  %v73 = vsel %vm71, %v44, 0
  %v76 = vsel %vm71, %v45, 0
  %v79 = vsel %vm71, %v46, 0
  %v82 = vsel %vm71, %v47, 0
  %84 = vmatprep.subr.bf16.mxu0 0
  %85 = vmatpush1.bf16.msra.mxu0 %v67
  %86 = vmatprep.subr.bf16.mxu0 0
  %87 = vmatpush1.bf16.msra.mxu0 %v68
  %88 = vmatprep.subr.bf16.mxu0 0
  %89 = vmatpush1.bf16.msra.mxu0 0
  %90 = vmatprep.subr.bf16.mxu0 0
  %91 = vmatpush1.bf16.msra.mxu0 0
  %92 = vmatprep.subr.bf16.mxu0 0
  %93 = vmatpush1.bf16.msra.mxu0 0
  %94 = vmatprep.subr.bf16.mxu0 0
  %95 = vmatpush1.bf16.msra.mxu0 0
  %96 = vmatprep.subr.bf16.mxu0 0
  %97 = vmatpush1.bf16.msra.mxu0 0
  %98 = vmatprep.subr.bf16.mxu0 0
  %99 = vmatpush1.bf16.msra.mxu0 0
  %100 = vmatprep.subr.bf16.mxu0 0
  %101 = vmatpush1.bf16.msra.mxu0 0
  %102 = vmatprep.subr.bf16.mxu0 0
  %103 = vmatpush1.bf16.msra.mxu0 0
  %104 = vmatprep.subr.bf16.mxu0 0
  %105 = vmatpush1.bf16.msra.mxu0 0
  %106 = vmatprep.subr.bf16.mxu0 0
  %107 = vmatpush1.bf16.msra.mxu0 0
  %108 = vmatprep.subr.bf16.mxu0 0
  %109 = vmatpush1.bf16.msra.mxu0 0
  %110 = vmatprep.subr.bf16.mxu0 0
  %111 = vmatpush1.bf16.msra.mxu0 0
  %112 = vmatprep.subr.bf16.mxu0 0
  %113 = vmatpush1.bf16.msra.mxu0 0
  %114 = vmatprep.subr.bf16.mxu0 0
  %115 = vmatpush1.bf16.msra.mxu0 0
  %116 = vmatprep.mubr.bf16.mxu0 0
  %117 = vmatmul.mubr.bf16.gmra.mrb[0].mxu0 %v73
  %v118 = vpop.f32.mrb[0].mxu0
  %v119 = vadd.f32 %v57, %v118
  %v120 = vpop.f32.mrb[0].mxu0
  %v121 = vpop.f32.mrb[0].mxu0
  %v122 = vadd.f32 %v57, %v121
  %v123 = vpop.f32.mrb[0].mxu0
  %124 = vmatprep.mubr.bf16.mxu0 0
  %125 = vmatmul.mubr.bf16.gmra.mrb[0].mxu0 %v76
  %v126 = vpop.f32.mrb[0].mxu0
  %v127 = vadd.f32 %v57, %v126
  %v128 = vpop.f32.mrb[0].mxu0
  %v129 = vpop.f32.mrb[0].mxu0
  %v130 = vadd.f32 %v57, %v129
  %v131 = vpop.f32.mrb[0].mxu0
  %132 = vmatprep.mubr.bf16.mxu0 0
  %133 = vmatmul.mubr.bf16.gmra.mrb[0].mxu0 %v79
  %v134 = vpop.f32.mrb[0].mxu0
  %v135 = vadd.f32 %v57, %v134
  %v136 = vpop.f32.mrb[0].mxu0
  %v137 = vpop.f32.mrb[0].mxu0
  %v138 = vadd.f32 %v57, %v137
  %v139 = vpop.f32.mrb[0].mxu0
  %140 = vmatprep.mubr.bf16.mxu0 0
  %141 = vmatmul.mubr.bf16.gmra.mrb[0].mxu0 %v82
  %v142 = vpop.f32.mrb[0].mxu0
  %v143 = vadd.f32 %v57, %v142
  %v144 = vpop.f32.mrb[0].mxu0
  %v145 = vpop.f32.mrb[0].mxu0
  %v146 = vadd.f32 %v57, %v145
  %v147 = vpop.f32.mrb[0].mxu0
  %148 = vdwg.mxu0
  %v149 = vmax.f32 %v119, 0.0
  %v150 = vmax.f32 %v122, 0.0
  %v151 = vmax.f32 %v127, 0.0
  %v152 = vmax.f32 %v130, 0.0
  %v153 = vmax.f32 %v135, 0.0
  %v154 = vmax.f32 %v138, 0.0
  %v155 = vmax.f32 %v143, 0.0
  %v156 = vmax.f32 %v146, 0.0
  %v157 = vmul.f32 %v149, %v149
  %v158 = vmul.f32 %v150, %v150
  %v159 = vmul.f32 %v151, %v151
  %v160 = vmul.f32 %v152, %v152
  %v161 = vmul.f32 %v153, %v153
  %v162 = vmul.f32 %v154, %v154
  %v163 = vmul.f32 %v155, %v155
  %v164 = vmul.f32 %v156, %v156
  %vm165 = vcmask 130048
  %v166 = vsel %vm165, %v157, 0.0
  %167 = vadd.xlane.f32.xlu0 %v166
  %v168 = vpop.xlane.xlu0 %167
  %v169 = vsel %vm165, %v158, 0.0
  %170 = vadd.xlane.f32.xlu0 %v169
  %v171 = vpop.xlane.xlu0 %170
  %v172 = vsel %vm165, %v159, 0.0
  %173 = vadd.xlane.f32.xlu0 %v172
  %v174 = vpop.xlane.xlu0 %173
  %v175 = vsel %vm165, %v160, 0.0
  %176 = vadd.xlane.f32.xlu0 %v175
  %v177 = vpop.xlane.xlu0 %176
  %v178 = vsel %vm165, %v161, 0.0
  %179 = vadd.xlane.f32.xlu0 %v178
  %v180 = vpop.xlane.xlu0 %179
  %v181 = vsel %vm165, %v162, 0.0
  %182 = vadd.xlane.f32.xlu0 %v181
  %v183 = vpop.xlane.xlu0 %182
  %v184 = vsel %vm165, %v163, 0.0
  %185 = vadd.xlane.f32.xlu0 %v184
  %v186 = vpop.xlane.xlu0 %185
  %v187 = vsel %vm165, %v164, 0.0
  %188 = vadd.xlane.f32.xlu0 %v187
  %v189 = vpop.xlane.xlu0 %188
  %v190 = vadd.f32 %v168, 1e-06
  %v191 = vadd.f32 %v171, 1e-06
  %v192 = vadd.f32 %v174, 1e-06
  %v193 = vadd.f32 %v177, 1e-06
  %v194 = vadd.f32 %v180, 1e-06
  %v195 = vadd.f32 %v183, 1e-06
  %v196 = vadd.f32 %v186, 1e-06
  %v197 = vadd.f32 %v189, 1e-06
  %v198 = vrsqrt.pop %v190
  %v199 = vrsqrt.pop %v191
  %v200 = vrsqrt.pop %v192
  %v201 = vrsqrt.pop %v193
  %v202 = vrsqrt.pop %v194
  %v203 = vrsqrt.pop %v195
  %v204 = vrsqrt.pop %v196
  %v205 = vrsqrt.pop %v197
  %v206 = vmul.f32 %v149, %v198
  %v207 = vmul.f32 %v150, %v199
  %v208 = vmul.f32 %v151, %v200
  %v209 = vmul.f32 %v152, %v201
  %v210 = vmul.f32 %v153, %v202
  %v211 = vmul.f32 %v154, %v203
  %v212 = vmul.f32 %v155, %v204
  %v213 = vmul.f32 %v156, %v205
  %v214 = vld [vmem:[%s1] sm:$0xff]
  %v215 = vld [vmem:[%s1 + $0x8] sm:$0xff]
  %v216 = vld [vmem:[%s1 + $0x10] sm:$0xff]
  %v217 = vld [vmem:[%s1 + $0x18] sm:$0xff]
  %v218 = vld [vmem:[%s1 + $0x20] sm:$0xff]
  %v219 = vld [vmem:[%s1 + $0x28] sm:$0xff]
  %v220 = vld [vmem:[%s1 + $0x30] sm:$0xff]
  %v221 = vld [vmem:[%s1 + $0x38] sm:$0xff]
  %v222 = vld [vmem:[%s4] sm:$0xf]
  %v223 = vld [vmem:[%s4 + $0x4] sm:$0xf]
  %v224 = vld [vmem:[%s4 + $0x8] sm:$0xf]
  %v225 = vld [vmem:[%s4 + $0xc] sm:$0xf]
  %v226 = vld [vmem:[%s4 + $0x10] sm:$0xf]
  %v227 = vld [vmem:[%s4 + $0x14] sm:$0xf]
  %v228 = vld [vmem:[%s4 + $0x18] sm:$0xf]
  %v229 = vld [vmem:[%s4 + $0x1c] sm:$0xf]
  %v230 = vld [vmem:[%s4 + $0x20] sm:$0xf]
  %v231 = vld [vmem:[%s4 + $0x24] sm:$0xf]
  %v232 = vld [vmem:[%s4 + $0x28] sm:$0xf]
  %v233 = vld [vmem:[%s4 + $0x2c] sm:$0xf]
  %v234 = vld [vmem:[%s4 + $0x30] sm:$0xf]
  %v235 = vld [vmem:[%s4 + $0x34] sm:$0xf]
  %v236 = vld [vmem:[%s4 + $0x38] sm:$0xf]
  %v237 = vld [vmem:[%s4 + $0x3c] sm:$0xf]
  %v238 = vld [vmem:[%s4 + $0x40] sm:$0xf]
  %v239 = vld [vmem:[%s4 + $0x44] sm:$0xf]
  %v240 = vld [vmem:[%s4 + $0x48] sm:$0xf]
  %v241 = vld [vmem:[%s4 + $0x4c] sm:$0xf]
  %v242 = vld [vmem:[%s4 + $0x50] sm:$0xf]
  %v243 = vld [vmem:[%s4 + $0x54] sm:$0xf]
  %v244 = vld [vmem:[%s4 + $0x58] sm:$0xf]
  %v245 = vld [vmem:[%s4 + $0x5c] sm:$0xf]
  %v246 = vld [vmem:[%s4 + $0x60] sm:$0xf]
  %v247 = vld [vmem:[%s4 + $0x64] sm:$0xf]
  %v248 = vld [vmem:[%s4 + $0x68] sm:$0xf]
  %v249 = vld [vmem:[%s4 + $0x6c] sm:$0xf]
  %v250 = vld [vmem:[%s4 + $0x70] sm:$0xf]
  %v251 = vld [vmem:[%s4 + $0x74] sm:$0xf]
  %v252 = vld [vmem:[%s4 + $0x78] sm:$0xf]
  %v253 = vld [vmem:[%s4 + $0x7c] sm:$0xf]
  %v254 = vld [vmem:[%s4 + $0x80] sm:$0xf]
  %v255 = vld [vmem:[%s4 + $0x84] sm:$0xf]
  %v256 = vld [vmem:[%s4 + $0x88] sm:$0xf]
  %v257 = vld [vmem:[%s4 + $0x8c] sm:$0xf]
  %v258 = vld [vmem:[%s4 + $0x90] sm:$0xf]
  %v259 = vld [vmem:[%s4 + $0x94] sm:$0xf]
  %v260 = vld [vmem:[%s4 + $0x98] sm:$0xf]
  %v261 = vld [vmem:[%s4 + $0x9c] sm:$0xf]
  %v262 = vld [vmem:[%s4 + $0xa0] sm:$0xf]
  %v263 = vld [vmem:[%s4 + $0xa4] sm:$0xf]
  %v264 = vld [vmem:[%s4 + $0xa8] sm:$0xf]
  %v265 = vld [vmem:[%s4 + $0xac] sm:$0xf]
  %v266 = vld [vmem:[%s4 + $0xb0] sm:$0xf]
  %v267 = vld [vmem:[%s4 + $0xb4] sm:$0xf]
  %v268 = vld [vmem:[%s4 + $0xb8] sm:$0xf]
  %v269 = vld [vmem:[%s4 + $0xbc] sm:$0xf]
  %v270 = vld [vmem:[%s4 + $0xc0] sm:$0xf]
  %v271 = vld [vmem:[%s4 + $0xc4] sm:$0xf]
  %v272 = vld [vmem:[%s4 + $0xc8] sm:$0xf]
  %v273 = vld [vmem:[%s4 + $0xcc] sm:$0xf]
  %v274 = vld [vmem:[%s4 + $0xd0] sm:$0xf]
  %v275 = vld [vmem:[%s4 + $0xd4] sm:$0xf]
  %v276 = vld [vmem:[%s4 + $0xd8] sm:$0xf]
  %v277 = vld [vmem:[%s4 + $0xdc] sm:$0xf]
  %v278 = vld [vmem:[%s4 + $0xe0] sm:$0xf]
  %v279 = vld [vmem:[%s4 + $0xe4] sm:$0xf]
  %v280 = vld [vmem:[%s4 + $0xe8] sm:$0xf]
  %v281 = vld [vmem:[%s4 + $0xec] sm:$0xf]
  %v282 = vld [vmem:[%s4 + $0xf0] sm:$0xf]
  %v283 = vld [vmem:[%s4 + $0xf4] sm:$0xf]
  %v284 = vld [vmem:[%s4 + $0xf8] sm:$0xf]
  %v285 = vld [vmem:[%s4 + $0xfc] sm:$0xf]
  %v286 = vld [vmem:[%s4 + $0x100] sm:$0xf]
  %v287 = vld [vmem:[%s4 + $0x104] sm:$0xf]
  %v288 = vld [vmem:[%s4 + $0x108] sm:$0xf]
  %v289 = vld [vmem:[%s4 + $0x10c] sm:$0xf]
  %v290 = vld [vmem:[%s4 + $0x110] sm:$0xf]
  %v291 = vld [vmem:[%s4 + $0x114] sm:$0xf]
  %v292 = vld [vmem:[%s4 + $0x118] sm:$0xf]
  %v293 = vld [vmem:[%s4 + $0x11c] sm:$0xf]
  %v294 = vld [vmem:[%s5] sm:$0x1]
  %v295 = vld [vmem:[%s6] sm:$0xf]
  %v296 = vld [vmem:[%s6 + $0x4] sm:$0xf]
  %v297 = vld [vmem:[%s6 + $0x8] sm:$0xf]
  %v298 = vld [vmem:[%s6 + $0xc] sm:$0xf]
  %v299 = vld [vmem:[%s6 + $0x10] sm:$0xf]
  %v300 = vld [vmem:[%s6 + $0x14] sm:$0xf]
  %v301 = vld [vmem:[%s6 + $0x18] sm:$0xf]
  %v302 = vld [vmem:[%s6 + $0x1c] sm:$0xf]
  %v303 = vld [vmem:[%s6 + $0x20] sm:$0xf]
  %v304 = vld [vmem:[%s6 + $0x24] sm:$0xf]
  %v305 = vld [vmem:[%s6 + $0x28] sm:$0xf]
  %v306 = vld [vmem:[%s6 + $0x2c] sm:$0xf]
  %v307 = vld [vmem:[%s6 + $0x30] sm:$0xf]
  %v308 = vld [vmem:[%s6 + $0x34] sm:$0xf]
  %v309 = vld [vmem:[%s6 + $0x38] sm:$0xf]
  %v310 = vld [vmem:[%s6 + $0x3c] sm:$0xf]
  %v311 = vld [vmem:[%s6 + $0x40] sm:$0xf]
  %v312 = vld [vmem:[%s6 + $0x44] sm:$0xf]
  %v313 = vld [vmem:[%s6 + $0x48] sm:$0xf]
  %v314 = vld [vmem:[%s6 + $0x4c] sm:$0xf]
  %v315 = vld [vmem:[%s6 + $0x50] sm:$0xf]
  %v316 = vld [vmem:[%s6 + $0x54] sm:$0xf]
  %v317 = vld [vmem:[%s6 + $0x58] sm:$0xf]
  %v318 = vld [vmem:[%s6 + $0x5c] sm:$0xf]
  %v319 = vld [vmem:[%s6 + $0x60] sm:$0xf]
  %v320 = vld [vmem:[%s6 + $0x64] sm:$0xf]
  %v321 = vld [vmem:[%s6 + $0x68] sm:$0xf]
  %v322 = vld [vmem:[%s6 + $0x6c] sm:$0xf]
  %v323 = vld [vmem:[%s6 + $0x70] sm:$0xf]
  %v324 = vld [vmem:[%s6 + $0x74] sm:$0xf]
  %v325 = vld [vmem:[%s6 + $0x78] sm:$0xf]
  %v326 = vld [vmem:[%s6 + $0x7c] sm:$0xf]
  %v327 = vld [vmem:[%s6 + $0x80] sm:$0xf]
  %v328 = vld [vmem:[%s6 + $0x84] sm:$0xf]
  %v329 = vld [vmem:[%s6 + $0x88] sm:$0xf]
  %v330 = vld [vmem:[%s6 + $0x8c] sm:$0xf]
  %v331 = vld [vmem:[%s7] sm:$0x1]
  %v332 = vld [vmem:[%s8] sm:$0xf]
  %v333 = vld [vmem:[%s8 + $0x4] sm:$0xf]
  %v334 = vld [vmem:[%s8 + $0x8] sm:$0xf]
  %v335 = vld [vmem:[%s8 + $0xc] sm:$0xf]
  %v336 = vld [vmem:[%s8 + $0x10] sm:$0xf]
  %v337 = vld [vmem:[%s8 + $0x14] sm:$0xf]
  %v338 = vld [vmem:[%s8 + $0x18] sm:$0xf]
  %v339 = vld [vmem:[%s8 + $0x1c] sm:$0xf]
  %v340 = vld [vmem:[%s8 + $0x20] sm:$0xf]
  %v341 = vld [vmem:[%s8 + $0x24] sm:$0xf]
  %v342 = vld [vmem:[%s8 + $0x28] sm:$0xf]
  %v343 = vld [vmem:[%s8 + $0x2c] sm:$0xf]
  %v344 = vld [vmem:[%s8 + $0x30] sm:$0xf]
  %v345 = vld [vmem:[%s8 + $0x34] sm:$0xf]
  %v346 = vld [vmem:[%s8 + $0x38] sm:$0xf]
  %v347 = vld [vmem:[%s8 + $0x3c] sm:$0xf]
  %v348 = vld [vmem:[%s8 + $0x40] sm:$0xf]
  %v349 = vld [vmem:[%s8 + $0x44] sm:$0xf]
  %v350 = vld [vmem:[%s8 + $0x48] sm:$0xf]
  %v351 = vld [vmem:[%s8 + $0x4c] sm:$0xf]
  %v352 = vld [vmem:[%s8 + $0x50] sm:$0xf]
  %v353 = vld [vmem:[%s8 + $0x54] sm:$0xf]
  %v354 = vld [vmem:[%s8 + $0x58] sm:$0xf]
  %v355 = vld [vmem:[%s8 + $0x5c] sm:$0xf]
  %v356 = vld [vmem:[%s8 + $0x60] sm:$0xf]
  %v357 = vld [vmem:[%s8 + $0x64] sm:$0xf]
  %v358 = vld [vmem:[%s8 + $0x68] sm:$0xf]
  %v359 = vld [vmem:[%s8 + $0x6c] sm:$0xf]
  %v360 = vld [vmem:[%s8 + $0x70] sm:$0xf]
  %v361 = vld [vmem:[%s8 + $0x74] sm:$0xf]
  %v362 = vld [vmem:[%s8 + $0x78] sm:$0xf]
  %v363 = vld [vmem:[%s8 + $0x7c] sm:$0xf]
  %v364 = vld [vmem:[%s9] sm:$0x1]
  %v365 = vpack.c.bf16 %v215, %v214
  %v366 = vpack.c.bf16 %v217, %v216
  %v367 = vpack.c.bf16 %v219, %v218
  %v368 = vpack.c.bf16 %v221, %v220
  %v369 = vpack.c.bf16 %v207, %v206
  %v370 = vpack.c.bf16 %v209, %v208
  %v371 = vpack.c.bf16 %v211, %v210
  %v372 = vpack.c.bf16 %v213, %v212
  %v374 = vsel %vm165, %v365, 0
  %v377 = vsel %vm165, %v366, 0
  %v380 = vsel %vm165, %v367, 0
  %v383 = vsel %vm165, %v368, 0
  %v386 = vsel %vm165, %v369, 0
  %v389 = vsel %vm165, %v370, 0
  %v392 = vsel %vm165, %v371, 0
  %v395 = vsel %vm165, %v372, 0
  %397 = vmatprep.subr.bf16.mxu0 0
  %398 = vmatpush1.bf16.xpose.msra.mxu0 %v386
  %399 = vmatprep.subr.bf16.mxu0 0
  %400 = vmatpush1.bf16.xpose.msra.mxu0 %v389
  %401 = vmatprep.subr.bf16.mxu0 0
  %402 = vmatpush1.bf16.xpose.msra.mxu0 %v392
  %403 = vmatprep.subr.bf16.mxu0 0
  %404 = vmatpush1.bf16.xpose.msra.mxu0 %v395
  %405 = vmatprep.subr.bf16.mxu0 0
  %406 = vmatpush1.bf16.xpose.msra.mxu0 0
  %407 = vmatprep.subr.bf16.mxu0 0
  %408 = vmatpush1.bf16.xpose.msra.mxu0 0
  %409 = vmatprep.subr.bf16.mxu0 0
  %410 = vmatpush1.bf16.xpose.msra.mxu0 0
  %411 = vmatprep.subr.bf16.mxu0 0
  %412 = vmatpush1.bf16.xpose.msra.mxu0 0
  %413 = vmatprep.subr.bf16.mxu0 0
  %414 = vmatpush1.bf16.xpose.msra.mxu0 0
  %415 = vmatprep.subr.bf16.mxu0 0
  %416 = vmatpush1.bf16.xpose.msra.mxu0 0
  %417 = vmatprep.subr.bf16.mxu0 0
  %418 = vmatpush1.bf16.xpose.msra.mxu0 0
  %419 = vmatprep.subr.bf16.mxu0 0
  %420 = vmatpush1.bf16.xpose.msra.mxu0 0
  %421 = vmatprep.subr.bf16.mxu0 0
  %422 = vmatpush1.bf16.xpose.msra.mxu0 0
  %423 = vmatprep.subr.bf16.mxu0 0
  %424 = vmatpush1.bf16.xpose.msra.mxu0 0
  %425 = vmatprep.subr.bf16.mxu0 0
  %426 = vmatpush1.bf16.xpose.msra.mxu0 0
  %427 = vmatprep.subr.bf16.mxu0 0
  %428 = vmatpush1.bf16.xpose.msra.mxu0 0
  %429 = vmatprep.mubr.bf16.mxu0 0
  %430 = vmatmul.mubr.bf16.gmra.mrb[0].mxu0 %v374
  %v431 = vpop.f32.mrb[0].mxu0
  %v432 = vadd.f32 0.0, %v431
  %v433 = vpop.f32.mrb[0].mxu0
  %v434 = vpop.f32.mrb[0].mxu0
  %v435 = vadd.f32 0.0, %v434
  %v436 = vpop.f32.mrb[0].mxu0
  %437 = vmatprep.mubr.bf16.mxu0 0
  %438 = vmatmul.mubr.bf16.gmra.mrb[0].mxu0 %v377
  %v439 = vpop.f32.mrb[0].mxu0
  %v440 = vadd.f32 0.0, %v439
  %v441 = vpop.f32.mrb[0].mxu0
  %v442 = vpop.f32.mrb[0].mxu0
  %v443 = vadd.f32 0.0, %v442
  %v444 = vpop.f32.mrb[0].mxu0
  %445 = vmatprep.mubr.bf16.mxu0 0
  %446 = vmatmul.mubr.bf16.gmra.mrb[0].mxu0 %v380
  %v447 = vpop.f32.mrb[0].mxu0
  %v448 = vadd.f32 0.0, %v447
  %v449 = vpop.f32.mrb[0].mxu0
  %v450 = vpop.f32.mrb[0].mxu0
  %v451 = vadd.f32 0.0, %v450
  %v452 = vpop.f32.mrb[0].mxu0
  %453 = vmatprep.mubr.bf16.mxu0 0
  %454 = vmatmul.mubr.bf16.gmra.mrb[0].mxu0 %v383
  %v455 = vpop.f32.mrb[0].mxu0
  %v456 = vadd.f32 0.0, %v455
  %v457 = vpop.f32.mrb[0].mxu0
  %v458 = vpop.f32.mrb[0].mxu0
  %v459 = vadd.f32 0.0, %v458
  %v460 = vpop.f32.mrb[0].mxu0
  %461 = vdwg.mxu0
  %v462 = vmax.f32 %v432, 0.0
  %v463 = vmax.f32 %v435, 0.0
  %v464 = vmax.f32 %v440, 0.0
  %v465 = vmax.f32 %v443, 0.0
  %v466 = vmax.f32 %v448, 0.0
  %v467 = vmax.f32 %v451, 0.0
  %v468 = vmax.f32 %v456, 0.0
  %v469 = vmax.f32 %v459, 0.0
  %v470 = vmul.f32 %v462, %v462
  %v471 = vmul.f32 %v463, %v463
  %v472 = vmul.f32 %v464, %v464
  %v473 = vmul.f32 %v465, %v465
  %v474 = vmul.f32 %v466, %v466
  %v475 = vmul.f32 %v467, %v467
  %v476 = vmul.f32 %v468, %v468
  %v477 = vmul.f32 %v469, %v469
  %vm478 = vcmask 523264
  %v479 = vsel %vm478, %v470, 0.0
  %480 = vadd.xlane.f32.xlu0 %v479
  %v481 = vpop.xlane.xlu0 %480
  %v482 = vsel %vm478, %v471, 0.0
  %483 = vadd.xlane.f32.xlu0 %v482
  %v484 = vpop.xlane.xlu0 %483
  %v485 = vsel %vm478, %v472, 0.0
  %486 = vadd.xlane.f32.xlu0 %v485
  %v487 = vpop.xlane.xlu0 %486
  %v488 = vsel %vm478, %v473, 0.0
  %489 = vadd.xlane.f32.xlu0 %v488
  %v490 = vpop.xlane.xlu0 %489
  %v491 = vsel %vm478, %v474, 0.0
  %492 = vadd.xlane.f32.xlu0 %v491
  %v493 = vpop.xlane.xlu0 %492
  %v494 = vsel %vm478, %v475, 0.0
  %495 = vadd.xlane.f32.xlu0 %v494
  %v496 = vpop.xlane.xlu0 %495
  %v497 = vsel %vm478, %v476, 0.0
  %498 = vadd.xlane.f32.xlu0 %v497
  %v499 = vpop.xlane.xlu0 %498
  %v500 = vsel %vm478, %v477, 0.0
  %501 = vadd.xlane.f32.xlu0 %v500
  %v502 = vpop.xlane.xlu0 %501
  %v503 = vadd.f32 %v481, 1e-06
  %v504 = vadd.f32 %v484, 1e-06
  %v505 = vadd.f32 %v487, 1e-06
  %v506 = vadd.f32 %v490, 1e-06
  %v507 = vadd.f32 %v493, 1e-06
  %v508 = vadd.f32 %v496, 1e-06
  %v509 = vadd.f32 %v499, 1e-06
  %v510 = vadd.f32 %v502, 1e-06
  %v511 = vrsqrt.pop %v503
  %v512 = vrsqrt.pop %v504
  %v513 = vrsqrt.pop %v505
  %v514 = vrsqrt.pop %v506
  %v515 = vrsqrt.pop %v507
  %v516 = vrsqrt.pop %v508
  %v517 = vrsqrt.pop %v509
  %v518 = vrsqrt.pop %v510
  %v519 = vmul.f32 %v462, %v511
  %v520 = vmul.f32 %v463, %v512
  %v521 = vmul.f32 %v464, %v513
  %v522 = vmul.f32 %v465, %v514
  %v523 = vmul.f32 %v466, %v515
  %v524 = vmul.f32 %v467, %v516
  %v525 = vmul.f32 %v468, %v517
  %v526 = vmul.f32 %v469, %v518
  %vm536 = vcmask 1046528
  %v537 = vrot.slane %v519, 1
  %v538 = vrot.slane %v520, 1
  %v539 = vsel %vm536, %v537, %v538
  %v540 = vrot.slane %v521, 1
  %v541 = vsel %vm536, %v538, %v540
  %v542 = vrot.slane %v522, 1
  %v543 = vsel %vm536, %v540, %v542
  %v544 = vrot.slane %v523, 1
  %v545 = vsel %vm536, %v542, %v544
  %v546 = vrot.slane %v524, 1
  %v547 = vsel %vm536, %v544, %v546
  %v548 = vrot.slane %v525, 1
  %v549 = vsel %vm536, %v546, %v548
  %v550 = vrot.slane %v526, 1
  %v551 = vsel %vm536, %v548, %v550
  %v552 = vrot.slane 0.0, 1
  %v553 = vsel %vm536, %v550, %v552
  %554 = vrot.lane.b32.xlu0 %v539, 64
  %v555 = vpop.permute.xlu0 %554
  %556 = vrot.lane.b32.xlu0 %v541, 64
  %v557 = vpop.permute.xlu0 %556
  %558 = vrot.lane.b32.xlu0 %v543, 64
  %v559 = vpop.permute.xlu0 %558
  %560 = vrot.lane.b32.xlu0 %v545, 64
  %v561 = vpop.permute.xlu0 %560
  %562 = vrot.lane.b32.xlu0 %v547, 64
  %v563 = vpop.permute.xlu0 %562
  %564 = vrot.lane.b32.xlu0 %v549, 64
  %v565 = vpop.permute.xlu0 %564
  %566 = vrot.lane.b32.xlu0 %v551, 64
  %v567 = vpop.permute.xlu0 %566
  %568 = vrot.lane.b32.xlu0 %v553, 64
  %v569 = vpop.permute.xlu0 %568
  %vm578 = vcmask 1045504
  %v579 = vrot.slane %v519, 2
  %v580 = vrot.slane %v520, 2
  %v581 = vsel %vm578, %v579, %v580
  %v582 = vrot.slane %v521, 2
  %v583 = vsel %vm578, %v580, %v582
  %v584 = vrot.slane %v522, 2
  %v585 = vsel %vm578, %v582, %v584
  %v586 = vrot.slane %v523, 2
  %v587 = vsel %vm578, %v584, %v586
  %v588 = vrot.slane %v524, 2
  %v589 = vsel %vm578, %v586, %v588
  %v590 = vrot.slane %v525, 2
  %v591 = vsel %vm578, %v588, %v590
  %v592 = vrot.slane %v526, 2
  %v593 = vsel %vm578, %v590, %v592
  %v594 = vrot.slane 0.0, 2
  %v595 = vsel %vm578, %v592, %v594
  %604 = vrot.lane.b32.xlu0 %v520, 64
  %v605 = vpop.permute.xlu0 %604
  %606 = vrot.lane.b32.xlu0 %v521, 64
  %v607 = vpop.permute.xlu0 %606
  %608 = vrot.lane.b32.xlu0 %v522, 64
  %v609 = vpop.permute.xlu0 %608
  %610 = vrot.lane.b32.xlu0 %v523, 64
  %v611 = vpop.permute.xlu0 %610
  %612 = vrot.lane.b32.xlu0 %v524, 64
  %v613 = vpop.permute.xlu0 %612
  %614 = vrot.lane.b32.xlu0 %v525, 64
  %v615 = vpop.permute.xlu0 %614
  %616 = vrot.lane.b32.xlu0 %v526, 64
  %v617 = vpop.permute.xlu0 %616
  %618 = vrot.lane.b32.xlu0 0.0, 64
  %v619 = vpop.permute.xlu0 %618
  %v628 = vsel %vm536, %v552, %v552
  %v637 = vsel %vm578, %v594, %v594
  %638 = vrot.lane.b32.xlu0 %v583, 64
  %v639 = vpop.permute.xlu0 %638
  %640 = vrot.lane.b32.xlu0 %v585, 64
  %v641 = vpop.permute.xlu0 %640
  %642 = vrot.lane.b32.xlu0 %v587, 64
  %v643 = vpop.permute.xlu0 %642
  %644 = vrot.lane.b32.xlu0 %v589, 64
  %v645 = vpop.permute.xlu0 %644
  %646 = vrot.lane.b32.xlu0 %v591, 64
  %v647 = vpop.permute.xlu0 %646
  %648 = vrot.lane.b32.xlu0 %v593, 64
  %v649 = vpop.permute.xlu0 %648
  %650 = vrot.lane.b32.xlu0 %v595, 64
  %v651 = vpop.permute.xlu0 %650
  %652 = vrot.lane.b32.xlu0 %v637, 64
  %v653 = vpop.permute.xlu0 %652
  %662 = vrot.lane.b32.xlu0 %v628, 64
  %v663 = vpop.permute.xlu0 %662
  %v666 = vsel %vm478, %v519, %v555
  %v667 = vsel %vm478, %v520, %v557
  %v668 = vsel %vm478, %v521, %v559
  %v669 = vsel %vm478, %v522, %v561
  %v670 = vsel %vm478, %v523, %v563
  %v671 = vsel %vm478, %v524, %v565
  %v672 = vsel %vm478, %v525, %v567
  %v673 = vsel %vm478, %v526, %v569
  %v674 = vsel %vm478, %v581, %v605
  %v675 = vsel %vm478, %v583, %v607
  %v676 = vsel %vm478, %v585, %v609
  %v677 = vsel %vm478, %v587, %v611
  %v678 = vsel %vm478, %v589, %v613
  %v679 = vsel %vm478, %v591, %v615
  %v680 = vsel %vm478, %v593, %v617
  %v681 = vsel %vm478, %v595, %v619
  %v682 = vsel %vm478, %v541, %v639
  %v683 = vsel %vm478, %v543, %v641
  %v684 = vsel %vm478, %v545, %v643
  %v685 = vsel %vm478, %v547, %v645
  %v686 = vsel %vm478, %v549, %v647
  %v687 = vsel %vm478, %v551, %v649
  %v688 = vsel %vm478, %v553, %v651
  %v689 = vsel %vm478, %v628, %v653
  %v690 = vsel %vm478, 0.0, %v663
  %v691 = vpack.c.bf16 %v667, %v666
  %v692 = vpack.c.bf16 %v675, %v674
  %v693 = vpack.c.bf16 %v683, %v682
  %v694 = vpack.c.bf16 %v669, %v668
  %v695 = vpack.c.bf16 %v587, %v585
  %v696 = vpack.c.bf16 %v677, %v676
  %v697 = vpack.c.bf16 %v685, %v684
  %v698 = vpack.c.bf16 %v671, %v670
  %v699 = vpack.c.bf16 %v591, %v589
  %v700 = vpack.c.bf16 %v679, %v678
  %v701 = vpack.c.bf16 %v687, %v686
  %v702 = vpack.c.bf16 %v673, %v672
  %v703 = vpack.c.bf16 %v595, %v593
  %v704 = vpack.c.bf16 %v681, %v680
  %v705 = vpack.c.bf16 %v689, %v688
  %v706 = vpack.c.bf16 %v690, %v690
  %v707 = vpack.c.bf16 %v637, %v637
  %v709 = vlaneseq
  %v710 = vshrl.u32 %v709, 7
  %v711 = vsub.s32 0, %v710
  %v712 = vrot.slane %v294, %v711
  %v786 = vunpack.c.l.b16 %v222
  %v787 = vunpack.c.l.b16 %v223
  %v788 = vunpack.c.l.b16 %v224
  %v789 = vunpack.c.l.b16 %v225
  %v790 = vunpack.c.l.b16 %v226
  %v791 = vunpack.c.l.b16 %v227
  %v792 = vunpack.c.l.b16 %v228
  %v793 = vunpack.c.l.b16 %v229
  %v794 = vunpack.c.l.b16 %v230
  %v795 = vunpack.c.l.b16 %v231
  %v796 = vunpack.c.l.b16 %v232
  %v797 = vunpack.c.l.b16 %v233
  %v798 = vunpack.c.l.b16 %v234
  %v799 = vunpack.c.l.b16 %v235
  %v800 = vunpack.c.l.b16 %v236
  %v801 = vunpack.c.l.b16 %v237
  %v802 = vunpack.c.l.b16 %v238
  %v803 = vunpack.c.l.b16 %v239
  %v804 = vunpack.c.l.b16 %v240
  %v805 = vunpack.c.l.b16 %v241
  %v806 = vunpack.c.l.b16 %v242
  %v807 = vunpack.c.l.b16 %v243
  %v808 = vunpack.c.l.b16 %v244
  %v809 = vunpack.c.l.b16 %v245
  %v810 = vunpack.c.l.b16 %v246
  %v811 = vunpack.c.l.b16 %v247
  %v812 = vunpack.c.l.b16 %v248
  %v813 = vunpack.c.l.b16 %v249
  %v814 = vunpack.c.l.b16 %v250
  %v815 = vunpack.c.l.b16 %v251
  %v816 = vunpack.c.l.b16 %v252
  %v817 = vunpack.c.l.b16 %v253
  %v818 = vunpack.c.l.b16 %v254
  %v819 = vunpack.c.l.b16 %v255
  %v820 = vunpack.c.l.b16 %v256
  %v821 = vunpack.c.l.b16 %v257
  %v822 = vunpack.c.l.b16 %v258
  %v823 = vunpack.c.l.b16 %v259
  %v824 = vunpack.c.l.b16 %v260
  %v825 = vunpack.c.l.b16 %v261
  %v826 = vunpack.c.l.b16 %v262
  %v827 = vunpack.c.l.b16 %v263
  %v828 = vunpack.c.l.b16 %v264
  %v829 = vunpack.c.l.b16 %v265
  %v830 = vunpack.c.l.b16 %v266
  %v831 = vunpack.c.l.b16 %v267
  %v832 = vunpack.c.l.b16 %v268
  %v833 = vunpack.c.l.b16 %v269
  %v834 = vunpack.c.l.b16 %v270
  %v835 = vunpack.c.l.b16 %v271
  %v836 = vunpack.c.l.b16 %v272
  %v837 = vunpack.c.l.b16 %v273
  %v838 = vunpack.c.l.b16 %v274
  %v839 = vunpack.c.l.b16 %v275
  %v840 = vunpack.c.l.b16 %v276
  %v841 = vunpack.c.l.b16 %v277
  %v842 = vunpack.c.l.b16 %v278
  %v843 = vunpack.c.l.b16 %v279
  %v844 = vunpack.c.l.b16 %v280
  %v845 = vunpack.c.l.b16 %v281
  %v846 = vunpack.c.l.b16 %v282
  %v847 = vunpack.c.l.b16 %v283
  %v848 = vunpack.c.l.b16 %v284
  %v849 = vunpack.c.l.b16 %v285
  %v850 = vunpack.c.l.b16 %v286
  %v851 = vunpack.c.l.b16 %v287
  %v852 = vunpack.c.l.b16 %v288
  %v853 = vunpack.c.l.b16 %v289
  %v854 = vunpack.c.l.b16 %v290
  %v855 = vunpack.c.l.b16 %v291
  %v856 = vunpack.c.l.b16 %v292
  %v857 = vunpack.c.l.b16 %v293
  %v858 = vpack.c.b16 %v787, %v786
  %v859 = vpack.c.b16 %v789, %v788
  %v860 = vpack.c.b16 %v791, %v790
  %v861 = vpack.c.b16 %v793, %v792
  %v862 = vpack.c.b16 %v795, %v794
  %v863 = vpack.c.b16 %v797, %v796
  %v864 = vpack.c.b16 %v799, %v798
  %v865 = vpack.c.b16 %v801, %v800
  %v866 = vpack.c.b16 %v803, %v802
  %v867 = vpack.c.b16 %v805, %v804
  %v868 = vpack.c.b16 %v807, %v806
  %v869 = vpack.c.b16 %v809, %v808
  %v870 = vpack.c.b16 %v811, %v810
  %v871 = vpack.c.b16 %v813, %v812
  %v872 = vpack.c.b16 %v815, %v814
  %v873 = vpack.c.b16 %v817, %v816
  %v874 = vpack.c.b16 %v819, %v818
  %v875 = vpack.c.b16 %v821, %v820
  %v876 = vpack.c.b16 %v823, %v822
  %v877 = vpack.c.b16 %v825, %v824
  %v878 = vpack.c.b16 %v827, %v826
  %v879 = vpack.c.b16 %v829, %v828
  %v880 = vpack.c.b16 %v831, %v830
  %v881 = vpack.c.b16 %v833, %v832
  %v882 = vpack.c.b16 %v835, %v834
  %v883 = vpack.c.b16 %v837, %v836
  %v884 = vpack.c.b16 %v839, %v838
  %v885 = vpack.c.b16 %v841, %v840
  %v886 = vpack.c.b16 %v843, %v842
  %v887 = vpack.c.b16 %v845, %v844
  %v888 = vpack.c.b16 %v847, %v846
  %v889 = vpack.c.b16 %v849, %v848
  %v890 = vpack.c.b16 %v851, %v850
  %v891 = vpack.c.b16 %v853, %v852
  %v892 = vpack.c.b16 %v855, %v854
  %v893 = vpack.c.b16 %v857, %v856
  %v931 = vsel %vm478, %v695, 0
  %v934 = vsel %vm478, %v699, 0
  %v937 = vsel %vm478, %v703, 0
  %v940 = vsel %vm478, %v707, 0
  %942 = vmatprep.subr.bf16.mxu0 0
  %943 = vmatpush1.bf16.msra.mxu0 %v858
  %944 = vmatprep.subr.bf16.mxu0 0
  %945 = vmatpush1.bf16.msra.mxu0 %v859
  %946 = vmatprep.subr.bf16.mxu0 0
  %947 = vmatpush1.bf16.msra.mxu0 %v860
  %948 = vmatprep.subr.bf16.mxu0 0
  %949 = vmatpush1.bf16.msra.mxu0 %v861
  %950 = vmatprep.subr.bf16.mxu0 0
  %951 = vmatpush1.bf16.msra.mxu0 %v862
  %952 = vmatprep.subr.bf16.mxu0 0
  %953 = vmatpush1.bf16.msra.mxu0 %v863
  %954 = vmatprep.subr.bf16.mxu0 0
  %955 = vmatpush1.bf16.msra.mxu0 %v864
  %956 = vmatprep.subr.bf16.mxu0 0
  %957 = vmatpush1.bf16.msra.mxu0 %v865
  %958 = vmatprep.subr.bf16.mxu0 0
  %959 = vmatpush1.bf16.msra.mxu0 %v866
  %960 = vmatprep.subr.bf16.mxu0 0
  %961 = vmatpush1.bf16.msra.mxu0 %v867
  %962 = vmatprep.subr.bf16.mxu0 0
  %963 = vmatpush1.bf16.msra.mxu0 %v868
  %964 = vmatprep.subr.bf16.mxu0 0
  %965 = vmatpush1.bf16.msra.mxu0 %v869
  %966 = vmatprep.subr.bf16.mxu0 0
  %967 = vmatpush1.bf16.msra.mxu0 %v870
  %968 = vmatprep.subr.bf16.mxu0 0
  %969 = vmatpush1.bf16.msra.mxu0 %v871
  %970 = vmatprep.subr.bf16.mxu0 0
  %971 = vmatpush1.bf16.msra.mxu0 %v872
  %972 = vmatprep.subr.bf16.mxu0 0
  %973 = vmatpush1.bf16.msra.mxu0 %v873
  %974 = vmatprep.mubr.bf16.mxu0 %v692
  %975 = vmatmul.mubr.bf16.gmra.mrb[0].mxu0 %v691
  %v976 = vpop.f32.mrb[0].mxu0
  %v977 = vadd.f32 %v712, %v976
  %v978 = vpop.f32.mrb[0].mxu0
  %v979 = vpop.f32.mrb[0].mxu0
  %v980 = vadd.f32 %v712, %v979
  %v981 = vpop.f32.mrb[0].mxu0
  %982 = vmatprep.mubr.bf16.mxu0 %v696
  %983 = vmatmul.mubr.bf16.gmra.mrb[0].mxu0 %v694
  %v984 = vpop.f32.mrb[0].mxu0
  %v985 = vadd.f32 %v712, %v984
  %v986 = vpop.f32.mrb[0].mxu0
  %v987 = vpop.f32.mrb[0].mxu0
  %v988 = vadd.f32 %v712, %v987
  %v989 = vpop.f32.mrb[0].mxu0
  %990 = vmatprep.mubr.bf16.mxu0 %v700
  %991 = vmatmul.mubr.bf16.gmra.mrb[0].mxu0 %v698
  %v992 = vpop.f32.mrb[0].mxu0
  %v993 = vadd.f32 %v712, %v992
  %v994 = vpop.f32.mrb[0].mxu0
  %v995 = vpop.f32.mrb[0].mxu0
  %v996 = vadd.f32 %v712, %v995
  %v997 = vpop.f32.mrb[0].mxu0
  %998 = vmatprep.mubr.bf16.mxu0 %v704
  %999 = vmatmul.mubr.bf16.gmra.mrb[0].mxu0 %v702
  %v1000 = vpop.f32.mrb[0].mxu0
  %v1001 = vadd.f32 %v712, %v1000
  %v1002 = vpop.f32.mrb[0].mxu0
  %v1003 = vpop.f32.mrb[0].mxu0
  %v1004 = vadd.f32 %v712, %v1003
  %v1005 = vpop.f32.mrb[0].mxu0
  %1006 = vdwg.mxu0
  %1007 = vmatprep.subr.bf16.mxu0 0
  %1008 = vmatpush1.bf16.msra.mxu0 %v874
  %1009 = vmatprep.subr.bf16.mxu0 0
  %1010 = vmatpush1.bf16.msra.mxu0 %v875
  %1011 = vmatprep.subr.bf16.mxu0 0
  %1012 = vmatpush1.bf16.msra.mxu0 %v876
  %1013 = vmatprep.subr.bf16.mxu0 0
  %1014 = vmatpush1.bf16.msra.mxu0 %v877
  %1015 = vmatprep.subr.bf16.mxu0 0
  %1016 = vmatpush1.bf16.msra.mxu0 %v878
  %1017 = vmatprep.subr.bf16.mxu0 0
  %1018 = vmatpush1.bf16.msra.mxu0 %v879
  %1019 = vmatprep.subr.bf16.mxu0 0
  %1020 = vmatpush1.bf16.msra.mxu0 %v880
  %1021 = vmatprep.subr.bf16.mxu0 0
  %1022 = vmatpush1.bf16.msra.mxu0 %v881
  %1023 = vmatprep.subr.bf16.mxu0 0
  %1024 = vmatpush1.bf16.msra.mxu0 %v882
  %1025 = vmatprep.subr.bf16.mxu0 0
  %1026 = vmatpush1.bf16.msra.mxu0 %v883
  %1027 = vmatprep.subr.bf16.mxu0 0
  %1028 = vmatpush1.bf16.msra.mxu0 %v884
  %1029 = vmatprep.subr.bf16.mxu0 0
  %1030 = vmatpush1.bf16.msra.mxu0 %v885
  %1031 = vmatprep.subr.bf16.mxu0 0
  %1032 = vmatpush1.bf16.msra.mxu0 %v886
  %1033 = vmatprep.subr.bf16.mxu0 0
  %1034 = vmatpush1.bf16.msra.mxu0 %v887
  %1035 = vmatprep.subr.bf16.mxu0 0
  %1036 = vmatpush1.bf16.msra.mxu0 %v888
  %1037 = vmatprep.subr.bf16.mxu0 0
  %1038 = vmatpush1.bf16.msra.mxu0 %v889
  %1039 = vmatprep.mubr.bf16.mxu0 %v694
  %1040 = vmatmul.mubr.bf16.gmra.mrb[0].mxu0 %v693
  %v1041 = vpop.f32.mrb[0].mxu0
  %v1042 = vadd.f32 %v977, %v1041
  %v1043 = vpop.f32.mrb[0].mxu0
  %v1044 = vpop.f32.mrb[0].mxu0
  %v1045 = vadd.f32 %v980, %v1044
  %v1046 = vpop.f32.mrb[0].mxu0
  %1047 = vmatprep.mubr.bf16.mxu0 %v698
  %1048 = vmatmul.mubr.bf16.gmra.mrb[0].mxu0 %v697
  %v1049 = vpop.f32.mrb[0].mxu0
  %v1050 = vadd.f32 %v985, %v1049
  %v1051 = vpop.f32.mrb[0].mxu0
  %v1052 = vpop.f32.mrb[0].mxu0
  %v1053 = vadd.f32 %v988, %v1052
  %v1054 = vpop.f32.mrb[0].mxu0
  %1055 = vmatprep.mubr.bf16.mxu0 %v702
  %1056 = vmatmul.mubr.bf16.gmra.mrb[0].mxu0 %v701
  %v1057 = vpop.f32.mrb[0].mxu0
  %v1058 = vadd.f32 %v993, %v1057
  %v1059 = vpop.f32.mrb[0].mxu0
  %v1060 = vpop.f32.mrb[0].mxu0
  %v1061 = vadd.f32 %v996, %v1060
  %v1062 = vpop.f32.mrb[0].mxu0
  %1063 = vmatprep.mubr.bf16.mxu0 %v706
  %1064 = vmatmul.mubr.bf16.gmra.mrb[0].mxu0 %v705
  %v1065 = vpop.f32.mrb[0].mxu0
  %v1066 = vadd.f32 %v1001, %v1065
  %v1067 = vpop.f32.mrb[0].mxu0
  %v1068 = vpop.f32.mrb[0].mxu0
  %v1069 = vadd.f32 %v1004, %v1068
  %v1070 = vpop.f32.mrb[0].mxu0
  %1071 = vdwg.mxu0
  %1072 = vmatprep.subr.bf16.mxu0 0
  %1073 = vmatpush1.bf16.msra.mxu0 %v890
  %1074 = vmatprep.subr.bf16.mxu0 0
  %1075 = vmatpush1.bf16.msra.mxu0 %v891
  %1076 = vmatprep.subr.bf16.mxu0 0
  %1077 = vmatpush1.bf16.msra.mxu0 %v892
  %1078 = vmatprep.subr.bf16.mxu0 0
  %1079 = vmatpush1.bf16.msra.mxu0 %v893
  %1080 = vmatprep.subr.bf16.mxu0 0
  %1081 = vmatpush1.bf16.msra.mxu0 0
  %1082 = vmatprep.subr.bf16.mxu0 0
  %1083 = vmatpush1.bf16.msra.mxu0 0
  %1084 = vmatprep.subr.bf16.mxu0 0
  %1085 = vmatpush1.bf16.msra.mxu0 0
  %1086 = vmatprep.subr.bf16.mxu0 0
  %1087 = vmatpush1.bf16.msra.mxu0 0
  %1088 = vmatprep.subr.bf16.mxu0 0
  %1089 = vmatpush1.bf16.msra.mxu0 0
  %1090 = vmatprep.subr.bf16.mxu0 0
  %1091 = vmatpush1.bf16.msra.mxu0 0
  %1092 = vmatprep.subr.bf16.mxu0 0
  %1093 = vmatpush1.bf16.msra.mxu0 0
  %1094 = vmatprep.subr.bf16.mxu0 0
  %1095 = vmatpush1.bf16.msra.mxu0 0
  %1096 = vmatprep.subr.bf16.mxu0 0
  %1097 = vmatpush1.bf16.msra.mxu0 0
  %1098 = vmatprep.subr.bf16.mxu0 0
  %1099 = vmatpush1.bf16.msra.mxu0 0
  %1100 = vmatprep.subr.bf16.mxu0 0
  %1101 = vmatpush1.bf16.msra.mxu0 0
  %1102 = vmatprep.subr.bf16.mxu0 0
  %1103 = vmatpush1.bf16.msra.mxu0 0
  %1104 = vmatprep.mubr.bf16.mxu0 0
  %1105 = vmatmul.mubr.bf16.gmra.mrb[0].mxu0 %v931
  %v1106 = vpop.f32.mrb[0].mxu0
  %v1107 = vadd.f32 %v1042, %v1106
  %v1108 = vpop.f32.mrb[0].mxu0
  %v1109 = vpop.f32.mrb[0].mxu0
  %v1110 = vadd.f32 %v1045, %v1109
  %v1111 = vpop.f32.mrb[0].mxu0
  %1112 = vmatprep.mubr.bf16.mxu0 0
  %1113 = vmatmul.mubr.bf16.gmra.mrb[0].mxu0 %v934
  %v1114 = vpop.f32.mrb[0].mxu0
  %v1115 = vadd.f32 %v1050, %v1114
  %v1116 = vpop.f32.mrb[0].mxu0
  %v1117 = vpop.f32.mrb[0].mxu0
  %v1118 = vadd.f32 %v1053, %v1117
  %v1119 = vpop.f32.mrb[0].mxu0
  %1120 = vmatprep.mubr.bf16.mxu0 0
  %1121 = vmatmul.mubr.bf16.gmra.mrb[0].mxu0 %v937
  %v1122 = vpop.f32.mrb[0].mxu0
  %v1123 = vadd.f32 %v1058, %v1122
  %v1124 = vpop.f32.mrb[0].mxu0
  %v1125 = vpop.f32.mrb[0].mxu0
  %v1126 = vadd.f32 %v1061, %v1125
  %v1127 = vpop.f32.mrb[0].mxu0
  %1128 = vmatprep.mubr.bf16.mxu0 0
  %1129 = vmatmul.mubr.bf16.gmra.mrb[0].mxu0 %v940
  %v1130 = vpop.f32.mrb[0].mxu0
  %v1131 = vadd.f32 %v1066, %v1130
  %v1132 = vpop.f32.mrb[0].mxu0
  %v1133 = vpop.f32.mrb[0].mxu0
  %v1134 = vadd.f32 %v1069, %v1133
  %v1135 = vpop.f32.mrb[0].mxu0
  %1136 = vdwg.mxu0
  %v1137 = vmax.f32 %v1107, 0.0
  %v1138 = vmax.f32 %v1110, 0.0
  %v1139 = vmax.f32 %v1115, 0.0
  %v1140 = vmax.f32 %v1118, 0.0
  %v1141 = vmax.f32 %v1123, 0.0
  %v1142 = vmax.f32 %v1126, 0.0
  %v1143 = vmax.f32 %v1131, 0.0
  %v1144 = vmax.f32 %v1134, 0.0
  %v1153 = vrot.slane %v1137, 1
  %v1154 = vrot.slane %v1138, 1
  %v1155 = vsel %vm536, %v1153, %v1154
  %v1156 = vrot.slane %v1139, 1
  %v1157 = vsel %vm536, %v1154, %v1156
  %v1158 = vrot.slane %v1140, 1
  %v1159 = vsel %vm536, %v1156, %v1158
  %v1160 = vrot.slane %v1141, 1
  %v1161 = vsel %vm536, %v1158, %v1160
  %v1162 = vrot.slane %v1142, 1
  %v1163 = vsel %vm536, %v1160, %v1162
  %v1164 = vrot.slane %v1143, 1
  %v1165 = vsel %vm536, %v1162, %v1164
  %v1166 = vrot.slane %v1144, 1
  %v1167 = vsel %vm536, %v1164, %v1166
  %v1168 = vsel %vm536, %v1166, %v552
  %1169 = vrot.lane.b32.xlu0 %v1155, 32
  %v1170 = vpop.permute.xlu0 %1169
  %1171 = vrot.lane.b32.xlu0 %v1157, 32
  %v1172 = vpop.permute.xlu0 %1171
  %1173 = vrot.lane.b32.xlu0 %v1159, 32
  %v1174 = vpop.permute.xlu0 %1173
  %1175 = vrot.lane.b32.xlu0 %v1161, 32
  %v1176 = vpop.permute.xlu0 %1175
  %1177 = vrot.lane.b32.xlu0 %v1163, 32
  %v1178 = vpop.permute.xlu0 %1177
  %1179 = vrot.lane.b32.xlu0 %v1165, 32
  %v1180 = vpop.permute.xlu0 %1179
  %1181 = vrot.lane.b32.xlu0 %v1167, 32
  %v1182 = vpop.permute.xlu0 %1181
  %1183 = vrot.lane.b32.xlu0 %v1168, 32
  %v1184 = vpop.permute.xlu0 %1183
  %v1193 = vrot.slane %v1137, 2
  %v1194 = vrot.slane %v1138, 2
  %v1195 = vsel %vm578, %v1193, %v1194
  %v1196 = vrot.slane %v1139, 2
  %v1197 = vsel %vm578, %v1194, %v1196
  %v1198 = vrot.slane %v1140, 2
  %v1199 = vsel %vm578, %v1196, %v1198
  %v1200 = vrot.slane %v1141, 2
  %v1201 = vsel %vm578, %v1198, %v1200
  %v1202 = vrot.slane %v1142, 2
  %v1203 = vsel %vm578, %v1200, %v1202
  %v1204 = vrot.slane %v1143, 2
  %v1205 = vsel %vm578, %v1202, %v1204
  %v1206 = vrot.slane %v1144, 2
  %v1207 = vsel %vm578, %v1204, %v1206
  %v1208 = vsel %vm578, %v1206, %v594
  %1209 = vrot.lane.b32.xlu0 %v1195, 64
  %v1210 = vpop.permute.xlu0 %1209
  %1211 = vrot.lane.b32.xlu0 %v1197, 64
  %v1212 = vpop.permute.xlu0 %1211
  %1213 = vrot.lane.b32.xlu0 %v1199, 64
  %v1214 = vpop.permute.xlu0 %1213
  %1215 = vrot.lane.b32.xlu0 %v1201, 64
  %v1216 = vpop.permute.xlu0 %1215
  %1217 = vrot.lane.b32.xlu0 %v1203, 64
  %v1218 = vpop.permute.xlu0 %1217
  %1219 = vrot.lane.b32.xlu0 %v1205, 64
  %v1220 = vpop.permute.xlu0 %1219
  %1221 = vrot.lane.b32.xlu0 %v1207, 64
  %v1222 = vpop.permute.xlu0 %1221
  %1223 = vrot.lane.b32.xlu0 %v1208, 64
  %v1224 = vpop.permute.xlu0 %1223
  %1233 = vrot.lane.b32.xlu0 %v1138, 96
  %v1234 = vpop.permute.xlu0 %1233
  %1235 = vrot.lane.b32.xlu0 %v1139, 96
  %v1236 = vpop.permute.xlu0 %1235
  %1237 = vrot.lane.b32.xlu0 %v1140, 96
  %v1238 = vpop.permute.xlu0 %1237
  %1239 = vrot.lane.b32.xlu0 %v1141, 96
  %v1240 = vpop.permute.xlu0 %1239
  %1241 = vrot.lane.b32.xlu0 %v1142, 96
  %v1242 = vpop.permute.xlu0 %1241
  %1243 = vrot.lane.b32.xlu0 %v1143, 96
  %v1244 = vpop.permute.xlu0 %1243
  %1245 = vrot.lane.b32.xlu0 %v1144, 96
  %v1246 = vpop.permute.xlu0 %1245
  %1247 = vrot.lane.b32.xlu0 0.0, 96
  %v1248 = vpop.permute.xlu0 %1247
  %1264 = vrot.lane.b32.xlu0 %v1197, 32
  %v1265 = vpop.permute.xlu0 %1264
  %1266 = vrot.lane.b32.xlu0 %v1199, 32
  %v1267 = vpop.permute.xlu0 %1266
  %1268 = vrot.lane.b32.xlu0 %v1201, 32
  %v1269 = vpop.permute.xlu0 %1268
  %1270 = vrot.lane.b32.xlu0 %v1203, 32
  %v1271 = vpop.permute.xlu0 %1270
  %1272 = vrot.lane.b32.xlu0 %v1205, 32
  %v1273 = vpop.permute.xlu0 %1272
  %1274 = vrot.lane.b32.xlu0 %v1207, 32
  %v1275 = vpop.permute.xlu0 %1274
  %1276 = vrot.lane.b32.xlu0 %v1208, 32
  %v1277 = vpop.permute.xlu0 %1276
  %1278 = vrot.lane.b32.xlu0 %v637, 32
  %v1279 = vpop.permute.xlu0 %1278
  %1288 = vrot.lane.b32.xlu0 %v1139, 64
  %v1289 = vpop.permute.xlu0 %1288
  %1290 = vrot.lane.b32.xlu0 %v1140, 64
  %v1291 = vpop.permute.xlu0 %1290
  %1292 = vrot.lane.b32.xlu0 %v1141, 64
  %v1293 = vpop.permute.xlu0 %1292
  %1294 = vrot.lane.b32.xlu0 %v1142, 64
  %v1295 = vpop.permute.xlu0 %1294
  %1296 = vrot.lane.b32.xlu0 %v1143, 64
  %v1297 = vpop.permute.xlu0 %1296
  %1298 = vrot.lane.b32.xlu0 %v1144, 64
  %v1299 = vpop.permute.xlu0 %1298
  %1306 = vrot.lane.b32.xlu0 %v1159, 96
  %v1307 = vpop.permute.xlu0 %1306
  %1308 = vrot.lane.b32.xlu0 %v1161, 96
  %v1309 = vpop.permute.xlu0 %1308
  %1310 = vrot.lane.b32.xlu0 %v1163, 96
  %v1311 = vpop.permute.xlu0 %1310
  %1312 = vrot.lane.b32.xlu0 %v1165, 96
  %v1313 = vpop.permute.xlu0 %1312
  %1314 = vrot.lane.b32.xlu0 %v1167, 96
  %v1315 = vpop.permute.xlu0 %1314
  %1316 = vrot.lane.b32.xlu0 %v1168, 96
  %v1317 = vpop.permute.xlu0 %1316
  %1318 = vrot.lane.b32.xlu0 %v628, 96
  %v1319 = vpop.permute.xlu0 %1318
  %v1333 = vsel %vm71, %v1137, %v1170
  %v1334 = vsel %vm71, %v1138, %v1172
  %v1335 = vsel %vm71, %v1139, %v1174
  %v1336 = vsel %vm71, %v1140, %v1176
  %v1337 = vsel %vm71, %v1141, %v1178
  %v1338 = vsel %vm71, %v1142, %v1180
  %v1339 = vsel %vm71, %v1143, %v1182
  %v1340 = vsel %vm71, %v1144, %v1184
  %v1341 = vsel %vm478, %v1333, %v1210
  %v1342 = vsel %vm478, %v1334, %v1212
  %v1343 = vsel %vm478, %v1335, %v1214
  %v1344 = vsel %vm478, %v1336, %v1216
  %v1345 = vsel %vm478, %v1337, %v1218
  %v1346 = vsel %vm478, %v1338, %v1220
  %v1347 = vsel %vm478, %v1339, %v1222
  %v1348 = vsel %vm478, %v1340, %v1224
  %vm1349 = vcmask 785408
  %v1350 = vsel %vm1349, %v1341, %v1234
  %v1351 = vsel %vm1349, %v1342, %v1236
  %v1352 = vsel %vm1349, %v1343, %v1238
  %v1353 = vsel %vm1349, %v1344, %v1240
  %v1354 = vsel %vm1349, %v1345, %v1242
  %v1355 = vsel %vm1349, %v1346, %v1244
  %v1356 = vsel %vm1349, %v1347, %v1246
  %v1357 = vsel %vm1349, %v1348, %v1248
  %v1358 = vsel %vm71, %v1157, %v1265
  %v1359 = vsel %vm71, %v1159, %v1267
  %v1360 = vsel %vm71, %v1161, %v1269
  %v1361 = vsel %vm71, %v1163, %v1271
  %v1362 = vsel %vm71, %v1165, %v1273
  %v1363 = vsel %vm71, %v1167, %v1275
  %v1364 = vsel %vm71, %v1168, %v1277
  %v1365 = vsel %vm71, %v628, %v1279
  %v1366 = vsel %vm478, %v1358, %v1289
  %v1367 = vsel %vm478, %v1359, %v1291
  %v1368 = vsel %vm478, %v1360, %v1293
  %v1369 = vsel %vm478, %v1361, %v1295
  %v1370 = vsel %vm478, %v1362, %v1297
  %v1371 = vsel %vm478, %v1363, %v1299
  %v1372 = vsel %vm478, %v1364, %v619
  %v1373 = vsel %vm478, %v1365, %v619
  %v1374 = vsel %vm1349, %v1366, %v1307
  %v1375 = vsel %vm1349, %v1367, %v1309
  %v1376 = vsel %vm1349, %v1368, %v1311
  %v1377 = vsel %vm1349, %v1369, %v1313
  %v1378 = vsel %vm1349, %v1370, %v1315
  %v1379 = vsel %vm1349, %v1371, %v1317
  %v1380 = vsel %vm1349, %v1372, %v1319
  %v1381 = vsel %vm1349, %v1373, %v1319
  %v1382 = vpack.c.bf16 %v1351, %v1350
  %v1383 = vpack.c.bf16 %v1375, %v1374
  %v1384 = vpack.c.bf16 %v1201, %v1199
  %v1385 = vpack.c.bf16 %v1353, %v1352
  %v1386 = vpack.c.bf16 %v1377, %v1376
  %v1387 = vpack.c.bf16 %v1205, %v1203
  %v1388 = vpack.c.bf16 %v1355, %v1354
  %v1389 = vpack.c.bf16 %v1379, %v1378
  %v1390 = vpack.c.bf16 %v1208, %v1207
  %v1391 = vpack.c.bf16 %v1357, %v1356
  %v1392 = vpack.c.bf16 %v1381, %v1380
  %v1394 = vlaneseq
  %v1395 = vshrl.u32 %v1394, 7
  %v1396 = vsub.s32 0, %v1395
  %v1397 = vrot.slane %v331, %v1396
  %v1435 = vunpack.c.l.b16 %v295
  %v1436 = vunpack.c.l.b16 %v296
  %v1437 = vunpack.c.l.b16 %v297
  %v1438 = vunpack.c.l.b16 %v298
  %v1439 = vunpack.c.l.b16 %v299
  %v1440 = vunpack.c.l.b16 %v300
  %v1441 = vunpack.c.l.b16 %v301
  %v1442 = vunpack.c.l.b16 %v302
  %v1443 = vunpack.c.l.b16 %v303
  %v1444 = vunpack.c.l.b16 %v304
  %v1445 = vunpack.c.l.b16 %v305
  %v1446 = vunpack.c.l.b16 %v306
  %v1447 = vunpack.c.l.b16 %v307
  %v1448 = vunpack.c.l.b16 %v308
  %v1449 = vunpack.c.l.b16 %v309
  %v1450 = vunpack.c.l.b16 %v310
  %v1451 = vunpack.c.l.b16 %v311
  %v1452 = vunpack.c.l.b16 %v312
  %v1453 = vunpack.c.l.b16 %v313
  %v1454 = vunpack.c.l.b16 %v314
  %v1455 = vunpack.c.l.b16 %v315
  %v1456 = vunpack.c.l.b16 %v316
  %v1457 = vunpack.c.l.b16 %v317
  %v1458 = vunpack.c.l.b16 %v318
  %v1459 = vunpack.c.l.b16 %v319
  %v1460 = vunpack.c.l.b16 %v320
  %v1461 = vunpack.c.l.b16 %v321
  %v1462 = vunpack.c.l.b16 %v322
  %v1463 = vunpack.c.l.b16 %v323
  %v1464 = vunpack.c.l.b16 %v324
  %v1465 = vunpack.c.l.b16 %v325
  %v1466 = vunpack.c.l.b16 %v326
  %v1467 = vunpack.c.l.b16 %v327
  %v1468 = vunpack.c.l.b16 %v328
  %v1469 = vunpack.c.l.b16 %v329
  %v1470 = vunpack.c.l.b16 %v330
  %v1471 = vpack.c.b16 %v1436, %v1435
  %v1472 = vpack.c.b16 %v1438, %v1437
  %v1473 = vpack.c.b16 %v1440, %v1439
  %v1474 = vpack.c.b16 %v1442, %v1441
  %v1475 = vpack.c.b16 %v1444, %v1443
  %v1476 = vpack.c.b16 %v1446, %v1445
  %v1477 = vpack.c.b16 %v1448, %v1447
  %v1478 = vpack.c.b16 %v1450, %v1449
  %v1479 = vpack.c.b16 %v1452, %v1451
  %v1480 = vpack.c.b16 %v1454, %v1453
  %v1481 = vpack.c.b16 %v1456, %v1455
  %v1482 = vpack.c.b16 %v1458, %v1457
  %v1483 = vpack.c.b16 %v1460, %v1459
  %v1484 = vpack.c.b16 %v1462, %v1461
  %v1485 = vpack.c.b16 %v1464, %v1463
  %v1486 = vpack.c.b16 %v1466, %v1465
  %v1487 = vpack.c.b16 %v1468, %v1467
  %v1488 = vpack.c.b16 %v1470, %v1469
  %v1508 = vsel %vm71, %v1384, 0
  %v1511 = vsel %vm71, %v1387, 0
  %v1514 = vsel %vm71, %v1390, 0
  %v1516 = vsel %vm71, %v707, 0
  %1518 = vmatprep.subr.bf16.mxu0 0
  %1519 = vmatpush1.bf16.msra.mxu0 %v1471
  %1520 = vmatprep.subr.bf16.mxu0 0
  %1521 = vmatpush1.bf16.msra.mxu0 %v1472
  %1522 = vmatprep.subr.bf16.mxu0 0
  %1523 = vmatpush1.bf16.msra.mxu0 %v1473
  %1524 = vmatprep.subr.bf16.mxu0 0
  %1525 = vmatpush1.bf16.msra.mxu0 %v1474
  %1526 = vmatprep.subr.bf16.mxu0 0
  %1527 = vmatpush1.bf16.msra.mxu0 %v1475
  %1528 = vmatprep.subr.bf16.mxu0 0
  %1529 = vmatpush1.bf16.msra.mxu0 %v1476
  %1530 = vmatprep.subr.bf16.mxu0 0
  %1531 = vmatpush1.bf16.msra.mxu0 %v1477
  %1532 = vmatprep.subr.bf16.mxu0 0
  %1533 = vmatpush1.bf16.msra.mxu0 %v1478
  %1534 = vmatprep.subr.bf16.mxu0 0
  %1535 = vmatpush1.bf16.msra.mxu0 %v1479
  %1536 = vmatprep.subr.bf16.mxu0 0
  %1537 = vmatpush1.bf16.msra.mxu0 %v1480
  %1538 = vmatprep.subr.bf16.mxu0 0
  %1539 = vmatpush1.bf16.msra.mxu0 %v1481
  %1540 = vmatprep.subr.bf16.mxu0 0
  %1541 = vmatpush1.bf16.msra.mxu0 %v1482
  %1542 = vmatprep.subr.bf16.mxu0 0
  %1543 = vmatpush1.bf16.msra.mxu0 %v1483
  %1544 = vmatprep.subr.bf16.mxu0 0
  %1545 = vmatpush1.bf16.msra.mxu0 %v1484
  %1546 = vmatprep.subr.bf16.mxu0 0
  %1547 = vmatpush1.bf16.msra.mxu0 %v1485
  %1548 = vmatprep.subr.bf16.mxu0 0
  %1549 = vmatpush1.bf16.msra.mxu0 %v1486
  %1550 = vmatprep.mubr.bf16.mxu0 %v1383
  %1551 = vmatmul.mubr.bf16.gmra.mrb[0].mxu0 %v1382
  %v1552 = vpop.f32.mrb[0].mxu0
  %v1553 = vadd.f32 %v1397, %v1552
  %v1554 = vpop.f32.mrb[0].mxu0
  %v1555 = vpop.f32.mrb[0].mxu0
  %v1556 = vadd.f32 %v1397, %v1555
  %v1557 = vpop.f32.mrb[0].mxu0
  %1558 = vmatprep.mubr.bf16.mxu0 %v1386
  %1559 = vmatmul.mubr.bf16.gmra.mrb[0].mxu0 %v1385
  %v1560 = vpop.f32.mrb[0].mxu0
  %v1561 = vadd.f32 %v1397, %v1560
  %v1562 = vpop.f32.mrb[0].mxu0
  %v1563 = vpop.f32.mrb[0].mxu0
  %v1564 = vadd.f32 %v1397, %v1563
  %v1565 = vpop.f32.mrb[0].mxu0
  %1566 = vmatprep.mubr.bf16.mxu0 %v1389
  %1567 = vmatmul.mubr.bf16.gmra.mrb[0].mxu0 %v1388
  %v1568 = vpop.f32.mrb[0].mxu0
  %v1569 = vpop.f32.mrb[0].mxu0
  %v1570 = vpop.f32.mrb[0].mxu0
  %v1571 = vpop.f32.mrb[0].mxu0
  %1572 = vmatprep.mubr.bf16.mxu0 %v1392
  %1573 = vmatmul.mubr.bf16.gmra.mrb[0].mxu0 %v1391
  %v1574 = vpop.f32.mrb[0].mxu0
  %v1575 = vpop.f32.mrb[0].mxu0
  %v1576 = vpop.f32.mrb[0].mxu0
  %v1577 = vpop.f32.mrb[0].mxu0
  %1578 = vdwg.mxu0
  %1579 = vmatprep.subr.bf16.mxu0 0
  %1580 = vmatpush1.bf16.msra.mxu0 %v1487
  %1581 = vmatprep.subr.bf16.mxu0 0
  %1582 = vmatpush1.bf16.msra.mxu0 %v1488
  %1583 = vmatprep.subr.bf16.mxu0 0
  %1584 = vmatpush1.bf16.msra.mxu0 0
  %1585 = vmatprep.subr.bf16.mxu0 0
  %1586 = vmatpush1.bf16.msra.mxu0 0
  %1587 = vmatprep.subr.bf16.mxu0 0
  %1588 = vmatpush1.bf16.msra.mxu0 0
  %1589 = vmatprep.subr.bf16.mxu0 0
  %1590 = vmatpush1.bf16.msra.mxu0 0
  %1591 = vmatprep.subr.bf16.mxu0 0
  %1592 = vmatpush1.bf16.msra.mxu0 0
  %1593 = vmatprep.subr.bf16.mxu0 0
  %1594 = vmatpush1.bf16.msra.mxu0 0
  %1595 = vmatprep.subr.bf16.mxu0 0
  %1596 = vmatpush1.bf16.msra.mxu0 0
  %1597 = vmatprep.subr.bf16.mxu0 0
  %1598 = vmatpush1.bf16.msra.mxu0 0
  %1599 = vmatprep.subr.bf16.mxu0 0
  %1600 = vmatpush1.bf16.msra.mxu0 0
  %1601 = vmatprep.subr.bf16.mxu0 0
  %1602 = vmatpush1.bf16.msra.mxu0 0
  %1603 = vmatprep.subr.bf16.mxu0 0
  %1604 = vmatpush1.bf16.msra.mxu0 0
  %1605 = vmatprep.subr.bf16.mxu0 0
  %1606 = vmatpush1.bf16.msra.mxu0 0
  %1607 = vmatprep.subr.bf16.mxu0 0
  %1608 = vmatpush1.bf16.msra.mxu0 0
  %1609 = vmatprep.subr.bf16.mxu0 0
  %1610 = vmatpush1.bf16.msra.mxu0 0
  %1611 = vmatprep.mubr.bf16.mxu0 0
  %1612 = vmatmul.mubr.bf16.gmra.mrb[0].mxu0 %v1508
  %v1613 = vpop.f32.mrb[0].mxu0
  %v1614 = vadd.f32 %v1553, %v1613
  %v1615 = vpop.f32.mrb[0].mxu0
  %v1616 = vpop.f32.mrb[0].mxu0
  %v1617 = vadd.f32 %v1556, %v1616
  %v1618 = vpop.f32.mrb[0].mxu0
  %1619 = vmatprep.mubr.bf16.mxu0 0
  %1620 = vmatmul.mubr.bf16.gmra.mrb[0].mxu0 %v1511
  %v1621 = vpop.f32.mrb[0].mxu0
  %v1622 = vadd.f32 %v1561, %v1621
  %v1623 = vpop.f32.mrb[0].mxu0
  %v1624 = vpop.f32.mrb[0].mxu0
  %v1625 = vadd.f32 %v1564, %v1624
  %v1626 = vpop.f32.mrb[0].mxu0
  %1627 = vmatprep.mubr.bf16.mxu0 0
  %1628 = vmatmul.mubr.bf16.gmra.mrb[0].mxu0 %v1514
  %v1629 = vpop.f32.mrb[0].mxu0
  %v1630 = vpop.f32.mrb[0].mxu0
  %v1631 = vpop.f32.mrb[0].mxu0
  %v1632 = vpop.f32.mrb[0].mxu0
  %1633 = vmatprep.mubr.bf16.mxu0 0
  %1634 = vmatmul.mubr.bf16.gmra.mrb[0].mxu0 %v1516
  %v1635 = vpop.f32.mrb[0].mxu0
  %v1636 = vpop.f32.mrb[0].mxu0
  %v1637 = vpop.f32.mrb[0].mxu0
  %v1638 = vpop.f32.mrb[0].mxu0
  %1639 = vdwg.mxu0
  %v1640 = vmax.f32 %v1614, 0.0
  %v1641 = vmax.f32 %v1617, 0.0
  %v1642 = vmax.f32 %v1622, 0.0
  %v1643 = vmax.f32 %v1625, 0.0
  %v1645 = vrot.slane %v1640, 1
  %1646 = vrot.lane.b32.xlu0 %v1645, 16
  %v1647 = vpop.permute.xlu0 %1646
  %v1649 = vrot.slane %v1640, 2
  %1650 = vrot.lane.b32.xlu0 %v1649, 32
  %v1651 = vpop.permute.xlu0 %1650
  %v1653 = vrot.slane %v1640, 3
  %1654 = vrot.lane.b32.xlu0 %v1653, 48
  %v1655 = vpop.permute.xlu0 %1654
  %1658 = vrot.lane.b32.xlu0 %v1641, 64
  %v1659 = vpop.permute.xlu0 %1658
  %v1661 = vrot.slane %v1641, 1
  %1662 = vrot.lane.b32.xlu0 %v1661, 80
  %v1663 = vpop.permute.xlu0 %1662
  %v1665 = vrot.slane %v1641, 2
  %1666 = vrot.lane.b32.xlu0 %v1665, 96
  %v1667 = vpop.permute.xlu0 %1666
  %v1669 = vrot.slane %v1641, 3
  %1670 = vrot.lane.b32.xlu0 %v1669, 112
  %v1671 = vpop.permute.xlu0 %1670
  %v1674 = vrot.slane %v1642, 1
  %1675 = vrot.lane.b32.xlu0 %v1674, 16
  %v1676 = vpop.permute.xlu0 %1675
  %v1678 = vrot.slane %v1642, 2
  %1679 = vrot.lane.b32.xlu0 %v1678, 32
  %v1680 = vpop.permute.xlu0 %1679
  %v1682 = vrot.slane %v1642, 3
  %1683 = vrot.lane.b32.xlu0 %v1682, 48
  %v1684 = vpop.permute.xlu0 %1683
  %1687 = vrot.lane.b32.xlu0 %v1643, 64
  %v1688 = vpop.permute.xlu0 %1687
  %v1690 = vrot.slane %v1643, 1
  %1691 = vrot.lane.b32.xlu0 %v1690, 80
  %v1692 = vpop.permute.xlu0 %1691
  %v1694 = vrot.slane %v1643, 2
  %1695 = vrot.lane.b32.xlu0 %v1694, 96
  %v1696 = vpop.permute.xlu0 %1695
  %v1698 = vrot.slane %v1643, 3
  %1699 = vrot.lane.b32.xlu0 %v1698, 112
  %v1700 = vpop.permute.xlu0 %1699
  %v1702 = vsel %vm165, %v1640, %v1647
  %v1703 = vsel %vm71, %v1702, %v1651
  %vm1704 = vcmask 392192
  %v1705 = vsel %vm1704, %v1703, %v1655
  %v1706 = vsel %vm478, %v1705, %v1659
  %vm1707 = vcmask 654336
  %v1708 = vsel %vm1707, %v1706, %v1663
  %v1709 = vsel %vm1349, %v1708, %v1667
  %vm1710 = vcmask 916480
  %v1711 = vsel %vm1710, %v1709, %v1671
  %v1712 = vsel %vm165, %v1642, %v1676
  %v1713 = vsel %vm71, %v1712, %v1680
  %v1714 = vsel %vm1704, %v1713, %v1684
  %v1715 = vsel %vm478, %v1714, %v1688
  %v1716 = vsel %vm1707, %v1715, %v1692
  %v1717 = vsel %vm1349, %v1716, %v1696
  %v1718 = vsel %vm1710, %v1717, %v1700
  %v1719 = vpack.c.bf16 %v1711, %v1711
  %v1720 = vpack.c.bf16 %v1718, %v1718
  %v1753 = vunpack.c.l.b16 %v332
  %v1754 = vunpack.c.l.b16 %v333
  %v1755 = vunpack.c.l.b16 %v334
  %v1756 = vunpack.c.l.b16 %v335
  %v1757 = vunpack.c.l.b16 %v336
  %v1758 = vunpack.c.l.b16 %v337
  %v1759 = vunpack.c.l.b16 %v338
  %v1760 = vunpack.c.l.b16 %v339
  %v1761 = vunpack.c.l.b16 %v340
  %v1762 = vunpack.c.l.b16 %v341
  %v1763 = vunpack.c.l.b16 %v342
  %v1764 = vunpack.c.l.b16 %v343
  %v1765 = vunpack.c.l.b16 %v344
  %v1766 = vunpack.c.l.b16 %v345
  %v1767 = vunpack.c.l.b16 %v346
  %v1768 = vunpack.c.l.b16 %v347
  %v1769 = vunpack.c.l.b16 %v348
  %v1770 = vunpack.c.l.b16 %v349
  %v1771 = vunpack.c.l.b16 %v350
  %v1772 = vunpack.c.l.b16 %v351
  %v1773 = vunpack.c.l.b16 %v352
  %v1774 = vunpack.c.l.b16 %v353
  %v1775 = vunpack.c.l.b16 %v354
  %v1776 = vunpack.c.l.b16 %v355
  %v1777 = vunpack.c.l.b16 %v356
  %v1778 = vunpack.c.l.b16 %v357
  %v1779 = vunpack.c.l.b16 %v358
  %v1780 = vunpack.c.l.b16 %v359
  %v1781 = vunpack.c.l.b16 %v360
  %v1782 = vunpack.c.l.b16 %v361
  %v1783 = vunpack.c.l.b16 %v362
  %v1784 = vunpack.c.l.b16 %v363
  %v1785 = vpack.c.b16 %v1754, %v1753
  %v1786 = vpack.c.b16 %v1756, %v1755
  %v1787 = vpack.c.b16 %v1758, %v1757
  %v1788 = vpack.c.b16 %v1760, %v1759
  %v1789 = vpack.c.b16 %v1762, %v1761
  %v1790 = vpack.c.b16 %v1764, %v1763
  %v1791 = vpack.c.b16 %v1766, %v1765
  %v1792 = vpack.c.b16 %v1768, %v1767
  %v1793 = vpack.c.b16 %v1770, %v1769
  %v1794 = vpack.c.b16 %v1772, %v1771
  %v1795 = vpack.c.b16 %v1774, %v1773
  %v1796 = vpack.c.b16 %v1776, %v1775
  %v1797 = vpack.c.b16 %v1778, %v1777
  %v1798 = vpack.c.b16 %v1780, %v1779
  %v1799 = vpack.c.b16 %v1782, %v1781
  %v1800 = vpack.c.b16 %v1784, %v1783
  %1817 = vmatprep.subr.bf16.mxu0 0
  %1818 = vmatpush1.bf16.msra.mxu0 %v1785
  %1819 = vmatprep.subr.bf16.mxu0 0
  %1820 = vmatpush1.bf16.msra.mxu0 %v1786
  %1821 = vmatprep.subr.bf16.mxu0 0
  %1822 = vmatpush1.bf16.msra.mxu0 %v1787
  %1823 = vmatprep.subr.bf16.mxu0 0
  %1824 = vmatpush1.bf16.msra.mxu0 %v1788
  %1825 = vmatprep.subr.bf16.mxu0 0
  %1826 = vmatpush1.bf16.msra.mxu0 %v1789
  %1827 = vmatprep.subr.bf16.mxu0 0
  %1828 = vmatpush1.bf16.msra.mxu0 %v1790
  %1829 = vmatprep.subr.bf16.mxu0 0
  %1830 = vmatpush1.bf16.msra.mxu0 %v1791
  %1831 = vmatprep.subr.bf16.mxu0 0
  %1832 = vmatpush1.bf16.msra.mxu0 %v1792
  %1833 = vmatprep.subr.bf16.mxu0 0
  %1834 = vmatpush1.bf16.msra.mxu0 %v1793
  %1835 = vmatprep.subr.bf16.mxu0 0
  %1836 = vmatpush1.bf16.msra.mxu0 %v1794
  %1837 = vmatprep.subr.bf16.mxu0 0
  %1838 = vmatpush1.bf16.msra.mxu0 %v1795
  %1839 = vmatprep.subr.bf16.mxu0 0
  %1840 = vmatpush1.bf16.msra.mxu0 %v1796
  %1841 = vmatprep.subr.bf16.mxu0 0
  %1842 = vmatpush1.bf16.msra.mxu0 %v1797
  %1843 = vmatprep.subr.bf16.mxu0 0
  %1844 = vmatpush1.bf16.msra.mxu0 %v1798
  %1845 = vmatprep.subr.bf16.mxu0 0
  %1846 = vmatpush1.bf16.msra.mxu0 %v1799
  %1847 = vmatprep.subr.bf16.mxu0 0
  %1848 = vmatpush1.bf16.msra.mxu0 %v1800
  %1849 = vmatprep.mubr.bf16.mxu0 %v1720
  %1850 = vmatmul.mubr.bf16.gmra.mrb[0].mxu0 %v1719
  %v1851 = vpop.f32.mrb[0].mxu0
  %v1852 = vadd.f32 %v364, %v1851
  %v1853 = vpop.f32.mrb[0].mxu0
  %v1854 = vpop.f32.mrb[0].mxu0
  %v1855 = vpop.f32.mrb[0].mxu0
  %1856 = vdwg.mxu0
  %vm1857 = vcmask 253952
  %1858 = vst.msk [vmem:[%s10] sm:$0x1] %vm1857, %v1852
  // Predicated region
  $region42: #{geo_api_forward.6} parent=0 // pred_check
    _
  $region43: #{geo_api_forward.6} parent=0 // pred_check_branch
    %1860 = sbr.rel (0) target = $region45
  $region44: #{geo_api_forward.6} parent=0 // pred_region
    _
  $region45: #{geo_api_forward.6} parent=0 // pred_fallthru
    _
  // Predicated region
  $region46: #{geo_api_forward.6} parent=0 // pred_check
    _
  $region47: #{geo_api_forward.6} parent=0 // pred_check_branch
    %1862 = sbr.rel (0) target = $region49
  $region48: #{geo_api_forward.6} parent=0 // pred_region
    _
  $region49: #{geo_api_forward.6} parent=0 // pred_fallthru
    _

// kernel: geo_api_forward.4
$region0: #{geo_api_forward.4}
  #allocation0 [shape = 'u32[]', space=smem, size = 0x4, offset = 0x4, fixed_abs, tag = 'smem constant byte address 0x4 - core index']
  #allocation1 [shape = 'u32[144,128]{1,0:T(1,128)}', space=vmem, size = 0x12000, scoped, tag = 'internal scratch']
  %s0 = inlined_call_operand.vmem [shape: f32[2,64,32], index: 0, kind: input, shape index: {}]
  %s1 = inlined_call_operand.vmem [shape: bf16[2,32,16], index: 1, kind: input, shape index: {}]
  %s2 = inlined_call_operand.vmem [shape: f32[2,1,16], index: 2, kind: input, shape index: {}]
  %s3 = inlined_call_operand.vmem [shape: bf16[2,576,32], index: 3, kind: input, shape index: {}]
  %s4 = inlined_call_operand.vmem [shape: f32[2,1,32], index: 4, kind: input, shape index: {}]
  %s5 = inlined_call_operand.vmem [shape: bf16[2,288,16], index: 5, kind: input, shape index: {}]
  %s6 = inlined_call_operand.vmem [shape: f32[2,1,16], index: 6, kind: input, shape index: {}]
  %s7 = inlined_call_operand.vmem [shape: bf16[2,256,32], index: 7, kind: input, shape index: {}]
  %s8 = inlined_call_operand.vmem [shape: f32[2,1,32], index: 8, kind: input, shape index: {}]
  %s9 = inlined_call_operand.vmem [shape: f32[2,32], index: 9, kind: output, shape index: {0}]
  %s10 = inlined_call_operand.vmem [shape: f32[64,16], index: 10, kind: output, shape index: {1}]
  %11 = xla_tuple %s9, %s10
  %s12 = sld [smem:[#allocation0]]
  $region54: #{geo_api_forward.4} parent=0
    _
  %s14 = ssub.s32 1, %s12
  %s15 = scalar_select 0, %s14, %s12
  // Predicated region
  $region2: #{geo_api_forward.4} parent=0 // pred_check
    _
  $region3: #{geo_api_forward.4} parent=0 // pred_check_branch
    %17 = sbr.rel (0) target = $region5
  $region4: #{geo_api_forward.4} parent=0 // pred_region
    _
  $region5: #{geo_api_forward.4} parent=0 // pred_fallthru
    _
  // Predicated region
  $region6: #{geo_api_forward.4} parent=0 // pred_check
    _
  $region7: #{geo_api_forward.4} parent=0 // pred_check_branch
    %19 = sbr.rel (0) target = $region9
  $region8: #{geo_api_forward.4} parent=0 // pred_region
    _
  $region9: #{geo_api_forward.4} parent=0 // pred_fallthru
    _
  // Predicated region
  $region10: #{geo_api_forward.4} parent=0 // pred_check
    _
  $region11: #{geo_api_forward.4} parent=0 // pred_check_branch
    %21 = sbr.rel (0) target = $region13
  $region12: #{geo_api_forward.4} parent=0 // pred_region
    _
  $region13: #{geo_api_forward.4} parent=0 // pred_fallthru
    _
  // Predicated region
  $region14: #{geo_api_forward.4} parent=0 // pred_check
    _
  $region15: #{geo_api_forward.4} parent=0 // pred_check_branch
    %23 = sbr.rel (0) target = $region17
  $region16: #{geo_api_forward.4} parent=0 // pred_region
    _
  $region17: #{geo_api_forward.4} parent=0 // pred_fallthru
    _
  // Predicated region
  $region18: #{geo_api_forward.4} parent=0 // pred_check
    _
  $region19: #{geo_api_forward.4} parent=0 // pred_check_branch
    %25 = sbr.rel (0) target = $region21
  $region20: #{geo_api_forward.4} parent=0 // pred_region
    _
  $region21: #{geo_api_forward.4} parent=0 // pred_fallthru
    _
  // Predicated region
  $region22: #{geo_api_forward.4} parent=0 // pred_check
    _
  $region23: #{geo_api_forward.4} parent=0 // pred_check_branch
    %27 = sbr.rel (0) target = $region25
  $region24: #{geo_api_forward.4} parent=0 // pred_region
    _
  $region25: #{geo_api_forward.4} parent=0 // pred_fallthru
    _
  // Predicated region
  $region26: #{geo_api_forward.4} parent=0 // pred_check
    _
  $region27: #{geo_api_forward.4} parent=0 // pred_check_branch
    %29 = sbr.rel (0) target = $region29
  $region28: #{geo_api_forward.4} parent=0 // pred_region
    _
  $region29: #{geo_api_forward.4} parent=0 // pred_fallthru
    _
  // Predicated region
  $region30: #{geo_api_forward.4} parent=0 // pred_check
    _
  $region31: #{geo_api_forward.4} parent=0 // pred_check_branch
    %31 = sbr.rel (0) target = $region33
  $region32: #{geo_api_forward.4} parent=0 // pred_region
    _
  $region33: #{geo_api_forward.4} parent=0 // pred_fallthru
    _
  // Predicated region
  $region34: #{geo_api_forward.4} parent=0 // pred_check
    _
  $region35: #{geo_api_forward.4} parent=0 // pred_check_branch
    %33 = sbr.rel (0) target = $region37
  $region36: #{geo_api_forward.4} parent=0 // pred_region
    _
  $region37: #{geo_api_forward.4} parent=0 // pred_fallthru
    _
  %v35 = vld [vmem:[%s0] sm:$0xff]
  %v36 = vld [vmem:[%s0 + $0x8] sm:$0xff]
  %v37 = vld [vmem:[%s0 + $0x10] sm:$0xff]
  %v38 = vld [vmem:[%s0 + $0x18] sm:$0xff]
  %v39 = vld [vmem:[%s0 + $0x20] sm:$0xff]
  %v40 = vld [vmem:[%s0 + $0x28] sm:$0xff]
  %v41 = vld [vmem:[%s0 + $0x30] sm:$0xff]
  %v42 = vld [vmem:[%s0 + $0x38] sm:$0xff]
  %v43 = vpack.c.bf16 %v36, %v35
  %v44 = vpack.c.bf16 %v38, %v37
  %v45 = vpack.c.bf16 %v40, %v39
  %v46 = vpack.c.bf16 %v42, %v41
  %s47 = scalar_lea.vmem %s0, 64
  %v48 = vld [vmem:[%s47] sm:$0xff]
  %v49 = vld [vmem:[%s47 + $0x8] sm:$0xff]
  %v50 = vld [vmem:[%s47 + $0x10] sm:$0xff]
  %v51 = vld [vmem:[%s47 + $0x18] sm:$0xff]
  %v52 = vld [vmem:[%s47 + $0x20] sm:$0xff]
  %v53 = vld [vmem:[%s47 + $0x28] sm:$0xff]
  %v54 = vld [vmem:[%s47 + $0x30] sm:$0xff]
  %v55 = vld [vmem:[%s47 + $0x38] sm:$0xff]
  %v56 = vpack.c.bf16 %v49, %v48
  %v57 = vpack.c.bf16 %v51, %v50
  %v58 = vpack.c.bf16 %v53, %v52
  %v59 = vpack.c.bf16 %v55, %v54
  %v60 = vld [vmem:[%s1] sm:$0xf]
  %v61 = vld [vmem:[%s1 + $0x4] sm:$0xf]
  %v62 = vld [vmem:[%s1 + $0x8] sm:$0xf]
  %v63 = vld [vmem:[%s1 + $0xc] sm:$0xf]
  %v64 = vld [vmem:[%s2] sm:$0x1]
  %v66 = vlaneseq
  %v67 = vshrl.u32 %v66, 7
  %v68 = vsub.s32 0, %v67
  %v69 = vrot.slane %v64, %v68
  %v75 = vunpack.c.l.b16 %v60
  %v76 = vunpack.c.l.b16 %v61
  %v77 = vunpack.c.l.b16 %v62
  %v78 = vunpack.c.l.b16 %v63
  %v79 = vpack.c.b16 %v76, %v75
  %v80 = vpack.c.b16 %v78, %v77
  %vm83 = vcmask 261120
  %v85 = vsel %vm83, %v43, 0
  %v88 = vsel %vm83, %v44, 0
  %v91 = vsel %vm83, %v45, 0
  %v94 = vsel %vm83, %v46, 0
  %96 = vmatprep.subr.bf16.mxu0 0
  %97 = vmatpush1.bf16.msra.mxu0 %v79
  %98 = vmatprep.subr.bf16.mxu0 0
  %99 = vmatpush1.bf16.msra.mxu0 %v80
  %100 = vmatprep.subr.bf16.mxu0 0
  %101 = vmatpush1.bf16.msra.mxu0 0
  %102 = vmatprep.subr.bf16.mxu0 0
  %103 = vmatpush1.bf16.msra.mxu0 0
  %104 = vmatprep.subr.bf16.mxu0 0
  %105 = vmatpush1.bf16.msra.mxu0 0
  %106 = vmatprep.subr.bf16.mxu0 0
  %107 = vmatpush1.bf16.msra.mxu0 0
  %108 = vmatprep.subr.bf16.mxu0 0
  %109 = vmatpush1.bf16.msra.mxu0 0
  %110 = vmatprep.subr.bf16.mxu0 0
  %111 = vmatpush1.bf16.msra.mxu0 0
  %112 = vmatprep.subr.bf16.mxu0 0
  %113 = vmatpush1.bf16.msra.mxu0 0
  %114 = vmatprep.subr.bf16.mxu0 0
  %115 = vmatpush1.bf16.msra.mxu0 0
  %116 = vmatprep.subr.bf16.mxu0 0
  %117 = vmatpush1.bf16.msra.mxu0 0
  %118 = vmatprep.subr.bf16.mxu0 0
  %119 = vmatpush1.bf16.msra.mxu0 0
  %120 = vmatprep.subr.bf16.mxu0 0
  %121 = vmatpush1.bf16.msra.mxu0 0
  %122 = vmatprep.subr.bf16.mxu0 0
  %123 = vmatpush1.bf16.msra.mxu0 0
  %124 = vmatprep.subr.bf16.mxu0 0
  %125 = vmatpush1.bf16.msra.mxu0 0
  %126 = vmatprep.subr.bf16.mxu0 0
  %127 = vmatpush1.bf16.msra.mxu0 0
  %128 = vmatprep.mubr.bf16.mxu0 0
  %129 = vmatmul.mubr.bf16.gmra.mrb[0].mxu0 %v85
  %v130 = vpop.f32.mrb[0].mxu0
  %v131 = vadd.f32 %v69, %v130
  %v132 = vpop.f32.mrb[0].mxu0
  %v133 = vpop.f32.mrb[0].mxu0
  %v134 = vadd.f32 %v69, %v133
  %v135 = vpop.f32.mrb[0].mxu0
  %136 = vmatprep.mubr.bf16.mxu0 0
  %137 = vmatmul.mubr.bf16.gmra.mrb[0].mxu0 %v88
  %v138 = vpop.f32.mrb[0].mxu0
  %v139 = vadd.f32 %v69, %v138
  %v140 = vpop.f32.mrb[0].mxu0
  %v141 = vpop.f32.mrb[0].mxu0
  %v142 = vadd.f32 %v69, %v141
  %v143 = vpop.f32.mrb[0].mxu0
  %144 = vmatprep.mubr.bf16.mxu0 0
  %145 = vmatmul.mubr.bf16.gmra.mrb[0].mxu0 %v91
  %v146 = vpop.f32.mrb[0].mxu0
  %v147 = vadd.f32 %v69, %v146
  %v148 = vpop.f32.mrb[0].mxu0
  %v149 = vpop.f32.mrb[0].mxu0
  %v150 = vadd.f32 %v69, %v149
  %v151 = vpop.f32.mrb[0].mxu0
  %152 = vmatprep.mubr.bf16.mxu0 0
  %153 = vmatmul.mubr.bf16.gmra.mrb[0].mxu0 %v94
  %v154 = vpop.f32.mrb[0].mxu0
  %v155 = vadd.f32 %v69, %v154
  %v156 = vpop.f32.mrb[0].mxu0
  %v157 = vpop.f32.mrb[0].mxu0
  %v158 = vadd.f32 %v69, %v157
  %v159 = vpop.f32.mrb[0].mxu0
  %160 = vdwg.mxu0
  %v161 = vmax.f32 %v131, 0.0
  %v162 = vmax.f32 %v134, 0.0
  %v163 = vmax.f32 %v139, 0.0
  %v164 = vmax.f32 %v142, 0.0
  %v165 = vmax.f32 %v147, 0.0
  %v166 = vmax.f32 %v150, 0.0
  %v167 = vmax.f32 %v155, 0.0
  %v168 = vmax.f32 %v158, 0.0
  %v169 = vmul.f32 %v161, %v161
  %v170 = vmul.f32 %v162, %v162
  %v171 = vmul.f32 %v163, %v163
  %v172 = vmul.f32 %v164, %v164
  %v173 = vmul.f32 %v165, %v165
  %v174 = vmul.f32 %v166, %v166
  %v175 = vmul.f32 %v167, %v167
  %v176 = vmul.f32 %v168, %v168
  %vm177 = vcmask 130048
  %v178 = vsel %vm177, %v169, 0.0
  %179 = vadd.xlane.f32.xlu0 %v178
  %v180 = vpop.xlane.xlu0 %179
  %v181 = vsel %vm177, %v170, 0.0
  %182 = vadd.xlane.f32.xlu0 %v181
  %v183 = vpop.xlane.xlu0 %182
  %v184 = vsel %vm177, %v171, 0.0
  %185 = vadd.xlane.f32.xlu0 %v184
  %v186 = vpop.xlane.xlu0 %185
  %v187 = vsel %vm177, %v172, 0.0
  %188 = vadd.xlane.f32.xlu0 %v187
  %v189 = vpop.xlane.xlu0 %188
  %v190 = vsel %vm177, %v173, 0.0
  %191 = vadd.xlane.f32.xlu0 %v190
  %v192 = vpop.xlane.xlu0 %191
  %v193 = vsel %vm177, %v174, 0.0
  %194 = vadd.xlane.f32.xlu0 %v193
  %v195 = vpop.xlane.xlu0 %194
  %v196 = vsel %vm177, %v175, 0.0
  %197 = vadd.xlane.f32.xlu0 %v196
  %v198 = vpop.xlane.xlu0 %197
  %v199 = vsel %vm177, %v176, 0.0
  %200 = vadd.xlane.f32.xlu0 %v199
  %v201 = vpop.xlane.xlu0 %200
  %v202 = vadd.f32 %v180, 1e-06
  %v203 = vadd.f32 %v183, 1e-06
  %v204 = vadd.f32 %v186, 1e-06
  %v205 = vadd.f32 %v189, 1e-06
  %v206 = vadd.f32 %v192, 1e-06
  %v207 = vadd.f32 %v195, 1e-06
  %v208 = vadd.f32 %v198, 1e-06
  %v209 = vadd.f32 %v201, 1e-06
  %v210 = vrsqrt.pop %v202
  %v211 = vrsqrt.pop %v203
  %v212 = vrsqrt.pop %v204
  %v213 = vrsqrt.pop %v205
  %v214 = vrsqrt.pop %v206
  %v215 = vrsqrt.pop %v207
  %v216 = vrsqrt.pop %v208
  %v217 = vrsqrt.pop %v209
  %v218 = vmul.f32 %v161, %v210
  %v219 = vmul.f32 %v162, %v211
  %v220 = vmul.f32 %v163, %v212
  %v221 = vmul.f32 %v164, %v213
  %v222 = vmul.f32 %v165, %v214
  %v223 = vmul.f32 %v166, %v215
  %v224 = vmul.f32 %v167, %v216
  %v225 = vmul.f32 %v168, %v217
  %v227 = vsel %vm83, %v56, 0
  %v230 = vsel %vm83, %v57, 0
  %v233 = vsel %vm83, %v58, 0
  %v236 = vsel %vm83, %v59, 0
  %238 = vmatprep.subr.bf16.mxu0 0
  %239 = vmatpush1.bf16.msra.mxu0 %v79
  %240 = vmatprep.subr.bf16.mxu0 0
  %241 = vmatpush1.bf16.msra.mxu0 %v80
  %242 = vmatprep.subr.bf16.mxu0 0
  %243 = vmatpush1.bf16.msra.mxu0 0
  %244 = vmatprep.subr.bf16.mxu0 0
  %245 = vmatpush1.bf16.msra.mxu0 0
  %246 = vmatprep.subr.bf16.mxu0 0
  %247 = vmatpush1.bf16.msra.mxu0 0
  %248 = vmatprep.subr.bf16.mxu0 0
  %249 = vmatpush1.bf16.msra.mxu0 0
  %250 = vmatprep.subr.bf16.mxu0 0
  %251 = vmatpush1.bf16.msra.mxu0 0
  %252 = vmatprep.subr.bf16.mxu0 0
  %253 = vmatpush1.bf16.msra.mxu0 0
  %254 = vmatprep.subr.bf16.mxu0 0
  %255 = vmatpush1.bf16.msra.mxu0 0
  %256 = vmatprep.subr.bf16.mxu0 0
  %257 = vmatpush1.bf16.msra.mxu0 0
  %258 = vmatprep.subr.bf16.mxu0 0
  %259 = vmatpush1.bf16.msra.mxu0 0
  %260 = vmatprep.subr.bf16.mxu0 0
  %261 = vmatpush1.bf16.msra.mxu0 0
  %262 = vmatprep.subr.bf16.mxu0 0
  %263 = vmatpush1.bf16.msra.mxu0 0
  %264 = vmatprep.subr.bf16.mxu0 0
  %265 = vmatpush1.bf16.msra.mxu0 0
  %266 = vmatprep.subr.bf16.mxu0 0
  %267 = vmatpush1.bf16.msra.mxu0 0
  %268 = vmatprep.subr.bf16.mxu0 0
  %269 = vmatpush1.bf16.msra.mxu0 0
  %270 = vmatprep.mubr.bf16.mxu0 0
  %271 = vmatmul.mubr.bf16.gmra.mrb[0].mxu0 %v227
  %v272 = vpop.f32.mrb[0].mxu0
  %v273 = vadd.f32 %v69, %v272
  %v274 = vpop.f32.mrb[0].mxu0
  %v275 = vpop.f32.mrb[0].mxu0
  %v276 = vadd.f32 %v69, %v275
  %v277 = vpop.f32.mrb[0].mxu0
  %278 = vmatprep.mubr.bf16.mxu0 0
  %279 = vmatmul.mubr.bf16.gmra.mrb[0].mxu0 %v230
  %v280 = vpop.f32.mrb[0].mxu0
  %v281 = vadd.f32 %v69, %v280
  %v282 = vpop.f32.mrb[0].mxu0
  %v283 = vpop.f32.mrb[0].mxu0
  %v284 = vadd.f32 %v69, %v283
  %v285 = vpop.f32.mrb[0].mxu0
  %286 = vmatprep.mubr.bf16.mxu0 0
  %287 = vmatmul.mubr.bf16.gmra.mrb[0].mxu0 %v233
  %v288 = vpop.f32.mrb[0].mxu0
  %v289 = vadd.f32 %v69, %v288
  %v290 = vpop.f32.mrb[0].mxu0
  %v291 = vpop.f32.mrb[0].mxu0
  %v292 = vadd.f32 %v69, %v291
  %v293 = vpop.f32.mrb[0].mxu0
  %294 = vmatprep.mubr.bf16.mxu0 0
  %295 = vmatmul.mubr.bf16.gmra.mrb[0].mxu0 %v236
  %v296 = vpop.f32.mrb[0].mxu0
  %v297 = vadd.f32 %v69, %v296
  %v298 = vpop.f32.mrb[0].mxu0
  %v299 = vpop.f32.mrb[0].mxu0
  %v300 = vadd.f32 %v69, %v299
  %v301 = vpop.f32.mrb[0].mxu0
  %302 = vdwg.mxu0
  %v303 = vmax.f32 %v273, 0.0
  %v304 = vmax.f32 %v276, 0.0
  %v305 = vmax.f32 %v281, 0.0
  %v306 = vmax.f32 %v284, 0.0
  %v307 = vmax.f32 %v289, 0.0
  %v308 = vmax.f32 %v292, 0.0
  %v309 = vmax.f32 %v297, 0.0
  %v310 = vmax.f32 %v300, 0.0
  %v311 = vmul.f32 %v303, %v303
  %v312 = vmul.f32 %v304, %v304
  %v313 = vmul.f32 %v305, %v305
  %v314 = vmul.f32 %v306, %v306
  %v315 = vmul.f32 %v307, %v307
  %v316 = vmul.f32 %v308, %v308
  %v317 = vmul.f32 %v309, %v309
  %v318 = vmul.f32 %v310, %v310
  %v319 = vsel %vm177, %v311, 0.0
  %320 = vadd.xlane.f32.xlu0 %v319
  %v321 = vpop.xlane.xlu0 %320
  %v322 = vsel %vm177, %v312, 0.0
  %323 = vadd.xlane.f32.xlu0 %v322
  %v324 = vpop.xlane.xlu0 %323
  %v325 = vsel %vm177, %v313, 0.0
  %326 = vadd.xlane.f32.xlu0 %v325
  %v327 = vpop.xlane.xlu0 %326
  %v328 = vsel %vm177, %v314, 0.0
  %329 = vadd.xlane.f32.xlu0 %v328
  %v330 = vpop.xlane.xlu0 %329
  %v331 = vsel %vm177, %v315, 0.0
  %332 = vadd.xlane.f32.xlu0 %v331
  %v333 = vpop.xlane.xlu0 %332
  %v334 = vsel %vm177, %v316, 0.0
  %335 = vadd.xlane.f32.xlu0 %v334
  %v336 = vpop.xlane.xlu0 %335
  %v337 = vsel %vm177, %v317, 0.0
  %338 = vadd.xlane.f32.xlu0 %v337
  %v339 = vpop.xlane.xlu0 %338
  %v340 = vsel %vm177, %v318, 0.0
  %341 = vadd.xlane.f32.xlu0 %v340
  %v342 = vpop.xlane.xlu0 %341
  %v343 = vadd.f32 %v321, 1e-06
  %v344 = vadd.f32 %v324, 1e-06
  %v345 = vadd.f32 %v327, 1e-06
  %v346 = vadd.f32 %v330, 1e-06
  %v347 = vadd.f32 %v333, 1e-06
  %v348 = vadd.f32 %v336, 1e-06
  %v349 = vadd.f32 %v339, 1e-06
  %v350 = vadd.f32 %v342, 1e-06
  %v351 = vrsqrt.pop %v343
  %v352 = vrsqrt.pop %v344
  %v353 = vrsqrt.pop %v345
  %v354 = vrsqrt.pop %v346
  %v355 = vrsqrt.pop %v347
  %v356 = vrsqrt.pop %v348
  %v357 = vrsqrt.pop %v349
  %v358 = vrsqrt.pop %v350
  %v359 = vmul.f32 %v303, %v351
  %v360 = vmul.f32 %v304, %v352
  %v361 = vmul.f32 %v305, %v353
  %v362 = vmul.f32 %v306, %v354
  %v363 = vmul.f32 %v307, %v355
  %v364 = vmul.f32 %v308, %v356
  %v365 = vmul.f32 %v309, %v357
  %v366 = vmul.f32 %v310, %v358
  %v367 = vld [vmem:[%s3] sm:$0xf]
  %v368 = vld [vmem:[%s3 + $0x4] sm:$0xf]
  %v369 = vld [vmem:[%s3 + $0x8] sm:$0xf]
  %v370 = vld [vmem:[%s3 + $0xc] sm:$0xf]
  %v371 = vld [vmem:[%s3 + $0x10] sm:$0xf]
  %v372 = vld [vmem:[%s3 + $0x14] sm:$0xf]
  %v373 = vld [vmem:[%s3 + $0x18] sm:$0xf]
  %v374 = vld [vmem:[%s3 + $0x1c] sm:$0xf]
  %v375 = vld [vmem:[%s3 + $0x20] sm:$0xf]
  %v376 = vld [vmem:[%s3 + $0x24] sm:$0xf]
  %v377 = vld [vmem:[%s3 + $0x28] sm:$0xf]
  %v378 = vld [vmem:[%s3 + $0x2c] sm:$0xf]
  %v379 = vld [vmem:[%s3 + $0x30] sm:$0xf]
  %v380 = vld [vmem:[%s3 + $0x34] sm:$0xf]
  %v381 = vld [vmem:[%s3 + $0x38] sm:$0xf]
  %v382 = vld [vmem:[%s3 + $0x3c] sm:$0xf]
  %v383 = vld [vmem:[%s3 + $0x40] sm:$0xf]
  %v384 = vld [vmem:[%s3 + $0x44] sm:$0xf]
  %v385 = vld [vmem:[%s3 + $0x48] sm:$0xf]
  %v386 = vld [vmem:[%s3 + $0x4c] sm:$0xf]
  %v387 = vld [vmem:[%s3 + $0x50] sm:$0xf]
  %v388 = vld [vmem:[%s3 + $0x54] sm:$0xf]
  %v389 = vld [vmem:[%s3 + $0x58] sm:$0xf]
  %v390 = vld [vmem:[%s3 + $0x5c] sm:$0xf]
  %v391 = vld [vmem:[%s3 + $0x60] sm:$0xf]
  %v392 = vld [vmem:[%s3 + $0x64] sm:$0xf]
  %v393 = vld [vmem:[%s3 + $0x68] sm:$0xf]
  %v394 = vld [vmem:[%s3 + $0x6c] sm:$0xf]
  %v395 = vld [vmem:[%s3 + $0x70] sm:$0xf]
  %v396 = vld [vmem:[%s3 + $0x74] sm:$0xf]
  %v397 = vld [vmem:[%s3 + $0x78] sm:$0xf]
  %v398 = vld [vmem:[%s3 + $0x7c] sm:$0xf]
  %v399 = vld [vmem:[%s3 + $0x80] sm:$0xf]
  %v400 = vld [vmem:[%s3 + $0x84] sm:$0xf]
  %v401 = vld [vmem:[%s3 + $0x88] sm:$0xf]
  %v402 = vld [vmem:[%s3 + $0x8c] sm:$0xf]
  %v403 = vld [vmem:[%s3 + $0x90] sm:$0xf]
  %v404 = vld [vmem:[%s3 + $0x94] sm:$0xf]
  %v405 = vld [vmem:[%s3 + $0x98] sm:$0xf]
  %v406 = vld [vmem:[%s3 + $0x9c] sm:$0xf]
  %v407 = vld [vmem:[%s3 + $0xa0] sm:$0xf]
  %v408 = vld [vmem:[%s3 + $0xa4] sm:$0xf]
  %v409 = vld [vmem:[%s3 + $0xa8] sm:$0xf]
  %v410 = vld [vmem:[%s3 + $0xac] sm:$0xf]
  %v411 = vld [vmem:[%s3 + $0xb0] sm:$0xf]
  %v412 = vld [vmem:[%s3 + $0xb4] sm:$0xf]
  %v413 = vld [vmem:[%s3 + $0xb8] sm:$0xf]
  %v414 = vld [vmem:[%s3 + $0xbc] sm:$0xf]
  %v415 = vld [vmem:[%s3 + $0xc0] sm:$0xf]
  %v416 = vld [vmem:[%s3 + $0xc4] sm:$0xf]
  %v417 = vld [vmem:[%s3 + $0xc8] sm:$0xf]
  %v418 = vld [vmem:[%s3 + $0xcc] sm:$0xf]
  %v419 = vld [vmem:[%s3 + $0xd0] sm:$0xf]
  %v420 = vld [vmem:[%s3 + $0xd4] sm:$0xf]
  %v421 = vld [vmem:[%s3 + $0xd8] sm:$0xf]
  %v422 = vld [vmem:[%s3 + $0xdc] sm:$0xf]
  %v423 = vld [vmem:[%s3 + $0xe0] sm:$0xf]
  %v424 = vld [vmem:[%s3 + $0xe4] sm:$0xf]
  %v425 = vld [vmem:[%s3 + $0xe8] sm:$0xf]
  %v426 = vld [vmem:[%s3 + $0xec] sm:$0xf]
  %v427 = vld [vmem:[%s3 + $0xf0] sm:$0xf]
  %v428 = vld [vmem:[%s3 + $0xf4] sm:$0xf]
  %v429 = vld [vmem:[%s3 + $0xf8] sm:$0xf]
  %v430 = vld [vmem:[%s3 + $0xfc] sm:$0xf]
  %v431 = vld [vmem:[%s3 + $0x100] sm:$0xf]
  %v432 = vld [vmem:[%s3 + $0x104] sm:$0xf]
  %v433 = vld [vmem:[%s3 + $0x108] sm:$0xf]
  %v434 = vld [vmem:[%s3 + $0x10c] sm:$0xf]
  %v435 = vld [vmem:[%s3 + $0x110] sm:$0xf]
  %v436 = vld [vmem:[%s3 + $0x114] sm:$0xf]
  %v437 = vld [vmem:[%s3 + $0x118] sm:$0xf]
  %v438 = vld [vmem:[%s3 + $0x11c] sm:$0xf]
  %v439 = vld [vmem:[%s4] sm:$0x1]
  %v440 = vld [vmem:[%s5] sm:$0xf]
  %v441 = vld [vmem:[%s5 + $0x4] sm:$0xf]
  %v442 = vld [vmem:[%s5 + $0x8] sm:$0xf]
  %v443 = vld [vmem:[%s5 + $0xc] sm:$0xf]
  %v444 = vld [vmem:[%s5 + $0x10] sm:$0xf]
  %v445 = vld [vmem:[%s5 + $0x14] sm:$0xf]
  %v446 = vld [vmem:[%s5 + $0x18] sm:$0xf]
  %v447 = vld [vmem:[%s5 + $0x1c] sm:$0xf]
  %v448 = vld [vmem:[%s5 + $0x20] sm:$0xf]
  %v449 = vld [vmem:[%s5 + $0x24] sm:$0xf]
  %v450 = vld [vmem:[%s5 + $0x28] sm:$0xf]
  %v451 = vld [vmem:[%s5 + $0x2c] sm:$0xf]
  %v452 = vld [vmem:[%s5 + $0x30] sm:$0xf]
  %v453 = vld [vmem:[%s5 + $0x34] sm:$0xf]
  %v454 = vld [vmem:[%s5 + $0x38] sm:$0xf]
  %v455 = vld [vmem:[%s5 + $0x3c] sm:$0xf]
  %v456 = vld [vmem:[%s5 + $0x40] sm:$0xf]
  %v457 = vld [vmem:[%s5 + $0x44] sm:$0xf]
  %v458 = vld [vmem:[%s5 + $0x48] sm:$0xf]
  %v459 = vld [vmem:[%s5 + $0x4c] sm:$0xf]
  %v460 = vld [vmem:[%s5 + $0x50] sm:$0xf]
  %v461 = vld [vmem:[%s5 + $0x54] sm:$0xf]
  %v462 = vld [vmem:[%s5 + $0x58] sm:$0xf]
  %v463 = vld [vmem:[%s5 + $0x5c] sm:$0xf]
  %v464 = vld [vmem:[%s5 + $0x60] sm:$0xf]
  %v465 = vld [vmem:[%s5 + $0x64] sm:$0xf]
  %v466 = vld [vmem:[%s5 + $0x68] sm:$0xf]
  %v467 = vld [vmem:[%s5 + $0x6c] sm:$0xf]
  %v468 = vld [vmem:[%s5 + $0x70] sm:$0xf]
  %v469 = vld [vmem:[%s5 + $0x74] sm:$0xf]
  %v470 = vld [vmem:[%s5 + $0x78] sm:$0xf]
  %v471 = vld [vmem:[%s5 + $0x7c] sm:$0xf]
  %v472 = vld [vmem:[%s5 + $0x80] sm:$0xf]
  %v473 = vld [vmem:[%s5 + $0x84] sm:$0xf]
  %v474 = vld [vmem:[%s5 + $0x88] sm:$0xf]
  %v475 = vld [vmem:[%s5 + $0x8c] sm:$0xf]
  %v476 = vld [vmem:[%s6] sm:$0x1]
  %v477 = vld [vmem:[%s7] sm:$0xf]
  %v478 = vld [vmem:[%s7 + $0x4] sm:$0xf]
  %v479 = vld [vmem:[%s7 + $0x8] sm:$0xf]
  %v480 = vld [vmem:[%s7 + $0xc] sm:$0xf]
  %v481 = vld [vmem:[%s7 + $0x10] sm:$0xf]
  %v482 = vld [vmem:[%s7 + $0x14] sm:$0xf]
  %v483 = vld [vmem:[%s7 + $0x18] sm:$0xf]
  %v484 = vld [vmem:[%s7 + $0x1c] sm:$0xf]
  %v485 = vld [vmem:[%s7 + $0x20] sm:$0xf]
  %v486 = vld [vmem:[%s7 + $0x24] sm:$0xf]
  %v487 = vld [vmem:[%s7 + $0x28] sm:$0xf]
  %v488 = vld [vmem:[%s7 + $0x2c] sm:$0xf]
  %v489 = vld [vmem:[%s7 + $0x30] sm:$0xf]
  %v490 = vld [vmem:[%s7 + $0x34] sm:$0xf]
  %v491 = vld [vmem:[%s7 + $0x38] sm:$0xf]
  %v492 = vld [vmem:[%s7 + $0x3c] sm:$0xf]
  %v493 = vld [vmem:[%s7 + $0x40] sm:$0xf]
  %v494 = vld [vmem:[%s7 + $0x44] sm:$0xf]
  %v495 = vld [vmem:[%s7 + $0x48] sm:$0xf]
  %v496 = vld [vmem:[%s7 + $0x4c] sm:$0xf]
  %v497 = vld [vmem:[%s7 + $0x50] sm:$0xf]
  %v498 = vld [vmem:[%s7 + $0x54] sm:$0xf]
  %v499 = vld [vmem:[%s7 + $0x58] sm:$0xf]
  %v500 = vld [vmem:[%s7 + $0x5c] sm:$0xf]
  %v501 = vld [vmem:[%s7 + $0x60] sm:$0xf]
  %v502 = vld [vmem:[%s7 + $0x64] sm:$0xf]
  %v503 = vld [vmem:[%s7 + $0x68] sm:$0xf]
  %v504 = vld [vmem:[%s7 + $0x6c] sm:$0xf]
  %v505 = vld [vmem:[%s7 + $0x70] sm:$0xf]
  %v506 = vld [vmem:[%s7 + $0x74] sm:$0xf]
  %v507 = vld [vmem:[%s7 + $0x78] sm:$0xf]
  %v508 = vld [vmem:[%s7 + $0x7c] sm:$0xf]
  %v509 = vld [vmem:[%s8] sm:$0x1]
  %v510 = vpack.c.bf16 %v360, %v359
  %v511 = vpack.c.bf16 %v362, %v361
  %v512 = vpack.c.bf16 %v364, %v363
  %v513 = vpack.c.bf16 %v366, %v365
  %v514 = vpack.c.bf16 %v219, %v218
  %v515 = vpack.c.bf16 %v221, %v220
  %v516 = vpack.c.bf16 %v223, %v222
  %v517 = vpack.c.bf16 %v225, %v224
  %v519 = vsel %vm177, %v510, 0
  %v522 = vsel %vm177, %v511, 0
  %v525 = vsel %vm177, %v512, 0
  %v528 = vsel %vm177, %v513, 0
  %v531 = vsel %vm177, %v514, 0
  %v534 = vsel %vm177, %v515, 0
  %v537 = vsel %vm177, %v516, 0
  %v540 = vsel %vm177, %v517, 0
  %542 = vmatprep.subr.bf16.mxu0 0
  %543 = vmatpush1.bf16.xpose.msra.mxu0 %v531
  %544 = vmatprep.subr.bf16.mxu0 0
  %545 = vmatpush1.bf16.xpose.msra.mxu0 %v534
  %546 = vmatprep.subr.bf16.mxu0 0
  %547 = vmatpush1.bf16.xpose.msra.mxu0 %v537
  %548 = vmatprep.subr.bf16.mxu0 0
  %549 = vmatpush1.bf16.xpose.msra.mxu0 %v540
  %550 = vmatprep.subr.bf16.mxu0 0
  %551 = vmatpush1.bf16.xpose.msra.mxu0 0
  %552 = vmatprep.subr.bf16.mxu0 0
  %553 = vmatpush1.bf16.xpose.msra.mxu0 0
  %554 = vmatprep.subr.bf16.mxu0 0
  %555 = vmatpush1.bf16.xpose.msra.mxu0 0
  %556 = vmatprep.subr.bf16.mxu0 0
  %557 = vmatpush1.bf16.xpose.msra.mxu0 0
  %558 = vmatprep.subr.bf16.mxu0 0
  %559 = vmatpush1.bf16.xpose.msra.mxu0 0
  %560 = vmatprep.subr.bf16.mxu0 0
  %561 = vmatpush1.bf16.xpose.msra.mxu0 0
  %562 = vmatprep.subr.bf16.mxu0 0
  %563 = vmatpush1.bf16.xpose.msra.mxu0 0
  %564 = vmatprep.subr.bf16.mxu0 0
  %565 = vmatpush1.bf16.xpose.msra.mxu0 0
  %566 = vmatprep.subr.bf16.mxu0 0
  %567 = vmatpush1.bf16.xpose.msra.mxu0 0
  %568 = vmatprep.subr.bf16.mxu0 0
  %569 = vmatpush1.bf16.xpose.msra.mxu0 0
  %570 = vmatprep.subr.bf16.mxu0 0
  %571 = vmatpush1.bf16.xpose.msra.mxu0 0
  %572 = vmatprep.subr.bf16.mxu0 0
  %573 = vmatpush1.bf16.xpose.msra.mxu0 0
  %574 = vmatprep.mubr.bf16.mxu0 0
  %575 = vmatmul.mubr.bf16.gmra.mrb[0].mxu0 %v519
  %v576 = vpop.f32.mrb[0].mxu0
  %v577 = vadd.f32 0.0, %v576
  %v578 = vpop.f32.mrb[0].mxu0
  %v579 = vpop.f32.mrb[0].mxu0
  %v580 = vadd.f32 0.0, %v579
  %v581 = vpop.f32.mrb[0].mxu0
  %582 = vmatprep.mubr.bf16.mxu0 0
  %583 = vmatmul.mubr.bf16.gmra.mrb[0].mxu0 %v522
  %v584 = vpop.f32.mrb[0].mxu0
  %v585 = vadd.f32 0.0, %v584
  %v586 = vpop.f32.mrb[0].mxu0
  %v587 = vpop.f32.mrb[0].mxu0
  %v588 = vadd.f32 0.0, %v587
  %v589 = vpop.f32.mrb[0].mxu0
  %590 = vmatprep.mubr.bf16.mxu0 0
  %591 = vmatmul.mubr.bf16.gmra.mrb[0].mxu0 %v525
  %v592 = vpop.f32.mrb[0].mxu0
  %v593 = vadd.f32 0.0, %v592
  %v594 = vpop.f32.mrb[0].mxu0
  %v595 = vpop.f32.mrb[0].mxu0
  %v596 = vadd.f32 0.0, %v595
  %v597 = vpop.f32.mrb[0].mxu0
  %598 = vmatprep.mubr.bf16.mxu0 0
  %599 = vmatmul.mubr.bf16.gmra.mrb[0].mxu0 %v528
  %v600 = vpop.f32.mrb[0].mxu0
  %v601 = vadd.f32 0.0, %v600
  %v602 = vpop.f32.mrb[0].mxu0
  %v603 = vpop.f32.mrb[0].mxu0
  %v604 = vadd.f32 0.0, %v603
  %v605 = vpop.f32.mrb[0].mxu0
  %606 = vdwg.mxu0
  %v607 = vmax.f32 %v577, 0.0
  %v608 = vmax.f32 %v580, 0.0
  %v609 = vmax.f32 %v585, 0.0
  %v610 = vmax.f32 %v588, 0.0
  %v611 = vmax.f32 %v593, 0.0
  %v612 = vmax.f32 %v596, 0.0
  %v613 = vmax.f32 %v601, 0.0
  %v614 = vmax.f32 %v604, 0.0
  %v615 = vmul.f32 %v607, %v607
  %v616 = vmul.f32 %v608, %v608
  %v617 = vmul.f32 %v609, %v609
  %v618 = vmul.f32 %v610, %v610
  %v619 = vmul.f32 %v611, %v611
  %v620 = vmul.f32 %v612, %v612
  %v621 = vmul.f32 %v613, %v613
  %v622 = vmul.f32 %v614, %v614
  %vm623 = vcmask 523264
  %v624 = vsel %vm623, %v615, 0.0
  %625 = vadd.xlane.f32.xlu0 %v624
  %v626 = vpop.xlane.xlu0 %625
  %v627 = vsel %vm623, %v616, 0.0
  %628 = vadd.xlane.f32.xlu0 %v627
  %v629 = vpop.xlane.xlu0 %628
  %v630 = vsel %vm623, %v617, 0.0
  %631 = vadd.xlane.f32.xlu0 %v630
  %v632 = vpop.xlane.xlu0 %631
  %v633 = vsel %vm623, %v618, 0.0
  %634 = vadd.xlane.f32.xlu0 %v633
  %v635 = vpop.xlane.xlu0 %634
  %v636 = vsel %vm623, %v619, 0.0
  %637 = vadd.xlane.f32.xlu0 %v636
  %v638 = vpop.xlane.xlu0 %637
  %v639 = vsel %vm623, %v620, 0.0
  %640 = vadd.xlane.f32.xlu0 %v639
  %v641 = vpop.xlane.xlu0 %640
  %v642 = vsel %vm623, %v621, 0.0
  %643 = vadd.xlane.f32.xlu0 %v642
  %v644 = vpop.xlane.xlu0 %643
  %v645 = vsel %vm623, %v622, 0.0
  %646 = vadd.xlane.f32.xlu0 %v645
  %v647 = vpop.xlane.xlu0 %646
  %v648 = vadd.f32 %v626, 1e-06
  %v649 = vadd.f32 %v629, 1e-06
  %v650 = vadd.f32 %v632, 1e-06
  %v651 = vadd.f32 %v635, 1e-06
  %v652 = vadd.f32 %v638, 1e-06
  %v653 = vadd.f32 %v641, 1e-06
  %v654 = vadd.f32 %v644, 1e-06
  %v655 = vadd.f32 %v647, 1e-06
  %v656 = vrsqrt.pop %v648
  %v657 = vrsqrt.pop %v649
  %v658 = vrsqrt.pop %v650
  %v659 = vrsqrt.pop %v651
  %v660 = vrsqrt.pop %v652
  %v661 = vrsqrt.pop %v653
  %v662 = vrsqrt.pop %v654
  %v663 = vrsqrt.pop %v655
  %v664 = vmul.f32 %v607, %v656
  %v665 = vmul.f32 %v608, %v657
  %v666 = vmul.f32 %v609, %v658
  %v667 = vmul.f32 %v610, %v659
  %v668 = vmul.f32 %v611, %v660
  %v669 = vmul.f32 %v612, %v661
  %v670 = vmul.f32 %v613, %v662
  %v671 = vmul.f32 %v614, %v663
  %vm681 = vcmask 1046528
  %v682 = vrot.slane %v664, 1
  %v683 = vrot.slane %v665, 1
  %v684 = vsel %vm681, %v682, %v683
  %v685 = vrot.slane %v666, 1
  %v686 = vsel %vm681, %v683, %v685
  %v687 = vrot.slane %v667, 1
  %v688 = vsel %vm681, %v685, %v687
  %v689 = vrot.slane %v668, 1
  %v690 = vsel %vm681, %v687, %v689
  %v691 = vrot.slane %v669, 1
  %v692 = vsel %vm681, %v689, %v691
  %v693 = vrot.slane %v670, 1
  %v694 = vsel %vm681, %v691, %v693
  %v695 = vrot.slane %v671, 1
  %v696 = vsel %vm681, %v693, %v695
  %v697 = vrot.slane 0.0, 1
  %v698 = vsel %vm681, %v695, %v697
  %699 = vrot.lane.b32.xlu0 %v684, 64
  %v700 = vpop.permute.xlu0 %699
  %701 = vrot.lane.b32.xlu0 %v686, 64
  %v702 = vpop.permute.xlu0 %701
  %703 = vrot.lane.b32.xlu0 %v688, 64
  %v704 = vpop.permute.xlu0 %703
  %705 = vrot.lane.b32.xlu0 %v690, 64
  %v706 = vpop.permute.xlu0 %705
  %707 = vrot.lane.b32.xlu0 %v692, 64
  %v708 = vpop.permute.xlu0 %707
  %709 = vrot.lane.b32.xlu0 %v694, 64
  %v710 = vpop.permute.xlu0 %709
  %711 = vrot.lane.b32.xlu0 %v696, 64
  %v712 = vpop.permute.xlu0 %711
  %713 = vrot.lane.b32.xlu0 %v698, 64
  %v714 = vpop.permute.xlu0 %713
  %vm723 = vcmask 1045504
  %v724 = vrot.slane %v664, 2
  %v725 = vrot.slane %v665, 2
  %v726 = vsel %vm723, %v724, %v725
  %v727 = vrot.slane %v666, 2
  %v728 = vsel %vm723, %v725, %v727
  %v729 = vrot.slane %v667, 2
  %v730 = vsel %vm723, %v727, %v729
  %v731 = vrot.slane %v668, 2
  %v732 = vsel %vm723, %v729, %v731
  %v733 = vrot.slane %v669, 2
  %v734 = vsel %vm723, %v731, %v733
  %v735 = vrot.slane %v670, 2
  %v736 = vsel %vm723, %v733, %v735
  %v737 = vrot.slane %v671, 2
  %v738 = vsel %vm723, %v735, %v737
  %v739 = vrot.slane 0.0, 2
  %v740 = vsel %vm723, %v737, %v739
  %749 = vrot.lane.b32.xlu0 %v665, 64
  %v750 = vpop.permute.xlu0 %749
  %751 = vrot.lane.b32.xlu0 %v666, 64
  %v752 = vpop.permute.xlu0 %751
  %753 = vrot.lane.b32.xlu0 %v667, 64
  %v754 = vpop.permute.xlu0 %753
  %755 = vrot.lane.b32.xlu0 %v668, 64
  %v756 = vpop.permute.xlu0 %755
  %757 = vrot.lane.b32.xlu0 %v669, 64
  %v758 = vpop.permute.xlu0 %757
  %759 = vrot.lane.b32.xlu0 %v670, 64
  %v760 = vpop.permute.xlu0 %759
  %761 = vrot.lane.b32.xlu0 %v671, 64
  %v762 = vpop.permute.xlu0 %761
  %763 = vrot.lane.b32.xlu0 0.0, 64
  %v764 = vpop.permute.xlu0 %763
  %v773 = vsel %vm681, %v697, %v697
  %v782 = vsel %vm723, %v739, %v739
  %783 = vrot.lane.b32.xlu0 %v728, 64
  %v784 = vpop.permute.xlu0 %783
  %785 = vrot.lane.b32.xlu0 %v730, 64
  %v786 = vpop.permute.xlu0 %785
  %787 = vrot.lane.b32.xlu0 %v732, 64
  %v788 = vpop.permute.xlu0 %787
  %789 = vrot.lane.b32.xlu0 %v734, 64
  %v790 = vpop.permute.xlu0 %789
  %791 = vrot.lane.b32.xlu0 %v736, 64
  %v792 = vpop.permute.xlu0 %791
  %793 = vrot.lane.b32.xlu0 %v738, 64
  %v794 = vpop.permute.xlu0 %793
  %795 = vrot.lane.b32.xlu0 %v740, 64
  %v796 = vpop.permute.xlu0 %795
  %797 = vrot.lane.b32.xlu0 %v782, 64
  %v798 = vpop.permute.xlu0 %797
  %807 = vrot.lane.b32.xlu0 %v773, 64
  %v808 = vpop.permute.xlu0 %807
  %v811 = vsel %vm623, %v664, %v700
  %v812 = vsel %vm623, %v665, %v702
  %v813 = vsel %vm623, %v666, %v704
  %v814 = vsel %vm623, %v667, %v706
  %v815 = vsel %vm623, %v668, %v708
  %v816 = vsel %vm623, %v669, %v710
  %v817 = vsel %vm623, %v670, %v712
  %v818 = vsel %vm623, %v671, %v714
  %v819 = vsel %vm623, %v726, %v750
  %v820 = vsel %vm623, %v728, %v752
  %v821 = vsel %vm623, %v730, %v754
  %v822 = vsel %vm623, %v732, %v756
  %v823 = vsel %vm623, %v734, %v758
  %v824 = vsel %vm623, %v736, %v760
  %v825 = vsel %vm623, %v738, %v762
  %v826 = vsel %vm623, %v740, %v764
  %v827 = vsel %vm623, %v686, %v784
  %v828 = vsel %vm623, %v688, %v786
  %v829 = vsel %vm623, %v690, %v788
  %v830 = vsel %vm623, %v692, %v790
  %v831 = vsel %vm623, %v694, %v792
  %v832 = vsel %vm623, %v696, %v794
  %v833 = vsel %vm623, %v698, %v796
  %v834 = vsel %vm623, %v773, %v798
  %v835 = vsel %vm623, 0.0, %v808
  %v836 = vpack.c.bf16 %v812, %v811
  %v837 = vpack.c.bf16 %v820, %v819
  %v838 = vpack.c.bf16 %v828, %v827
  %v839 = vpack.c.bf16 %v814, %v813
  %v840 = vpack.c.bf16 %v732, %v730
  %v841 = vpack.c.bf16 %v822, %v821
  %v842 = vpack.c.bf16 %v830, %v829
  %v843 = vpack.c.bf16 %v816, %v815
  %v844 = vpack.c.bf16 %v736, %v734
  %v845 = vpack.c.bf16 %v824, %v823
  %v846 = vpack.c.bf16 %v832, %v831
  %v847 = vpack.c.bf16 %v818, %v817
  %v848 = vpack.c.bf16 %v740, %v738
  %v849 = vpack.c.bf16 %v826, %v825
  %v850 = vpack.c.bf16 %v834, %v833
  %v851 = vpack.c.bf16 %v835, %v835
  %v852 = vpack.c.bf16 %v782, %v782
  %v854 = vlaneseq
  %v855 = vshrl.u32 %v854, 7
  %v856 = vsub.s32 0, %v855
  %v857 = vrot.slane %v439, %v856
  %v931 = vunpack.c.l.b16 %v367
  %v932 = vunpack.c.l.b16 %v368
  %v933 = vunpack.c.l.b16 %v369
  %v934 = vunpack.c.l.b16 %v370
  %v935 = vunpack.c.l.b16 %v371
  %v936 = vunpack.c.l.b16 %v372
  %v937 = vunpack.c.l.b16 %v373
  %v938 = vunpack.c.l.b16 %v374
  %v939 = vunpack.c.l.b16 %v375
  %v940 = vunpack.c.l.b16 %v376
  %v941 = vunpack.c.l.b16 %v377
  %v942 = vunpack.c.l.b16 %v378
  %v943 = vunpack.c.l.b16 %v379
  %v944 = vunpack.c.l.b16 %v380
  %v945 = vunpack.c.l.b16 %v381
  %v946 = vunpack.c.l.b16 %v382
  %v947 = vunpack.c.l.b16 %v383
  %v948 = vunpack.c.l.b16 %v384
  %v949 = vunpack.c.l.b16 %v385
  %v950 = vunpack.c.l.b16 %v386
  %v951 = vunpack.c.l.b16 %v387
  %v952 = vunpack.c.l.b16 %v388
  %v953 = vunpack.c.l.b16 %v389
  %v954 = vunpack.c.l.b16 %v390
  %v955 = vunpack.c.l.b16 %v391
  %v956 = vunpack.c.l.b16 %v392
  %v957 = vunpack.c.l.b16 %v393
  %v958 = vunpack.c.l.b16 %v394
  %v959 = vunpack.c.l.b16 %v395
  %v960 = vunpack.c.l.b16 %v396
  %v961 = vunpack.c.l.b16 %v397
  %v962 = vunpack.c.l.b16 %v398
  %v963 = vunpack.c.l.b16 %v399
  %v964 = vunpack.c.l.b16 %v400
  %v965 = vunpack.c.l.b16 %v401
  %v966 = vunpack.c.l.b16 %v402
  %v967 = vunpack.c.l.b16 %v403
  %v968 = vunpack.c.l.b16 %v404
  %v969 = vunpack.c.l.b16 %v405
  %v970 = vunpack.c.l.b16 %v406
  %v971 = vunpack.c.l.b16 %v407
  %v972 = vunpack.c.l.b16 %v408
  %v973 = vunpack.c.l.b16 %v409
  %v974 = vunpack.c.l.b16 %v410
  %v975 = vunpack.c.l.b16 %v411
  %v976 = vunpack.c.l.b16 %v412
  %v977 = vunpack.c.l.b16 %v413
  %v978 = vunpack.c.l.b16 %v414
  %v979 = vunpack.c.l.b16 %v415
  %v980 = vunpack.c.l.b16 %v416
  %v981 = vunpack.c.l.b16 %v417
  %v982 = vunpack.c.l.b16 %v418
  %v983 = vunpack.c.l.b16 %v419
  %v984 = vunpack.c.l.b16 %v420
  %v985 = vunpack.c.l.b16 %v421
  %v986 = vunpack.c.l.b16 %v422
  %v987 = vunpack.c.l.b16 %v423
  %v988 = vunpack.c.l.b16 %v424
  %v989 = vunpack.c.l.b16 %v425
  %v990 = vunpack.c.l.b16 %v426
  %v991 = vunpack.c.l.b16 %v427
  %v992 = vunpack.c.l.b16 %v428
  %v993 = vunpack.c.l.b16 %v429
  %v994 = vunpack.c.l.b16 %v430
  %v995 = vunpack.c.l.b16 %v431
  %v996 = vunpack.c.l.b16 %v432
  %v997 = vunpack.c.l.b16 %v433
  %v998 = vunpack.c.l.b16 %v434
  %v999 = vunpack.c.l.b16 %v435
  %v1000 = vunpack.c.l.b16 %v436
  %v1001 = vunpack.c.l.b16 %v437
  %v1002 = vunpack.c.l.b16 %v438
  %v1003 = vpack.c.b16 %v932, %v931
  %v1004 = vpack.c.b16 %v934, %v933
  %v1005 = vpack.c.b16 %v936, %v935
  %v1006 = vpack.c.b16 %v938, %v937
  %v1007 = vpack.c.b16 %v940, %v939
  %v1008 = vpack.c.b16 %v942, %v941
  %v1009 = vpack.c.b16 %v944, %v943
  %v1010 = vpack.c.b16 %v946, %v945
  %v1011 = vpack.c.b16 %v948, %v947
  %v1012 = vpack.c.b16 %v950, %v949
  %v1013 = vpack.c.b16 %v952, %v951
  %v1014 = vpack.c.b16 %v954, %v953
  %v1015 = vpack.c.b16 %v956, %v955
  %v1016 = vpack.c.b16 %v958, %v957
  %v1017 = vpack.c.b16 %v960, %v959
  %v1018 = vpack.c.b16 %v962, %v961
  %v1019 = vpack.c.b16 %v964, %v963
  %v1020 = vpack.c.b16 %v966, %v965
  %v1021 = vpack.c.b16 %v968, %v967
  %v1022 = vpack.c.b16 %v970, %v969
  %v1023 = vpack.c.b16 %v972, %v971
  %v1024 = vpack.c.b16 %v974, %v973
  %v1025 = vpack.c.b16 %v976, %v975
  %v1026 = vpack.c.b16 %v978, %v977
  %v1027 = vpack.c.b16 %v980, %v979
  %v1028 = vpack.c.b16 %v982, %v981
  %v1029 = vpack.c.b16 %v984, %v983
  %v1030 = vpack.c.b16 %v986, %v985
  %v1031 = vpack.c.b16 %v988, %v987
  %v1032 = vpack.c.b16 %v990, %v989
  %v1033 = vpack.c.b16 %v992, %v991
  %v1034 = vpack.c.b16 %v994, %v993
  %v1035 = vpack.c.b16 %v996, %v995
  %v1036 = vpack.c.b16 %v998, %v997
  %v1037 = vpack.c.b16 %v1000, %v999
  %v1038 = vpack.c.b16 %v1002, %v1001
  %v1076 = vsel %vm623, %v840, 0
  %v1079 = vsel %vm623, %v844, 0
  %v1082 = vsel %vm623, %v848, 0
  %v1085 = vsel %vm623, %v852, 0
  %1087 = vmatprep.subr.bf16.mxu0 0
  %1088 = vmatpush1.bf16.msra.mxu0 %v1003
  %1089 = vmatprep.subr.bf16.mxu0 0
  %1090 = vmatpush1.bf16.msra.mxu0 %v1004
  %1091 = vmatprep.subr.bf16.mxu0 0
  %1092 = vmatpush1.bf16.msra.mxu0 %v1005
  %1093 = vmatprep.subr.bf16.mxu0 0
  %1094 = vmatpush1.bf16.msra.mxu0 %v1006
  %1095 = vmatprep.subr.bf16.mxu0 0
  %1096 = vmatpush1.bf16.msra.mxu0 %v1007
  %1097 = vmatprep.subr.bf16.mxu0 0
  %1098 = vmatpush1.bf16.msra.mxu0 %v1008
  %1099 = vmatprep.subr.bf16.mxu0 0
  %1100 = vmatpush1.bf16.msra.mxu0 %v1009
  %1101 = vmatprep.subr.bf16.mxu0 0
  %1102 = vmatpush1.bf16.msra.mxu0 %v1010
  %1103 = vmatprep.subr.bf16.mxu0 0
  %1104 = vmatpush1.bf16.msra.mxu0 %v1011
  %1105 = vmatprep.subr.bf16.mxu0 0
  %1106 = vmatpush1.bf16.msra.mxu0 %v1012
  %1107 = vmatprep.subr.bf16.mxu0 0
  %1108 = vmatpush1.bf16.msra.mxu0 %v1013
  %1109 = vmatprep.subr.bf16.mxu0 0
  %1110 = vmatpush1.bf16.msra.mxu0 %v1014
  %1111 = vmatprep.subr.bf16.mxu0 0
  %1112 = vmatpush1.bf16.msra.mxu0 %v1015
  %1113 = vmatprep.subr.bf16.mxu0 0
  %1114 = vmatpush1.bf16.msra.mxu0 %v1016
  %1115 = vmatprep.subr.bf16.mxu0 0
  %1116 = vmatpush1.bf16.msra.mxu0 %v1017
  %1117 = vmatprep.subr.bf16.mxu0 0
  %1118 = vmatpush1.bf16.msra.mxu0 %v1018
  %1119 = vmatprep.mubr.bf16.mxu0 %v837
  %1120 = vmatmul.mubr.bf16.gmra.mrb[0].mxu0 %v836
  %v1121 = vpop.f32.mrb[0].mxu0
  %v1122 = vadd.f32 %v857, %v1121
  %v1123 = vpop.f32.mrb[0].mxu0
  %v1124 = vpop.f32.mrb[0].mxu0
  %v1125 = vadd.f32 %v857, %v1124
  %v1126 = vpop.f32.mrb[0].mxu0
  %1127 = vmatprep.mubr.bf16.mxu0 %v841
  %1128 = vmatmul.mubr.bf16.gmra.mrb[0].mxu0 %v839
  %v1129 = vpop.f32.mrb[0].mxu0
  %v1130 = vadd.f32 %v857, %v1129
  %v1131 = vpop.f32.mrb[0].mxu0
  %v1132 = vpop.f32.mrb[0].mxu0
  %v1133 = vadd.f32 %v857, %v1132
  %v1134 = vpop.f32.mrb[0].mxu0
  %1135 = vmatprep.mubr.bf16.mxu0 %v845
  %1136 = vmatmul.mubr.bf16.gmra.mrb[0].mxu0 %v843
  %v1137 = vpop.f32.mrb[0].mxu0
  %v1138 = vadd.f32 %v857, %v1137
  %v1139 = vpop.f32.mrb[0].mxu0
  %v1140 = vpop.f32.mrb[0].mxu0
  %v1141 = vadd.f32 %v857, %v1140
  %v1142 = vpop.f32.mrb[0].mxu0
  %1143 = vmatprep.mubr.bf16.mxu0 %v849
  %1144 = vmatmul.mubr.bf16.gmra.mrb[0].mxu0 %v847
  %v1145 = vpop.f32.mrb[0].mxu0
  %v1146 = vadd.f32 %v857, %v1145
  %v1147 = vpop.f32.mrb[0].mxu0
  %v1148 = vpop.f32.mrb[0].mxu0
  %v1149 = vadd.f32 %v857, %v1148
  %v1150 = vpop.f32.mrb[0].mxu0
  %1151 = vdwg.mxu0
  %1152 = vmatprep.subr.bf16.mxu0 0
  %1153 = vmatpush1.bf16.msra.mxu0 %v1019
  %1154 = vmatprep.subr.bf16.mxu0 0
  %1155 = vmatpush1.bf16.msra.mxu0 %v1020
  %1156 = vmatprep.subr.bf16.mxu0 0
  %1157 = vmatpush1.bf16.msra.mxu0 %v1021
  %1158 = vmatprep.subr.bf16.mxu0 0
  %1159 = vmatpush1.bf16.msra.mxu0 %v1022
  %1160 = vmatprep.subr.bf16.mxu0 0
  %1161 = vmatpush1.bf16.msra.mxu0 %v1023
  %1162 = vmatprep.subr.bf16.mxu0 0
  %1163 = vmatpush1.bf16.msra.mxu0 %v1024
  %1164 = vmatprep.subr.bf16.mxu0 0
  %1165 = vmatpush1.bf16.msra.mxu0 %v1025
  %1166 = vmatprep.subr.bf16.mxu0 0
  %1167 = vmatpush1.bf16.msra.mxu0 %v1026
  %1168 = vmatprep.subr.bf16.mxu0 0
  %1169 = vmatpush1.bf16.msra.mxu0 %v1027
  %1170 = vmatprep.subr.bf16.mxu0 0
  %1171 = vmatpush1.bf16.msra.mxu0 %v1028
  %1172 = vmatprep.subr.bf16.mxu0 0
  %1173 = vmatpush1.bf16.msra.mxu0 %v1029
  %1174 = vmatprep.subr.bf16.mxu0 0
  %1175 = vmatpush1.bf16.msra.mxu0 %v1030
  %1176 = vmatprep.subr.bf16.mxu0 0
  %1177 = vmatpush1.bf16.msra.mxu0 %v1031
  %1178 = vmatprep.subr.bf16.mxu0 0
  %1179 = vmatpush1.bf16.msra.mxu0 %v1032
  %1180 = vmatprep.subr.bf16.mxu0 0
  %1181 = vmatpush1.bf16.msra.mxu0 %v1033
  %1182 = vmatprep.subr.bf16.mxu0 0
  %1183 = vmatpush1.bf16.msra.mxu0 %v1034
  %1184 = vmatprep.mubr.bf16.mxu0 %v839
  %1185 = vmatmul.mubr.bf16.gmra.mrb[0].mxu0 %v838
  %v1186 = vpop.f32.mrb[0].mxu0
  %v1187 = vadd.f32 %v1122, %v1186
  %v1188 = vpop.f32.mrb[0].mxu0
  %v1189 = vpop.f32.mrb[0].mxu0
  %v1190 = vadd.f32 %v1125, %v1189
  %v1191 = vpop.f32.mrb[0].mxu0
  %1192 = vmatprep.mubr.bf16.mxu0 %v843
  %1193 = vmatmul.mubr.bf16.gmra.mrb[0].mxu0 %v842
  %v1194 = vpop.f32.mrb[0].mxu0
  %v1195 = vadd.f32 %v1130, %v1194
  %v1196 = vpop.f32.mrb[0].mxu0
  %v1197 = vpop.f32.mrb[0].mxu0
  %v1198 = vadd.f32 %v1133, %v1197
  %v1199 = vpop.f32.mrb[0].mxu0
  %1200 = vmatprep.mubr.bf16.mxu0 %v847
  %1201 = vmatmul.mubr.bf16.gmra.mrb[0].mxu0 %v846
  %v1202 = vpop.f32.mrb[0].mxu0
  %v1203 = vadd.f32 %v1138, %v1202
  %v1204 = vpop.f32.mrb[0].mxu0
  %v1205 = vpop.f32.mrb[0].mxu0
  %v1206 = vadd.f32 %v1141, %v1205
  %v1207 = vpop.f32.mrb[0].mxu0
  %1208 = vmatprep.mubr.bf16.mxu0 %v851
  %1209 = vmatmul.mubr.bf16.gmra.mrb[0].mxu0 %v850
  %v1210 = vpop.f32.mrb[0].mxu0
  %v1211 = vadd.f32 %v1146, %v1210
  %v1212 = vpop.f32.mrb[0].mxu0
  %v1213 = vpop.f32.mrb[0].mxu0
  %v1214 = vadd.f32 %v1149, %v1213
  %v1215 = vpop.f32.mrb[0].mxu0
  %1216 = vdwg.mxu0
  %1217 = vmatprep.subr.bf16.mxu0 0
  %1218 = vmatpush1.bf16.msra.mxu0 %v1035
  %1219 = vmatprep.subr.bf16.mxu0 0
  %1220 = vmatpush1.bf16.msra.mxu0 %v1036
  %1221 = vmatprep.subr.bf16.mxu0 0
  %1222 = vmatpush1.bf16.msra.mxu0 %v1037
  %1223 = vmatprep.subr.bf16.mxu0 0
  %1224 = vmatpush1.bf16.msra.mxu0 %v1038
  %1225 = vmatprep.subr.bf16.mxu0 0
  %1226 = vmatpush1.bf16.msra.mxu0 0
  %1227 = vmatprep.subr.bf16.mxu0 0
  %1228 = vmatpush1.bf16.msra.mxu0 0
  %1229 = vmatprep.subr.bf16.mxu0 0
  %1230 = vmatpush1.bf16.msra.mxu0 0
  %1231 = vmatprep.subr.bf16.mxu0 0
  %1232 = vmatpush1.bf16.msra.mxu0 0
  %1233 = vmatprep.subr.bf16.mxu0 0
  %1234 = vmatpush1.bf16.msra.mxu0 0
  %1235 = vmatprep.subr.bf16.mxu0 0
  %1236 = vmatpush1.bf16.msra.mxu0 0
  %1237 = vmatprep.subr.bf16.mxu0 0
  %1238 = vmatpush1.bf16.msra.mxu0 0
  %1239 = vmatprep.subr.bf16.mxu0 0
  %1240 = vmatpush1.bf16.msra.mxu0 0
  %1241 = vmatprep.subr.bf16.mxu0 0
  %1242 = vmatpush1.bf16.msra.mxu0 0
  %1243 = vmatprep.subr.bf16.mxu0 0
  %1244 = vmatpush1.bf16.msra.mxu0 0
  %1245 = vmatprep.subr.bf16.mxu0 0
  %1246 = vmatpush1.bf16.msra.mxu0 0
  %1247 = vmatprep.subr.bf16.mxu0 0
  %1248 = vmatpush1.bf16.msra.mxu0 0
  %1249 = vmatprep.mubr.bf16.mxu0 0
  %1250 = vmatmul.mubr.bf16.gmra.mrb[0].mxu0 %v1076
  %v1251 = vpop.f32.mrb[0].mxu0
  %v1252 = vadd.f32 %v1187, %v1251
  %v1253 = vpop.f32.mrb[0].mxu0
  %v1254 = vpop.f32.mrb[0].mxu0
  %v1255 = vadd.f32 %v1190, %v1254
  %v1256 = vpop.f32.mrb[0].mxu0
  %1257 = vmatprep.mubr.bf16.mxu0 0
  %1258 = vmatmul.mubr.bf16.gmra.mrb[0].mxu0 %v1079
  %v1259 = vpop.f32.mrb[0].mxu0
  %v1260 = vadd.f32 %v1195, %v1259
  %v1261 = vpop.f32.mrb[0].mxu0
  %v1262 = vpop.f32.mrb[0].mxu0
  %v1263 = vadd.f32 %v1198, %v1262
  %v1264 = vpop.f32.mrb[0].mxu0
  %1265 = vmatprep.mubr.bf16.mxu0 0
  %1266 = vmatmul.mubr.bf16.gmra.mrb[0].mxu0 %v1082
  %v1267 = vpop.f32.mrb[0].mxu0
  %v1268 = vadd.f32 %v1203, %v1267
  %v1269 = vpop.f32.mrb[0].mxu0
  %v1270 = vpop.f32.mrb[0].mxu0
  %v1271 = vadd.f32 %v1206, %v1270
  %v1272 = vpop.f32.mrb[0].mxu0
  %1273 = vmatprep.mubr.bf16.mxu0 0
  %1274 = vmatmul.mubr.bf16.gmra.mrb[0].mxu0 %v1085
  %v1275 = vpop.f32.mrb[0].mxu0
  %v1276 = vadd.f32 %v1211, %v1275
  %v1277 = vpop.f32.mrb[0].mxu0
  %v1278 = vpop.f32.mrb[0].mxu0
  %v1279 = vadd.f32 %v1214, %v1278
  %v1280 = vpop.f32.mrb[0].mxu0
  %1281 = vdwg.mxu0
  %v1282 = vmax.f32 %v1252, 0.0
  %v1283 = vmax.f32 %v1255, 0.0
  %v1284 = vmax.f32 %v1260, 0.0
  %v1285 = vmax.f32 %v1263, 0.0
  %v1286 = vmax.f32 %v1268, 0.0
  %v1287 = vmax.f32 %v1271, 0.0
  %v1288 = vmax.f32 %v1276, 0.0
  %v1289 = vmax.f32 %v1279, 0.0
  %v1298 = vrot.slane %v1282, 1
  %v1299 = vrot.slane %v1283, 1
  %v1300 = vsel %vm681, %v1298, %v1299
  %v1301 = vrot.slane %v1284, 1
  %v1302 = vsel %vm681, %v1299, %v1301
  %v1303 = vrot.slane %v1285, 1
  %v1304 = vsel %vm681, %v1301, %v1303
  %v1305 = vrot.slane %v1286, 1
  %v1306 = vsel %vm681, %v1303, %v1305
  %v1307 = vrot.slane %v1287, 1
  %v1308 = vsel %vm681, %v1305, %v1307
  %v1309 = vrot.slane %v1288, 1
  %v1310 = vsel %vm681, %v1307, %v1309
  %v1311 = vrot.slane %v1289, 1
  %v1312 = vsel %vm681, %v1309, %v1311
  %v1313 = vsel %vm681, %v1311, %v697
  %1314 = vrot.lane.b32.xlu0 %v1300, 32
  %v1315 = vpop.permute.xlu0 %1314
  %1316 = vrot.lane.b32.xlu0 %v1302, 32
  %v1317 = vpop.permute.xlu0 %1316
  %1318 = vrot.lane.b32.xlu0 %v1304, 32
  %v1319 = vpop.permute.xlu0 %1318
  %1320 = vrot.lane.b32.xlu0 %v1306, 32
  %v1321 = vpop.permute.xlu0 %1320
  %1322 = vrot.lane.b32.xlu0 %v1308, 32
  %v1323 = vpop.permute.xlu0 %1322
  %1324 = vrot.lane.b32.xlu0 %v1310, 32
  %v1325 = vpop.permute.xlu0 %1324
  %1326 = vrot.lane.b32.xlu0 %v1312, 32
  %v1327 = vpop.permute.xlu0 %1326
  %1328 = vrot.lane.b32.xlu0 %v1313, 32
  %v1329 = vpop.permute.xlu0 %1328
  %v1338 = vrot.slane %v1282, 2
  %v1339 = vrot.slane %v1283, 2
  %v1340 = vsel %vm723, %v1338, %v1339
  %v1341 = vrot.slane %v1284, 2
  %v1342 = vsel %vm723, %v1339, %v1341
  %v1343 = vrot.slane %v1285, 2
  %v1344 = vsel %vm723, %v1341, %v1343
  %v1345 = vrot.slane %v1286, 2
  %v1346 = vsel %vm723, %v1343, %v1345
  %v1347 = vrot.slane %v1287, 2
  %v1348 = vsel %vm723, %v1345, %v1347
  %v1349 = vrot.slane %v1288, 2
  %v1350 = vsel %vm723, %v1347, %v1349
  %v1351 = vrot.slane %v1289, 2
  %v1352 = vsel %vm723, %v1349, %v1351
  %v1353 = vsel %vm723, %v1351, %v739
  %1354 = vrot.lane.b32.xlu0 %v1340, 64
  %v1355 = vpop.permute.xlu0 %1354
  %1356 = vrot.lane.b32.xlu0 %v1342, 64
  %v1357 = vpop.permute.xlu0 %1356
  %1358 = vrot.lane.b32.xlu0 %v1344, 64
  %v1359 = vpop.permute.xlu0 %1358
  %1360 = vrot.lane.b32.xlu0 %v1346, 64
  %v1361 = vpop.permute.xlu0 %1360
  %1362 = vrot.lane.b32.xlu0 %v1348, 64
  %v1363 = vpop.permute.xlu0 %1362
  %1364 = vrot.lane.b32.xlu0 %v1350, 64
  %v1365 = vpop.permute.xlu0 %1364
  %1366 = vrot.lane.b32.xlu0 %v1352, 64
  %v1367 = vpop.permute.xlu0 %1366
  %1368 = vrot.lane.b32.xlu0 %v1353, 64
  %v1369 = vpop.permute.xlu0 %1368
  %1378 = vrot.lane.b32.xlu0 %v1283, 96
  %v1379 = vpop.permute.xlu0 %1378
  %1380 = vrot.lane.b32.xlu0 %v1284, 96
  %v1381 = vpop.permute.xlu0 %1380
  %1382 = vrot.lane.b32.xlu0 %v1285, 96
  %v1383 = vpop.permute.xlu0 %1382
  %1384 = vrot.lane.b32.xlu0 %v1286, 96
  %v1385 = vpop.permute.xlu0 %1384
  %1386 = vrot.lane.b32.xlu0 %v1287, 96
  %v1387 = vpop.permute.xlu0 %1386
  %1388 = vrot.lane.b32.xlu0 %v1288, 96
  %v1389 = vpop.permute.xlu0 %1388
  %1390 = vrot.lane.b32.xlu0 %v1289, 96
  %v1391 = vpop.permute.xlu0 %1390
  %1392 = vrot.lane.b32.xlu0 0.0, 96
  %v1393 = vpop.permute.xlu0 %1392
  %1409 = vrot.lane.b32.xlu0 %v1342, 32
  %v1410 = vpop.permute.xlu0 %1409
  %1411 = vrot.lane.b32.xlu0 %v1344, 32
  %v1412 = vpop.permute.xlu0 %1411
  %1413 = vrot.lane.b32.xlu0 %v1346, 32
  %v1414 = vpop.permute.xlu0 %1413
  %1415 = vrot.lane.b32.xlu0 %v1348, 32
  %v1416 = vpop.permute.xlu0 %1415
  %1417 = vrot.lane.b32.xlu0 %v1350, 32
  %v1418 = vpop.permute.xlu0 %1417
  %1419 = vrot.lane.b32.xlu0 %v1352, 32
  %v1420 = vpop.permute.xlu0 %1419
  %1421 = vrot.lane.b32.xlu0 %v1353, 32
  %v1422 = vpop.permute.xlu0 %1421
  %1423 = vrot.lane.b32.xlu0 %v782, 32
  %v1424 = vpop.permute.xlu0 %1423
  %1433 = vrot.lane.b32.xlu0 %v1284, 64
  %v1434 = vpop.permute.xlu0 %1433
  %1435 = vrot.lane.b32.xlu0 %v1285, 64
  %v1436 = vpop.permute.xlu0 %1435
  %1437 = vrot.lane.b32.xlu0 %v1286, 64
  %v1438 = vpop.permute.xlu0 %1437
  %1439 = vrot.lane.b32.xlu0 %v1287, 64
  %v1440 = vpop.permute.xlu0 %1439
  %1441 = vrot.lane.b32.xlu0 %v1288, 64
  %v1442 = vpop.permute.xlu0 %1441
  %1443 = vrot.lane.b32.xlu0 %v1289, 64
  %v1444 = vpop.permute.xlu0 %1443
  %1451 = vrot.lane.b32.xlu0 %v1304, 96
  %v1452 = vpop.permute.xlu0 %1451
  %1453 = vrot.lane.b32.xlu0 %v1306, 96
  %v1454 = vpop.permute.xlu0 %1453
  %1455 = vrot.lane.b32.xlu0 %v1308, 96
  %v1456 = vpop.permute.xlu0 %1455
  %1457 = vrot.lane.b32.xlu0 %v1310, 96
  %v1458 = vpop.permute.xlu0 %1457
  %1459 = vrot.lane.b32.xlu0 %v1312, 96
  %v1460 = vpop.permute.xlu0 %1459
  %1461 = vrot.lane.b32.xlu0 %v1313, 96
  %v1462 = vpop.permute.xlu0 %1461
  %1463 = vrot.lane.b32.xlu0 %v773, 96
  %v1464 = vpop.permute.xlu0 %1463
  %v1478 = vsel %vm83, %v1282, %v1315
  %v1479 = vsel %vm83, %v1283, %v1317
  %v1480 = vsel %vm83, %v1284, %v1319
  %v1481 = vsel %vm83, %v1285, %v1321
  %v1482 = vsel %vm83, %v1286, %v1323
  %v1483 = vsel %vm83, %v1287, %v1325
  %v1484 = vsel %vm83, %v1288, %v1327
  %v1485 = vsel %vm83, %v1289, %v1329
  %v1486 = vsel %vm623, %v1478, %v1355
  %v1487 = vsel %vm623, %v1479, %v1357
  %v1488 = vsel %vm623, %v1480, %v1359
  %v1489 = vsel %vm623, %v1481, %v1361
  %v1490 = vsel %vm623, %v1482, %v1363
  %v1491 = vsel %vm623, %v1483, %v1365
  %v1492 = vsel %vm623, %v1484, %v1367
  %v1493 = vsel %vm623, %v1485, %v1369
  %vm1494 = vcmask 785408
  %v1495 = vsel %vm1494, %v1486, %v1379
  %v1496 = vsel %vm1494, %v1487, %v1381
  %v1497 = vsel %vm1494, %v1488, %v1383
  %v1498 = vsel %vm1494, %v1489, %v1385
  %v1499 = vsel %vm1494, %v1490, %v1387
  %v1500 = vsel %vm1494, %v1491, %v1389
  %v1501 = vsel %vm1494, %v1492, %v1391
  %v1502 = vsel %vm1494, %v1493, %v1393
  %v1503 = vsel %vm83, %v1302, %v1410
  %v1504 = vsel %vm83, %v1304, %v1412
  %v1505 = vsel %vm83, %v1306, %v1414
  %v1506 = vsel %vm83, %v1308, %v1416
  %v1507 = vsel %vm83, %v1310, %v1418
  %v1508 = vsel %vm83, %v1312, %v1420
  %v1509 = vsel %vm83, %v1313, %v1422
  %v1510 = vsel %vm83, %v773, %v1424
  %v1511 = vsel %vm623, %v1503, %v1434
  %v1512 = vsel %vm623, %v1504, %v1436
  %v1513 = vsel %vm623, %v1505, %v1438
  %v1514 = vsel %vm623, %v1506, %v1440
  %v1515 = vsel %vm623, %v1507, %v1442
  %v1516 = vsel %vm623, %v1508, %v1444
  %v1517 = vsel %vm623, %v1509, %v764
  %v1518 = vsel %vm623, %v1510, %v764
  %v1519 = vsel %vm1494, %v1511, %v1452
  %v1520 = vsel %vm1494, %v1512, %v1454
  %v1521 = vsel %vm1494, %v1513, %v1456
  %v1522 = vsel %vm1494, %v1514, %v1458
  %v1523 = vsel %vm1494, %v1515, %v1460
  %v1524 = vsel %vm1494, %v1516, %v1462
  %v1525 = vsel %vm1494, %v1517, %v1464
  %v1526 = vsel %vm1494, %v1518, %v1464
  %v1527 = vpack.c.bf16 %v1496, %v1495
  %v1528 = vpack.c.bf16 %v1520, %v1519
  %v1529 = vpack.c.bf16 %v1346, %v1344
  %v1530 = vpack.c.bf16 %v1498, %v1497
  %v1531 = vpack.c.bf16 %v1522, %v1521
  %v1532 = vpack.c.bf16 %v1350, %v1348
  %v1533 = vpack.c.bf16 %v1500, %v1499
  %v1534 = vpack.c.bf16 %v1524, %v1523
  %v1535 = vpack.c.bf16 %v1353, %v1352
  %v1536 = vpack.c.bf16 %v1502, %v1501
  %v1537 = vpack.c.bf16 %v1526, %v1525
  %v1539 = vlaneseq
  %v1540 = vshrl.u32 %v1539, 7
  %v1541 = vsub.s32 0, %v1540
  %v1542 = vrot.slane %v476, %v1541
  %v1580 = vunpack.c.l.b16 %v440
  %v1581 = vunpack.c.l.b16 %v441
  %v1582 = vunpack.c.l.b16 %v442
  %v1583 = vunpack.c.l.b16 %v443
  %v1584 = vunpack.c.l.b16 %v444
  %v1585 = vunpack.c.l.b16 %v445
  %v1586 = vunpack.c.l.b16 %v446
  %v1587 = vunpack.c.l.b16 %v447
  %v1588 = vunpack.c.l.b16 %v448
  %v1589 = vunpack.c.l.b16 %v449
  %v1590 = vunpack.c.l.b16 %v450
  %v1591 = vunpack.c.l.b16 %v451
  %v1592 = vunpack.c.l.b16 %v452
  %v1593 = vunpack.c.l.b16 %v453
  %v1594 = vunpack.c.l.b16 %v454
  %v1595 = vunpack.c.l.b16 %v455
  %v1596 = vunpack.c.l.b16 %v456
  %v1597 = vunpack.c.l.b16 %v457
  %v1598 = vunpack.c.l.b16 %v458
  %v1599 = vunpack.c.l.b16 %v459
  %v1600 = vunpack.c.l.b16 %v460
  %v1601 = vunpack.c.l.b16 %v461
  %v1602 = vunpack.c.l.b16 %v462
  %v1603 = vunpack.c.l.b16 %v463
  %v1604 = vunpack.c.l.b16 %v464
  %v1605 = vunpack.c.l.b16 %v465
  %v1606 = vunpack.c.l.b16 %v466
  %v1607 = vunpack.c.l.b16 %v467
  %v1608 = vunpack.c.l.b16 %v468
  %v1609 = vunpack.c.l.b16 %v469
  %v1610 = vunpack.c.l.b16 %v470
  %v1611 = vunpack.c.l.b16 %v471
  %v1612 = vunpack.c.l.b16 %v472
  %v1613 = vunpack.c.l.b16 %v473
  %v1614 = vunpack.c.l.b16 %v474
  %v1615 = vunpack.c.l.b16 %v475
  %v1616 = vpack.c.b16 %v1581, %v1580
  %v1617 = vpack.c.b16 %v1583, %v1582
  %v1618 = vpack.c.b16 %v1585, %v1584
  %v1619 = vpack.c.b16 %v1587, %v1586
  %v1620 = vpack.c.b16 %v1589, %v1588
  %v1621 = vpack.c.b16 %v1591, %v1590
  %v1622 = vpack.c.b16 %v1593, %v1592
  %v1623 = vpack.c.b16 %v1595, %v1594
  %v1624 = vpack.c.b16 %v1597, %v1596
  %v1625 = vpack.c.b16 %v1599, %v1598
  %v1626 = vpack.c.b16 %v1601, %v1600
  %v1627 = vpack.c.b16 %v1603, %v1602
  %v1628 = vpack.c.b16 %v1605, %v1604
  %v1629 = vpack.c.b16 %v1607, %v1606
  %v1630 = vpack.c.b16 %v1609, %v1608
  %v1631 = vpack.c.b16 %v1611, %v1610
  %v1632 = vpack.c.b16 %v1613, %v1612
  %v1633 = vpack.c.b16 %v1615, %v1614
  %v1653 = vsel %vm83, %v1529, 0
  %v1656 = vsel %vm83, %v1532, 0
  %v1659 = vsel %vm83, %v1535, 0
  %v1661 = vsel %vm83, %v852, 0
  %1663 = vmatprep.subr.bf16.mxu0 0
  %1664 = vmatpush1.bf16.msra.mxu0 %v1616
  %1665 = vmatprep.subr.bf16.mxu0 0
  %1666 = vmatpush1.bf16.msra.mxu0 %v1617
  %1667 = vmatprep.subr.bf16.mxu0 0
  %1668 = vmatpush1.bf16.msra.mxu0 %v1618
  %1669 = vmatprep.subr.bf16.mxu0 0
  %1670 = vmatpush1.bf16.msra.mxu0 %v1619
  %1671 = vmatprep.subr.bf16.mxu0 0
  %1672 = vmatpush1.bf16.msra.mxu0 %v1620
  %1673 = vmatprep.subr.bf16.mxu0 0
  %1674 = vmatpush1.bf16.msra.mxu0 %v1621
  %1675 = vmatprep.subr.bf16.mxu0 0
  %1676 = vmatpush1.bf16.msra.mxu0 %v1622
  %1677 = vmatprep.subr.bf16.mxu0 0
  %1678 = vmatpush1.bf16.msra.mxu0 %v1623
  %1679 = vmatprep.subr.bf16.mxu0 0
  %1680 = vmatpush1.bf16.msra.mxu0 %v1624
  %1681 = vmatprep.subr.bf16.mxu0 0
  %1682 = vmatpush1.bf16.msra.mxu0 %v1625
  %1683 = vmatprep.subr.bf16.mxu0 0
  %1684 = vmatpush1.bf16.msra.mxu0 %v1626
  %1685 = vmatprep.subr.bf16.mxu0 0
  %1686 = vmatpush1.bf16.msra.mxu0 %v1627
  %1687 = vmatprep.subr.bf16.mxu0 0
  %1688 = vmatpush1.bf16.msra.mxu0 %v1628
  %1689 = vmatprep.subr.bf16.mxu0 0
  %1690 = vmatpush1.bf16.msra.mxu0 %v1629
  %1691 = vmatprep.subr.bf16.mxu0 0
  %1692 = vmatpush1.bf16.msra.mxu0 %v1630
  %1693 = vmatprep.subr.bf16.mxu0 0
  %1694 = vmatpush1.bf16.msra.mxu0 %v1631
  %1695 = vmatprep.mubr.bf16.mxu0 %v1528
  %1696 = vmatmul.mubr.bf16.gmra.mrb[0].mxu0 %v1527
  %v1697 = vpop.f32.mrb[0].mxu0
  %v1698 = vadd.f32 %v1542, %v1697
  %v1699 = vpop.f32.mrb[0].mxu0
  %v1700 = vpop.f32.mrb[0].mxu0
  %v1701 = vadd.f32 %v1542, %v1700
  %v1702 = vpop.f32.mrb[0].mxu0
  %1703 = vmatprep.mubr.bf16.mxu0 %v1531
  %1704 = vmatmul.mubr.bf16.gmra.mrb[0].mxu0 %v1530
  %v1705 = vpop.f32.mrb[0].mxu0
  %v1706 = vadd.f32 %v1542, %v1705
  %v1707 = vpop.f32.mrb[0].mxu0
  %v1708 = vpop.f32.mrb[0].mxu0
  %v1709 = vadd.f32 %v1542, %v1708
  %v1710 = vpop.f32.mrb[0].mxu0
  %1711 = vmatprep.mubr.bf16.mxu0 %v1534
  %1712 = vmatmul.mubr.bf16.gmra.mrb[0].mxu0 %v1533
  %v1713 = vpop.f32.mrb[0].mxu0
  %v1714 = vpop.f32.mrb[0].mxu0
  %v1715 = vpop.f32.mrb[0].mxu0
  %v1716 = vpop.f32.mrb[0].mxu0
  %1717 = vmatprep.mubr.bf16.mxu0 %v1537
  %1718 = vmatmul.mubr.bf16.gmra.mrb[0].mxu0 %v1536
  %v1719 = vpop.f32.mrb[0].mxu0
  %v1720 = vpop.f32.mrb[0].mxu0
  %v1721 = vpop.f32.mrb[0].mxu0
  %v1722 = vpop.f32.mrb[0].mxu0
  %1723 = vdwg.mxu0
  %1724 = vmatprep.subr.bf16.mxu0 0
  %1725 = vmatpush1.bf16.msra.mxu0 %v1632
  %1726 = vmatprep.subr.bf16.mxu0 0
  %1727 = vmatpush1.bf16.msra.mxu0 %v1633
  %1728 = vmatprep.subr.bf16.mxu0 0
  %1729 = vmatpush1.bf16.msra.mxu0 0
  %1730 = vmatprep.subr.bf16.mxu0 0
  %1731 = vmatpush1.bf16.msra.mxu0 0
  %1732 = vmatprep.subr.bf16.mxu0 0
  %1733 = vmatpush1.bf16.msra.mxu0 0
  %1734 = vmatprep.subr.bf16.mxu0 0
  %1735 = vmatpush1.bf16.msra.mxu0 0
  %1736 = vmatprep.subr.bf16.mxu0 0
  %1737 = vmatpush1.bf16.msra.mxu0 0
  %1738 = vmatprep.subr.bf16.mxu0 0
  %1739 = vmatpush1.bf16.msra.mxu0 0
  %1740 = vmatprep.subr.bf16.mxu0 0
  %1741 = vmatpush1.bf16.msra.mxu0 0
  %1742 = vmatprep.subr.bf16.mxu0 0
  %1743 = vmatpush1.bf16.msra.mxu0 0
  %1744 = vmatprep.subr.bf16.mxu0 0
  %1745 = vmatpush1.bf16.msra.mxu0 0
  %1746 = vmatprep.subr.bf16.mxu0 0
  %1747 = vmatpush1.bf16.msra.mxu0 0
  %1748 = vmatprep.subr.bf16.mxu0 0
  %1749 = vmatpush1.bf16.msra.mxu0 0
  %1750 = vmatprep.subr.bf16.mxu0 0
  %1751 = vmatpush1.bf16.msra.mxu0 0
  %1752 = vmatprep.subr.bf16.mxu0 0
  %1753 = vmatpush1.bf16.msra.mxu0 0
  %1754 = vmatprep.subr.bf16.mxu0 0
  %1755 = vmatpush1.bf16.msra.mxu0 0
  %1756 = vmatprep.mubr.bf16.mxu0 0
  %1757 = vmatmul.mubr.bf16.gmra.mrb[0].mxu0 %v1653
  %v1758 = vpop.f32.mrb[0].mxu0
  %v1759 = vadd.f32 %v1698, %v1758
  %v1760 = vpop.f32.mrb[0].mxu0
  %v1761 = vpop.f32.mrb[0].mxu0
  %v1762 = vadd.f32 %v1701, %v1761
  %v1763 = vpop.f32.mrb[0].mxu0
  %1764 = vmatprep.mubr.bf16.mxu0 0
  %1765 = vmatmul.mubr.bf16.gmra.mrb[0].mxu0 %v1656
  %v1766 = vpop.f32.mrb[0].mxu0
  %v1767 = vadd.f32 %v1706, %v1766
  %v1768 = vpop.f32.mrb[0].mxu0
  %v1769 = vpop.f32.mrb[0].mxu0
  %v1770 = vadd.f32 %v1709, %v1769
  %v1771 = vpop.f32.mrb[0].mxu0
  %1772 = vmatprep.mubr.bf16.mxu0 0
  %1773 = vmatmul.mubr.bf16.gmra.mrb[0].mxu0 %v1659
  %v1774 = vpop.f32.mrb[0].mxu0
  %v1775 = vpop.f32.mrb[0].mxu0
  %v1776 = vpop.f32.mrb[0].mxu0
  %v1777 = vpop.f32.mrb[0].mxu0
  %1778 = vmatprep.mubr.bf16.mxu0 0
  %1779 = vmatmul.mubr.bf16.gmra.mrb[0].mxu0 %v1661
  %v1780 = vpop.f32.mrb[0].mxu0
  %v1781 = vpop.f32.mrb[0].mxu0
  %v1782 = vpop.f32.mrb[0].mxu0
  %v1783 = vpop.f32.mrb[0].mxu0
  %1784 = vdwg.mxu0
  %v1785 = vmax.f32 %v1759, 0.0
  %v1786 = vmax.f32 %v1762, 0.0
  %v1787 = vmax.f32 %v1767, 0.0
  %v1788 = vmax.f32 %v1770, 0.0
  %v1790 = vrot.slane %v1785, 1
  %1791 = vrot.lane.b32.xlu0 %v1790, 16
  %v1792 = vpop.permute.xlu0 %1791
  %v1794 = vrot.slane %v1785, 2
  %1795 = vrot.lane.b32.xlu0 %v1794, 32
  %v1796 = vpop.permute.xlu0 %1795
  %v1798 = vrot.slane %v1785, 3
  %1799 = vrot.lane.b32.xlu0 %v1798, 48
  %v1800 = vpop.permute.xlu0 %1799
  %1803 = vrot.lane.b32.xlu0 %v1786, 64
  %v1804 = vpop.permute.xlu0 %1803
  %v1806 = vrot.slane %v1786, 1
  %1807 = vrot.lane.b32.xlu0 %v1806, 80
  %v1808 = vpop.permute.xlu0 %1807
  %v1810 = vrot.slane %v1786, 2
  %1811 = vrot.lane.b32.xlu0 %v1810, 96
  %v1812 = vpop.permute.xlu0 %1811
  %v1814 = vrot.slane %v1786, 3
  %1815 = vrot.lane.b32.xlu0 %v1814, 112
  %v1816 = vpop.permute.xlu0 %1815
  %v1819 = vrot.slane %v1787, 1
  %1820 = vrot.lane.b32.xlu0 %v1819, 16
  %v1821 = vpop.permute.xlu0 %1820
  %v1823 = vrot.slane %v1787, 2
  %1824 = vrot.lane.b32.xlu0 %v1823, 32
  %v1825 = vpop.permute.xlu0 %1824
  %v1827 = vrot.slane %v1787, 3
  %1828 = vrot.lane.b32.xlu0 %v1827, 48
  %v1829 = vpop.permute.xlu0 %1828
  %1832 = vrot.lane.b32.xlu0 %v1788, 64
  %v1833 = vpop.permute.xlu0 %1832
  %v1835 = vrot.slane %v1788, 1
  %1836 = vrot.lane.b32.xlu0 %v1835, 80
  %v1837 = vpop.permute.xlu0 %1836
  %v1839 = vrot.slane %v1788, 2
  %1840 = vrot.lane.b32.xlu0 %v1839, 96
  %v1841 = vpop.permute.xlu0 %1840
  %v1843 = vrot.slane %v1788, 3
  %1844 = vrot.lane.b32.xlu0 %v1843, 112
  %v1845 = vpop.permute.xlu0 %1844
  %v1847 = vsel %vm177, %v1785, %v1792
  %v1848 = vsel %vm83, %v1847, %v1796
  %vm1849 = vcmask 392192
  %v1850 = vsel %vm1849, %v1848, %v1800
  %v1851 = vsel %vm623, %v1850, %v1804
  %vm1852 = vcmask 654336
  %v1853 = vsel %vm1852, %v1851, %v1808
  %v1854 = vsel %vm1494, %v1853, %v1812
  %vm1855 = vcmask 916480
  %v1856 = vsel %vm1855, %v1854, %v1816
  %v1857 = vsel %vm177, %v1787, %v1821
  %v1858 = vsel %vm83, %v1857, %v1825
  %v1859 = vsel %vm1849, %v1858, %v1829
  %v1860 = vsel %vm623, %v1859, %v1833
  %v1861 = vsel %vm1852, %v1860, %v1837
  %v1862 = vsel %vm1494, %v1861, %v1841
  %v1863 = vsel %vm1855, %v1862, %v1845
  %v1864 = vpack.c.bf16 %v1856, %v1856
  %v1865 = vpack.c.bf16 %v1863, %v1863
  %v1898 = vunpack.c.l.b16 %v477
  %v1899 = vunpack.c.l.b16 %v478
  %v1900 = vunpack.c.l.b16 %v479
  %v1901 = vunpack.c.l.b16 %v480
  %v1902 = vunpack.c.l.b16 %v481
  %v1903 = vunpack.c.l.b16 %v482
  %v1904 = vunpack.c.l.b16 %v483
  %v1905 = vunpack.c.l.b16 %v484
  %v1906 = vunpack.c.l.b16 %v485
  %v1907 = vunpack.c.l.b16 %v486
  %v1908 = vunpack.c.l.b16 %v487
  %v1909 = vunpack.c.l.b16 %v488
  %v1910 = vunpack.c.l.b16 %v489
  %v1911 = vunpack.c.l.b16 %v490
  %v1912 = vunpack.c.l.b16 %v491
  %v1913 = vunpack.c.l.b16 %v492
  %v1914 = vunpack.c.l.b16 %v493
  %v1915 = vunpack.c.l.b16 %v494
  %v1916 = vunpack.c.l.b16 %v495
  %v1917 = vunpack.c.l.b16 %v496
  %v1918 = vunpack.c.l.b16 %v497
  %v1919 = vunpack.c.l.b16 %v498
  %v1920 = vunpack.c.l.b16 %v499
  %v1921 = vunpack.c.l.b16 %v500
  %v1922 = vunpack.c.l.b16 %v501
  %v1923 = vunpack.c.l.b16 %v502
  %v1924 = vunpack.c.l.b16 %v503
  %v1925 = vunpack.c.l.b16 %v504
  %v1926 = vunpack.c.l.b16 %v505
  %v1927 = vunpack.c.l.b16 %v506
  %v1928 = vunpack.c.l.b16 %v507
  %v1929 = vunpack.c.l.b16 %v508
  %v1930 = vpack.c.b16 %v1899, %v1898
  %v1931 = vpack.c.b16 %v1901, %v1900
  %v1932 = vpack.c.b16 %v1903, %v1902
  %v1933 = vpack.c.b16 %v1905, %v1904
  %v1934 = vpack.c.b16 %v1907, %v1906
  %v1935 = vpack.c.b16 %v1909, %v1908
  %v1936 = vpack.c.b16 %v1911, %v1910
  %v1937 = vpack.c.b16 %v1913, %v1912
  %v1938 = vpack.c.b16 %v1915, %v1914
  %v1939 = vpack.c.b16 %v1917, %v1916
  %v1940 = vpack.c.b16 %v1919, %v1918
  %v1941 = vpack.c.b16 %v1921, %v1920
  %v1942 = vpack.c.b16 %v1923, %v1922
  %v1943 = vpack.c.b16 %v1925, %v1924
  %v1944 = vpack.c.b16 %v1927, %v1926
  %v1945 = vpack.c.b16 %v1929, %v1928
  %1962 = vmatprep.subr.bf16.mxu0 0
  %1963 = vmatpush1.bf16.msra.mxu0 %v1930
  %1964 = vmatprep.subr.bf16.mxu0 0
  %1965 = vmatpush1.bf16.msra.mxu0 %v1931
  %1966 = vmatprep.subr.bf16.mxu0 0
  %1967 = vmatpush1.bf16.msra.mxu0 %v1932
  %1968 = vmatprep.subr.bf16.mxu0 0
  %1969 = vmatpush1.bf16.msra.mxu0 %v1933
  %1970 = vmatprep.subr.bf16.mxu0 0
  %1971 = vmatpush1.bf16.msra.mxu0 %v1934
  %1972 = vmatprep.subr.bf16.mxu0 0
  %1973 = vmatpush1.bf16.msra.mxu0 %v1935
  %1974 = vmatprep.subr.bf16.mxu0 0
  %1975 = vmatpush1.bf16.msra.mxu0 %v1936
  %1976 = vmatprep.subr.bf16.mxu0 0
  %1977 = vmatpush1.bf16.msra.mxu0 %v1937
  %1978 = vmatprep.subr.bf16.mxu0 0
  %1979 = vmatpush1.bf16.msra.mxu0 %v1938
  %1980 = vmatprep.subr.bf16.mxu0 0
  %1981 = vmatpush1.bf16.msra.mxu0 %v1939
  %1982 = vmatprep.subr.bf16.mxu0 0
  %1983 = vmatpush1.bf16.msra.mxu0 %v1940
  %1984 = vmatprep.subr.bf16.mxu0 0
  %1985 = vmatpush1.bf16.msra.mxu0 %v1941
  %1986 = vmatprep.subr.bf16.mxu0 0
  %1987 = vmatpush1.bf16.msra.mxu0 %v1942
  %1988 = vmatprep.subr.bf16.mxu0 0
  %1989 = vmatpush1.bf16.msra.mxu0 %v1943
  %1990 = vmatprep.subr.bf16.mxu0 0
  %1991 = vmatpush1.bf16.msra.mxu0 %v1944
  %1992 = vmatprep.subr.bf16.mxu0 0
  %1993 = vmatpush1.bf16.msra.mxu0 %v1945
  %1994 = vmatprep.mubr.bf16.mxu0 %v1865
  %1995 = vmatmul.mubr.bf16.gmra.mrb[0].mxu0 %v1864
  %v1996 = vpop.f32.mrb[0].mxu0
  %v1997 = vadd.f32 %v509, %v1996
  %v1998 = vpop.f32.mrb[0].mxu0
  %v1999 = vpop.f32.mrb[0].mxu0
  %v2000 = vpop.f32.mrb[0].mxu0
  %2001 = vdwg.mxu0
  %vm2002 = vcmask 253952
  %2003 = vst.msk [vmem:[%s9] sm:$0x1] %vm2002, %v1997
  %s2004 = scalar_lea.vmem %s1, 16
  %v2005 = vld [vmem:[%s2004] sm:$0xf]
  %v2006 = vld [vmem:[%s2004 + $0x4] sm:$0xf]
  %v2007 = vld [vmem:[%s2004 + $0x8] sm:$0xf]
  %v2008 = vld [vmem:[%s2004 + $0xc] sm:$0xf]
  %s2009 = scalar_lea.vmem %s2, 1
  %v2010 = vld [vmem:[%s2009] sm:$0x1]
  %v2012 = vlaneseq
  %v2013 = vshrl.u32 %v2012, 7
  %v2014 = vsub.s32 0, %v2013
  %v2015 = vrot.slane %v2010, %v2014
  %v2021 = vunpack.c.l.b16 %v2005
  %v2022 = vunpack.c.l.b16 %v2006
  %v2023 = vunpack.c.l.b16 %v2007
  %v2024 = vunpack.c.l.b16 %v2008
  %v2025 = vpack.c.b16 %v2022, %v2021
  %v2026 = vpack.c.b16 %v2024, %v2023
  %2029 = vmatprep.subr.bf16.mxu0 0
  %2030 = vmatpush1.bf16.msra.mxu0 %v2025
  %2031 = vmatprep.subr.bf16.mxu0 0
  %2032 = vmatpush1.bf16.msra.mxu0 %v2026
  %2033 = vmatprep.subr.bf16.mxu0 0
  %2034 = vmatpush1.bf16.msra.mxu0 0
  %2035 = vmatprep.subr.bf16.mxu0 0
  %2036 = vmatpush1.bf16.msra.mxu0 0
  %2037 = vmatprep.subr.bf16.mxu0 0
  %2038 = vmatpush1.bf16.msra.mxu0 0
  %2039 = vmatprep.subr.bf16.mxu0 0
  %2040 = vmatpush1.bf16.msra.mxu0 0
  %2041 = vmatprep.subr.bf16.mxu0 0
  %2042 = vmatpush1.bf16.msra.mxu0 0
  %2043 = vmatprep.subr.bf16.mxu0 0
  %2044 = vmatpush1.bf16.msra.mxu0 0
  %2045 = vmatprep.subr.bf16.mxu0 0
  %2046 = vmatpush1.bf16.msra.mxu0 0
  %2047 = vmatprep.subr.bf16.mxu0 0
  %2048 = vmatpush1.bf16.msra.mxu0 0
  %2049 = vmatprep.subr.bf16.mxu0 0
  %2050 = vmatpush1.bf16.msra.mxu0 0
  %2051 = vmatprep.subr.bf16.mxu0 0
  %2052 = vmatpush1.bf16.msra.mxu0 0
  %2053 = vmatprep.subr.bf16.mxu0 0
  %2054 = vmatpush1.bf16.msra.mxu0 0
  %2055 = vmatprep.subr.bf16.mxu0 0
  %2056 = vmatpush1.bf16.msra.mxu0 0
  %2057 = vmatprep.subr.bf16.mxu0 0
  %2058 = vmatpush1.bf16.msra.mxu0 0
  %2059 = vmatprep.subr.bf16.mxu0 0
  %2060 = vmatpush1.bf16.msra.mxu0 0
  %2061 = vmatprep.mubr.bf16.mxu0 0
  %2062 = vmatmul.mubr.bf16.gmra.mrb[0].mxu0 %v85
  %v2063 = vpop.f32.mrb[0].mxu0
  %v2064 = vadd.f32 %v2015, %v2063
  %v2065 = vpop.f32.mrb[0].mxu0
  %v2066 = vpop.f32.mrb[0].mxu0
  %v2067 = vadd.f32 %v2015, %v2066
  %v2068 = vpop.f32.mrb[0].mxu0
  %2069 = vmatprep.mubr.bf16.mxu0 0
  %2070 = vmatmul.mubr.bf16.gmra.mrb[0].mxu0 %v88
  %v2071 = vpop.f32.mrb[0].mxu0
  %v2072 = vadd.f32 %v2015, %v2071
  %v2073 = vpop.f32.mrb[0].mxu0
  %v2074 = vpop.f32.mrb[0].mxu0
  %v2075 = vadd.f32 %v2015, %v2074
  %v2076 = vpop.f32.mrb[0].mxu0
  %2077 = vmatprep.mubr.bf16.mxu0 0
  %2078 = vmatmul.mubr.bf16.gmra.mrb[0].mxu0 %v91
  %v2079 = vpop.f32.mrb[0].mxu0
  %v2080 = vadd.f32 %v2015, %v2079
  %v2081 = vpop.f32.mrb[0].mxu0
  %v2082 = vpop.f32.mrb[0].mxu0
  %v2083 = vadd.f32 %v2015, %v2082
  %v2084 = vpop.f32.mrb[0].mxu0
  %2085 = vmatprep.mubr.bf16.mxu0 0
  %2086 = vmatmul.mubr.bf16.gmra.mrb[0].mxu0 %v94
  %v2087 = vpop.f32.mrb[0].mxu0
  %v2088 = vadd.f32 %v2015, %v2087
  %v2089 = vpop.f32.mrb[0].mxu0
  %v2090 = vpop.f32.mrb[0].mxu0
  %v2091 = vadd.f32 %v2015, %v2090
  %v2092 = vpop.f32.mrb[0].mxu0
  %2093 = vdwg.mxu0
  %v2094 = vmax.f32 %v2064, 0.0
  %v2095 = vmax.f32 %v2067, 0.0
  %v2096 = vmax.f32 %v2072, 0.0
  %v2097 = vmax.f32 %v2075, 0.0
  %v2098 = vmax.f32 %v2080, 0.0
  %v2099 = vmax.f32 %v2083, 0.0
  %v2100 = vmax.f32 %v2088, 0.0
  %v2101 = vmax.f32 %v2091, 0.0
  %v2102 = vmul.f32 %v2094, %v2094
  %v2103 = vmul.f32 %v2095, %v2095
  %v2104 = vmul.f32 %v2096, %v2096
  %v2105 = vmul.f32 %v2097, %v2097
  %v2106 = vmul.f32 %v2098, %v2098
  %v2107 = vmul.f32 %v2099, %v2099
  %v2108 = vmul.f32 %v2100, %v2100
  %v2109 = vmul.f32 %v2101, %v2101
  %v2110 = vsel %vm177, %v2102, 0.0
  %2111 = vadd.xlane.f32.xlu0 %v2110
  %v2112 = vpop.xlane.xlu0 %2111
  %v2113 = vsel %vm177, %v2103, 0.0
  %2114 = vadd.xlane.f32.xlu0 %v2113
  %v2115 = vpop.xlane.xlu0 %2114
  %v2116 = vsel %vm177, %v2104, 0.0
  %2117 = vadd.xlane.f32.xlu0 %v2116
  %v2118 = vpop.xlane.xlu0 %2117
  %v2119 = vsel %vm177, %v2105, 0.0
  %2120 = vadd.xlane.f32.xlu0 %v2119
  %v2121 = vpop.xlane.xlu0 %2120
  %v2122 = vsel %vm177, %v2106, 0.0
  %2123 = vadd.xlane.f32.xlu0 %v2122
  %v2124 = vpop.xlane.xlu0 %2123
  %v2125 = vsel %vm177, %v2107, 0.0
  %2126 = vadd.xlane.f32.xlu0 %v2125
  %v2127 = vpop.xlane.xlu0 %2126
  %v2128 = vsel %vm177, %v2108, 0.0
  %2129 = vadd.xlane.f32.xlu0 %v2128
  %v2130 = vpop.xlane.xlu0 %2129
  %v2131 = vsel %vm177, %v2109, 0.0
  %2132 = vadd.xlane.f32.xlu0 %v2131
  %v2133 = vpop.xlane.xlu0 %2132
  %v2134 = vadd.f32 %v2112, 1e-06
  %v2135 = vadd.f32 %v2115, 1e-06
  %v2136 = vadd.f32 %v2118, 1e-06
  %v2137 = vadd.f32 %v2121, 1e-06
  %v2138 = vadd.f32 %v2124, 1e-06
  %v2139 = vadd.f32 %v2127, 1e-06
  %v2140 = vadd.f32 %v2130, 1e-06
  %v2141 = vadd.f32 %v2133, 1e-06
  %v2142 = vrsqrt.pop %v2134
  %v2143 = vrsqrt.pop %v2135
  %v2144 = vrsqrt.pop %v2136
  %v2145 = vrsqrt.pop %v2137
  %v2146 = vrsqrt.pop %v2138
  %v2147 = vrsqrt.pop %v2139
  %v2148 = vrsqrt.pop %v2140
  %v2149 = vrsqrt.pop %v2141
  %v2150 = vmul.f32 %v2094, %v2142
  %v2151 = vmul.f32 %v2095, %v2143
  %v2152 = vmul.f32 %v2096, %v2144
  %v2153 = vmul.f32 %v2097, %v2145
  %v2154 = vmul.f32 %v2098, %v2146
  %v2155 = vmul.f32 %v2099, %v2147
  %v2156 = vmul.f32 %v2100, %v2148
  %v2157 = vmul.f32 %v2101, %v2149
  %2158 = vmatprep.subr.bf16.mxu0 0
  %2159 = vmatpush1.bf16.msra.mxu0 %v2025
  %2160 = vmatprep.subr.bf16.mxu0 0
  %2161 = vmatpush1.bf16.msra.mxu0 %v2026
  %2162 = vmatprep.subr.bf16.mxu0 0
  %2163 = vmatpush1.bf16.msra.mxu0 0
  %2164 = vmatprep.subr.bf16.mxu0 0
  %2165 = vmatpush1.bf16.msra.mxu0 0
  %2166 = vmatprep.subr.bf16.mxu0 0
  %2167 = vmatpush1.bf16.msra.mxu0 0
  %2168 = vmatprep.subr.bf16.mxu0 0
  %2169 = vmatpush1.bf16.msra.mxu0 0
  %2170 = vmatprep.subr.bf16.mxu0 0
  %2171 = vmatpush1.bf16.msra.mxu0 0
  %2172 = vmatprep.subr.bf16.mxu0 0
  %2173 = vmatpush1.bf16.msra.mxu0 0
  %2174 = vmatprep.subr.bf16.mxu0 0
  %2175 = vmatpush1.bf16.msra.mxu0 0
  %2176 = vmatprep.subr.bf16.mxu0 0
  %2177 = vmatpush1.bf16.msra.mxu0 0
  %2178 = vmatprep.subr.bf16.mxu0 0
  %2179 = vmatpush1.bf16.msra.mxu0 0
  %2180 = vmatprep.subr.bf16.mxu0 0
  %2181 = vmatpush1.bf16.msra.mxu0 0
  %2182 = vmatprep.subr.bf16.mxu0 0
  %2183 = vmatpush1.bf16.msra.mxu0 0
  %2184 = vmatprep.subr.bf16.mxu0 0
  %2185 = vmatpush1.bf16.msra.mxu0 0
  %2186 = vmatprep.subr.bf16.mxu0 0
  %2187 = vmatpush1.bf16.msra.mxu0 0
  %2188 = vmatprep.subr.bf16.mxu0 0
  %2189 = vmatpush1.bf16.msra.mxu0 0
  %2190 = vmatprep.mubr.bf16.mxu0 0
  %2191 = vmatmul.mubr.bf16.gmra.mrb[0].mxu0 %v227
  %v2192 = vpop.f32.mrb[0].mxu0
  %v2193 = vadd.f32 %v2015, %v2192
  %v2194 = vpop.f32.mrb[0].mxu0
  %v2195 = vpop.f32.mrb[0].mxu0
  %v2196 = vadd.f32 %v2015, %v2195
  %v2197 = vpop.f32.mrb[0].mxu0
  %2198 = vmatprep.mubr.bf16.mxu0 0
  %2199 = vmatmul.mubr.bf16.gmra.mrb[0].mxu0 %v230
  %v2200 = vpop.f32.mrb[0].mxu0
  %v2201 = vadd.f32 %v2015, %v2200
  %v2202 = vpop.f32.mrb[0].mxu0
  %v2203 = vpop.f32.mrb[0].mxu0
  %v2204 = vadd.f32 %v2015, %v2203
  %v2205 = vpop.f32.mrb[0].mxu0
  %2206 = vmatprep.mubr.bf16.mxu0 0
  %2207 = vmatmul.mubr.bf16.gmra.mrb[0].mxu0 %v233
  %v2208 = vpop.f32.mrb[0].mxu0
  %v2209 = vadd.f32 %v2015, %v2208
  %v2210 = vpop.f32.mrb[0].mxu0
  %v2211 = vpop.f32.mrb[0].mxu0
  %v2212 = vadd.f32 %v2015, %v2211
  %v2213 = vpop.f32.mrb[0].mxu0
  %2214 = vmatprep.mubr.bf16.mxu0 0
  %2215 = vmatmul.mubr.bf16.gmra.mrb[0].mxu0 %v236
  %v2216 = vpop.f32.mrb[0].mxu0
  %v2217 = vadd.f32 %v2015, %v2216
  %v2218 = vpop.f32.mrb[0].mxu0
  %v2219 = vpop.f32.mrb[0].mxu0
  %v2220 = vadd.f32 %v2015, %v2219
  %v2221 = vpop.f32.mrb[0].mxu0
  %2222 = vdwg.mxu0
  %v2223 = vmax.f32 %v2193, 0.0
  %v2224 = vmax.f32 %v2196, 0.0
  %v2225 = vmax.f32 %v2201, 0.0
  %v2226 = vmax.f32 %v2204, 0.0
  %v2227 = vmax.f32 %v2209, 0.0
  %v2228 = vmax.f32 %v2212, 0.0
  %v2229 = vmax.f32 %v2217, 0.0
  %v2230 = vmax.f32 %v2220, 0.0
  %v2231 = vmul.f32 %v2223, %v2223
  %v2232 = vmul.f32 %v2224, %v2224
  %v2233 = vmul.f32 %v2225, %v2225
  %v2234 = vmul.f32 %v2226, %v2226
  %v2235 = vmul.f32 %v2227, %v2227
  %v2236 = vmul.f32 %v2228, %v2228
  %v2237 = vmul.f32 %v2229, %v2229
  %v2238 = vmul.f32 %v2230, %v2230
  %v2239 = vsel %vm177, %v2231, 0.0
  %2240 = vadd.xlane.f32.xlu0 %v2239
  %v2241 = vpop.xlane.xlu0 %2240
  %v2242 = vsel %vm177, %v2232, 0.0
  %2243 = vadd.xlane.f32.xlu0 %v2242
  %v2244 = vpop.xlane.xlu0 %2243
  %v2245 = vsel %vm177, %v2233, 0.0
  %2246 = vadd.xlane.f32.xlu0 %v2245
  %v2247 = vpop.xlane.xlu0 %2246
  %v2248 = vsel %vm177, %v2234, 0.0
  %2249 = vadd.xlane.f32.xlu0 %v2248
  %v2250 = vpop.xlane.xlu0 %2249
  %v2251 = vsel %vm177, %v2235, 0.0
  %2252 = vadd.xlane.f32.xlu0 %v2251
  %v2253 = vpop.xlane.xlu0 %2252
  %v2254 = vsel %vm177, %v2236, 0.0
  %2255 = vadd.xlane.f32.xlu0 %v2254
  %v2256 = vpop.xlane.xlu0 %2255
  %v2257 = vsel %vm177, %v2237, 0.0
  %2258 = vadd.xlane.f32.xlu0 %v2257
  %v2259 = vpop.xlane.xlu0 %2258
  %v2260 = vsel %vm177, %v2238, 0.0
  %2261 = vadd.xlane.f32.xlu0 %v2260
  %v2262 = vpop.xlane.xlu0 %2261
  %v2263 = vadd.f32 %v2241, 1e-06
  %v2264 = vadd.f32 %v2244, 1e-06
  %v2265 = vadd.f32 %v2247, 1e-06
  %v2266 = vadd.f32 %v2250, 1e-06
  %v2267 = vadd.f32 %v2253, 1e-06
  %v2268 = vadd.f32 %v2256, 1e-06
  %v2269 = vadd.f32 %v2259, 1e-06
  %v2270 = vadd.f32 %v2262, 1e-06
  %v2271 = vrsqrt.pop %v2263
  %v2272 = vrsqrt.pop %v2264
  %v2273 = vrsqrt.pop %v2265
  %v2274 = vrsqrt.pop %v2266
  %v2275 = vrsqrt.pop %v2267
  %v2276 = vrsqrt.pop %v2268
  %v2277 = vrsqrt.pop %v2269
  %v2278 = vrsqrt.pop %v2270
  %v2279 = vmul.f32 %v2223, %v2271
  %v2280 = vmul.f32 %v2224, %v2272
  %v2281 = vmul.f32 %v2225, %v2273
  %v2282 = vmul.f32 %v2226, %v2274
  %v2283 = vmul.f32 %v2227, %v2275
  %v2284 = vmul.f32 %v2228, %v2276
  %v2285 = vmul.f32 %v2229, %v2277
  %v2286 = vmul.f32 %v2230, %v2278
  %s2287 = scalar_lea.vmem %s3, 288
  %v2288 = vld [vmem:[%s2287] sm:$0xf]
  %v2289 = vld [vmem:[%s2287 + $0x4] sm:$0xf]
  %v2290 = vld [vmem:[%s2287 + $0x8] sm:$0xf]
  %v2291 = vld [vmem:[%s2287 + $0xc] sm:$0xf]
  %v2292 = vld [vmem:[%s2287 + $0x10] sm:$0xf]
  %v2293 = vld [vmem:[%s2287 + $0x14] sm:$0xf]
  %v2294 = vld [vmem:[%s2287 + $0x18] sm:$0xf]
  %v2295 = vld [vmem:[%s2287 + $0x1c] sm:$0xf]
  %v2296 = vld [vmem:[%s2287 + $0x20] sm:$0xf]
  %v2297 = vld [vmem:[%s2287 + $0x24] sm:$0xf]
  %v2298 = vld [vmem:[%s2287 + $0x28] sm:$0xf]
  %v2299 = vld [vmem:[%s2287 + $0x2c] sm:$0xf]
  %v2300 = vld [vmem:[%s2287 + $0x30] sm:$0xf]
  %v2301 = vld [vmem:[%s2287 + $0x34] sm:$0xf]
  %v2302 = vld [vmem:[%s2287 + $0x38] sm:$0xf]
  %v2303 = vld [vmem:[%s2287 + $0x3c] sm:$0xf]
  %v2304 = vld [vmem:[%s2287 + $0x40] sm:$0xf]
  %v2305 = vld [vmem:[%s2287 + $0x44] sm:$0xf]
  %v2306 = vld [vmem:[%s2287 + $0x48] sm:$0xf]
  %v2307 = vld [vmem:[%s2287 + $0x4c] sm:$0xf]
  %v2308 = vld [vmem:[%s2287 + $0x50] sm:$0xf]
  %v2309 = vld [vmem:[%s2287 + $0x54] sm:$0xf]
  %v2310 = vld [vmem:[%s2287 + $0x58] sm:$0xf]
  %v2311 = vld [vmem:[%s2287 + $0x5c] sm:$0xf]
  %v2312 = vld [vmem:[%s2287 + $0x60] sm:$0xf]
  %v2313 = vld [vmem:[%s2287 + $0x64] sm:$0xf]
  %v2314 = vld [vmem:[%s2287 + $0x68] sm:$0xf]
  %v2315 = vld [vmem:[%s2287 + $0x6c] sm:$0xf]
  %v2316 = vld [vmem:[%s2287 + $0x70] sm:$0xf]
  %v2317 = vld [vmem:[%s2287 + $0x74] sm:$0xf]
  %v2318 = vld [vmem:[%s2287 + $0x78] sm:$0xf]
  %v2319 = vld [vmem:[%s2287 + $0x7c] sm:$0xf]
  %v2320 = vld [vmem:[%s2287 + $0x80] sm:$0xf]
  %v2321 = vld [vmem:[%s2287 + $0x84] sm:$0xf]
  %v2322 = vld [vmem:[%s2287 + $0x88] sm:$0xf]
  %v2323 = vld [vmem:[%s2287 + $0x8c] sm:$0xf]
  %v2324 = vld [vmem:[%s2287 + $0x90] sm:$0xf]
  %v2325 = vld [vmem:[%s2287 + $0x94] sm:$0xf]
  %v2326 = vld [vmem:[%s2287 + $0x98] sm:$0xf]
  %v2327 = vld [vmem:[%s2287 + $0x9c] sm:$0xf]
  %v2328 = vld [vmem:[%s2287 + $0xa0] sm:$0xf]
  %v2329 = vld [vmem:[%s2287 + $0xa4] sm:$0xf]
  %v2330 = vld [vmem:[%s2287 + $0xa8] sm:$0xf]
  %v2331 = vld [vmem:[%s2287 + $0xac] sm:$0xf]
  %v2332 = vld [vmem:[%s2287 + $0xb0] sm:$0xf]
  %v2333 = vld [vmem:[%s2287 + $0xb4] sm:$0xf]
  %v2334 = vld [vmem:[%s2287 + $0xb8] sm:$0xf]
  %v2335 = vld [vmem:[%s2287 + $0xbc] sm:$0xf]
  %v2336 = vld [vmem:[%s2287 + $0xc0] sm:$0xf]
  %v2337 = vld [vmem:[%s2287 + $0xc4] sm:$0xf]
  %v2338 = vld [vmem:[%s2287 + $0xc8] sm:$0xf]
  %v2339 = vld [vmem:[%s2287 + $0xcc] sm:$0xf]
  %v2340 = vld [vmem:[%s2287 + $0xd0] sm:$0xf]
  %v2341 = vld [vmem:[%s2287 + $0xd4] sm:$0xf]
  %v2342 = vld [vmem:[%s2287 + $0xd8] sm:$0xf]
  %v2343 = vld [vmem:[%s2287 + $0xdc] sm:$0xf]
  %v2344 = vld [vmem:[%s2287 + $0xe0] sm:$0xf]
  %v2345 = vld [vmem:[%s2287 + $0xe4] sm:$0xf]
  %v2346 = vld [vmem:[%s2287 + $0xe8] sm:$0xf]
  %v2347 = vld [vmem:[%s2287 + $0xec] sm:$0xf]
  %v2348 = vld [vmem:[%s2287 + $0xf0] sm:$0xf]
  %v2349 = vld [vmem:[%s2287 + $0xf4] sm:$0xf]
  %v2350 = vld [vmem:[%s2287 + $0xf8] sm:$0xf]
  %v2351 = vld [vmem:[%s2287 + $0xfc] sm:$0xf]
  %v2352 = vld [vmem:[%s2287 + $0x100] sm:$0xf]
  %v2353 = vld [vmem:[%s2287 + $0x104] sm:$0xf]
  %v2354 = vld [vmem:[%s2287 + $0x108] sm:$0xf]
  %v2355 = vld [vmem:[%s2287 + $0x10c] sm:$0xf]
  %v2356 = vld [vmem:[%s2287 + $0x110] sm:$0xf]
  %v2357 = vld [vmem:[%s2287 + $0x114] sm:$0xf]
  %v2358 = vld [vmem:[%s2287 + $0x118] sm:$0xf]
  %v2359 = vld [vmem:[%s2287 + $0x11c] sm:$0xf]
  %s2360 = scalar_lea.vmem %s4, 1
  %v2361 = vld [vmem:[%s2360] sm:$0x1]
  %s2362 = scalar_lea.vmem %s5, 144
  %v2363 = vld [vmem:[%s2362] sm:$0xf]
  %v2364 = vld [vmem:[%s2362 + $0x4] sm:$0xf]
  %v2365 = vld [vmem:[%s2362 + $0x8] sm:$0xf]
  %v2366 = vld [vmem:[%s2362 + $0xc] sm:$0xf]
  %v2367 = vld [vmem:[%s2362 + $0x10] sm:$0xf]
  %v2368 = vld [vmem:[%s2362 + $0x14] sm:$0xf]
  %v2369 = vld [vmem:[%s2362 + $0x18] sm:$0xf]
  %v2370 = vld [vmem:[%s2362 + $0x1c] sm:$0xf]
  %v2371 = vld [vmem:[%s2362 + $0x20] sm:$0xf]
  %v2372 = vld [vmem:[%s2362 + $0x24] sm:$0xf]
  %v2373 = vld [vmem:[%s2362 + $0x28] sm:$0xf]
  %v2374 = vld [vmem:[%s2362 + $0x2c] sm:$0xf]
  %v2375 = vld [vmem:[%s2362 + $0x30] sm:$0xf]
  %v2376 = vld [vmem:[%s2362 + $0x34] sm:$0xf]
  %v2377 = vld [vmem:[%s2362 + $0x38] sm:$0xf]
  %v2378 = vld [vmem:[%s2362 + $0x3c] sm:$0xf]
  %v2379 = vld [vmem:[%s2362 + $0x40] sm:$0xf]
  %v2380 = vld [vmem:[%s2362 + $0x44] sm:$0xf]
  %v2381 = vld [vmem:[%s2362 + $0x48] sm:$0xf]
  %v2382 = vld [vmem:[%s2362 + $0x4c] sm:$0xf]
  %v2383 = vld [vmem:[%s2362 + $0x50] sm:$0xf]
  %v2384 = vld [vmem:[%s2362 + $0x54] sm:$0xf]
  %v2385 = vld [vmem:[%s2362 + $0x58] sm:$0xf]
  %v2386 = vld [vmem:[%s2362 + $0x5c] sm:$0xf]
  %v2387 = vld [vmem:[%s2362 + $0x60] sm:$0xf]
  %v2388 = vld [vmem:[%s2362 + $0x64] sm:$0xf]
  %v2389 = vld [vmem:[%s2362 + $0x68] sm:$0xf]
  %v2390 = vld [vmem:[%s2362 + $0x6c] sm:$0xf]
  %v2391 = vld [vmem:[%s2362 + $0x70] sm:$0xf]
  %v2392 = vld [vmem:[%s2362 + $0x74] sm:$0xf]
  %v2393 = vld [vmem:[%s2362 + $0x78] sm:$0xf]
  %v2394 = vld [vmem:[%s2362 + $0x7c] sm:$0xf]
  %v2395 = vld [vmem:[%s2362 + $0x80] sm:$0xf]
  %v2396 = vld [vmem:[%s2362 + $0x84] sm:$0xf]
  %v2397 = vld [vmem:[%s2362 + $0x88] sm:$0xf]
  %v2398 = vld [vmem:[%s2362 + $0x8c] sm:$0xf]
  %s2399 = scalar_lea.vmem %s6, 1
  %v2400 = vld [vmem:[%s2399] sm:$0x1]
  %s2401 = scalar_lea.vmem %s7, 128
  %v2402 = vld [vmem:[%s2401] sm:$0xf]
  %v2403 = vld [vmem:[%s2401 + $0x4] sm:$0xf]
  %v2404 = vld [vmem:[%s2401 + $0x8] sm:$0xf]
  %v2405 = vld [vmem:[%s2401 + $0xc] sm:$0xf]
  %v2406 = vld [vmem:[%s2401 + $0x10] sm:$0xf]
  %v2407 = vld [vmem:[%s2401 + $0x14] sm:$0xf]
  %v2408 = vld [vmem:[%s2401 + $0x18] sm:$0xf]
  %v2409 = vld [vmem:[%s2401 + $0x1c] sm:$0xf]
  %v2410 = vld [vmem:[%s2401 + $0x20] sm:$0xf]
  %v2411 = vld [vmem:[%s2401 + $0x24] sm:$0xf]
  %v2412 = vld [vmem:[%s2401 + $0x28] sm:$0xf]
  %v2413 = vld [vmem:[%s2401 + $0x2c] sm:$0xf]
  %v2414 = vld [vmem:[%s2401 + $0x30] sm:$0xf]
  %v2415 = vld [vmem:[%s2401 + $0x34] sm:$0xf]
  %v2416 = vld [vmem:[%s2401 + $0x38] sm:$0xf]
  %v2417 = vld [vmem:[%s2401 + $0x3c] sm:$0xf]
  %v2418 = vld [vmem:[%s2401 + $0x40] sm:$0xf]
  %v2419 = vld [vmem:[%s2401 + $0x44] sm:$0xf]
  %v2420 = vld [vmem:[%s2401 + $0x48] sm:$0xf]
  %v2421 = vld [vmem:[%s2401 + $0x4c] sm:$0xf]
  %v2422 = vld [vmem:[%s2401 + $0x50] sm:$0xf]
  %v2423 = vld [vmem:[%s2401 + $0x54] sm:$0xf]
  %v2424 = vld [vmem:[%s2401 + $0x58] sm:$0xf]
  %v2425 = vld [vmem:[%s2401 + $0x5c] sm:$0xf]
  %v2426 = vld [vmem:[%s2401 + $0x60] sm:$0xf]
  %v2427 = vld [vmem:[%s2401 + $0x64] sm:$0xf]
  %v2428 = vld [vmem:[%s2401 + $0x68] sm:$0xf]
  %v2429 = vld [vmem:[%s2401 + $0x6c] sm:$0xf]
  %v2430 = vld [vmem:[%s2401 + $0x70] sm:$0xf]
  %v2431 = vld [vmem:[%s2401 + $0x74] sm:$0xf]
  %v2432 = vld [vmem:[%s2401 + $0x78] sm:$0xf]
  %v2433 = vld [vmem:[%s2401 + $0x7c] sm:$0xf]
  %s2434 = scalar_lea.vmem %s8, 1
  %v2435 = vld [vmem:[%s2434] sm:$0x1]
  %v2436 = vpack.c.bf16 %v2280, %v2279
  %v2437 = vpack.c.bf16 %v2282, %v2281
  %v2438 = vpack.c.bf16 %v2284, %v2283
  %v2439 = vpack.c.bf16 %v2286, %v2285
  %v2440 = vpack.c.bf16 %v2151, %v2150
  %v2441 = vpack.c.bf16 %v2153, %v2152
  %v2442 = vpack.c.bf16 %v2155, %v2154
  %v2443 = vpack.c.bf16 %v2157, %v2156
  %v2445 = vsel %vm177, %v2436, 0
  %v2448 = vsel %vm177, %v2437, 0
  %v2451 = vsel %vm177, %v2438, 0
  %v2454 = vsel %vm177, %v2439, 0
  %v2457 = vsel %vm177, %v2440, 0
  %v2460 = vsel %vm177, %v2441, 0
  %v2463 = vsel %vm177, %v2442, 0
  %v2466 = vsel %vm177, %v2443, 0
  %2468 = vmatprep.subr.bf16.mxu0 0
  %2469 = vmatpush1.bf16.xpose.msra.mxu0 %v2457
  %2470 = vmatprep.subr.bf16.mxu0 0
  %2471 = vmatpush1.bf16.xpose.msra.mxu0 %v2460
  %2472 = vmatprep.subr.bf16.mxu0 0
  %2473 = vmatpush1.bf16.xpose.msra.mxu0 %v2463
  %2474 = vmatprep.subr.bf16.mxu0 0
  %2475 = vmatpush1.bf16.xpose.msra.mxu0 %v2466
  %2476 = vmatprep.subr.bf16.mxu0 0
  %2477 = vmatpush1.bf16.xpose.msra.mxu0 0
  %2478 = vmatprep.subr.bf16.mxu0 0
  %2479 = vmatpush1.bf16.xpose.msra.mxu0 0
  %2480 = vmatprep.subr.bf16.mxu0 0
  %2481 = vmatpush1.bf16.xpose.msra.mxu0 0
  %2482 = vmatprep.subr.bf16.mxu0 0
  %2483 = vmatpush1.bf16.xpose.msra.mxu0 0
  %2484 = vmatprep.subr.bf16.mxu0 0
  %2485 = vmatpush1.bf16.xpose.msra.mxu0 0
  %2486 = vmatprep.subr.bf16.mxu0 0
  %2487 = vmatpush1.bf16.xpose.msra.mxu0 0
  %2488 = vmatprep.subr.bf16.mxu0 0
  %2489 = vmatpush1.bf16.xpose.msra.mxu0 0
  %2490 = vmatprep.subr.bf16.mxu0 0
  %2491 = vmatpush1.bf16.xpose.msra.mxu0 0
  %2492 = vmatprep.subr.bf16.mxu0 0
  %2493 = vmatpush1.bf16.xpose.msra.mxu0 0
  %2494 = vmatprep.subr.bf16.mxu0 0
  %2495 = vmatpush1.bf16.xpose.msra.mxu0 0
  %2496 = vmatprep.subr.bf16.mxu0 0
  %2497 = vmatpush1.bf16.xpose.msra.mxu0 0
  %2498 = vmatprep.subr.bf16.mxu0 0
  %2499 = vmatpush1.bf16.xpose.msra.mxu0 0
  %2500 = vmatprep.mubr.bf16.mxu0 0
  %2501 = vmatmul.mubr.bf16.gmra.mrb[0].mxu0 %v2445
  %v2502 = vpop.f32.mrb[0].mxu0
  %v2503 = vadd.f32 0.0, %v2502
  %v2504 = vpop.f32.mrb[0].mxu0
  %v2505 = vpop.f32.mrb[0].mxu0
  %v2506 = vadd.f32 0.0, %v2505
  %v2507 = vpop.f32.mrb[0].mxu0
  %2508 = vmatprep.mubr.bf16.mxu0 0
  %2509 = vmatmul.mubr.bf16.gmra.mrb[0].mxu0 %v2448
  %v2510 = vpop.f32.mrb[0].mxu0
  %v2511 = vadd.f32 0.0, %v2510
  %v2512 = vpop.f32.mrb[0].mxu0
  %v2513 = vpop.f32.mrb[0].mxu0
  %v2514 = vadd.f32 0.0, %v2513
  %v2515 = vpop.f32.mrb[0].mxu0
  %2516 = vmatprep.mubr.bf16.mxu0 0
  %2517 = vmatmul.mubr.bf16.gmra.mrb[0].mxu0 %v2451
  %v2518 = vpop.f32.mrb[0].mxu0
  %v2519 = vadd.f32 0.0, %v2518
  %v2520 = vpop.f32.mrb[0].mxu0
  %v2521 = vpop.f32.mrb[0].mxu0
  %v2522 = vadd.f32 0.0, %v2521
  %v2523 = vpop.f32.mrb[0].mxu0
  %2524 = vmatprep.mubr.bf16.mxu0 0
  %2525 = vmatmul.mubr.bf16.gmra.mrb[0].mxu0 %v2454
  %v2526 = vpop.f32.mrb[0].mxu0
  %v2527 = vadd.f32 0.0, %v2526
  %v2528 = vpop.f32.mrb[0].mxu0
  %v2529 = vpop.f32.mrb[0].mxu0
  %v2530 = vadd.f32 0.0, %v2529
  %v2531 = vpop.f32.mrb[0].mxu0
  %2532 = vdwg.mxu0
  %v2533 = vmax.f32 %v2503, 0.0
  %v2534 = vmax.f32 %v2506, 0.0
  %v2535 = vmax.f32 %v2511, 0.0
  %v2536 = vmax.f32 %v2514, 0.0
  %v2537 = vmax.f32 %v2519, 0.0
  %v2538 = vmax.f32 %v2522, 0.0
  %v2539 = vmax.f32 %v2527, 0.0
  %v2540 = vmax.f32 %v2530, 0.0
  %v2541 = vmul.f32 %v2533, %v2533
  %v2542 = vmul.f32 %v2534, %v2534
  %v2543 = vmul.f32 %v2535, %v2535
  %v2544 = vmul.f32 %v2536, %v2536
  %v2545 = vmul.f32 %v2537, %v2537
  %v2546 = vmul.f32 %v2538, %v2538
  %v2547 = vmul.f32 %v2539, %v2539
  %v2548 = vmul.f32 %v2540, %v2540
  %v2549 = vsel %vm623, %v2541, 0.0
  %2550 = vadd.xlane.f32.xlu0 %v2549
  %v2551 = vpop.xlane.xlu0 %2550
  %v2552 = vsel %vm623, %v2542, 0.0
  %2553 = vadd.xlane.f32.xlu0 %v2552
  %v2554 = vpop.xlane.xlu0 %2553
  %v2555 = vsel %vm623, %v2543, 0.0
  %2556 = vadd.xlane.f32.xlu0 %v2555
  %v2557 = vpop.xlane.xlu0 %2556
  %v2558 = vsel %vm623, %v2544, 0.0
  %2559 = vadd.xlane.f32.xlu0 %v2558
  %v2560 = vpop.xlane.xlu0 %2559
  %v2561 = vsel %vm623, %v2545, 0.0
  %2562 = vadd.xlane.f32.xlu0 %v2561
  %v2563 = vpop.xlane.xlu0 %2562
  %v2564 = vsel %vm623, %v2546, 0.0
  %2565 = vadd.xlane.f32.xlu0 %v2564
  %v2566 = vpop.xlane.xlu0 %2565
  %v2567 = vsel %vm623, %v2547, 0.0
  %2568 = vadd.xlane.f32.xlu0 %v2567
  %v2569 = vpop.xlane.xlu0 %2568
  %v2570 = vsel %vm623, %v2548, 0.0
  %2571 = vadd.xlane.f32.xlu0 %v2570
  %v2572 = vpop.xlane.xlu0 %2571
  %v2573 = vadd.f32 %v2551, 1e-06
  %v2574 = vadd.f32 %v2554, 1e-06
  %v2575 = vadd.f32 %v2557, 1e-06
  %v2576 = vadd.f32 %v2560, 1e-06
  %v2577 = vadd.f32 %v2563, 1e-06
  %v2578 = vadd.f32 %v2566, 1e-06
  %v2579 = vadd.f32 %v2569, 1e-06
  %v2580 = vadd.f32 %v2572, 1e-06
  %v2581 = vrsqrt.pop %v2573
  %v2582 = vrsqrt.pop %v2574
  %v2583 = vrsqrt.pop %v2575
  %v2584 = vrsqrt.pop %v2576
  %v2585 = vrsqrt.pop %v2577
  %v2586 = vrsqrt.pop %v2578
  %v2587 = vrsqrt.pop %v2579
  %v2588 = vrsqrt.pop %v2580
  %v2589 = vmul.f32 %v2533, %v2581
  %v2590 = vmul.f32 %v2534, %v2582
  %v2591 = vmul.f32 %v2535, %v2583
  %v2592 = vmul.f32 %v2536, %v2584
  %v2593 = vmul.f32 %v2537, %v2585
  %v2594 = vmul.f32 %v2538, %v2586
  %v2595 = vmul.f32 %v2539, %v2587
  %v2596 = vmul.f32 %v2540, %v2588
  %v2605 = vrot.slane %v2589, 1
  %v2606 = vrot.slane %v2590, 1
  %v2607 = vsel %vm681, %v2605, %v2606
  %v2608 = vrot.slane %v2591, 1
  %v2609 = vsel %vm681, %v2606, %v2608
  %v2610 = vrot.slane %v2592, 1
  %v2611 = vsel %vm681, %v2608, %v2610
  %v2612 = vrot.slane %v2593, 1
  %v2613 = vsel %vm681, %v2610, %v2612
  %v2614 = vrot.slane %v2594, 1
  %v2615 = vsel %vm681, %v2612, %v2614
  %v2616 = vrot.slane %v2595, 1
  %v2617 = vsel %vm681, %v2614, %v2616
  %v2618 = vrot.slane %v2596, 1
  %v2619 = vsel %vm681, %v2616, %v2618
  %v2620 = vsel %vm681, %v2618, %v697
  %2621 = vrot.lane.b32.xlu0 %v2607, 64
  %v2622 = vpop.permute.xlu0 %2621
  %2623 = vrot.lane.b32.xlu0 %v2609, 64
  %v2624 = vpop.permute.xlu0 %2623
  %2625 = vrot.lane.b32.xlu0 %v2611, 64
  %v2626 = vpop.permute.xlu0 %2625
  %2627 = vrot.lane.b32.xlu0 %v2613, 64
  %v2628 = vpop.permute.xlu0 %2627
  %2629 = vrot.lane.b32.xlu0 %v2615, 64
  %v2630 = vpop.permute.xlu0 %2629
  %2631 = vrot.lane.b32.xlu0 %v2617, 64
  %v2632 = vpop.permute.xlu0 %2631
  %2633 = vrot.lane.b32.xlu0 %v2619, 64
  %v2634 = vpop.permute.xlu0 %2633
  %2635 = vrot.lane.b32.xlu0 %v2620, 64
  %v2636 = vpop.permute.xlu0 %2635
  %v2645 = vrot.slane %v2589, 2
  %v2646 = vrot.slane %v2590, 2
  %v2647 = vsel %vm723, %v2645, %v2646
  %v2648 = vrot.slane %v2591, 2
  %v2649 = vsel %vm723, %v2646, %v2648
  %v2650 = vrot.slane %v2592, 2
  %v2651 = vsel %vm723, %v2648, %v2650
  %v2652 = vrot.slane %v2593, 2
  %v2653 = vsel %vm723, %v2650, %v2652
  %v2654 = vrot.slane %v2594, 2
  %v2655 = vsel %vm723, %v2652, %v2654
  %v2656 = vrot.slane %v2595, 2
  %v2657 = vsel %vm723, %v2654, %v2656
  %v2658 = vrot.slane %v2596, 2
  %v2659 = vsel %vm723, %v2656, %v2658
  %v2660 = vsel %vm723, %v2658, %v739
  %2669 = vrot.lane.b32.xlu0 %v2590, 64
  %v2670 = vpop.permute.xlu0 %2669
  %2671 = vrot.lane.b32.xlu0 %v2591, 64
  %v2672 = vpop.permute.xlu0 %2671
  %2673 = vrot.lane.b32.xlu0 %v2592, 64
  %v2674 = vpop.permute.xlu0 %2673
  %2675 = vrot.lane.b32.xlu0 %v2593, 64
  %v2676 = vpop.permute.xlu0 %2675
  %2677 = vrot.lane.b32.xlu0 %v2594, 64
  %v2678 = vpop.permute.xlu0 %2677
  %2679 = vrot.lane.b32.xlu0 %v2595, 64
  %v2680 = vpop.permute.xlu0 %2679
  %2681 = vrot.lane.b32.xlu0 %v2596, 64
  %v2682 = vpop.permute.xlu0 %2681
  %2697 = vrot.lane.b32.xlu0 %v2649, 64
  %v2698 = vpop.permute.xlu0 %2697
  %2699 = vrot.lane.b32.xlu0 %v2651, 64
  %v2700 = vpop.permute.xlu0 %2699
  %2701 = vrot.lane.b32.xlu0 %v2653, 64
  %v2702 = vpop.permute.xlu0 %2701
  %2703 = vrot.lane.b32.xlu0 %v2655, 64
  %v2704 = vpop.permute.xlu0 %2703
  %2705 = vrot.lane.b32.xlu0 %v2657, 64
  %v2706 = vpop.permute.xlu0 %2705
  %2707 = vrot.lane.b32.xlu0 %v2659, 64
  %v2708 = vpop.permute.xlu0 %2707
  %2709 = vrot.lane.b32.xlu0 %v2660, 64
  %v2710 = vpop.permute.xlu0 %2709
  %v2718 = vsel %vm623, %v2589, %v2622
  %v2719 = vsel %vm623, %v2590, %v2624
  %v2720 = vsel %vm623, %v2591, %v2626
  %v2721 = vsel %vm623, %v2592, %v2628
  %v2722 = vsel %vm623, %v2593, %v2630
  %v2723 = vsel %vm623, %v2594, %v2632
  %v2724 = vsel %vm623, %v2595, %v2634
  %v2725 = vsel %vm623, %v2596, %v2636
  %v2726 = vsel %vm623, %v2647, %v2670
  %v2727 = vsel %vm623, %v2649, %v2672
  %v2728 = vsel %vm623, %v2651, %v2674
  %v2729 = vsel %vm623, %v2653, %v2676
  %v2730 = vsel %vm623, %v2655, %v2678
  %v2731 = vsel %vm623, %v2657, %v2680
  %v2732 = vsel %vm623, %v2659, %v2682
  %v2733 = vsel %vm623, %v2660, %v764
  %v2734 = vsel %vm623, %v2609, %v2698
  %v2735 = vsel %vm623, %v2611, %v2700
  %v2736 = vsel %vm623, %v2613, %v2702
  %v2737 = vsel %vm623, %v2615, %v2704
  %v2738 = vsel %vm623, %v2617, %v2706
  %v2739 = vsel %vm623, %v2619, %v2708
  %v2740 = vsel %vm623, %v2620, %v2710
  %v2741 = vpack.c.bf16 %v2719, %v2718
  %v2742 = vpack.c.bf16 %v2727, %v2726
  %v2743 = vpack.c.bf16 %v2735, %v2734
  %v2744 = vpack.c.bf16 %v2721, %v2720
  %v2745 = vpack.c.bf16 %v2653, %v2651
  %v2746 = vpack.c.bf16 %v2729, %v2728
  %v2747 = vpack.c.bf16 %v2737, %v2736
  %v2748 = vpack.c.bf16 %v2723, %v2722
  %v2749 = vpack.c.bf16 %v2657, %v2655
  %v2750 = vpack.c.bf16 %v2731, %v2730
  %v2751 = vpack.c.bf16 %v2739, %v2738
  %v2752 = vpack.c.bf16 %v2725, %v2724
  %v2753 = vpack.c.bf16 %v2660, %v2659
  %v2754 = vpack.c.bf16 %v2733, %v2732
  %v2755 = vpack.c.bf16 %v834, %v2740
  %v2757 = vlaneseq
  %v2758 = vshrl.u32 %v2757, 7
  %v2759 = vsub.s32 0, %v2758
  %v2760 = vrot.slane %v2361, %v2759
  %v2834 = vunpack.c.l.b16 %v2288
  %v2835 = vunpack.c.l.b16 %v2289
  %v2836 = vunpack.c.l.b16 %v2290
  %v2837 = vunpack.c.l.b16 %v2291
  %v2838 = vunpack.c.l.b16 %v2292
  %v2839 = vunpack.c.l.b16 %v2293
  %v2840 = vunpack.c.l.b16 %v2294
  %v2841 = vunpack.c.l.b16 %v2295
  %v2842 = vunpack.c.l.b16 %v2296
  %v2843 = vunpack.c.l.b16 %v2297
  %v2844 = vunpack.c.l.b16 %v2298
  %v2845 = vunpack.c.l.b16 %v2299
  %v2846 = vunpack.c.l.b16 %v2300
  %v2847 = vunpack.c.l.b16 %v2301
  %v2848 = vunpack.c.l.b16 %v2302
  %v2849 = vunpack.c.l.b16 %v2303
  %v2850 = vunpack.c.l.b16 %v2304
  %v2851 = vunpack.c.l.b16 %v2305
  %v2852 = vunpack.c.l.b16 %v2306
  %v2853 = vunpack.c.l.b16 %v2307
  %v2854 = vunpack.c.l.b16 %v2308
  %v2855 = vunpack.c.l.b16 %v2309
  %v2856 = vunpack.c.l.b16 %v2310
  %v2857 = vunpack.c.l.b16 %v2311
  %v2858 = vunpack.c.l.b16 %v2312
  %v2859 = vunpack.c.l.b16 %v2313
  %v2860 = vunpack.c.l.b16 %v2314
  %v2861 = vunpack.c.l.b16 %v2315
  %v2862 = vunpack.c.l.b16 %v2316
  %v2863 = vunpack.c.l.b16 %v2317
  %v2864 = vunpack.c.l.b16 %v2318
  %v2865 = vunpack.c.l.b16 %v2319
  %v2866 = vunpack.c.l.b16 %v2320
  %v2867 = vunpack.c.l.b16 %v2321
  %v2868 = vunpack.c.l.b16 %v2322
  %v2869 = vunpack.c.l.b16 %v2323
  %v2870 = vunpack.c.l.b16 %v2324
  %v2871 = vunpack.c.l.b16 %v2325
  %v2872 = vunpack.c.l.b16 %v2326
  %v2873 = vunpack.c.l.b16 %v2327
  %v2874 = vunpack.c.l.b16 %v2328
  %v2875 = vunpack.c.l.b16 %v2329
  %v2876 = vunpack.c.l.b16 %v2330
  %v2877 = vunpack.c.l.b16 %v2331
  %v2878 = vunpack.c.l.b16 %v2332
  %v2879 = vunpack.c.l.b16 %v2333
  %v2880 = vunpack.c.l.b16 %v2334
  %v2881 = vunpack.c.l.b16 %v2335
  %v2882 = vunpack.c.l.b16 %v2336
  %v2883 = vunpack.c.l.b16 %v2337
  %v2884 = vunpack.c.l.b16 %v2338
  %v2885 = vunpack.c.l.b16 %v2339
  %v2886 = vunpack.c.l.b16 %v2340
  %v2887 = vunpack.c.l.b16 %v2341
  %v2888 = vunpack.c.l.b16 %v2342
  %v2889 = vunpack.c.l.b16 %v2343
  %v2890 = vunpack.c.l.b16 %v2344
  %v2891 = vunpack.c.l.b16 %v2345
  %v2892 = vunpack.c.l.b16 %v2346
  %v2893 = vunpack.c.l.b16 %v2347
  %v2894 = vunpack.c.l.b16 %v2348
  %v2895 = vunpack.c.l.b16 %v2349
  %v2896 = vunpack.c.l.b16 %v2350
  %v2897 = vunpack.c.l.b16 %v2351
  %v2898 = vunpack.c.l.b16 %v2352
  %v2899 = vunpack.c.l.b16 %v2353
  %v2900 = vunpack.c.l.b16 %v2354
  %v2901 = vunpack.c.l.b16 %v2355
  %v2902 = vunpack.c.l.b16 %v2356
  %v2903 = vunpack.c.l.b16 %v2357
  %v2904 = vunpack.c.l.b16 %v2358
  %v2905 = vunpack.c.l.b16 %v2359
  %v2906 = vpack.c.b16 %v2835, %v2834
  %v2907 = vpack.c.b16 %v2837, %v2836
  %v2908 = vpack.c.b16 %v2839, %v2838
  %v2909 = vpack.c.b16 %v2841, %v2840
  %v2910 = vpack.c.b16 %v2843, %v2842
  %v2911 = vpack.c.b16 %v2845, %v2844
  %v2912 = vpack.c.b16 %v2847, %v2846
  %v2913 = vpack.c.b16 %v2849, %v2848
  %v2914 = vpack.c.b16 %v2851, %v2850
  %v2915 = vpack.c.b16 %v2853, %v2852
  %v2916 = vpack.c.b16 %v2855, %v2854
  %v2917 = vpack.c.b16 %v2857, %v2856
  %v2918 = vpack.c.b16 %v2859, %v2858
  %v2919 = vpack.c.b16 %v2861, %v2860
  %v2920 = vpack.c.b16 %v2863, %v2862
  %v2921 = vpack.c.b16 %v2865, %v2864
  %v2922 = vpack.c.b16 %v2867, %v2866
  %v2923 = vpack.c.b16 %v2869, %v2868
  %v2924 = vpack.c.b16 %v2871, %v2870
  %v2925 = vpack.c.b16 %v2873, %v2872
  %v2926 = vpack.c.b16 %v2875, %v2874
  %v2927 = vpack.c.b16 %v2877, %v2876
  %v2928 = vpack.c.b16 %v2879, %v2878
  %v2929 = vpack.c.b16 %v2881, %v2880
  %v2930 = vpack.c.b16 %v2883, %v2882
  %v2931 = vpack.c.b16 %v2885, %v2884
  %v2932 = vpack.c.b16 %v2887, %v2886
  %v2933 = vpack.c.b16 %v2889, %v2888
  %v2934 = vpack.c.b16 %v2891, %v2890
  %v2935 = vpack.c.b16 %v2893, %v2892
  %v2936 = vpack.c.b16 %v2895, %v2894
  %v2937 = vpack.c.b16 %v2897, %v2896
  %v2938 = vpack.c.b16 %v2899, %v2898
  %v2939 = vpack.c.b16 %v2901, %v2900
  %v2940 = vpack.c.b16 %v2903, %v2902
  %v2941 = vpack.c.b16 %v2905, %v2904
  %v2979 = vsel %vm623, %v2745, 0
  %v2982 = vsel %vm623, %v2749, 0
  %v2985 = vsel %vm623, %v2753, 0
  %2987 = vmatprep.subr.bf16.mxu0 0
  %2988 = vmatpush1.bf16.msra.mxu0 %v2906
  %2989 = vmatprep.subr.bf16.mxu0 0
  %2990 = vmatpush1.bf16.msra.mxu0 %v2907
  %2991 = vmatprep.subr.bf16.mxu0 0
  %2992 = vmatpush1.bf16.msra.mxu0 %v2908
  %2993 = vmatprep.subr.bf16.mxu0 0
  %2994 = vmatpush1.bf16.msra.mxu0 %v2909
  %2995 = vmatprep.subr.bf16.mxu0 0
  %2996 = vmatpush1.bf16.msra.mxu0 %v2910
  %2997 = vmatprep.subr.bf16.mxu0 0
  %2998 = vmatpush1.bf16.msra.mxu0 %v2911
  %2999 = vmatprep.subr.bf16.mxu0 0
  %3000 = vmatpush1.bf16.msra.mxu0 %v2912
  %3001 = vmatprep.subr.bf16.mxu0 0
  %3002 = vmatpush1.bf16.msra.mxu0 %v2913
  %3003 = vmatprep.subr.bf16.mxu0 0
  %3004 = vmatpush1.bf16.msra.mxu0 %v2914
  %3005 = vmatprep.subr.bf16.mxu0 0
  %3006 = vmatpush1.bf16.msra.mxu0 %v2915
  %3007 = vmatprep.subr.bf16.mxu0 0
  %3008 = vmatpush1.bf16.msra.mxu0 %v2916
  %3009 = vmatprep.subr.bf16.mxu0 0
  %3010 = vmatpush1.bf16.msra.mxu0 %v2917
  %3011 = vmatprep.subr.bf16.mxu0 0
  %3012 = vmatpush1.bf16.msra.mxu0 %v2918
  %3013 = vmatprep.subr.bf16.mxu0 0
  %3014 = vmatpush1.bf16.msra.mxu0 %v2919
  %3015 = vmatprep.subr.bf16.mxu0 0
  %3016 = vmatpush1.bf16.msra.mxu0 %v2920
  %3017 = vmatprep.subr.bf16.mxu0 0
  %3018 = vmatpush1.bf16.msra.mxu0 %v2921
  %3019 = vmatprep.mubr.bf16.mxu0 %v2742
  %3020 = vmatmul.mubr.bf16.gmra.mrb[0].mxu0 %v2741
  %v3021 = vpop.f32.mrb[0].mxu0
  %v3022 = vadd.f32 %v2760, %v3021
  %v3023 = vpop.f32.mrb[0].mxu0
  %v3024 = vpop.f32.mrb[0].mxu0
  %v3025 = vadd.f32 %v2760, %v3024
  %v3026 = vpop.f32.mrb[0].mxu0
  %3027 = vmatprep.mubr.bf16.mxu0 %v2746
  %3028 = vmatmul.mubr.bf16.gmra.mrb[0].mxu0 %v2744
  %v3029 = vpop.f32.mrb[0].mxu0
  %v3030 = vadd.f32 %v2760, %v3029
  %v3031 = vpop.f32.mrb[0].mxu0
  %v3032 = vpop.f32.mrb[0].mxu0
  %v3033 = vadd.f32 %v2760, %v3032
  %v3034 = vpop.f32.mrb[0].mxu0
  %3035 = vmatprep.mubr.bf16.mxu0 %v2750
  %3036 = vmatmul.mubr.bf16.gmra.mrb[0].mxu0 %v2748
  %v3037 = vpop.f32.mrb[0].mxu0
  %v3038 = vadd.f32 %v2760, %v3037
  %v3039 = vpop.f32.mrb[0].mxu0
  %v3040 = vpop.f32.mrb[0].mxu0
  %v3041 = vadd.f32 %v2760, %v3040
  %v3042 = vpop.f32.mrb[0].mxu0
  %3043 = vmatprep.mubr.bf16.mxu0 %v2754
  %3044 = vmatmul.mubr.bf16.gmra.mrb[0].mxu0 %v2752
  %v3045 = vpop.f32.mrb[0].mxu0
  %v3046 = vadd.f32 %v2760, %v3045
  %v3047 = vpop.f32.mrb[0].mxu0
  %v3048 = vpop.f32.mrb[0].mxu0
  %v3049 = vadd.f32 %v2760, %v3048
  %v3050 = vpop.f32.mrb[0].mxu0
  %3051 = vdwg.mxu0
  %3052 = vmatprep.subr.bf16.mxu0 0
  %3053 = vmatpush1.bf16.msra.mxu0 %v2922
  %3054 = vmatprep.subr.bf16.mxu0 0
  %3055 = vmatpush1.bf16.msra.mxu0 %v2923
  %3056 = vmatprep.subr.bf16.mxu0 0
  %3057 = vmatpush1.bf16.msra.mxu0 %v2924
  %3058 = vmatprep.subr.bf16.mxu0 0
  %3059 = vmatpush1.bf16.msra.mxu0 %v2925
  %3060 = vmatprep.subr.bf16.mxu0 0
  %3061 = vmatpush1.bf16.msra.mxu0 %v2926
  %3062 = vmatprep.subr.bf16.mxu0 0
  %3063 = vmatpush1.bf16.msra.mxu0 %v2927
  %3064 = vmatprep.subr.bf16.mxu0 0
  %3065 = vmatpush1.bf16.msra.mxu0 %v2928
  %3066 = vmatprep.subr.bf16.mxu0 0
  %3067 = vmatpush1.bf16.msra.mxu0 %v2929
  %3068 = vmatprep.subr.bf16.mxu0 0
  %3069 = vmatpush1.bf16.msra.mxu0 %v2930
  %3070 = vmatprep.subr.bf16.mxu0 0
  %3071 = vmatpush1.bf16.msra.mxu0 %v2931
  %3072 = vmatprep.subr.bf16.mxu0 0
  %3073 = vmatpush1.bf16.msra.mxu0 %v2932
  %3074 = vmatprep.subr.bf16.mxu0 0
  %3075 = vmatpush1.bf16.msra.mxu0 %v2933
  %3076 = vmatprep.subr.bf16.mxu0 0
  %3077 = vmatpush1.bf16.msra.mxu0 %v2934
  %3078 = vmatprep.subr.bf16.mxu0 0
  %3079 = vmatpush1.bf16.msra.mxu0 %v2935
  %3080 = vmatprep.subr.bf16.mxu0 0
  %3081 = vmatpush1.bf16.msra.mxu0 %v2936
  %3082 = vmatprep.subr.bf16.mxu0 0
  %3083 = vmatpush1.bf16.msra.mxu0 %v2937
  %3084 = vmatprep.mubr.bf16.mxu0 %v2744
  %3085 = vmatmul.mubr.bf16.gmra.mrb[0].mxu0 %v2743
  %v3086 = vpop.f32.mrb[0].mxu0
  %v3087 = vadd.f32 %v3022, %v3086
  %v3088 = vpop.f32.mrb[0].mxu0
  %v3089 = vpop.f32.mrb[0].mxu0
  %v3090 = vadd.f32 %v3025, %v3089
  %v3091 = vpop.f32.mrb[0].mxu0
  %3092 = vmatprep.mubr.bf16.mxu0 %v2748
  %3093 = vmatmul.mubr.bf16.gmra.mrb[0].mxu0 %v2747
  %v3094 = vpop.f32.mrb[0].mxu0
  %v3095 = vadd.f32 %v3030, %v3094
  %v3096 = vpop.f32.mrb[0].mxu0
  %v3097 = vpop.f32.mrb[0].mxu0
  %v3098 = vadd.f32 %v3033, %v3097
  %v3099 = vpop.f32.mrb[0].mxu0
  %3100 = vmatprep.mubr.bf16.mxu0 %v2752
  %3101 = vmatmul.mubr.bf16.gmra.mrb[0].mxu0 %v2751
  %v3102 = vpop.f32.mrb[0].mxu0
  %v3103 = vadd.f32 %v3038, %v3102
  %v3104 = vpop.f32.mrb[0].mxu0
  %v3105 = vpop.f32.mrb[0].mxu0
  %v3106 = vadd.f32 %v3041, %v3105
  %v3107 = vpop.f32.mrb[0].mxu0
  %3108 = vmatprep.mubr.bf16.mxu0 %v851
  %3109 = vmatmul.mubr.bf16.gmra.mrb[0].mxu0 %v2755
  %v3110 = vpop.f32.mrb[0].mxu0
  %v3111 = vadd.f32 %v3046, %v3110
  %v3112 = vpop.f32.mrb[0].mxu0
  %v3113 = vpop.f32.mrb[0].mxu0
  %v3114 = vadd.f32 %v3049, %v3113
  %v3115 = vpop.f32.mrb[0].mxu0
  %3116 = vdwg.mxu0
  %3117 = vmatprep.subr.bf16.mxu0 0
  %3118 = vmatpush1.bf16.msra.mxu0 %v2938
  %3119 = vmatprep.subr.bf16.mxu0 0
  %3120 = vmatpush1.bf16.msra.mxu0 %v2939
  %3121 = vmatprep.subr.bf16.mxu0 0
  %3122 = vmatpush1.bf16.msra.mxu0 %v2940
  %3123 = vmatprep.subr.bf16.mxu0 0
  %3124 = vmatpush1.bf16.msra.mxu0 %v2941
  %3125 = vmatprep.subr.bf16.mxu0 0
  %3126 = vmatpush1.bf16.msra.mxu0 0
  %3127 = vmatprep.subr.bf16.mxu0 0
  %3128 = vmatpush1.bf16.msra.mxu0 0
  %3129 = vmatprep.subr.bf16.mxu0 0
  %3130 = vmatpush1.bf16.msra.mxu0 0
  %3131 = vmatprep.subr.bf16.mxu0 0
  %3132 = vmatpush1.bf16.msra.mxu0 0
  %3133 = vmatprep.subr.bf16.mxu0 0
  %3134 = vmatpush1.bf16.msra.mxu0 0
  %3135 = vmatprep.subr.bf16.mxu0 0
  %3136 = vmatpush1.bf16.msra.mxu0 0
  %3137 = vmatprep.subr.bf16.mxu0 0
  %3138 = vmatpush1.bf16.msra.mxu0 0
  %3139 = vmatprep.subr.bf16.mxu0 0
  %3140 = vmatpush1.bf16.msra.mxu0 0
  %3141 = vmatprep.subr.bf16.mxu0 0
  %3142 = vmatpush1.bf16.msra.mxu0 0
  %3143 = vmatprep.subr.bf16.mxu0 0
  %3144 = vmatpush1.bf16.msra.mxu0 0
  %3145 = vmatprep.subr.bf16.mxu0 0
  %3146 = vmatpush1.bf16.msra.mxu0 0
  %3147 = vmatprep.subr.bf16.mxu0 0
  %3148 = vmatpush1.bf16.msra.mxu0 0
  %3149 = vmatprep.mubr.bf16.mxu0 0
  %3150 = vmatmul.mubr.bf16.gmra.mrb[0].mxu0 %v2979
  %v3151 = vpop.f32.mrb[0].mxu0
  %v3152 = vadd.f32 %v3087, %v3151
  %v3153 = vpop.f32.mrb[0].mxu0
  %v3154 = vpop.f32.mrb[0].mxu0
  %v3155 = vadd.f32 %v3090, %v3154
  %v3156 = vpop.f32.mrb[0].mxu0
  %3157 = vmatprep.mubr.bf16.mxu0 0
  %3158 = vmatmul.mubr.bf16.gmra.mrb[0].mxu0 %v2982
  %v3159 = vpop.f32.mrb[0].mxu0
  %v3160 = vadd.f32 %v3095, %v3159
  %v3161 = vpop.f32.mrb[0].mxu0
  %v3162 = vpop.f32.mrb[0].mxu0
  %v3163 = vadd.f32 %v3098, %v3162
  %v3164 = vpop.f32.mrb[0].mxu0
  %3165 = vmatprep.mubr.bf16.mxu0 0
  %3166 = vmatmul.mubr.bf16.gmra.mrb[0].mxu0 %v2985
  %v3167 = vpop.f32.mrb[0].mxu0
  %v3168 = vadd.f32 %v3103, %v3167
  %v3169 = vpop.f32.mrb[0].mxu0
  %v3170 = vpop.f32.mrb[0].mxu0
  %v3171 = vadd.f32 %v3106, %v3170
  %v3172 = vpop.f32.mrb[0].mxu0
  %3173 = vmatprep.mubr.bf16.mxu0 0
  %3174 = vmatmul.mubr.bf16.gmra.mrb[0].mxu0 %v1085
  %v3175 = vpop.f32.mrb[0].mxu0
  %v3176 = vadd.f32 %v3111, %v3175
  %v3177 = vpop.f32.mrb[0].mxu0
  %v3178 = vpop.f32.mrb[0].mxu0
  %v3179 = vadd.f32 %v3114, %v3178
  %v3180 = vpop.f32.mrb[0].mxu0
  %3181 = vdwg.mxu0
  %v3182 = vmax.f32 %v3152, 0.0
  %v3183 = vmax.f32 %v3155, 0.0
  %v3184 = vmax.f32 %v3160, 0.0
  %v3185 = vmax.f32 %v3163, 0.0
  %v3186 = vmax.f32 %v3168, 0.0
  %v3187 = vmax.f32 %v3171, 0.0
  %v3188 = vmax.f32 %v3176, 0.0
  %v3189 = vmax.f32 %v3179, 0.0
  %v3198 = vrot.slane %v3182, 1
  %v3199 = vrot.slane %v3183, 1
  %v3200 = vsel %vm681, %v3198, %v3199
  %v3201 = vrot.slane %v3184, 1
  %v3202 = vsel %vm681, %v3199, %v3201
  %v3203 = vrot.slane %v3185, 1
  %v3204 = vsel %vm681, %v3201, %v3203
  %v3205 = vrot.slane %v3186, 1
  %v3206 = vsel %vm681, %v3203, %v3205
  %v3207 = vrot.slane %v3187, 1
  %v3208 = vsel %vm681, %v3205, %v3207
  %v3209 = vrot.slane %v3188, 1
  %v3210 = vsel %vm681, %v3207, %v3209
  %v3211 = vrot.slane %v3189, 1
  %v3212 = vsel %vm681, %v3209, %v3211
  %v3213 = vsel %vm681, %v3211, %v697
  %3214 = vrot.lane.b32.xlu0 %v3200, 32
  %v3215 = vpop.permute.xlu0 %3214
  %3216 = vrot.lane.b32.xlu0 %v3202, 32
  %v3217 = vpop.permute.xlu0 %3216
  %3218 = vrot.lane.b32.xlu0 %v3204, 32
  %v3219 = vpop.permute.xlu0 %3218
  %3220 = vrot.lane.b32.xlu0 %v3206, 32
  %v3221 = vpop.permute.xlu0 %3220
  %3222 = vrot.lane.b32.xlu0 %v3208, 32
  %v3223 = vpop.permute.xlu0 %3222
  %3224 = vrot.lane.b32.xlu0 %v3210, 32
  %v3225 = vpop.permute.xlu0 %3224
  %3226 = vrot.lane.b32.xlu0 %v3212, 32
  %v3227 = vpop.permute.xlu0 %3226
  %3228 = vrot.lane.b32.xlu0 %v3213, 32
  %v3229 = vpop.permute.xlu0 %3228
  %v3238 = vrot.slane %v3182, 2
  %v3239 = vrot.slane %v3183, 2
  %v3240 = vsel %vm723, %v3238, %v3239
  %v3241 = vrot.slane %v3184, 2
  %v3242 = vsel %vm723, %v3239, %v3241
  %v3243 = vrot.slane %v3185, 2
  %v3244 = vsel %vm723, %v3241, %v3243
  %v3245 = vrot.slane %v3186, 2
  %v3246 = vsel %vm723, %v3243, %v3245
  %v3247 = vrot.slane %v3187, 2
  %v3248 = vsel %vm723, %v3245, %v3247
  %v3249 = vrot.slane %v3188, 2
  %v3250 = vsel %vm723, %v3247, %v3249
  %v3251 = vrot.slane %v3189, 2
  %v3252 = vsel %vm723, %v3249, %v3251
  %v3253 = vsel %vm723, %v3251, %v739
  %3254 = vrot.lane.b32.xlu0 %v3240, 64
  %v3255 = vpop.permute.xlu0 %3254
  %3256 = vrot.lane.b32.xlu0 %v3242, 64
  %v3257 = vpop.permute.xlu0 %3256
  %3258 = vrot.lane.b32.xlu0 %v3244, 64
  %v3259 = vpop.permute.xlu0 %3258
  %3260 = vrot.lane.b32.xlu0 %v3246, 64
  %v3261 = vpop.permute.xlu0 %3260
  %3262 = vrot.lane.b32.xlu0 %v3248, 64
  %v3263 = vpop.permute.xlu0 %3262
  %3264 = vrot.lane.b32.xlu0 %v3250, 64
  %v3265 = vpop.permute.xlu0 %3264
  %3266 = vrot.lane.b32.xlu0 %v3252, 64
  %v3267 = vpop.permute.xlu0 %3266
  %3268 = vrot.lane.b32.xlu0 %v3253, 64
  %v3269 = vpop.permute.xlu0 %3268
  %3278 = vrot.lane.b32.xlu0 %v3183, 96
  %v3279 = vpop.permute.xlu0 %3278
  %3280 = vrot.lane.b32.xlu0 %v3184, 96
  %v3281 = vpop.permute.xlu0 %3280
  %3282 = vrot.lane.b32.xlu0 %v3185, 96
  %v3283 = vpop.permute.xlu0 %3282
  %3284 = vrot.lane.b32.xlu0 %v3186, 96
  %v3285 = vpop.permute.xlu0 %3284
  %3286 = vrot.lane.b32.xlu0 %v3187, 96
  %v3287 = vpop.permute.xlu0 %3286
  %3288 = vrot.lane.b32.xlu0 %v3188, 96
  %v3289 = vpop.permute.xlu0 %3288
  %3290 = vrot.lane.b32.xlu0 %v3189, 96
  %v3291 = vpop.permute.xlu0 %3290
  %3306 = vrot.lane.b32.xlu0 %v3242, 32
  %v3307 = vpop.permute.xlu0 %3306
  %3308 = vrot.lane.b32.xlu0 %v3244, 32
  %v3309 = vpop.permute.xlu0 %3308
  %3310 = vrot.lane.b32.xlu0 %v3246, 32
  %v3311 = vpop.permute.xlu0 %3310
  %3312 = vrot.lane.b32.xlu0 %v3248, 32
  %v3313 = vpop.permute.xlu0 %3312
  %3314 = vrot.lane.b32.xlu0 %v3250, 32
  %v3315 = vpop.permute.xlu0 %3314
  %3316 = vrot.lane.b32.xlu0 %v3252, 32
  %v3317 = vpop.permute.xlu0 %3316
  %3318 = vrot.lane.b32.xlu0 %v3253, 32
  %v3319 = vpop.permute.xlu0 %3318
  %3327 = vrot.lane.b32.xlu0 %v3184, 64
  %v3328 = vpop.permute.xlu0 %3327
  %3329 = vrot.lane.b32.xlu0 %v3185, 64
  %v3330 = vpop.permute.xlu0 %3329
  %3331 = vrot.lane.b32.xlu0 %v3186, 64
  %v3332 = vpop.permute.xlu0 %3331
  %3333 = vrot.lane.b32.xlu0 %v3187, 64
  %v3334 = vpop.permute.xlu0 %3333
  %3335 = vrot.lane.b32.xlu0 %v3188, 64
  %v3336 = vpop.permute.xlu0 %3335
  %3337 = vrot.lane.b32.xlu0 %v3189, 64
  %v3338 = vpop.permute.xlu0 %3337
  %3345 = vrot.lane.b32.xlu0 %v3204, 96
  %v3346 = vpop.permute.xlu0 %3345
  %3347 = vrot.lane.b32.xlu0 %v3206, 96
  %v3348 = vpop.permute.xlu0 %3347
  %3349 = vrot.lane.b32.xlu0 %v3208, 96
  %v3350 = vpop.permute.xlu0 %3349
  %3351 = vrot.lane.b32.xlu0 %v3210, 96
  %v3352 = vpop.permute.xlu0 %3351
  %3353 = vrot.lane.b32.xlu0 %v3212, 96
  %v3354 = vpop.permute.xlu0 %3353
  %3355 = vrot.lane.b32.xlu0 %v3213, 96
  %v3356 = vpop.permute.xlu0 %3355
  %v3369 = vsel %vm83, %v3182, %v3215
  %v3370 = vsel %vm83, %v3183, %v3217
  %v3371 = vsel %vm83, %v3184, %v3219
  %v3372 = vsel %vm83, %v3185, %v3221
  %v3373 = vsel %vm83, %v3186, %v3223
  %v3374 = vsel %vm83, %v3187, %v3225
  %v3375 = vsel %vm83, %v3188, %v3227
  %v3376 = vsel %vm83, %v3189, %v3229
  %v3377 = vsel %vm623, %v3369, %v3255
  %v3378 = vsel %vm623, %v3370, %v3257
  %v3379 = vsel %vm623, %v3371, %v3259
  %v3380 = vsel %vm623, %v3372, %v3261
  %v3381 = vsel %vm623, %v3373, %v3263
  %v3382 = vsel %vm623, %v3374, %v3265
  %v3383 = vsel %vm623, %v3375, %v3267
  %v3384 = vsel %vm623, %v3376, %v3269
  %v3385 = vsel %vm1494, %v3377, %v3279
  %v3386 = vsel %vm1494, %v3378, %v3281
  %v3387 = vsel %vm1494, %v3379, %v3283
  %v3388 = vsel %vm1494, %v3380, %v3285
  %v3389 = vsel %vm1494, %v3381, %v3287
  %v3390 = vsel %vm1494, %v3382, %v3289
  %v3391 = vsel %vm1494, %v3383, %v3291
  %v3392 = vsel %vm1494, %v3384, %v1393
  %v3393 = vsel %vm83, %v3202, %v3307
  %v3394 = vsel %vm83, %v3204, %v3309
  %v3395 = vsel %vm83, %v3206, %v3311
  %v3396 = vsel %vm83, %v3208, %v3313
  %v3397 = vsel %vm83, %v3210, %v3315
  %v3398 = vsel %vm83, %v3212, %v3317
  %v3399 = vsel %vm83, %v3213, %v3319
  %v3400 = vsel %vm623, %v3393, %v3328
  %v3401 = vsel %vm623, %v3394, %v3330
  %v3402 = vsel %vm623, %v3395, %v3332
  %v3403 = vsel %vm623, %v3396, %v3334
  %v3404 = vsel %vm623, %v3397, %v3336
  %v3405 = vsel %vm623, %v3398, %v3338
  %v3406 = vsel %vm623, %v3399, %v764
  %v3407 = vsel %vm1494, %v3400, %v3346
  %v3408 = vsel %vm1494, %v3401, %v3348
  %v3409 = vsel %vm1494, %v3402, %v3350
  %v3410 = vsel %vm1494, %v3403, %v3352
  %v3411 = vsel %vm1494, %v3404, %v3354
  %v3412 = vsel %vm1494, %v3405, %v3356
  %v3413 = vsel %vm1494, %v3406, %v1464
  %v3414 = vpack.c.bf16 %v3386, %v3385
  %v3415 = vpack.c.bf16 %v3408, %v3407
  %v3416 = vpack.c.bf16 %v3246, %v3244
  %v3417 = vpack.c.bf16 %v3388, %v3387
  %v3418 = vpack.c.bf16 %v3410, %v3409
  %v3419 = vpack.c.bf16 %v3250, %v3248
  %v3420 = vpack.c.bf16 %v3390, %v3389
  %v3421 = vpack.c.bf16 %v3412, %v3411
  %v3422 = vpack.c.bf16 %v3253, %v3252
  %v3423 = vpack.c.bf16 %v3392, %v3391
  %v3424 = vpack.c.bf16 %v1526, %v3413
  %v3426 = vlaneseq
  %v3427 = vshrl.u32 %v3426, 7
  %v3428 = vsub.s32 0, %v3427
  %v3429 = vrot.slane %v2400, %v3428
  %v3467 = vunpack.c.l.b16 %v2363
  %v3468 = vunpack.c.l.b16 %v2364
  %v3469 = vunpack.c.l.b16 %v2365
  %v3470 = vunpack.c.l.b16 %v2366
  %v3471 = vunpack.c.l.b16 %v2367
  %v3472 = vunpack.c.l.b16 %v2368
  %v3473 = vunpack.c.l.b16 %v2369
  %v3474 = vunpack.c.l.b16 %v2370
  %v3475 = vunpack.c.l.b16 %v2371
  %v3476 = vunpack.c.l.b16 %v2372
  %v3477 = vunpack.c.l.b16 %v2373
  %v3478 = vunpack.c.l.b16 %v2374
  %v3479 = vunpack.c.l.b16 %v2375
  %v3480 = vunpack.c.l.b16 %v2376
  %v3481 = vunpack.c.l.b16 %v2377
  %v3482 = vunpack.c.l.b16 %v2378
  %v3483 = vunpack.c.l.b16 %v2379
  %v3484 = vunpack.c.l.b16 %v2380
  %v3485 = vunpack.c.l.b16 %v2381
  %v3486 = vunpack.c.l.b16 %v2382
  %v3487 = vunpack.c.l.b16 %v2383
  %v3488 = vunpack.c.l.b16 %v2384
  %v3489 = vunpack.c.l.b16 %v2385
  %v3490 = vunpack.c.l.b16 %v2386
  %v3491 = vunpack.c.l.b16 %v2387
  %v3492 = vunpack.c.l.b16 %v2388
  %v3493 = vunpack.c.l.b16 %v2389
  %v3494 = vunpack.c.l.b16 %v2390
  %v3495 = vunpack.c.l.b16 %v2391
  %v3496 = vunpack.c.l.b16 %v2392
  %v3497 = vunpack.c.l.b16 %v2393
  %v3498 = vunpack.c.l.b16 %v2394
  %v3499 = vunpack.c.l.b16 %v2395
  %v3500 = vunpack.c.l.b16 %v2396
  %v3501 = vunpack.c.l.b16 %v2397
  %v3502 = vunpack.c.l.b16 %v2398
  %v3503 = vpack.c.b16 %v3468, %v3467
  %v3504 = vpack.c.b16 %v3470, %v3469
  %v3505 = vpack.c.b16 %v3472, %v3471
  %v3506 = vpack.c.b16 %v3474, %v3473
  %v3507 = vpack.c.b16 %v3476, %v3475
  %v3508 = vpack.c.b16 %v3478, %v3477
  %v3509 = vpack.c.b16 %v3480, %v3479
  %v3510 = vpack.c.b16 %v3482, %v3481
  %v3511 = vpack.c.b16 %v3484, %v3483
  %v3512 = vpack.c.b16 %v3486, %v3485
  %v3513 = vpack.c.b16 %v3488, %v3487
  %v3514 = vpack.c.b16 %v3490, %v3489
  %v3515 = vpack.c.b16 %v3492, %v3491
  %v3516 = vpack.c.b16 %v3494, %v3493
  %v3517 = vpack.c.b16 %v3496, %v3495
  %v3518 = vpack.c.b16 %v3498, %v3497
  %v3519 = vpack.c.b16 %v3500, %v3499
  %v3520 = vpack.c.b16 %v3502, %v3501
  %v3540 = vsel %vm83, %v3416, 0
  %v3543 = vsel %vm83, %v3419, 0
  %v3546 = vsel %vm83, %v3422, 0
  %3548 = vmatprep.subr.bf16.mxu0 0
  %3549 = vmatpush1.bf16.msra.mxu0 %v3503
  %3550 = vmatprep.subr.bf16.mxu0 0
  %3551 = vmatpush1.bf16.msra.mxu0 %v3504
  %3552 = vmatprep.subr.bf16.mxu0 0
  %3553 = vmatpush1.bf16.msra.mxu0 %v3505
  %3554 = vmatprep.subr.bf16.mxu0 0
  %3555 = vmatpush1.bf16.msra.mxu0 %v3506
  %3556 = vmatprep.subr.bf16.mxu0 0
  %3557 = vmatpush1.bf16.msra.mxu0 %v3507
  %3558 = vmatprep.subr.bf16.mxu0 0
  %3559 = vmatpush1.bf16.msra.mxu0 %v3508
  %3560 = vmatprep.subr.bf16.mxu0 0
  %3561 = vmatpush1.bf16.msra.mxu0 %v3509
  %3562 = vmatprep.subr.bf16.mxu0 0
  %3563 = vmatpush1.bf16.msra.mxu0 %v3510
  %3564 = vmatprep.subr.bf16.mxu0 0
  %3565 = vmatpush1.bf16.msra.mxu0 %v3511
  %3566 = vmatprep.subr.bf16.mxu0 0
  %3567 = vmatpush1.bf16.msra.mxu0 %v3512
  %3568 = vmatprep.subr.bf16.mxu0 0
  %3569 = vmatpush1.bf16.msra.mxu0 %v3513
  %3570 = vmatprep.subr.bf16.mxu0 0
  %3571 = vmatpush1.bf16.msra.mxu0 %v3514
  %3572 = vmatprep.subr.bf16.mxu0 0
  %3573 = vmatpush1.bf16.msra.mxu0 %v3515
  %3574 = vmatprep.subr.bf16.mxu0 0
  %3575 = vmatpush1.bf16.msra.mxu0 %v3516
  %3576 = vmatprep.subr.bf16.mxu0 0
  %3577 = vmatpush1.bf16.msra.mxu0 %v3517
  %3578 = vmatprep.subr.bf16.mxu0 0
  %3579 = vmatpush1.bf16.msra.mxu0 %v3518
  %3580 = vmatprep.mubr.bf16.mxu0 %v3415
  %3581 = vmatmul.mubr.bf16.gmra.mrb[0].mxu0 %v3414
  %v3582 = vpop.f32.mrb[0].mxu0
  %v3583 = vadd.f32 %v3429, %v3582
  %v3584 = vpop.f32.mrb[0].mxu0
  %v3585 = vpop.f32.mrb[0].mxu0
  %v3586 = vadd.f32 %v3429, %v3585
  %v3587 = vpop.f32.mrb[0].mxu0
  %3588 = vmatprep.mubr.bf16.mxu0 %v3418
  %3589 = vmatmul.mubr.bf16.gmra.mrb[0].mxu0 %v3417
  %v3590 = vpop.f32.mrb[0].mxu0
  %v3591 = vadd.f32 %v3429, %v3590
  %v3592 = vpop.f32.mrb[0].mxu0
  %v3593 = vpop.f32.mrb[0].mxu0
  %v3594 = vadd.f32 %v3429, %v3593
  %v3595 = vpop.f32.mrb[0].mxu0
  %3596 = vmatprep.mubr.bf16.mxu0 %v3421
  %3597 = vmatmul.mubr.bf16.gmra.mrb[0].mxu0 %v3420
  %v3598 = vpop.f32.mrb[0].mxu0
  %v3599 = vpop.f32.mrb[0].mxu0
  %v3600 = vpop.f32.mrb[0].mxu0
  %v3601 = vpop.f32.mrb[0].mxu0
  %3602 = vmatprep.mubr.bf16.mxu0 %v3424
  %3603 = vmatmul.mubr.bf16.gmra.mrb[0].mxu0 %v3423
  %v3604 = vpop.f32.mrb[0].mxu0
  %v3605 = vpop.f32.mrb[0].mxu0
  %v3606 = vpop.f32.mrb[0].mxu0
  %v3607 = vpop.f32.mrb[0].mxu0
  %3608 = vdwg.mxu0
  %3609 = vmatprep.subr.bf16.mxu0 0
  %3610 = vmatpush1.bf16.msra.mxu0 %v3519
  %3611 = vmatprep.subr.bf16.mxu0 0
  %3612 = vmatpush1.bf16.msra.mxu0 %v3520
  %3613 = vmatprep.subr.bf16.mxu0 0
  %3614 = vmatpush1.bf16.msra.mxu0 0
  %3615 = vmatprep.subr.bf16.mxu0 0
  %3616 = vmatpush1.bf16.msra.mxu0 0
  %3617 = vmatprep.subr.bf16.mxu0 0
  %3618 = vmatpush1.bf16.msra.mxu0 0
  %3619 = vmatprep.subr.bf16.mxu0 0
  %3620 = vmatpush1.bf16.msra.mxu0 0
  %3621 = vmatprep.subr.bf16.mxu0 0
  %3622 = vmatpush1.bf16.msra.mxu0 0
  %3623 = vmatprep.subr.bf16.mxu0 0
  %3624 = vmatpush1.bf16.msra.mxu0 0
  %3625 = vmatprep.subr.bf16.mxu0 0
  %3626 = vmatpush1.bf16.msra.mxu0 0
  %3627 = vmatprep.subr.bf16.mxu0 0
  %3628 = vmatpush1.bf16.msra.mxu0 0
  %3629 = vmatprep.subr.bf16.mxu0 0
  %3630 = vmatpush1.bf16.msra.mxu0 0
  %3631 = vmatprep.subr.bf16.mxu0 0
  %3632 = vmatpush1.bf16.msra.mxu0 0
  %3633 = vmatprep.subr.bf16.mxu0 0
  %3634 = vmatpush1.bf16.msra.mxu0 0
  %3635 = vmatprep.subr.bf16.mxu0 0
  %3636 = vmatpush1.bf16.msra.mxu0 0
  %3637 = vmatprep.subr.bf16.mxu0 0
  %3638 = vmatpush1.bf16.msra.mxu0 0
  %3639 = vmatprep.subr.bf16.mxu0 0
  %3640 = vmatpush1.bf16.msra.mxu0 0
  %3641 = vmatprep.mubr.bf16.mxu0 0
  %3642 = vmatmul.mubr.bf16.gmra.mrb[0].mxu0 %v3540
  %v3643 = vpop.f32.mrb[0].mxu0
  %v3644 = vadd.f32 %v3583, %v3643
  %v3645 = vpop.f32.mrb[0].mxu0
  %v3646 = vpop.f32.mrb[0].mxu0
  %v3647 = vadd.f32 %v3586, %v3646
  %v3648 = vpop.f32.mrb[0].mxu0
  %3649 = vmatprep.mubr.bf16.mxu0 0
  %3650 = vmatmul.mubr.bf16.gmra.mrb[0].mxu0 %v3543
  %v3651 = vpop.f32.mrb[0].mxu0
  %v3652 = vadd.f32 %v3591, %v3651
  %v3653 = vpop.f32.mrb[0].mxu0
  %v3654 = vpop.f32.mrb[0].mxu0
  %v3655 = vadd.f32 %v3594, %v3654
  %v3656 = vpop.f32.mrb[0].mxu0
  %3657 = vmatprep.mubr.bf16.mxu0 0
  %3658 = vmatmul.mubr.bf16.gmra.mrb[0].mxu0 %v3546
  %v3659 = vpop.f32.mrb[0].mxu0
  %v3660 = vpop.f32.mrb[0].mxu0
  %v3661 = vpop.f32.mrb[0].mxu0
  %v3662 = vpop.f32.mrb[0].mxu0
  %3663 = vmatprep.mubr.bf16.mxu0 0
  %3664 = vmatmul.mubr.bf16.gmra.mrb[0].mxu0 %v1661
  %v3665 = vpop.f32.mrb[0].mxu0
  %v3666 = vpop.f32.mrb[0].mxu0
  %v3667 = vpop.f32.mrb[0].mxu0
  %v3668 = vpop.f32.mrb[0].mxu0
  %3669 = vdwg.mxu0
  %v3670 = vmax.f32 %v3644, 0.0
  %v3671 = vmax.f32 %v3647, 0.0
  %v3672 = vmax.f32 %v3652, 0.0
  %v3673 = vmax.f32 %v3655, 0.0
  %v3675 = vrot.slane %v3670, 1
  %3676 = vrot.lane.b32.xlu0 %v3675, 16
  %v3677 = vpop.permute.xlu0 %3676
  %v3679 = vrot.slane %v3670, 2
  %3680 = vrot.lane.b32.xlu0 %v3679, 32
  %v3681 = vpop.permute.xlu0 %3680
  %v3683 = vrot.slane %v3670, 3
  %3684 = vrot.lane.b32.xlu0 %v3683, 48
  %v3685 = vpop.permute.xlu0 %3684
  %3688 = vrot.lane.b32.xlu0 %v3671, 64
  %v3689 = vpop.permute.xlu0 %3688
  %v3691 = vrot.slane %v3671, 1
  %3692 = vrot.lane.b32.xlu0 %v3691, 80
  %v3693 = vpop.permute.xlu0 %3692
  %v3695 = vrot.slane %v3671, 2
  %3696 = vrot.lane.b32.xlu0 %v3695, 96
  %v3697 = vpop.permute.xlu0 %3696
  %v3699 = vrot.slane %v3671, 3
  %3700 = vrot.lane.b32.xlu0 %v3699, 112
  %v3701 = vpop.permute.xlu0 %3700
  %v3704 = vrot.slane %v3672, 1
  %3705 = vrot.lane.b32.xlu0 %v3704, 16
  %v3706 = vpop.permute.xlu0 %3705
  %v3708 = vrot.slane %v3672, 2
  %3709 = vrot.lane.b32.xlu0 %v3708, 32
  %v3710 = vpop.permute.xlu0 %3709
  %v3712 = vrot.slane %v3672, 3
  %3713 = vrot.lane.b32.xlu0 %v3712, 48
  %v3714 = vpop.permute.xlu0 %3713
  %3717 = vrot.lane.b32.xlu0 %v3673, 64
  %v3718 = vpop.permute.xlu0 %3717
  %v3720 = vrot.slane %v3673, 1
  %3721 = vrot.lane.b32.xlu0 %v3720, 80
  %v3722 = vpop.permute.xlu0 %3721
  %v3724 = vrot.slane %v3673, 2
  %3725 = vrot.lane.b32.xlu0 %v3724, 96
  %v3726 = vpop.permute.xlu0 %3725
  %v3728 = vrot.slane %v3673, 3
  %3729 = vrot.lane.b32.xlu0 %v3728, 112
  %v3730 = vpop.permute.xlu0 %3729
  %v3732 = vsel %vm177, %v3670, %v3677
  %v3733 = vsel %vm83, %v3732, %v3681
  %v3734 = vsel %vm1849, %v3733, %v3685
  %v3735 = vsel %vm623, %v3734, %v3689
  %v3736 = vsel %vm1852, %v3735, %v3693
  %v3737 = vsel %vm1494, %v3736, %v3697
  %v3738 = vsel %vm1855, %v3737, %v3701
  %v3739 = vsel %vm177, %v3672, %v3706
  %v3740 = vsel %vm83, %v3739, %v3710
  %v3741 = vsel %vm1849, %v3740, %v3714
  %v3742 = vsel %vm623, %v3741, %v3718
  %v3743 = vsel %vm1852, %v3742, %v3722
  %v3744 = vsel %vm1494, %v3743, %v3726
  %v3745 = vsel %vm1855, %v3744, %v3730
  %v3746 = vpack.c.bf16 %v3738, %v3738
  %v3747 = vpack.c.bf16 %v3745, %v3745
  %v3780 = vunpack.c.l.b16 %v2402
  %v3781 = vunpack.c.l.b16 %v2403
  %v3782 = vunpack.c.l.b16 %v2404
  %v3783 = vunpack.c.l.b16 %v2405
  %v3784 = vunpack.c.l.b16 %v2406
  %v3785 = vunpack.c.l.b16 %v2407
  %v3786 = vunpack.c.l.b16 %v2408
  %v3787 = vunpack.c.l.b16 %v2409
  %v3788 = vunpack.c.l.b16 %v2410
  %v3789 = vunpack.c.l.b16 %v2411
  %v3790 = vunpack.c.l.b16 %v2412
  %v3791 = vunpack.c.l.b16 %v2413
  %v3792 = vunpack.c.l.b16 %v2414
  %v3793 = vunpack.c.l.b16 %v2415
  %v3794 = vunpack.c.l.b16 %v2416
  %v3795 = vunpack.c.l.b16 %v2417
  %v3796 = vunpack.c.l.b16 %v2418
  %v3797 = vunpack.c.l.b16 %v2419
  %v3798 = vunpack.c.l.b16 %v2420
  %v3799 = vunpack.c.l.b16 %v2421
  %v3800 = vunpack.c.l.b16 %v2422
  %v3801 = vunpack.c.l.b16 %v2423
  %v3802 = vunpack.c.l.b16 %v2424
  %v3803 = vunpack.c.l.b16 %v2425
  %v3804 = vunpack.c.l.b16 %v2426
  %v3805 = vunpack.c.l.b16 %v2427
  %v3806 = vunpack.c.l.b16 %v2428
  %v3807 = vunpack.c.l.b16 %v2429
  %v3808 = vunpack.c.l.b16 %v2430
  %v3809 = vunpack.c.l.b16 %v2431
  %v3810 = vunpack.c.l.b16 %v2432
  %v3811 = vunpack.c.l.b16 %v2433
  %v3812 = vpack.c.b16 %v3781, %v3780
  %v3813 = vpack.c.b16 %v3783, %v3782
  %v3814 = vpack.c.b16 %v3785, %v3784
  %v3815 = vpack.c.b16 %v3787, %v3786
  %v3816 = vpack.c.b16 %v3789, %v3788
  %v3817 = vpack.c.b16 %v3791, %v3790
  %v3818 = vpack.c.b16 %v3793, %v3792
  %v3819 = vpack.c.b16 %v3795, %v3794
  %v3820 = vpack.c.b16 %v3797, %v3796
  %v3821 = vpack.c.b16 %v3799, %v3798
  %v3822 = vpack.c.b16 %v3801, %v3800
  %v3823 = vpack.c.b16 %v3803, %v3802
  %v3824 = vpack.c.b16 %v3805, %v3804
  %v3825 = vpack.c.b16 %v3807, %v3806
  %v3826 = vpack.c.b16 %v3809, %v3808
  %v3827 = vpack.c.b16 %v3811, %v3810
  %3844 = vmatprep.subr.bf16.mxu0 0
  %3845 = vmatpush1.bf16.msra.mxu0 %v3812
  %3846 = vmatprep.subr.bf16.mxu0 0
  %3847 = vmatpush1.bf16.msra.mxu0 %v3813
  %3848 = vmatprep.subr.bf16.mxu0 0
  %3849 = vmatpush1.bf16.msra.mxu0 %v3814
  %3850 = vmatprep.subr.bf16.mxu0 0
  %3851 = vmatpush1.bf16.msra.mxu0 %v3815
  %3852 = vmatprep.subr.bf16.mxu0 0
  %3853 = vmatpush1.bf16.msra.mxu0 %v3816
  %3854 = vmatprep.subr.bf16.mxu0 0
  %3855 = vmatpush1.bf16.msra.mxu0 %v3817
  %3856 = vmatprep.subr.bf16.mxu0 0
  %3857 = vmatpush1.bf16.msra.mxu0 %v3818
  %3858 = vmatprep.subr.bf16.mxu0 0
  %3859 = vmatpush1.bf16.msra.mxu0 %v3819
  %3860 = vmatprep.subr.bf16.mxu0 0
  %3861 = vmatpush1.bf16.msra.mxu0 %v3820
  %3862 = vmatprep.subr.bf16.mxu0 0
  %3863 = vmatpush1.bf16.msra.mxu0 %v3821
  %3864 = vmatprep.subr.bf16.mxu0 0
  %3865 = vmatpush1.bf16.msra.mxu0 %v3822
  %3866 = vmatprep.subr.bf16.mxu0 0
  %3867 = vmatpush1.bf16.msra.mxu0 %v3823
  %3868 = vmatprep.subr.bf16.mxu0 0
  %3869 = vmatpush1.bf16.msra.mxu0 %v3824
  %3870 = vmatprep.subr.bf16.mxu0 0
  %3871 = vmatpush1.bf16.msra.mxu0 %v3825
  %3872 = vmatprep.subr.bf16.mxu0 0
  %3873 = vmatpush1.bf16.msra.mxu0 %v3826
  %3874 = vmatprep.subr.bf16.mxu0 0
  %3875 = vmatpush1.bf16.msra.mxu0 %v3827
  %3876 = vmatprep.mubr.bf16.mxu0 %v3747
  %3877 = vmatmul.mubr.bf16.gmra.mrb[0].mxu0 %v3746
  %v3878 = vpop.f32.mrb[0].mxu0
  %v3879 = vadd.f32 %v2435, %v3878
  %v3880 = vpop.f32.mrb[0].mxu0
  %v3881 = vpop.f32.mrb[0].mxu0
  %v3882 = vpop.f32.mrb[0].mxu0
  %3883 = vdwg.mxu0
  %3884 = vst.msk [vmem:[%s9 + $0x1] sm:$0x1] %vm2002, %v3879
  %3885 = vst.msk [vmem:[%s10] sm:$0xff] %vm177, %v2279
  %3886 = vst.msk [vmem:[%s10 + $0x8] sm:$0xff] %vm177, %v2280
  %3887 = vst.msk [vmem:[%s10 + $0x10] sm:$0xff] %vm177, %v2281
  %3888 = vst.msk [vmem:[%s10 + $0x18] sm:$0xff] %vm177, %v2282
  %3889 = vst.msk [vmem:[%s10 + $0x20] sm:$0xff] %vm177, %v2283
  %3890 = vst.msk [vmem:[%s10 + $0x28] sm:$0xff] %vm177, %v2284
  %3891 = vst.msk [vmem:[%s10 + $0x30] sm:$0xff] %vm177, %v2285
  %3892 = vst.msk [vmem:[%s10 + $0x38] sm:$0xff] %vm177, %v2286
  // Predicated region
  $region38: #{geo_api_forward.4} parent=0 // pred_check
    _
  $region39: #{geo_api_forward.4} parent=0 // pred_check_branch
    %3894 = sbr.rel (0) target = $region41
  $region40: #{geo_api_forward.4} parent=0 // pred_region
    _
  $region41: #{geo_api_forward.4} parent=0 // pred_fallthru
    _
  // Predicated region
  $region42: #{geo_api_forward.4} parent=0 // pred_check
    _
  $region43: #{geo_api_forward.4} parent=0 // pred_check_branch
    %3896 = sbr.rel (0) target = $region45
  $region44: #{geo_api_forward.4} parent=0 // pred_region
    _
  $region45: #{geo_api_forward.4} parent=0 // pred_fallthru
    _
  // Predicated region
  $region46: #{geo_api_forward.4} parent=0 // pred_check
    _
  $region47: #{geo_api_forward.4} parent=0 // pred_check_branch
    %3898 = sbr.rel (0) target = $region49
  $region48: #{geo_api_forward.4} parent=0 // pred_region
    _
  $region49: #{geo_api_forward.4} parent=0 // pred_fallthru
    _
  // Predicated region
  $region50: #{geo_api_forward.4} parent=0 // pred_check
    _
  $region51: #{geo_api_forward.4} parent=0 // pred_check_branch
    %3900 = sbr.rel (0) target = $region53
  $region52: #{geo_api_forward.4} parent=0 // pred_region
    _
  $region53: #{geo_api_forward.4} parent=0 // pred_fallthru
    _

</llo_original>
